<compile_context>
chip_gen: v7x
topology: tpu7x:2x2x1
jax: 0.10.0
libtpu: 0.0.40
codegen_flags: <defaults>
</compile_context>

<pallas_src>
from functools import partial

import jax
import jax.numpy as jnp
import numpy as np
from jax.experimental import pallas as pl
from jax.experimental.pallas import tpu as pltpu


# ---------------------------------------------------------------------------
# Shared attention + LSTMCell math (traced inside both kernel variants).
# ---------------------------------------------------------------------------
def _attention_lstm(emb_bf, h, c, enc_bf,
                    w_enc, b_enc, w_dec, b_dec, w_full, b_full,
                    w_ih_e, w_ih_a, w_hh, b_lstm):
  """Attention (repeat/softmax folded) + LSTMCell.  Returns (h_new, c_new)."""
  f32 = jnp.float32
  B, P, E = enc_bf.shape
  D = h.shape[1]
  A = w_enc.shape[1]
  h_bf = h.astype(jnp.bfloat16)

  # Attention on the UN-duplicated pixel axis: encoder_out.repeat(1,2,1)
  # duplicates rows, and softmax([x, x]) == tile(softmax(x)/2, 2), so only P
  # rows ever hit the MXU / relu / exp.
  wh = (jnp.dot(enc_bf.reshape(B * P, E), w_enc, preferred_element_type=f32)
        .reshape(B, P, A) + b_enc)                                 # (B, P, A)
  us = jnp.dot(h_bf, w_dec, preferred_element_type=f32) + b_dec    # (B, A)
  act = jnp.maximum(wh + us[:, None, :], 0.0)                      # relu
  # full_att: Linear(attention_dim, 1) as a lane reduction.
  form = jnp.sum(act * w_full.reshape(1, 1, A), axis=-1) + b_full  # (B, P)

  m = jnp.max(form, axis=-1, keepdims=True)
  e = jnp.exp(form - m)
  denom = jnp.sum(e, axis=-1, keepdims=True)
  # softmax over the doubled pixel axis == softmax(form) / 2 on each half.
  attn_bf = (e * pl.reciprocal(denom, approx=True) * 0.5).astype(jnp.bfloat16)

  # LSTMCell without the lane-axis concat: w_ih is pre-split into an embedding
  # part and a PRE-SUMMED attention part (w_ih_a = w_ih_att[:P] + w_ih_att[P:],
  # exact because the duplicated attention halves are identical) -> 3 matmuls.
  gates = (jnp.dot(emb_bf, w_ih_e, preferred_element_type=f32)
           + jnp.dot(attn_bf, w_ih_a, preferred_element_type=f32)
           + jnp.dot(h_bf, w_hh, preferred_element_type=f32)
           + b_lstm)                                               # (B, 4D)

  # PyTorch gate order i, f, g, o; D is a multiple of 128 so the slices are
  # lane-tile aligned.
  i_g = jax.nn.sigmoid(gates[:, 0:D])
  f_g = jax.nn.sigmoid(gates[:, D:2 * D])
  g_g = jnp.tanh(gates[:, 2 * D:3 * D])
  o_g = jax.nn.sigmoid(gates[:, 3 * D:4 * D])
  c_new = f_g * c + i_g * g_g
  h_new = o_g * jnp.tanh(c_new)
  return h_new, c_new


# ---------------------------------------------------------------------------
# Split path kernels (v7x: fc grid shards across the two TensorCores).
# ---------------------------------------------------------------------------
def attn_lstm_kernel(emb_ref, h_ref, c_ref, enc_ref,
                     w_enc_ref, b_enc_ref, w_dec_ref, b_dec_ref,
                     w_full_ref, b_full_ref,
                     w_ih_e_ref, w_ih_a_ref, w_hh_ref, b_lstm_ref,
                     h_out_ref, c_out_ref, h_bf_out_ref):
  h_new, c_new = _attention_lstm(
      emb_ref[...], h_ref[...], c_ref[...], enc_ref[...],
      w_enc_ref[...], b_enc_ref[...], w_dec_ref[...], b_dec_ref[...],
      w_full_ref[...], b_full_ref[...],
      w_ih_e_ref[...], w_ih_a_ref[...], w_hh_ref[...], b_lstm_ref[...])
  h_out_ref[...] = h_new
  c_out_ref[...] = c_new
  # bf16 copy of h for the fc kernel -> no per-vocab-tile recast downstream.
  h_bf_out_ref[...] = h_new.astype(jnp.bfloat16)


def fc_kernel(h_bf_ref, w_ref, b_ref, out_ref):
  # TODO(synk): nn.Dropout is treated as identity (inference mode); training
  # mode stochastic dropout is not reproduced here.
  out_ref[...] = (jnp.dot(h_bf_ref[...], w_ref[...],
                          preferred_element_type=jnp.float32) + b_ref[...])


# ---------------------------------------------------------------------------
# Fused path kernel (v5e/v6e: one launch, no h round trip through HBM).
# ---------------------------------------------------------------------------
def fused_kernel(emb_ref, h_ref, c_ref, enc_ref,
                 w_enc_ref, b_enc_ref, w_dec_ref, b_dec_ref,
                 w_full_ref, b_full_ref,
                 w_ih_e_ref, w_ih_a_ref, w_hh_ref, b_lstm_ref,
                 w_fc_ref, b_fc_ref,
                 scores_ref, h_out_ref, c_out_ref,
                 h_bf_scratch):
  # Attention + LSTM once, on the first vocab tile.  The h/c output blocks use
  # a constant index_map so they stay resident across the grid and the values
  # written here are flushed at the end.
  @pl.when(pl.program_id(0) == 0)
  def _():
    h_new, c_new = _attention_lstm(
        emb_ref[...], h_ref[...], c_ref[...], enc_ref[...],
        w_enc_ref[...], b_enc_ref[...], w_dec_ref[...], b_dec_ref[...],
        w_full_ref[...], b_full_ref[...],
        w_ih_e_ref[...], w_ih_a_ref[...], w_hh_ref[...], b_lstm_ref[...])
    h_out_ref[...] = h_new
    c_out_ref[...] = c_new
    h_bf_scratch[...] = h_new.astype(jnp.bfloat16)

  # fc vocab tile on every grid step (dropout = identity, see fc_kernel TODO).
  scores_ref[...] = (jnp.dot(h_bf_scratch[...], w_fc_ref[...],
                             preferred_element_type=jnp.float32)
                     + b_fc_ref[...])


# ---------------------------------------------------------------------------
# Wrapper helpers.
# ---------------------------------------------------------------------------
def _pick_fc_tile(D, V):
  """fc vocab-tile width: the largest tile whose streamed bf16 weight block is
  <= 2 MiB, preferring tiles that still leave >= 8 grid steps so the
  weight-streaming pipeline stays fed (per-step overhead ~0.35 us)."""
  candidates = [tn for tn in (128, 256, 512, 1024, 2048, 4096) if V % tn == 0]
  # TODO(synk): vocab sizes that are not multiples of 128 need w_fc padding
  # plus a masked tail tile; unsupported here.
  assert candidates, "vocab_size must be a multiple of 128"
  fitting = [tn for tn in candidates if D * tn * 2 <= 2 * 1024 * 1024]
  fitting = fitting or candidates[:1]
  deep = [tn for tn in fitting if V // tn >= 8]
  return max(deep) if deep else max(fitting)


def _prefer_fused():
  """Fuse everything into one pallas_call on single-TensorCore chips
  (v5e/v6e); keep the split on v7x so the 'parallel' fc grid can shard across
  its two TensorCores."""
  try:
    kind = jax.devices()[0].device_kind.lower()
  except Exception:
    return True
  return not any(tag in kind for tag in ("v7", "7x"))


def _step_costs(B, P, E, D, A, EMB, V):
  attn_flops = 2 * B * (P * E * A + D * A + P * A + (EMB + P + D) * 4 * D)
  attn_trans = B * (P + 6 * D)
  attn_bytes = (2 * (B * P * E + B * EMB + E * A + D * A
                     + (EMB + P + D) * 4 * D)
                + 4 * (6 * B * D + 2 * A + 8 * D + 1))
  fc_flops = 2 * B * D * V
  fc_bytes = 2 * (D * V + B * D) + 4 * (V + B * V)
  attn_cost = pl.CostEstimate(flops=attn_flops, transcendentals=attn_trans,
                              bytes_accessed=attn_bytes)
  fc_cost = pl.CostEstimate(flops=fc_flops, transcendentals=0,
                            bytes_accessed=fc_bytes)
  fused_cost = pl.CostEstimate(flops=attn_flops + fc_flops,
                               transcendentals=attn_trans,
                               bytes_accessed=attn_bytes + fc_bytes)
  return attn_cost, fc_cost, fused_cost


# ---------------------------------------------------------------------------
# Wrapper: one decode step.
# ---------------------------------------------------------------------------
def decoder_with_attention_step(emb_x, h, c, enc, kp, *, fuse=None):
  """One decode step of DecoderWithAttention.forward.

  Returns (scores (B, V), h_new (B, D), c_new (B, D))."""
  B, D = h.shape
  _, P, E = enc.shape
  assert 2 * P == E, "skeleton attention requires encoder_dim == 2*num_pixels"
  A = kp["w_enc"].shape[1]
  EMB = emb_x.shape[1]
  V = kp["w_fc"].shape[1]
  TN = _pick_fc_tile(D, V)
  if fuse is None:
    fuse = _prefer_fused()

  # bf16 ingress for the two activation inputs that only feed MXU matmuls:
  # halves their HBM->VMEM DMA and removes the in-kernel casts.
  # TODO(synk): the embedding gather (jnp.take in the caller) is kept as XLA
  # glue; a scalar-prefetch row gather would also move it into the kernel.
  emb_bf = emb_x.astype(jnp.bfloat16)
  enc_bf = enc.astype(jnp.bfloat16)

  attn_inputs = (emb_bf, h, c, enc_bf,
                 kp["w_enc"], kp["b_enc"], kp["w_dec"], kp["b_dec"],
                 kp["w_full"], kp["b_full"],
                 kp["w_ih_e"], kp["w_ih_a"], kp["w_hh"], kp["b_lstm"])
  attn_cost, fc_cost, fused_cost = _step_costs(B, P, E, D, A, EMB, V)
  # TODO(synk): for production shapes on v7x (64 MiB VMEM) the all-resident
  # attention inputs should be tiled over the pixel axis; trivial at these
  # sizes (< 2 MiB total).
  cparams = dict(vmem_limit_bytes=32 * 1024 * 1024)

  if fuse:
    # Single pallas_call: vocab-tiled grid, attention+LSTM computed once under
    # pl.when(j == 0) into VMEM scratch; 'arbitrary' because the h scratch
    # carries across grid steps.
    def _resident(x):
      shape = tuple(x.shape)
      zero = (0,) * len(shape)
      return pl.BlockSpec(shape, lambda j, _z=zero: _z)

    scores, h_new, c_new = pl.pallas_call(
        fused_kernel,
        out_shape=(jax.ShapeDtypeStruct((B, V), jnp.float32),
                   jax.ShapeDtypeStruct((B, D), jnp.float32),
                   jax.ShapeDtypeStruct((B, D), jnp.float32)),
        grid=(V // TN,),
        in_specs=[_resident(x) for x in attn_inputs]
                 + [pl.BlockSpec((D, TN), lambda j: (0, j)),
                    pl.BlockSpec((1, TN), lambda j: (0, j))],
        out_specs=(pl.BlockSpec((B, TN), lambda j: (0, j)),
                   pl.BlockSpec((B, D), lambda j: (0, 0)),
                   pl.BlockSpec((B, D), lambda j: (0, 0))),
        scratch_shapes=[pltpu.VMEM((B, D), jnp.bfloat16)],
        # h -> h_new, c -> c_new: reuse state buffers across decode steps.
        input_output_aliases={1: 1, 2: 2},
        compiler_params=pltpu.CompilerParams(
            dimension_semantics=("arbitrary",), **cparams),
        cost_estimate=fused_cost,
    )(*attn_inputs, kp["w_fc"], kp["b_fc"])
    return scores, h_new, c_new

  # Split path: gridless attention+LSTM, then a vocab-tiled fc whose grid is
  # 'parallel' so v7x shards the tiles across both TensorCores.
  vmem = pl.BlockSpec(memory_space=pltpu.MemorySpace.VMEM)
  h_new, c_new, h_bf = pl.pallas_call(
      attn_lstm_kernel,
      out_shape=(jax.ShapeDtypeStruct((B, D), jnp.float32),
                 jax.ShapeDtypeStruct((B, D), jnp.float32),
                 jax.ShapeDtypeStruct((B, D), jnp.bfloat16)),
      in_specs=[vmem] * len(attn_inputs),
      out_specs=(vmem, vmem, vmem),
      input_output_aliases={1: 0, 2: 1},
      compiler_params=pltpu.CompilerParams(**cparams),
      cost_estimate=attn_cost,
  )(*attn_inputs)

  scores = pl.pallas_call(
      fc_kernel,
      out_shape=jax.ShapeDtypeStruct((B, V), jnp.float32),
      grid=(V // TN,),
      in_specs=[pl.BlockSpec((B, D), lambda j: (0, 0)),
                pl.BlockSpec((D, TN), lambda j: (0, j)),
                pl.BlockSpec((1, TN), lambda j: (0, j))],
      out_specs=pl.BlockSpec((B, TN), lambda j: (0, j)),
      compiler_params=pltpu.CompilerParams(
          dimension_semantics=("parallel",), **cparams),
      cost_estimate=fc_cost,
  )(h_bf, kp["w_fc"], kp["b_fc"])
  return scores, h_new, c_new


# ---------------------------------------------------------------------------
# Pure-JAX reference: mirrors the PyTorch forward structure exactly
# (repeat(1,2,1), full softmax over 2P, concatenated LSTM input), with matmul
# inputs quantized to bf16 like the kernel (f32 accumulation).
# ---------------------------------------------------------------------------
def reference_forward(emb_x, h, c, enc, p):
  f32 = jnp.float32

  def mm(x, w):
    return jnp.dot(x.astype(jnp.bfloat16), w.astype(jnp.bfloat16),
                   preferred_element_type=f32)

  B, P, E = enc.shape
  D = h.shape[1]
  A = p["w_enc"].shape[1]

  # Attention (faithful to the skeleton).
  enc_rep = jnp.concatenate([enc, enc], axis=1)                      # repeat(1,2,1)
  wh = mm(enc_rep.reshape(-1, E), p["w_enc"]).reshape(B, 2 * P, A) + p["b_enc"]
  us = mm(h, p["w_dec"]) + p["b_dec"]
  act = jax.nn.relu(wh + us[:, None, :])
  form = jnp.sum(act * p["w_full"].reshape(1, 1, A), axis=-1) + p["b_full"][0, 0]
  attn = jax.nn.softmax(form, axis=1)                                # (B, 2P)

  # LSTMCell on torch.cat((embedding, attention), 1).squeeze(2).
  inp = jnp.concatenate([emb_x, attn], axis=1)
  gates = mm(inp, p["w_ih"]) + p["b_ih"] + mm(h, p["w_hh"]) + p["b_hh"]
  i_g = jax.nn.sigmoid(gates[:, :D])
  f_g = jax.nn.sigmoid(gates[:, D:2 * D])
  g_g = jnp.tanh(gates[:, 2 * D:3 * D])
  o_g = jax.nn.sigmoid(gates[:, 3 * D:])
  c_new = f_g * c + i_g * g_g
  h_new = o_g * jnp.tanh(c_new)

  scores = mm(h_new, p["w_fc"]) + p["b_fc"]                          # dropout = identity
  return scores, h_new, c_new


# ---------------------------------------------------------------------------
# Parameters.
# ---------------------------------------------------------------------------
def make_params(key, *, attention_dim, decoder_dim, embed_dim, vocab_size,
                encoder_dim):
  """Master f32 parameters, linear weights stored transposed as [in, out]."""
  ks = jax.random.split(key, 12)
  u = lambda k, shape, lim: jax.random.uniform(
      k, shape, jnp.float32, minval=-lim, maxval=lim)
  in_lstm = embed_dim + encoder_dim
  return {
      # Attention
      "w_enc": u(ks[0], (encoder_dim, attention_dim), 1.0 / np.sqrt(encoder_dim)),
      "b_enc": u(ks[1], (1, attention_dim), 1.0 / np.sqrt(encoder_dim)),
      "w_dec": u(ks[2], (decoder_dim, attention_dim), 1.0 / np.sqrt(decoder_dim)),
      "b_dec": u(ks[3], (1, attention_dim), 1.0 / np.sqrt(decoder_dim)),
      "w_full": u(ks[4], (1, attention_dim), 1.0 / np.sqrt(attention_dim)),
      "b_full": u(ks[5], (1, 1), 1.0 / np.sqrt(attention_dim)),
      # LSTMCell (PyTorch gate order i, f, g, o), stored transposed [in, 4H]
      "w_ih": u(ks[6], (in_lstm, 4 * decoder_dim), 1.0 / np.sqrt(decoder_dim)),
      "b_ih": u(ks[7], (1, 4 * decoder_dim), 1.0 / np.sqrt(decoder_dim)),
      "w_hh": u(ks[8], (decoder_dim, 4 * decoder_dim), 1.0 / np.sqrt(decoder_dim)),
      "b_hh": u(ks[9], (1, 4 * decoder_dim), 1.0 / np.sqrt(decoder_dim)),
      # fc: init_weights() -> weight U(-0.1, 0.1), bias zero
      "w_fc": u(ks[10], (decoder_dim, vocab_size), 0.1),
      "b_fc": jnp.zeros((1, vocab_size), jnp.float32),
      # Embedding table: init_weights() -> U(-0.1, 0.1)
      "embedding": u(ks[11], (vocab_size, embed_dim), 0.1),
  }


def prepare_kernel_params(p, *, embed_dim, num_pixels):
  """One-time weight preprocessing for the kernels:
  - bf16 for all matmul weights (halves HBM traffic, doubles MXU rate),
  - w_ih split into (embed | attention) pieces with the two identical
    attention halves PRE-SUMMED (one matmul instead of two, one fewer weight
    resident in VMEM),
  - LSTM biases pre-combined."""
  bf16 = jnp.bfloat16
  w_ih_e = p["w_ih"][:embed_dim]
  w_ih_a = p["w_ih"][embed_dim:]
  w_ih_a_sum = w_ih_a[:num_pixels] + w_ih_a[num_pixels:]
  return {
      "w_enc": p["w_enc"].astype(bf16), "b_enc": p["b_enc"],
      "w_dec": p["w_dec"].astype(bf16), "b_dec": p["b_dec"],
      "w_full": p["w_full"], "b_full": p["b_full"],
      "w_ih_e": w_ih_e.astype(bf16),
      "w_ih_a": w_ih_a_sum.astype(bf16),
      "w_hh": p["w_hh"].astype(bf16),
      "b_lstm": p["b_ih"] + p["b_hh"],
      "w_fc": p["w_fc"].astype(bf16), "b_fc": p["b_fc"],
  }


if __name__ == "__main__":
  # Small but lane/sublane-friendly shapes: feature dims are multiples of 128,
  # batch is a full bf16 sublane tile (16).  num_pixels must be
  # encoder_dim // 2 for the skeleton's attention broadcast to be defined.
  attention_dim = 128
  decoder_dim = 128
  embed_dim = 128
  vocab_size = 2048        # -> fc tile TN=256, 8 pipelined grid steps
  encoder_dim = 128
  num_pixels = encoder_dim // 2
  batch = 16

  key = jax.random.PRNGKey(0)
  k_param, k_word, k_h, k_c, k_enc = jax.random.split(key, 5)

  params = make_params(k_param,
                       attention_dim=attention_dim, decoder_dim=decoder_dim,
                       embed_dim=embed_dim, vocab_size=vocab_size,
                       encoder_dim=encoder_dim)
  kparams = prepare_kernel_params(params, embed_dim=embed_dim,
                                  num_pixels=num_pixels)

  word = jax.random.randint(k_word, (batch,), 0, vocab_size, dtype=jnp.int32)
  h0 = 0.1 * jax.random.normal(k_h, (batch, decoder_dim), jnp.float32)
  c0 = 0.1 * jax.random.normal(k_c, (batch, decoder_dim), jnp.float32)
  encoder_out = jax.random.normal(
      k_enc, (batch, num_pixels, encoder_dim), jnp.float32)

  # Embedding lookup (glue: the gather is not the hot path).
  emb_x = jnp.take(params["embedding"], word, axis=0)        # (B, embed_dim)

  # Pure-JAX mirror of the PyTorch forward for the cross-check.
  ref_scores, ref_h, ref_c = reference_forward(emb_x, h0, c0, encoder_out,
                                               params)

  # Exercise both code paths: the split path (default on v7x) and the fused
  # single-launch path (default on v5e/v6e).  Both are correct everywhere.
  for fuse in (False, True):
    step_fn = jax.jit(partial(decoder_with_attention_step, fuse=fuse))
    scores, h_new, c_new = step_fn(emb_x, h0, c0, encoder_out, kparams)
    jax.block_until_ready((scores, h_new, c_new))
    np.testing.assert_allclose(np.asarray(h_new), np.asarray(ref_h),
                               rtol=5e-3, atol=5e-3)
    np.testing.assert_allclose(np.asarray(c_new), np.asarray(ref_c),
                               rtol=5e-3, atol=5e-3)
    np.testing.assert_allclose(np.asarray(scores), np.asarray(ref_scores),
                               rtol=5e-3, atol=5e-3)

  print("KERNEL_OK")
</pallas_src>

<mosaic_0001>
module attributes {stable_mosaic.version = 11 : i64} {
  func.func @attn_lstm_kernel(%arg0: memref<16x128xbf16, #tpu.memory_space<vmem>>, %arg1: memref<16x128xf32, #tpu.memory_space<vmem>>, %arg2: memref<16x128xf32, #tpu.memory_space<vmem>>, %arg3: memref<16x64x128xbf16, #tpu.memory_space<vmem>>, %arg4: memref<128x128xbf16, #tpu.memory_space<vmem>>, %arg5: memref<1x128xf32, #tpu.memory_space<vmem>>, %arg6: memref<128x128xbf16, #tpu.memory_space<vmem>>, %arg7: memref<1x128xf32, #tpu.memory_space<vmem>>, %arg8: memref<1x128xf32, #tpu.memory_space<vmem>>, %arg9: memref<1x1xf32, #tpu.memory_space<vmem>>, %arg10: memref<128x512xbf16, #tpu.memory_space<vmem>>, %arg11: memref<64x512xbf16, #tpu.memory_space<vmem>>, %arg12: memref<128x512xbf16, #tpu.memory_space<vmem>>, %arg13: memref<1x512xf32, #tpu.memory_space<vmem>>, %arg14: memref<16x128xf32, #tpu.memory_space<vmem>>, %arg15: memref<16x128xf32, #tpu.memory_space<vmem>>, %arg16: memref<16x128xbf16, #tpu.memory_space<vmem>>) attributes {dimension_semantics = [], scalar_prefetch = 0 : i64, scratch_operands = 0 : i64, tpu.core_type = #tpu.core_type<tc>} {
    %c0 = arith.constant 0 : index
    %c0_0 = arith.constant 0 : index
    %0 = vector.load %arg0[%c0, %c0_0] : memref<16x128xbf16, #tpu.memory_space<vmem>>, vector<16x128xbf16>
    %c0_1 = arith.constant 0 : index
    %c0_2 = arith.constant 0 : index
    %1 = vector.load %arg1[%c0_1, %c0_2] : memref<16x128xf32, #tpu.memory_space<vmem>>, vector<16x128xf32>
    %c0_3 = arith.constant 0 : index
    %c0_4 = arith.constant 0 : index
    %2 = vector.load %arg2[%c0_3, %c0_4] : memref<16x128xf32, #tpu.memory_space<vmem>>, vector<16x128xf32>
    %c0_5 = arith.constant 0 : index
    %c0_6 = arith.constant 0 : index
    %c0_7 = arith.constant 0 : index
    %3 = vector.load %arg3[%c0_5, %c0_6, %c0_7] : memref<16x64x128xbf16, #tpu.memory_space<vmem>>, vector<16x64x128xbf16>
    %c0_8 = arith.constant 0 : index
    %c0_9 = arith.constant 0 : index
    %4 = vector.load %arg4[%c0_8, %c0_9] : memref<128x128xbf16, #tpu.memory_space<vmem>>, vector<128x128xbf16>
    %c0_10 = arith.constant 0 : index
    %c0_11 = arith.constant 0 : index
    %5 = vector.load %arg5[%c0_10, %c0_11] : memref<1x128xf32, #tpu.memory_space<vmem>>, vector<1x128xf32>
    %c0_12 = arith.constant 0 : index
    %c0_13 = arith.constant 0 : index
    %6 = vector.load %arg6[%c0_12, %c0_13] : memref<128x128xbf16, #tpu.memory_space<vmem>>, vector<128x128xbf16>
    %c0_14 = arith.constant 0 : index
    %c0_15 = arith.constant 0 : index
    %7 = vector.load %arg7[%c0_14, %c0_15] : memref<1x128xf32, #tpu.memory_space<vmem>>, vector<1x128xf32>
    %c0_16 = arith.constant 0 : index
    %c0_17 = arith.constant 0 : index
    %8 = vector.load %arg8[%c0_16, %c0_17] : memref<1x128xf32, #tpu.memory_space<vmem>>, vector<1x128xf32>
    %c0_18 = arith.constant 0 : index
    %c0_19 = arith.constant 0 : index
    %9 = vector.load %arg9[%c0_18, %c0_19] : memref<1x1xf32, #tpu.memory_space<vmem>>, vector<1x1xf32>
    %c0_20 = arith.constant 0 : index
    %c0_21 = arith.constant 0 : index
    %10 = vector.load %arg10[%c0_20, %c0_21] : memref<128x512xbf16, #tpu.memory_space<vmem>>, vector<128x512xbf16>
    %c0_22 = arith.constant 0 : index
    %c0_23 = arith.constant 0 : index
    %11 = vector.load %arg11[%c0_22, %c0_23] : memref<64x512xbf16, #tpu.memory_space<vmem>>, vector<64x512xbf16>
    %c0_24 = arith.constant 0 : index
    %c0_25 = arith.constant 0 : index
    %12 = vector.load %arg12[%c0_24, %c0_25] : memref<128x512xbf16, #tpu.memory_space<vmem>>, vector<128x512xbf16>
    %c0_26 = arith.constant 0 : index
    %c0_27 = arith.constant 0 : index
    %13 = vector.load %arg13[%c0_26, %c0_27] : memref<1x512xf32, #tpu.memory_space<vmem>>, vector<1x512xf32>
    %14 = arith.truncf %1 : vector<16x128xf32> to vector<16x128xbf16>
    %15 = vector.shape_cast %3 : vector<16x64x128xbf16> to vector<1024x128xbf16>
    %cst = arith.constant dense<0.000000e+00> : vector<1024x128xf32>
    %16 = tpu.matmul %15, %4, %cst {dimension_numbers = #tpu.dot_dimension_numbers<[1], [0], [0], [1], [0, 0, 1, 1], [], []>} : vector<1024x128xbf16>, vector<128x128xbf16>, vector<1024x128xf32> -> vector<1024x128xf32>
    %17 = vector.shape_cast %16 : vector<1024x128xf32> to vector<16x64x128xf32>
    %18 = vector.shape_cast %5 : vector<1x128xf32> to vector<1x1x128xf32>
    %19 = vector.broadcast %18 : vector<1x1x128xf32> to vector<16x64x128xf32>
    %20 = arith.addf %17, %19 : vector<16x64x128xf32>
    %cst_28 = arith.constant dense<0.000000e+00> : vector<16x128xf32>
    %21 = tpu.matmul %14, %6, %cst_28 {dimension_numbers = #tpu.dot_dimension_numbers<[1], [0], [0], [1], [0, 0, 1, 1], [], []>} : vector<16x128xbf16>, vector<128x128xbf16>, vector<16x128xf32> -> vector<16x128xf32>
    %22 = vector.broadcast %7 : vector<1x128xf32> to vector<16x128xf32>
    %23 = arith.addf %21, %22 : vector<16x128xf32>
    %24 = vector.shape_cast %23 : vector<16x128xf32> to vector<16x1x128xf32>
    %25 = vector.broadcast %24 : vector<16x1x128xf32> to vector<16x64x128xf32>
    %26 = arith.addf %20, %25 : vector<16x64x128xf32>
    %cst_29 = arith.constant 0.000000e+00 : f32
    %27 = vector.broadcast %cst_29 : f32 to vector<16x64x128xf32>
    %28 = arith.maximumf %26, %27 : vector<16x64x128xf32>
    %29 = vector.shape_cast %8 : vector<1x128xf32> to vector<1x1x128xf32>
    %30 = vector.broadcast %29 : vector<1x1x128xf32> to vector<16x64x128xf32>
    %31 = arith.mulf %28, %30 : vector<16x64x128xf32>
    %cst_30 = arith.constant dense<0.000000e+00> : vector<16x64xf32>
    %32 = vector.multi_reduction <add>, %31, %cst_30 [2] : vector<16x64x128xf32> to vector<16x64xf32>
    %33 = vector.broadcast %9 : vector<1x1xf32> to vector<16x64xf32>
    %34 = arith.addf %32, %33 : vector<16x64xf32>
    %cst_31 = arith.constant dense<0xFF800000> : vector<16xf32>
    %35 = vector.multi_reduction <maximumf>, %34, %cst_31 [1] : vector<16x64xf32> to vector<16xf32>
    %36 = vector.shape_cast %35 : vector<16xf32> to vector<16x1xf32>
    %37 = vector.broadcast %36 : vector<16x1xf32> to vector<16x64xf32>
    %38 = arith.subf %34, %37 : vector<16x64xf32>
    %39 = math.exp %38 : vector<16x64xf32>
    %cst_32 = arith.constant dense<0.000000e+00> : vector<16xf32>
    %40 = vector.multi_reduction <add>, %39, %cst_32 [1] : vector<16x64xf32> to vector<16xf32>
    %41 = vector.shape_cast %40 : vector<16xf32> to vector<16x1xf32>
    %42 = tpu.reciprocal %41 {approx = true} : vector<16x1xf32> -> vector<16x1xf32>
    %43 = vector.broadcast %42 : vector<16x1xf32> to vector<16x64xf32>
    %44 = arith.mulf %39, %43 : vector<16x64xf32>
    %cst_33 = arith.constant 5.000000e-01 : f32
    %45 = vector.broadcast %cst_33 : f32 to vector<16x64xf32>
    %46 = arith.mulf %44, %45 : vector<16x64xf32>
    %47 = arith.truncf %46 : vector<16x64xf32> to vector<16x64xbf16>
    %cst_34 = arith.constant dense<0.000000e+00> : vector<16x512xf32>
    %48 = tpu.matmul %0, %10, %cst_34 {dimension_numbers = #tpu.dot_dimension_numbers<[1], [0], [0], [1], [0, 0, 1, 1], [], []>} : vector<16x128xbf16>, vector<128x512xbf16>, vector<16x512xf32> -> vector<16x512xf32>
    %cst_35 = arith.constant dense<0.000000e+00> : vector<16x512xf32>
    %49 = tpu.matmul %47, %11, %cst_35 {dimension_numbers = #tpu.dot_dimension_numbers<[1], [0], [0], [1], [0, 0, 1, 1], [], []>} : vector<16x64xbf16>, vector<64x512xbf16>, vector<16x512xf32> -> vector<16x512xf32>
    %50 = arith.addf %48, %49 : vector<16x512xf32>
    %cst_36 = arith.constant dense<0.000000e+00> : vector<16x512xf32>
    %51 = tpu.matmul %14, %12, %cst_36 {dimension_numbers = #tpu.dot_dimension_numbers<[1], [0], [0], [1], [0, 0, 1, 1], [], []>} : vector<16x128xbf16>, vector<128x512xbf16>, vector<16x512xf32> -> vector<16x512xf32>
    %52 = arith.addf %50, %51 : vector<16x512xf32>
    %53 = vector.broadcast %13 : vector<1x512xf32> to vector<16x512xf32>
    %54 = arith.addf %52, %53 : vector<16x512xf32>
    %55 = vector.extract_strided_slice %54 {offsets = [0, 0], sizes = [16, 128], strides = [1, 1]} : vector<16x512xf32> to vector<16x128xf32>
    %56 = arith.negf %55 : vector<16x128xf32>
    %57 = math.exp %56 : vector<16x128xf32>
    %cst_37 = arith.constant 1.000000e+00 : f32
    %58 = vector.broadcast %cst_37 : f32 to vector<16x128xf32>
    %59 = arith.addf %58, %57 : vector<16x128xf32>
    %60 = arith.divf %58, %59 : vector<16x128xf32>
    %61 = vector.extract_strided_slice %54 {offsets = [0, 128], sizes = [16, 128], strides = [1, 1]} : vector<16x512xf32> to vector<16x128xf32>
    %62 = arith.negf %61 : vector<16x128xf32>
    %63 = math.exp %62 : vector<16x128xf32>
    %cst_38 = arith.constant 1.000000e+00 : f32
    %64 = vector.broadcast %cst_38 : f32 to vector<16x128xf32>
    %65 = arith.addf %64, %63 : vector<16x128xf32>
    %66 = arith.divf %64, %65 : vector<16x128xf32>
    %67 = vector.extract_strided_slice %54 {offsets = [0, 256], sizes = [16, 128], strides = [1, 1]} : vector<16x512xf32> to vector<16x128xf32>
    %68 = math.tanh %67 : vector<16x128xf32>
    %69 = vector.extract_strided_slice %54 {offsets = [0, 384], sizes = [16, 128], strides = [1, 1]} : vector<16x512xf32> to vector<16x128xf32>
    %70 = arith.negf %69 : vector<16x128xf32>
    %71 = math.exp %70 : vector<16x128xf32>
    %cst_39 = arith.constant 1.000000e+00 : f32
    %72 = vector.broadcast %cst_39 : f32 to vector<16x128xf32>
    %73 = arith.addf %72, %71 : vector<16x128xf32>
    %74 = arith.divf %72, %73 : vector<16x128xf32>
    %75 = arith.mulf %66, %2 : vector<16x128xf32>
    %76 = arith.mulf %60, %68 : vector<16x128xf32>
    %77 = arith.addf %75, %76 : vector<16x128xf32>
    %78 = math.tanh %77 : vector<16x128xf32>
    %79 = arith.mulf %74, %78 : vector<16x128xf32>
    %c0_40 = arith.constant 0 : index
    %c0_41 = arith.constant 0 : index
    %80 = vector.load %arg14[%c0_40, %c0_41] : memref<16x128xf32, #tpu.memory_space<vmem>>, vector<16x128xf32>
    tpu.vector_store %arg14[%c0_40, %c0_41], %79 {strides = array<i32>} : memref<16x128xf32, #tpu.memory_space<vmem>>, vector<16x128xf32>,
    %c0_42 = arith.constant 0 : index
    %c0_43 = arith.constant 0 : index
    %81 = vector.load %arg15[%c0_42, %c0_43] : memref<16x128xf32, #tpu.memory_space<vmem>>, vector<16x128xf32>
    tpu.vector_store %arg15[%c0_42, %c0_43], %77 {strides = array<i32>} : memref<16x128xf32, #tpu.memory_space<vmem>>, vector<16x128xf32>,
    %82 = arith.truncf %79 : vector<16x128xf32> to vector<16x128xbf16>
    %c0_44 = arith.constant 0 : index
    %c0_45 = arith.constant 0 : index
    %83 = vector.load %arg16[%c0_44, %c0_45] : memref<16x128xbf16, #tpu.memory_space<vmem>>, vector<16x128xbf16>
    tpu.vector_store %arg16[%c0_44, %c0_45], %82 {strides = array<i32>} : memref<16x128xbf16, #tpu.memory_space<vmem>>, vector<16x128xbf16>,
    return
  }
}

module attributes {stable_mosaic.version = 11 : i64} {
  func.func @fc_kernel(%arg0: i32, %arg1: memref<16x128xbf16, #tpu.memory_space<vmem>>, %arg2: memref<128x256xbf16, #tpu.memory_space<vmem>>, %arg3: memref<1x256xf32, #tpu.memory_space<vmem>>, %arg4: memref<16x256xf32, #tpu.memory_space<vmem>>) attributes {dimension_semantics = [#tpu.dimension_semantics<parallel>], iteration_bounds = array<i64: 8>, scalar_prefetch = 0 : i64, scratch_operands = 0 : i64, tpu.core_type = #tpu.core_type<tc>, window_params = [{pipeline_mode = #tpu.pipeline_mode<synchronous>, transform_indices = @transform_0, window_bounds = array<i64: 16, 128>}, {transform_indices = @transform_1, window_bounds = array<i64: 128, 256>}, {transform_indices = @transform_2, window_bounds = array<i64: 1, 256>}, {transform_indices = @transform_3, window_bounds = array<i64: 16, 256>}]} {
    %c0 = arith.constant 0 : index
    %c0_0 = arith.constant 0 : index
    %0 = vector.load %arg1[%c0, %c0_0] : memref<16x128xbf16, #tpu.memory_space<vmem>>, vector<16x128xbf16>
    %c0_1 = arith.constant 0 : index
    %c0_2 = arith.constant 0 : index
    %1 = vector.load %arg2[%c0_1, %c0_2] : memref<128x256xbf16, #tpu.memory_space<vmem>>, vector<128x256xbf16>
    %cst = arith.constant dense<0.000000e+00> : vector<16x256xf32>
    %2 = tpu.matmul %0, %1, %cst {dimension_numbers = #tpu.dot_dimension_numbers<[1], [0], [0], [1], [0, 0, 1, 1], [], []>} : vector<16x128xbf16>, vector<128x256xbf16>, vector<16x256xf32> -> vector<16x256xf32>
    %c0_3 = arith.constant 0 : index
    %c0_4 = arith.constant 0 : index
    %3 = vector.load %arg3[%c0_3, %c0_4] : memref<1x256xf32, #tpu.memory_space<vmem>>, vector<1x256xf32>
    %4 = vector.broadcast %3 : vector<1x256xf32> to vector<16x256xf32>
    %5 = arith.addf %2, %4 : vector<16x256xf32>
    %c0_5 = arith.constant 0 : index
    %c0_6 = arith.constant 0 : index
    %6 = vector.load %arg4[%c0_5, %c0_6] : memref<16x256xf32, #tpu.memory_space<vmem>>, vector<16x256xf32>
    tpu.vector_store %arg4[%c0_5, %c0_6], %5 {strides = array<i32>} : memref<16x256xf32, #tpu.memory_space<vmem>>, vector<16x256xf32>,
    return
  }
  func.func @transform_0(%arg0: i32) -> (i32, i32) {
    %c0_i32 = arith.constant 0 : i32
    %c0_i32_0 = arith.constant 0 : i32
    %c0_i32_1 = arith.constant 0 : i32
    return %c0_i32, %c0_i32_0 : i32, i32
  }
  func.func @transform_1(%arg0: i32) -> (i32, i32) {
    %c0_i32 = arith.constant 0 : i32
    %c0_i32_0 = arith.constant 0 : i32
    return %c0_i32, %arg0 : i32, i32
  }
  func.func @transform_2(%arg0: i32) -> (i32, i32) {
    %c0_i32 = arith.constant 0 : i32
    %c0_i32_0 = arith.constant 0 : i32
    return %c0_i32, %arg0 : i32, i32
  }
  func.func @transform_3(%arg0: i32) -> (i32, i32) {
    %c0_i32 = arith.constant 0 : i32
    %c0_i32_0 = arith.constant 0 : i32
    return %c0_i32, %arg0 : i32, i32
  }
}

</mosaic_0001>

<llo_original>
// kernel: decoder_with_attention_step.3
$region0: #{decoder_with_attention_step.3}
  #allocation0 [shape = 'u32[]', space=smem, size = 0x4, offset = 0x4, fixed_abs, tag = 'smem constant byte address 0x4 - core index']
  #allocation1 [shape = 'u32[144,128]{1,0:T(1,128)}', space=vmem, size = 0x12000, scoped, tag = 'internal scratch']
  %s0 = inlined_call_operand.vmem [shape: bf16[16,128], index: 0, kind: input, shape index: {}]
  %s1 = inlined_call_operand.vmem [shape: bf16[128,2048], index: 1, kind: input, shape index: {}]
  %s2 = inlined_call_operand.vmem [shape: f32[1,2048], index: 2, kind: input, shape index: {}]
  %s3 = inlined_call_operand.hbm [shape: f32[16,2048], index: 3, kind: output, shape index: {}]
  %s4 = sld [smem:[#allocation0]]
  $region83: #{decoder_with_attention_step.3} parent=0
    _
  %s6 = ssub.s32 1, %s4
  %s7 = scalar_select 0, %s6, %s4
  $region1: #{decoder_with_attention_step.3} parent=0
    #allocation2 [shape = 'u8[131072]{0}', space=vmem, size = 0x20000, scoped, tag = 'input window, operand 1']
    #allocation3 [shape = 'u8[32768]{0}', space=vmem, size = 0x8000, scoped, tag = 'output window, operand 0']
    #allocation4 [shape = 's32[2]{0}', space=sflag, size = 0x8, scoped, tag = 'scoped memory for decoder_with_attention_step.3']
    %8 = vsyncpa [#allocation4], 0
    %s9 = scalar_lea.sflag [#allocation4], 1
    %10 = vsyncpa %s9, 0
    loop: start=0, step=1, limit=10
    $region2: #{decoder_with_attention_step.3} parent=1 // loop_pre_header
      _
    $region3: #{decoder_with_attention_step.3} parent=1 // loop_header
      %s12 = sphi 0, %s16
      %p13 = scmp.ge.s32.totalorder %s12, 10
      %s20 = sphi 0, %s20
      %s22 = sphi 0, %s20
      %s23 = sphi 0, %s22
      %s37 = sphi 0, %s23
      %s43 = sphi 0, %s45
      %s46 = sphi 0, %s43
      %s47 = sphi 0, %s46
      %s63 = sphi 0, %s47
      %s69 = sphi 0, %s71
      %s72 = sphi 0, %s69
      %s73 = sphi 0, %s72
      %s89 = sphi 0, %s73
      %s95 = sphi 0, %s97
      %s98 = sphi 0, %s95
      %s99 = sphi 0, %s98
      %s115 = sphi 0, %s99
    $region4: #{decoder_with_attention_step.3} parent=1 // loop_header_branch
      %15 = sbr.rel (%p13) target = $region8
    $region5: #{decoder_with_attention_step.3} parent=1 // loop_body
      %s17 = ssub.s32 %s12, 1
      %s18 = ssub.s32 %s12, 2
      %s19 = sadd.s32 %s12, 1
      %s21 = sadd.s32 %s20, 1
      %p24 = scmp.eq.s32.totalorder %s12, 7
      %p25 = scmp.ne.s32.totalorder %s20, %s22
      %p26 = scmp.eq.s32.totalorder %s12, 0
      %p27 = por %p25, %p26
      %p28 = scmp.ne.s32.totalorder %s20, %s22
      %p29 = scmp.eq.s32.totalorder %s17, 7
      %p30 = por %p28, %p29
      %p31 = scmp.ne.s32.totalorder %s22, %s23
      %p32 = scmp.eq.s32.totalorder %s17, 0
      %p33 = por %p31, %p32
      %p34 = scmp.ne.s32.totalorder %s22, %s23
      %p35 = scmp.eq.s32.totalorder %s18, 7
      %p36 = por %p34, %p35
      %p38 = scmp.ne.s32.totalorder %s23, %s37
      %p39 = scmp.eq.s32.totalorder %s18, 0
      %p40 = por %p38, %p39
      %s41 = ssub.s32 %s12, %s19
      %p42 = scmp.eq.s32.totalorder %s41, 0
      %s44 = sadd.s32 %s43, 1
      %s45 = scalar_select %p42, %s43, %s44
      %p48 = pneg %p42
      %p49 = scmp.eq.s32.totalorder %s12, 7
      %p50 = por %p48, %p49
      %p51 = scmp.ne.s32.totalorder %s43, %s46
      %p52 = scmp.eq.s32.totalorder %s12, 0
      %p53 = por %p51, %p52
      %p54 = scmp.ne.s32.totalorder %s43, %s46
      %p55 = scmp.eq.s32.totalorder %s17, 7
      %p56 = por %p54, %p55
      %p57 = scmp.ne.s32.totalorder %s46, %s47
      %p58 = scmp.eq.s32.totalorder %s17, 0
      %p59 = por %p57, %p58
      %p60 = scmp.ne.s32.totalorder %s46, %s47
      %p61 = scmp.eq.s32.totalorder %s18, 7
      %p62 = por %p60, %p61
      %p64 = scmp.ne.s32.totalorder %s47, %s63
      %p65 = scmp.eq.s32.totalorder %s18, 0
      %p66 = por %p64, %p65
      %s67 = ssub.s32 %s12, %s19
      %p68 = scmp.eq.s32.totalorder %s67, 0
      %s70 = sadd.s32 %s69, 1
      %s71 = scalar_select %p68, %s69, %s70
      %p74 = pneg %p68
      %p75 = scmp.eq.s32.totalorder %s12, 7
      %p76 = por %p74, %p75
      %p77 = scmp.ne.s32.totalorder %s69, %s72
      %p78 = scmp.eq.s32.totalorder %s12, 0
      %p79 = por %p77, %p78
      %p80 = scmp.ne.s32.totalorder %s69, %s72
      %p81 = scmp.eq.s32.totalorder %s17, 7
      %p82 = por %p80, %p81
      %p83 = scmp.ne.s32.totalorder %s72, %s73
      %p84 = scmp.eq.s32.totalorder %s17, 0
      %p85 = por %p83, %p84
      %p86 = scmp.ne.s32.totalorder %s72, %s73
      %p87 = scmp.eq.s32.totalorder %s18, 7
      %p88 = por %p86, %p87
      %p90 = scmp.ne.s32.totalorder %s73, %s89
      %p91 = scmp.eq.s32.totalorder %s18, 0
      %p92 = por %p90, %p91
      %s93 = ssub.s32 %s12, %s19
      %p94 = scmp.eq.s32.totalorder %s93, 0
      %s96 = sadd.s32 %s95, 1
      %s97 = scalar_select %p94, %s95, %s96
      %p100 = pneg %p94
      %p101 = scmp.eq.s32.totalorder %s12, 7
      %p102 = por %p100, %p101
      %p103 = scmp.ne.s32.totalorder %s95, %s98
      %p104 = scmp.eq.s32.totalorder %s12, 0
      %p105 = por %p103, %p104
      %p106 = scmp.ne.s32.totalorder %s95, %s98
      %p107 = scmp.eq.s32.totalorder %s17, 7
      %p108 = por %p106, %p107
      %p109 = scmp.ne.s32.totalorder %s98, %s99
      %p110 = scmp.eq.s32.totalorder %s17, 0
      %p111 = por %p109, %p110
      %p112 = scmp.ne.s32.totalorder %s98, %s99
      %p113 = scmp.eq.s32.totalorder %s18, 7
      %p114 = por %p112, %p113
      %p116 = scmp.ne.s32.totalorder %s99, %s115
      %p117 = scmp.eq.s32.totalorder %s18, 0
      %p118 = por %p116, %p117
      %p119 = scmp.le.s32.totalorder 1, %s12
      %p120 = scmp.lt.s32.totalorder %s12, 9
      %p121 = pnand %p119, %p120
      %p122 = pneg %p121
      // Predicated region
      $region9: #{decoder_with_attention_step.3} parent=5 // pred_check
        _
      $region10: #{decoder_with_attention_step.3} parent=5 // pred_check_branch
        %124 = sbr.rel (%p121) target = $region12
      $region11: #{decoder_with_attention_step.3} parent=5 // pred_region
        %s125 = ssub.s32 %s12, 1
        // Predicated region
        $region13: #{decoder_with_attention_step.3} parent=11 // pred_check
          %p126 = pneg %p33
        $region14: #{decoder_with_attention_step.3} parent=11 // pred_check_branch
          %128 = sbr.rel (%p126) target = $region16
        $region15: #{decoder_with_attention_step.3} parent=11 // pred_region
          _
        $region16: #{decoder_with_attention_step.3} parent=11 // pred_fallthru
          _
      $region12: #{decoder_with_attention_step.3} parent=5 // pred_fallthru
        _
      %p129 = scmp.lt.s32.totalorder %s12, 8
      // Predicated region
      $region17: #{decoder_with_attention_step.3} parent=5 // pred_check
        %p130 = pneg %p129
      $region18: #{decoder_with_attention_step.3} parent=5 // pred_check_branch
        %132 = sbr.rel (%p130) target = $region20
      $region19: #{decoder_with_attention_step.3} parent=5 // pred_region
        // Predicated region
        $region21: #{decoder_with_attention_step.3} parent=19 // pred_check
          %p133 = pneg %p53
        $region22: #{decoder_with_attention_step.3} parent=19 // pred_check_branch
          %135 = sbr.rel (%p133) target = $region24
        $region23: #{decoder_with_attention_step.3} parent=19 // pred_region
          %s136 = sand.u32 %s43, 1
          %s137 = sand.u32 %s43, 1
          %s138 = smul.addr %s137, 128
          %s139 = scalar_lea.vmem [#allocation2], %s138
          %s140 = smul.u32 2, %s12
          %s141 = smul.addr %s140, 4
          %s142 = scalar_lea.vmem %s1, %s141
          // Predicated region
          $region25: #{decoder_with_attention_step.3} parent=23 // pred_check
            _
          $region26: #{decoder_with_attention_step.3} parent=23 // pred_check_branch
            %144 = sbr.rel (0) target = $region28
          $region27: #{decoder_with_attention_step.3} parent=23 // pred_region
            // Predicated region
            $region29: #{decoder_with_attention_step.3} parent=27 // pred_check
              _
            $region30: #{decoder_with_attention_step.3} parent=27 // pred_check_branch
              %146 = sbr.rel (0) target = $region32
            $region31: #{decoder_with_attention_step.3} parent=27 // pred_region
              // Predicated region
              $region44: #{decoder_with_attention_step.3} parent=31 // pred_check
                _
              $region45: #{decoder_with_attention_step.3} parent=31 // pred_check_branch
                %191 = sbr.rel (0) target = $region47
              $region46: #{decoder_with_attention_step.3} parent=31 // pred_region
                loop: start=0, step=1, limit=1
                $region48: #{decoder_with_attention_step.3} parent=46 // loop_pre_header
                  _
                $region49: #{decoder_with_attention_step.3} parent=46 // loop_header
                  %s193 = sphi 0, %s197
                  %p194 = scmp.ge.s32.totalorder %s193, 1
                  %s198 = sphi %s142, %s142
                  %s199 = sphi %s139, %s139
                $region50: #{decoder_with_attention_step.3} parent=46 // loop_header_branch
                  %196 = sbr.rel (%p194) target = $region54
                $region51: #{decoder_with_attention_step.3} parent=46 // loop_body
                  %v200 = vld [vmem:[%s198] sm:$0xff]
                  %201 = vst [vmem:[%s199] sm:$0xff] %v200
                  %v202 = vld [vmem:[%s198 + $0x40] sm:$0xff]
                  %203 = vst [vmem:[%s199 + $0x8] sm:$0xff] %v202
                  %v204 = vld [vmem:[%s198 + $0x80] sm:$0xff]
                  %205 = vst [vmem:[%s199 + $0x10] sm:$0xff] %v204
                  %v206 = vld [vmem:[%s198 + $0xc0] sm:$0xff]
                  %207 = vst [vmem:[%s199 + $0x18] sm:$0xff] %v206
                  %v208 = vld [vmem:[%s198 + $0x100] sm:$0xff]
                  %209 = vst [vmem:[%s199 + $0x20] sm:$0xff] %v208
                  %v210 = vld [vmem:[%s198 + $0x140] sm:$0xff]
                  %211 = vst [vmem:[%s199 + $0x28] sm:$0xff] %v210
                  %v212 = vld [vmem:[%s198 + $0x180] sm:$0xff]
                  %213 = vst [vmem:[%s199 + $0x30] sm:$0xff] %v212
                  %v214 = vld [vmem:[%s198 + $0x1c0] sm:$0xff]
                  %215 = vst [vmem:[%s199 + $0x38] sm:$0xff] %v214
                  %v216 = vld [vmem:[%s198 + $0x200] sm:$0xff]
                  %217 = vst [vmem:[%s199 + $0x40] sm:$0xff] %v216
                  %v218 = vld [vmem:[%s198 + $0x240] sm:$0xff]
                  %219 = vst [vmem:[%s199 + $0x48] sm:$0xff] %v218
                  %v220 = vld [vmem:[%s198 + $0x280] sm:$0xff]
                  %221 = vst [vmem:[%s199 + $0x50] sm:$0xff] %v220
                  %v222 = vld [vmem:[%s198 + $0x2c0] sm:$0xff]
                  %223 = vst [vmem:[%s199 + $0x58] sm:$0xff] %v222
                  %v224 = vld [vmem:[%s198 + $0x300] sm:$0xff]
                  %225 = vst [vmem:[%s199 + $0x60] sm:$0xff] %v224
                  %v226 = vld [vmem:[%s198 + $0x340] sm:$0xff]
                  %227 = vst [vmem:[%s199 + $0x68] sm:$0xff] %v226
                  %v228 = vld [vmem:[%s198 + $0x380] sm:$0xff]
                  %229 = vst [vmem:[%s199 + $0x70] sm:$0xff] %v228
                  %v230 = vld [vmem:[%s198 + $0x3c0] sm:$0xff]
                  %231 = vst [vmem:[%s199 + $0x78] sm:$0xff] %v230
                $region52: #{decoder_with_attention_step.3} parent=46 // loop_footer
                  %s197 = sadd.s32 1, %s193
                $region53: #{decoder_with_attention_step.3} parent=46 // loop_footer_branch
                  %192 = sbr.rel target = $region49
                $region54: #{decoder_with_attention_step.3} parent=46 // loop_exit
                  _
              $region47: #{decoder_with_attention_step.3} parent=31 // pred_fallthru
                _
              // Predicated region
              $region55: #{decoder_with_attention_step.3} parent=31 // pred_check
                _
              $region56: #{decoder_with_attention_step.3} parent=31 // pred_check_branch
                %233 = sbr.rel target = $region58
              $region57: #{decoder_with_attention_step.3} parent=31 // pred_region
                _
              $region58: #{decoder_with_attention_step.3} parent=31 // pred_fallthru
                _
            $region32: #{decoder_with_attention_step.3} parent=27 // pred_fallthru
              _
            // Predicated region
            $region33: #{decoder_with_attention_step.3} parent=27 // pred_check
              _
            $region34: #{decoder_with_attention_step.3} parent=27 // pred_check_branch
              %148 = sbr.rel target = $region36
            $region35: #{decoder_with_attention_step.3} parent=27 // pred_region
              loop: start=0, step=1, limit=1
              $region37: #{decoder_with_attention_step.3} parent=35 // loop_pre_header
                _
              $region38: #{decoder_with_attention_step.3} parent=35 // loop_header
                %s151 = sphi 0, %s155
                %p152 = scmp.ge.s32.totalorder %s151, 1
                %s156 = sphi %s142, %s142
                %s157 = sphi %s139, %s139
              $region39: #{decoder_with_attention_step.3} parent=35 // loop_header_branch
                %154 = sbr.rel (%p152) target = $region43
              $region40: #{decoder_with_attention_step.3} parent=35 // loop_body
                %v158 = vld [vmem:[%s156] sm:$0xff]
                %159 = vst [vmem:[%s157] sm:$0xff] %v158
                %v160 = vld [vmem:[%s156 + $0x40] sm:$0xff]
                %161 = vst [vmem:[%s157 + $0x8] sm:$0xff] %v160
                %v162 = vld [vmem:[%s156 + $0x80] sm:$0xff]
                %163 = vst [vmem:[%s157 + $0x10] sm:$0xff] %v162
                %v164 = vld [vmem:[%s156 + $0xc0] sm:$0xff]
                %165 = vst [vmem:[%s157 + $0x18] sm:$0xff] %v164
                %v166 = vld [vmem:[%s156 + $0x100] sm:$0xff]
                %167 = vst [vmem:[%s157 + $0x20] sm:$0xff] %v166
                %v168 = vld [vmem:[%s156 + $0x140] sm:$0xff]
                %169 = vst [vmem:[%s157 + $0x28] sm:$0xff] %v168
                %v170 = vld [vmem:[%s156 + $0x180] sm:$0xff]
                %171 = vst [vmem:[%s157 + $0x30] sm:$0xff] %v170
                %v172 = vld [vmem:[%s156 + $0x1c0] sm:$0xff]
                %173 = vst [vmem:[%s157 + $0x38] sm:$0xff] %v172
                %v174 = vld [vmem:[%s156 + $0x200] sm:$0xff]
                %175 = vst [vmem:[%s157 + $0x40] sm:$0xff] %v174
                %v176 = vld [vmem:[%s156 + $0x240] sm:$0xff]
                %177 = vst [vmem:[%s157 + $0x48] sm:$0xff] %v176
                %v178 = vld [vmem:[%s156 + $0x280] sm:$0xff]
                %179 = vst [vmem:[%s157 + $0x50] sm:$0xff] %v178
                %v180 = vld [vmem:[%s156 + $0x2c0] sm:$0xff]
                %181 = vst [vmem:[%s157 + $0x58] sm:$0xff] %v180
                %v182 = vld [vmem:[%s156 + $0x300] sm:$0xff]
                %183 = vst [vmem:[%s157 + $0x60] sm:$0xff] %v182
                %v184 = vld [vmem:[%s156 + $0x340] sm:$0xff]
                %185 = vst [vmem:[%s157 + $0x68] sm:$0xff] %v184
                %v186 = vld [vmem:[%s156 + $0x380] sm:$0xff]
                %187 = vst [vmem:[%s157 + $0x70] sm:$0xff] %v186
                %v188 = vld [vmem:[%s156 + $0x3c0] sm:$0xff]
                %189 = vst [vmem:[%s157 + $0x78] sm:$0xff] %v188
              $region41: #{decoder_with_attention_step.3} parent=35 // loop_footer
                %s155 = sadd.s32 1, %s151
              $region42: #{decoder_with_attention_step.3} parent=35 // loop_footer_branch
                %150 = sbr.rel target = $region38
              $region43: #{decoder_with_attention_step.3} parent=35 // loop_exit
                _
            $region36: #{decoder_with_attention_step.3} parent=27 // pred_fallthru
              _
          $region28: #{decoder_with_attention_step.3} parent=23 // pred_fallthru
            _
          %234 = vnop
        $region24: #{decoder_with_attention_step.3} parent=19 // pred_fallthru
          _
        // Predicated region
        $region59: #{decoder_with_attention_step.3} parent=19 // pred_check
          %p235 = pneg %p79
        $region60: #{decoder_with_attention_step.3} parent=19 // pred_check_branch
          %237 = sbr.rel (%p235) target = $region62
        $region61: #{decoder_with_attention_step.3} parent=19 // pred_region
          %s238 = smul.u32 2, %s12
          %p239 = scmp.lt.s32.totalorder %s238, 15
          %s240 = scalar_select %p239, %s238, 15
          %s241 = scalar_lea.vmem %s2, %s240
          %s242 = smul.u32 2, %s12
        $region62: #{decoder_with_attention_step.3} parent=19 // pred_fallthru
          _
      $region20: #{decoder_with_attention_step.3} parent=5 // pred_fallthru
        _
      %p243 = scmp.le.s32.totalorder 1, %s12
      %p244 = scmp.lt.s32.totalorder %s12, 9
      %p245 = pnand %p243, %p244
      %p246 = pneg %p245
      // Predicated region
      $region63: #{decoder_with_attention_step.3} parent=5 // pred_check
        _
      $region64: #{decoder_with_attention_step.3} parent=5 // pred_check_branch
        %248 = sbr.rel (%p245) target = $region66
      $region65: #{decoder_with_attention_step.3} parent=5 // pred_region
        %s249 = ssub.s32 %s12, 1
        %s250 = sand.u32 %s46, 1
        %s251 = sand.u32 %s46, 1
        %s252 = smul.addr %s251, 128
        %s253 = scalar_lea.vmem [#allocation2], %s252
        // Predicated region
        $region67: #{decoder_with_attention_step.3} parent=65 // pred_check
          %p254 = pneg %p59
        $region68: #{decoder_with_attention_step.3} parent=65 // pred_check_branch
          %256 = sbr.rel (%p254) target = $region70
        $region69: #{decoder_with_attention_step.3} parent=65 // pred_region
          _
        $region70: #{decoder_with_attention_step.3} parent=65 // pred_fallthru
          _
        %p257 = pneg %p33
        %p258 = pneg %p30
        %s259 = sand.u32 %s46, 1
        %s260 = sand.u32 %s46, 1
        %s261 = smul.addr %s260, 128
        %s262 = scalar_lea.vmem [#allocation2], %s261
        %p263 = pneg %p59
        %p264 = pneg %p56
        %s265 = smul.u32 2, %s17
        %p266 = scmp.lt.s32.totalorder %s265, 15
        %s267 = scalar_select %p266, %s265, 15
        %s268 = scalar_lea.vmem %s2, %s267
        %p269 = pneg %p85
        %p270 = pneg %p82
        %p271 = pneg %p111
        %p272 = pneg %p108
        %s273 = sand.u32 %s98, 1
        %s274 = scalar_lea.sflag [#allocation4], %s273
        %s275 = sand.u32 %s98, 1
        %s276 = smul.addr %s275, 32
        %s277 = scalar_lea.vmem [#allocation3], %s276
        %s278 = smul.u32 2, %s17
        %s279 = smul.u32 2, %s17
        %p280 = scmp.lt.s32.totalorder %s279, 15
        %s281 = scalar_select %p280, %s279, 15
        %s282 = scalar_lea.vmem %s2, %s281
        %s283 = smul.u32 2, %s17
        %s284 = smul.u32 2, %s17
        %v286 = vld [vmem:[%s0] sm:$0xf]
        %v287 = vld [vmem:[%s0 + $0x4] sm:$0xf]
        %v288 = vld [vmem:[%s253] sm:$0xff]
        %v289 = vld [vmem:[%s253 + $0x8] sm:$0xff]
        %v290 = vld [vmem:[%s253 + $0x10] sm:$0xff]
        %v291 = vld [vmem:[%s253 + $0x18] sm:$0xff]
        %v292 = vld [vmem:[%s253 + $0x20] sm:$0xff]
        %v293 = vld [vmem:[%s253 + $0x28] sm:$0xff]
        %v294 = vld [vmem:[%s253 + $0x30] sm:$0xff]
        %v295 = vld [vmem:[%s253 + $0x38] sm:$0xff]
        %v296 = vld [vmem:[%s253 + $0x40] sm:$0xff]
        %v297 = vld [vmem:[%s253 + $0x48] sm:$0xff]
        %v298 = vld [vmem:[%s253 + $0x50] sm:$0xff]
        %v299 = vld [vmem:[%s253 + $0x58] sm:$0xff]
        %v300 = vld [vmem:[%s253 + $0x60] sm:$0xff]
        %v301 = vld [vmem:[%s253 + $0x68] sm:$0xff]
        %v302 = vld [vmem:[%s253 + $0x70] sm:$0xff]
        %v303 = vld [vmem:[%s253 + $0x78] sm:$0xff]
        %v304 = vld [vmem:[%s282] sm:$0x3]
        %v306 = vlaneseq
        %v307 = vshrl.u32 %v306, 7
        %v308 = vsub.s32 0, %v307
        %v309 = vrot.slane %v304, %v308
        %v310 = vlaneseq
        %v311 = vshrl.u32 %v310, 7
        %v312 = vsub.s32 1, %v311
        %v313 = vrot.slane %v304, %v312
        %v318 = vunpack.c.l.b16 %v286
        %v319 = vunpack.c.l.b16 %v287
        %v320 = vpack.c.b16 %v319, %v318
        %v338 = vunpack.c.l.b16 %v288
        %v339 = vunpack.c.h.b16 %v288
        %v340 = vunpack.c.l.b16 %v289
        %v341 = vunpack.c.h.b16 %v289
        %v342 = vunpack.c.l.b16 %v290
        %v343 = vunpack.c.h.b16 %v290
        %v344 = vunpack.c.l.b16 %v291
        %v345 = vunpack.c.h.b16 %v291
        %v346 = vunpack.c.l.b16 %v292
        %v347 = vunpack.c.h.b16 %v292
        %v348 = vunpack.c.l.b16 %v293
        %v349 = vunpack.c.h.b16 %v293
        %v350 = vunpack.c.l.b16 %v294
        %v351 = vunpack.c.h.b16 %v294
        %v352 = vunpack.c.l.b16 %v295
        %v353 = vunpack.c.h.b16 %v295
        %v354 = vunpack.c.l.b16 %v296
        %v355 = vunpack.c.h.b16 %v296
        %v356 = vunpack.c.l.b16 %v297
        %v357 = vunpack.c.h.b16 %v297
        %v358 = vunpack.c.l.b16 %v298
        %v359 = vunpack.c.h.b16 %v298
        %v360 = vunpack.c.l.b16 %v299
        %v361 = vunpack.c.h.b16 %v299
        %v362 = vunpack.c.l.b16 %v300
        %v363 = vunpack.c.h.b16 %v300
        %v364 = vunpack.c.l.b16 %v301
        %v365 = vunpack.c.h.b16 %v301
        %v366 = vunpack.c.l.b16 %v302
        %v367 = vunpack.c.h.b16 %v302
        %v368 = vunpack.c.l.b16 %v303
        %v369 = vunpack.c.h.b16 %v303
        %v370 = vpack.c.b16 %v340, %v338
        %v371 = vpack.c.b16 %v341, %v339
        %v372 = vpack.c.b16 %v344, %v342
        %v373 = vpack.c.b16 %v345, %v343
        %v374 = vpack.c.b16 %v348, %v346
        %v375 = vpack.c.b16 %v349, %v347
        %v376 = vpack.c.b16 %v352, %v350
        %v377 = vpack.c.b16 %v353, %v351
        %v378 = vpack.c.b16 %v356, %v354
        %v379 = vpack.c.b16 %v357, %v355
        %v380 = vpack.c.b16 %v360, %v358
        %v381 = vpack.c.b16 %v361, %v359
        %v382 = vpack.c.b16 %v364, %v362
        %v383 = vpack.c.b16 %v365, %v363
        %v384 = vpack.c.b16 %v368, %v366
        %v385 = vpack.c.b16 %v369, %v367
        %402 = vmatprep.subr.bf16.mxu0 %v371
        %403 = vmatpush1.bf16.msra.mxu0 %v370
        %404 = vmatprep.subr.bf16.mxu0 %v373
        %405 = vmatpush1.bf16.msra.mxu0 %v372
        %406 = vmatprep.subr.bf16.mxu0 %v375
        %407 = vmatpush1.bf16.msra.mxu0 %v374
        %408 = vmatprep.subr.bf16.mxu0 %v377
        %409 = vmatpush1.bf16.msra.mxu0 %v376
        %410 = vmatprep.subr.bf16.mxu0 %v379
        %411 = vmatpush1.bf16.msra.mxu0 %v378
        %412 = vmatprep.subr.bf16.mxu0 %v381
        %413 = vmatpush1.bf16.msra.mxu0 %v380
        %414 = vmatprep.subr.bf16.mxu0 %v383
        %415 = vmatpush1.bf16.msra.mxu0 %v382
        %416 = vmatprep.subr.bf16.mxu0 %v385
        %417 = vmatpush1.bf16.msra.mxu0 %v384
        %418 = vmatprep.subr.bf16.mxu0 0
        %419 = vmatpush1.bf16.msra.mxu0 0
        %420 = vmatprep.subr.bf16.mxu0 0
        %421 = vmatpush1.bf16.msra.mxu0 0
        %422 = vmatprep.subr.bf16.mxu0 0
        %423 = vmatpush1.bf16.msra.mxu0 0
        %424 = vmatprep.subr.bf16.mxu0 0
        %425 = vmatpush1.bf16.msra.mxu0 0
        %426 = vmatprep.subr.bf16.mxu0 0
        %427 = vmatpush1.bf16.msra.mxu0 0
        %428 = vmatprep.subr.bf16.mxu0 0
        %429 = vmatpush1.bf16.msra.mxu0 0
        %430 = vmatprep.subr.bf16.mxu0 0
        %431 = vmatpush1.bf16.msra.mxu0 0
        %432 = vmatprep.subr.bf16.mxu0 0
        %433 = vmatpush1.bf16.msra.mxu0 0
        %434 = vmatprep.mubr.bf16.mxu0 0
        %435 = vmatmul.mubr.bf16.gmra.mrb[0].mxu0 %v320
        %v436 = vpop.f32.mrb[0].mxu0
        %v437 = vadd.f32 %v309, %v436
        %v438 = vpop.f32.mrb[0].mxu0
        %v439 = vadd.f32 %v313, %v438
        %v440 = vpop.f32.mrb[0].mxu0
        %v441 = vadd.f32 %v309, %v440
        %v442 = vpop.f32.mrb[0].mxu0
        %v443 = vadd.f32 %v313, %v442
        %444 = vdwg.mxu0
        %445 = vst [vmem:[%s277] sm:$0xff] %v437
        %446 = vst [vmem:[%s277 + $0x8] sm:$0xff] %v439
        %447 = vst [vmem:[%s277 + $0x10] sm:$0xff] %v441
        %448 = vst [vmem:[%s277 + $0x18] sm:$0xff] %v443
        %s449 = sand.u32 %s98, 1
        %s450 = scalar_lea.sflag [#allocation4], %s449
        %s451 = sand.u32 %s98, 1
        %s452 = smul.addr %s451, 32
        %s453 = scalar_lea.vmem [#allocation3], %s452
        // Predicated region
        $region71: #{decoder_with_attention_step.3} parent=65 // pred_check
          %p454 = pneg %p108
        $region72: #{decoder_with_attention_step.3} parent=65 // pred_check_branch
          %456 = sbr.rel (%p454) target = $region74
        $region73: #{decoder_with_attention_step.3} parent=65 // pred_region
          %s457 = smul.u32 2, %s17
          %s459 = ssub.s32 512, 512
          %460 = vsyncadd %s450, %s459
          %s461 = smul.addr %s457, 128
          %s462 = scalar_lea.hbm %s3, %s461
          %s463 = sshll.u32 %s453, 4
          %s464 = int_to_ptr.vmem [resolvable:$true] %s463
          %469 = dma.vmem_to_hbm [thread:$0]  %s464, 512, %s462, %s450, 256, 2048, 16
        $region74: #{decoder_with_attention_step.3} parent=65 // pred_fallthru
          _
      $region66: #{decoder_with_attention_step.3} parent=5 // pred_fallthru
        _
      %p470 = scmp.le.s32.totalorder 2, %s12
      // Predicated region
      $region75: #{decoder_with_attention_step.3} parent=5 // pred_check
        %p471 = pneg %p470
      $region76: #{decoder_with_attention_step.3} parent=5 // pred_check_branch
        %473 = sbr.rel (%p471) target = $region78
      $region77: #{decoder_with_attention_step.3} parent=5 // pred_region
        %s474 = ssub.s32 %s12, 2
        // Predicated region
        $region79: #{decoder_with_attention_step.3} parent=77 // pred_check
          %p475 = pneg %p114
        $region80: #{decoder_with_attention_step.3} parent=77 // pred_check_branch
          %477 = sbr.rel (%p475) target = $region82
        $region81: #{decoder_with_attention_step.3} parent=77 // pred_region
          %s478 = sand.u32 %s99, 1
          %s479 = scalar_lea.sflag [#allocation4], %s478
          %s480 = sand.u32 %s99, 1
          %s481 = smul.addr %s480, 32
          %s482 = scalar_lea.vmem [#allocation3], %s481
          %483 = dma.done %s479, 512
        $region82: #{decoder_with_attention_step.3} parent=77 // pred_fallthru
          _
      $region78: #{decoder_with_attention_step.3} parent=5 // pred_fallthru
        _
    $region6: #{decoder_with_attention_step.3} parent=1 // loop_footer
      %s16 = sadd.s32 1, %s12
    $region7: #{decoder_with_attention_step.3} parent=1 // loop_footer_branch
      %11 = sbr.rel target = $region3
    $region8: #{decoder_with_attention_step.3} parent=1 // loop_exit
      _
    %484 = vsyncpa [#allocation4], 1
    %s485 = scalar_lea.sflag [#allocation4], 1
    %486 = vsyncpa %s485, 1

// kernel: decoder_with_attention_step.2
$region0: #{decoder_with_attention_step.2}
  #allocation0 [shape = 'u32[]', space=smem, size = 0x4, offset = 0x4, fixed_abs, tag = 'smem constant byte address 0x4 - core index']
  #allocation1 [shape = 'u32[144,128]{1,0:T(1,128)}', space=vmem, size = 0x12000, scoped, tag = 'internal scratch']
  #allocation2 [shape = 'f32[1,1]{1,0:T(1,128)S(1)}', space=vmem, size = 0x200, scoped, tag = 'scoped memory for decoder_with_attention_step.2']
  %s0 = inlined_call_operand.vmem [shape: bf16[16,128], index: 0, kind: input, shape index: {}]
  %s1 = inlined_call_operand.vmem [shape: f32[16,128], index: 1, kind: input, shape index: {}, may-alias: {1,14}]
  %s2 = inlined_call_operand.vmem [shape: f32[16,128], index: 2, kind: input, shape index: {}, may-alias: {2,15}]
  %s3 = inlined_call_operand.vmem [shape: bf16[16,64,128], index: 3, kind: input, shape index: {}]
  %s4 = inlined_call_operand.vmem [shape: bf16[128,128], index: 4, kind: input, shape index: {}]
  %s5 = inlined_call_operand.vmem [shape: f32[1,128], index: 5, kind: input, shape index: {}]
  %s6 = inlined_call_operand.vmem [shape: bf16[128,128], index: 6, kind: input, shape index: {}]
  %s7 = inlined_call_operand.vmem [shape: f32[1,128], index: 7, kind: input, shape index: {}]
  %s8 = inlined_call_operand.vmem [shape: f32[1,128], index: 8, kind: input, shape index: {}]
  %s9 = inlined_call_operand.<no memory space> [shape: f32[1,1], index: 9, kind: input, shape index: {}]
  %s10 = inlined_call_operand.vmem [shape: bf16[128,512], index: 10, kind: input, shape index: {}]
  %s11 = inlined_call_operand.vmem [shape: bf16[64,512], index: 11, kind: input, shape index: {}]
  %s12 = inlined_call_operand.vmem [shape: bf16[128,512], index: 12, kind: input, shape index: {}]
  %s13 = inlined_call_operand.vmem [shape: f32[1,512], index: 13, kind: input, shape index: {}]
  %s14 = inlined_call_operand.vmem [shape: f32[16,128], index: 14, kind: output, shape index: {0}, may-alias: {1,14}]
  %s15 = inlined_call_operand.vmem [shape: f32[16,128], index: 15, kind: output, shape index: {1}, may-alias: {2,15}]
  %s16 = inlined_call_operand.vmem [shape: bf16[16,128], index: 16, kind: output, shape index: {2}]
  %17 = xla_tuple %s14, %s15, %s16
  %s18 = sld [smem:[#allocation0]]
  $region82: #{decoder_with_attention_step.2} parent=0
    _
  %s20 = ssub.s32 1, %s18
  %s21 = scalar_select 0, %s20, %s18
  %v22 = vstv %s9
  %23 = vst [vmem:[#allocation2] sm:$0x1] %v22
  // Predicated region
  $region2: #{decoder_with_attention_step.2} parent=0 // pred_check
    _
  $region3: #{decoder_with_attention_step.2} parent=0 // pred_check_branch
    %25 = sbr.rel (0) target = $region5
  $region4: #{decoder_with_attention_step.2} parent=0 // pred_region
    _
  $region5: #{decoder_with_attention_step.2} parent=0 // pred_fallthru
    _
  // Predicated region
  $region6: #{decoder_with_attention_step.2} parent=0 // pred_check
    _
  $region7: #{decoder_with_attention_step.2} parent=0 // pred_check_branch
    %27 = sbr.rel (0) target = $region9
  $region8: #{decoder_with_attention_step.2} parent=0 // pred_region
    _
  $region9: #{decoder_with_attention_step.2} parent=0 // pred_fallthru
    _
  // Predicated region
  $region10: #{decoder_with_attention_step.2} parent=0 // pred_check
    _
  $region11: #{decoder_with_attention_step.2} parent=0 // pred_check_branch
    %29 = sbr.rel (0) target = $region13
  $region12: #{decoder_with_attention_step.2} parent=0 // pred_region
    _
  $region13: #{decoder_with_attention_step.2} parent=0 // pred_fallthru
    _
  // Predicated region
  $region14: #{decoder_with_attention_step.2} parent=0 // pred_check
    _
  $region15: #{decoder_with_attention_step.2} parent=0 // pred_check_branch
    %31 = sbr.rel (0) target = $region17
  $region16: #{decoder_with_attention_step.2} parent=0 // pred_region
    _
  $region17: #{decoder_with_attention_step.2} parent=0 // pred_fallthru
    _
  // Predicated region
  $region18: #{decoder_with_attention_step.2} parent=0 // pred_check
    _
  $region19: #{decoder_with_attention_step.2} parent=0 // pred_check_branch
    %33 = sbr.rel (0) target = $region21
  $region20: #{decoder_with_attention_step.2} parent=0 // pred_region
    _
  $region21: #{decoder_with_attention_step.2} parent=0 // pred_fallthru
    _
  // Predicated region
  $region22: #{decoder_with_attention_step.2} parent=0 // pred_check
    _
  $region23: #{decoder_with_attention_step.2} parent=0 // pred_check_branch
    %35 = sbr.rel (0) target = $region25
  $region24: #{decoder_with_attention_step.2} parent=0 // pred_region
    _
  $region25: #{decoder_with_attention_step.2} parent=0 // pred_fallthru
    _
  // Predicated region
  $region26: #{decoder_with_attention_step.2} parent=0 // pred_check
    _
  $region27: #{decoder_with_attention_step.2} parent=0 // pred_check_branch
    %37 = sbr.rel (0) target = $region29
  $region28: #{decoder_with_attention_step.2} parent=0 // pred_region
    _
  $region29: #{decoder_with_attention_step.2} parent=0 // pred_fallthru
    _
  // Predicated region
  $region30: #{decoder_with_attention_step.2} parent=0 // pred_check
    _
  $region31: #{decoder_with_attention_step.2} parent=0 // pred_check_branch
    %39 = sbr.rel (0) target = $region33
  $region32: #{decoder_with_attention_step.2} parent=0 // pred_region
    _
  $region33: #{decoder_with_attention_step.2} parent=0 // pred_fallthru
    _
  // Predicated region
  $region34: #{decoder_with_attention_step.2} parent=0 // pred_check
    _
  $region35: #{decoder_with_attention_step.2} parent=0 // pred_check_branch
    %41 = sbr.rel (0) target = $region37
  $region36: #{decoder_with_attention_step.2} parent=0 // pred_region
    _
  $region37: #{decoder_with_attention_step.2} parent=0 // pred_fallthru
    _
  // Predicated region
  $region38: #{decoder_with_attention_step.2} parent=0 // pred_check
    _
  $region39: #{decoder_with_attention_step.2} parent=0 // pred_check_branch
    %43 = sbr.rel (0) target = $region41
  $region40: #{decoder_with_attention_step.2} parent=0 // pred_region
    _
  $region41: #{decoder_with_attention_step.2} parent=0 // pred_fallthru
    _
  // Predicated region
  $region42: #{decoder_with_attention_step.2} parent=0 // pred_check
    _
  $region43: #{decoder_with_attention_step.2} parent=0 // pred_check_branch
    %45 = sbr.rel (0) target = $region45
  $region44: #{decoder_with_attention_step.2} parent=0 // pred_region
    _
  $region45: #{decoder_with_attention_step.2} parent=0 // pred_fallthru
    _
  // Predicated region
  $region46: #{decoder_with_attention_step.2} parent=0 // pred_check
    _
  $region47: #{decoder_with_attention_step.2} parent=0 // pred_check_branch
    %47 = sbr.rel (0) target = $region49
  $region48: #{decoder_with_attention_step.2} parent=0 // pred_region
    _
  $region49: #{decoder_with_attention_step.2} parent=0 // pred_fallthru
    _
  // Predicated region
  $region50: #{decoder_with_attention_step.2} parent=0 // pred_check
    _
  $region51: #{decoder_with_attention_step.2} parent=0 // pred_check_branch
    %49 = sbr.rel (0) target = $region53
  $region52: #{decoder_with_attention_step.2} parent=0 // pred_region
    _
  $region53: #{decoder_with_attention_step.2} parent=0 // pred_fallthru
    _
  // Predicated region
  $region54: #{decoder_with_attention_step.2} parent=0 // pred_check
    _
  $region55: #{decoder_with_attention_step.2} parent=0 // pred_check_branch
    %51 = sbr.rel (0) target = $region57
  $region56: #{decoder_with_attention_step.2} parent=0 // pred_region
    _
  $region57: #{decoder_with_attention_step.2} parent=0 // pred_fallthru
    _
  %v53 = vld [vmem:[%s0] sm:$0xf]
  %v54 = vld [vmem:[%s0 + $0x4] sm:$0xf]
  %v55 = vld [vmem:[%s1] sm:$0xff]
  %v56 = vld [vmem:[%s1 + $0x8] sm:$0xff]
  %v57 = vld [vmem:[%s2] sm:$0xff]
  %v58 = vld [vmem:[%s2 + $0x8] sm:$0xff]
  %v59 = vld [vmem:[%s3] sm:$0xf]
  %v60 = vld [vmem:[%s3 + $0x4] sm:$0xf]
  %v61 = vld [vmem:[%s3 + $0x8] sm:$0xf]
  %v62 = vld [vmem:[%s3 + $0xc] sm:$0xf]
  %v63 = vld [vmem:[%s3 + $0x10] sm:$0xf]
  %v64 = vld [vmem:[%s3 + $0x14] sm:$0xf]
  %v65 = vld [vmem:[%s3 + $0x18] sm:$0xf]
  %v66 = vld [vmem:[%s3 + $0x1c] sm:$0xf]
  %v67 = vld [vmem:[%s3 + $0x20] sm:$0xf]
  %v68 = vld [vmem:[%s3 + $0x24] sm:$0xf]
  %v69 = vld [vmem:[%s3 + $0x28] sm:$0xf]
  %v70 = vld [vmem:[%s3 + $0x2c] sm:$0xf]
  %v71 = vld [vmem:[%s3 + $0x30] sm:$0xf]
  %v72 = vld [vmem:[%s3 + $0x34] sm:$0xf]
  %v73 = vld [vmem:[%s3 + $0x38] sm:$0xf]
  %v74 = vld [vmem:[%s3 + $0x3c] sm:$0xf]
  %v75 = vld [vmem:[%s3 + $0x40] sm:$0xf]
  %v76 = vld [vmem:[%s3 + $0x44] sm:$0xf]
  %v77 = vld [vmem:[%s3 + $0x48] sm:$0xf]
  %v78 = vld [vmem:[%s3 + $0x4c] sm:$0xf]
  %v79 = vld [vmem:[%s3 + $0x50] sm:$0xf]
  %v80 = vld [vmem:[%s3 + $0x54] sm:$0xf]
  %v81 = vld [vmem:[%s3 + $0x58] sm:$0xf]
  %v82 = vld [vmem:[%s3 + $0x5c] sm:$0xf]
  %v83 = vld [vmem:[%s3 + $0x60] sm:$0xf]
  %v84 = vld [vmem:[%s3 + $0x64] sm:$0xf]
  %v85 = vld [vmem:[%s3 + $0x68] sm:$0xf]
  %v86 = vld [vmem:[%s3 + $0x6c] sm:$0xf]
  %v87 = vld [vmem:[%s3 + $0x70] sm:$0xf]
  %v88 = vld [vmem:[%s3 + $0x74] sm:$0xf]
  %v89 = vld [vmem:[%s3 + $0x78] sm:$0xf]
  %v90 = vld [vmem:[%s3 + $0x7c] sm:$0xf]
  %v91 = vld [vmem:[%s3 + $0x80] sm:$0xf]
  %v92 = vld [vmem:[%s3 + $0x84] sm:$0xf]
  %v93 = vld [vmem:[%s3 + $0x88] sm:$0xf]
  %v94 = vld [vmem:[%s3 + $0x8c] sm:$0xf]
  %v95 = vld [vmem:[%s3 + $0x90] sm:$0xf]
  %v96 = vld [vmem:[%s3 + $0x94] sm:$0xf]
  %v97 = vld [vmem:[%s3 + $0x98] sm:$0xf]
  %v98 = vld [vmem:[%s3 + $0x9c] sm:$0xf]
  %v99 = vld [vmem:[%s3 + $0xa0] sm:$0xf]
  %v100 = vld [vmem:[%s3 + $0xa4] sm:$0xf]
  %v101 = vld [vmem:[%s3 + $0xa8] sm:$0xf]
  %v102 = vld [vmem:[%s3 + $0xac] sm:$0xf]
  %v103 = vld [vmem:[%s3 + $0xb0] sm:$0xf]
  %v104 = vld [vmem:[%s3 + $0xb4] sm:$0xf]
  %v105 = vld [vmem:[%s3 + $0xb8] sm:$0xf]
  %v106 = vld [vmem:[%s3 + $0xbc] sm:$0xf]
  %v107 = vld [vmem:[%s3 + $0xc0] sm:$0xf]
  %v108 = vld [vmem:[%s3 + $0xc4] sm:$0xf]
  %v109 = vld [vmem:[%s3 + $0xc8] sm:$0xf]
  %v110 = vld [vmem:[%s3 + $0xcc] sm:$0xf]
  %v111 = vld [vmem:[%s3 + $0xd0] sm:$0xf]
  %v112 = vld [vmem:[%s3 + $0xd4] sm:$0xf]
  %v113 = vld [vmem:[%s3 + $0xd8] sm:$0xf]
  %v114 = vld [vmem:[%s3 + $0xdc] sm:$0xf]
  %v115 = vld [vmem:[%s3 + $0xe0] sm:$0xf]
  %v116 = vld [vmem:[%s3 + $0xe4] sm:$0xf]
  %v117 = vld [vmem:[%s3 + $0xe8] sm:$0xf]
  %v118 = vld [vmem:[%s3 + $0xec] sm:$0xf]
  %v119 = vld [vmem:[%s3 + $0xf0] sm:$0xf]
  %v120 = vld [vmem:[%s3 + $0xf4] sm:$0xf]
  %v121 = vld [vmem:[%s3 + $0xf8] sm:$0xf]
  %v122 = vld [vmem:[%s3 + $0xfc] sm:$0xf]
  %v123 = vld [vmem:[%s3 + $0x100] sm:$0xf]
  %v124 = vld [vmem:[%s3 + $0x104] sm:$0xf]
  %v125 = vld [vmem:[%s3 + $0x108] sm:$0xf]
  %v126 = vld [vmem:[%s3 + $0x10c] sm:$0xf]
  %v127 = vld [vmem:[%s3 + $0x110] sm:$0xf]
  %v128 = vld [vmem:[%s3 + $0x114] sm:$0xf]
  %v129 = vld [vmem:[%s3 + $0x118] sm:$0xf]
  %v130 = vld [vmem:[%s3 + $0x11c] sm:$0xf]
  %v131 = vld [vmem:[%s3 + $0x120] sm:$0xf]
  %v132 = vld [vmem:[%s3 + $0x124] sm:$0xf]
  %v133 = vld [vmem:[%s3 + $0x128] sm:$0xf]
  %v134 = vld [vmem:[%s3 + $0x12c] sm:$0xf]
  %v135 = vld [vmem:[%s3 + $0x130] sm:$0xf]
  %v136 = vld [vmem:[%s3 + $0x134] sm:$0xf]
  %v137 = vld [vmem:[%s3 + $0x138] sm:$0xf]
  %v138 = vld [vmem:[%s3 + $0x13c] sm:$0xf]
  %v139 = vld [vmem:[%s3 + $0x140] sm:$0xf]
  %v140 = vld [vmem:[%s3 + $0x144] sm:$0xf]
  %v141 = vld [vmem:[%s3 + $0x148] sm:$0xf]
  %v142 = vld [vmem:[%s3 + $0x14c] sm:$0xf]
  %v143 = vld [vmem:[%s3 + $0x150] sm:$0xf]
  %v144 = vld [vmem:[%s3 + $0x154] sm:$0xf]
  %v145 = vld [vmem:[%s3 + $0x158] sm:$0xf]
  %v146 = vld [vmem:[%s3 + $0x15c] sm:$0xf]
  %v147 = vld [vmem:[%s3 + $0x160] sm:$0xf]
  %v148 = vld [vmem:[%s3 + $0x164] sm:$0xf]
  %v149 = vld [vmem:[%s3 + $0x168] sm:$0xf]
  %v150 = vld [vmem:[%s3 + $0x16c] sm:$0xf]
  %v151 = vld [vmem:[%s3 + $0x170] sm:$0xf]
  %v152 = vld [vmem:[%s3 + $0x174] sm:$0xf]
  %v153 = vld [vmem:[%s3 + $0x178] sm:$0xf]
  %v154 = vld [vmem:[%s3 + $0x17c] sm:$0xf]
  %v155 = vld [vmem:[%s3 + $0x180] sm:$0xf]
  %v156 = vld [vmem:[%s3 + $0x184] sm:$0xf]
  %v157 = vld [vmem:[%s3 + $0x188] sm:$0xf]
  %v158 = vld [vmem:[%s3 + $0x18c] sm:$0xf]
  %v159 = vld [vmem:[%s3 + $0x190] sm:$0xf]
  %v160 = vld [vmem:[%s3 + $0x194] sm:$0xf]
  %v161 = vld [vmem:[%s3 + $0x198] sm:$0xf]
  %v162 = vld [vmem:[%s3 + $0x19c] sm:$0xf]
  %v163 = vld [vmem:[%s3 + $0x1a0] sm:$0xf]
  %v164 = vld [vmem:[%s3 + $0x1a4] sm:$0xf]
  %v165 = vld [vmem:[%s3 + $0x1a8] sm:$0xf]
  %v166 = vld [vmem:[%s3 + $0x1ac] sm:$0xf]
  %v167 = vld [vmem:[%s3 + $0x1b0] sm:$0xf]
  %v168 = vld [vmem:[%s3 + $0x1b4] sm:$0xf]
  %v169 = vld [vmem:[%s3 + $0x1b8] sm:$0xf]
  %v170 = vld [vmem:[%s3 + $0x1bc] sm:$0xf]
  %v171 = vld [vmem:[%s3 + $0x1c0] sm:$0xf]
  %v172 = vld [vmem:[%s3 + $0x1c4] sm:$0xf]
  %v173 = vld [vmem:[%s3 + $0x1c8] sm:$0xf]
  %v174 = vld [vmem:[%s3 + $0x1cc] sm:$0xf]
  %v175 = vld [vmem:[%s3 + $0x1d0] sm:$0xf]
  %v176 = vld [vmem:[%s3 + $0x1d4] sm:$0xf]
  %v177 = vld [vmem:[%s3 + $0x1d8] sm:$0xf]
  %v178 = vld [vmem:[%s3 + $0x1dc] sm:$0xf]
  %v179 = vld [vmem:[%s3 + $0x1e0] sm:$0xf]
  %v180 = vld [vmem:[%s3 + $0x1e4] sm:$0xf]
  %v181 = vld [vmem:[%s3 + $0x1e8] sm:$0xf]
  %v182 = vld [vmem:[%s3 + $0x1ec] sm:$0xf]
  %v183 = vld [vmem:[%s3 + $0x1f0] sm:$0xf]
  %v184 = vld [vmem:[%s3 + $0x1f4] sm:$0xf]
  %v185 = vld [vmem:[%s3 + $0x1f8] sm:$0xf]
  %v186 = vld [vmem:[%s3 + $0x1fc] sm:$0xf]
  %v187 = vld [vmem:[%s4] sm:$0xf]
  %v188 = vld [vmem:[%s4 + $0x4] sm:$0xf]
  %v189 = vld [vmem:[%s4 + $0x8] sm:$0xf]
  %v190 = vld [vmem:[%s4 + $0xc] sm:$0xf]
  %v191 = vld [vmem:[%s4 + $0x10] sm:$0xf]
  %v192 = vld [vmem:[%s4 + $0x14] sm:$0xf]
  %v193 = vld [vmem:[%s4 + $0x18] sm:$0xf]
  %v194 = vld [vmem:[%s4 + $0x1c] sm:$0xf]
  %v195 = vld [vmem:[%s4 + $0x20] sm:$0xf]
  %v196 = vld [vmem:[%s4 + $0x24] sm:$0xf]
  %v197 = vld [vmem:[%s4 + $0x28] sm:$0xf]
  %v198 = vld [vmem:[%s4 + $0x2c] sm:$0xf]
  %v199 = vld [vmem:[%s4 + $0x30] sm:$0xf]
  %v200 = vld [vmem:[%s4 + $0x34] sm:$0xf]
  %v201 = vld [vmem:[%s4 + $0x38] sm:$0xf]
  %v202 = vld [vmem:[%s4 + $0x3c] sm:$0xf]
  %v203 = vld [vmem:[%s5] sm:$0x1]
  %v204 = vld [vmem:[%s6] sm:$0xf]
  %v205 = vld [vmem:[%s6 + $0x4] sm:$0xf]
  %v206 = vld [vmem:[%s6 + $0x8] sm:$0xf]
  %v207 = vld [vmem:[%s6 + $0xc] sm:$0xf]
  %v208 = vld [vmem:[%s6 + $0x10] sm:$0xf]
  %v209 = vld [vmem:[%s6 + $0x14] sm:$0xf]
  %v210 = vld [vmem:[%s6 + $0x18] sm:$0xf]
  %v211 = vld [vmem:[%s6 + $0x1c] sm:$0xf]
  %v212 = vld [vmem:[%s6 + $0x20] sm:$0xf]
  %v213 = vld [vmem:[%s6 + $0x24] sm:$0xf]
  %v214 = vld [vmem:[%s6 + $0x28] sm:$0xf]
  %v215 = vld [vmem:[%s6 + $0x2c] sm:$0xf]
  %v216 = vld [vmem:[%s6 + $0x30] sm:$0xf]
  %v217 = vld [vmem:[%s6 + $0x34] sm:$0xf]
  %v218 = vld [vmem:[%s6 + $0x38] sm:$0xf]
  %v219 = vld [vmem:[%s6 + $0x3c] sm:$0xf]
  %v220 = vld [vmem:[%s7] sm:$0x1]
  %v221 = vld [vmem:[%s8] sm:$0x1]
  %v222 = vld [vmem:[#allocation2] sm:$0x1]
  %v223 = vld [vmem:[%s10] sm:$0xff]
  %v224 = vld [vmem:[%s10 + $0x8] sm:$0xff]
  %v225 = vld [vmem:[%s10 + $0x10] sm:$0xff]
  %v226 = vld [vmem:[%s10 + $0x18] sm:$0xff]
  %v227 = vld [vmem:[%s10 + $0x20] sm:$0xff]
  %v228 = vld [vmem:[%s10 + $0x28] sm:$0xff]
  %v229 = vld [vmem:[%s10 + $0x30] sm:$0xff]
  %v230 = vld [vmem:[%s10 + $0x38] sm:$0xff]
  %v231 = vld [vmem:[%s10 + $0x40] sm:$0xff]
  %v232 = vld [vmem:[%s10 + $0x48] sm:$0xff]
  %v233 = vld [vmem:[%s10 + $0x50] sm:$0xff]
  %v234 = vld [vmem:[%s10 + $0x58] sm:$0xff]
  %v235 = vld [vmem:[%s10 + $0x60] sm:$0xff]
  %v236 = vld [vmem:[%s10 + $0x68] sm:$0xff]
  %v237 = vld [vmem:[%s10 + $0x70] sm:$0xff]
  %v238 = vld [vmem:[%s10 + $0x78] sm:$0xff]
  %v239 = vld [vmem:[%s10 + $0x80] sm:$0xff]
  %v240 = vld [vmem:[%s10 + $0x88] sm:$0xff]
  %v241 = vld [vmem:[%s10 + $0x90] sm:$0xff]
  %v242 = vld [vmem:[%s10 + $0x98] sm:$0xff]
  %v243 = vld [vmem:[%s10 + $0xa0] sm:$0xff]
  %v244 = vld [vmem:[%s10 + $0xa8] sm:$0xff]
  %v245 = vld [vmem:[%s10 + $0xb0] sm:$0xff]
  %v246 = vld [vmem:[%s10 + $0xb8] sm:$0xff]
  %v247 = vld [vmem:[%s10 + $0xc0] sm:$0xff]
  %v248 = vld [vmem:[%s10 + $0xc8] sm:$0xff]
  %v249 = vld [vmem:[%s10 + $0xd0] sm:$0xff]
  %v250 = vld [vmem:[%s10 + $0xd8] sm:$0xff]
  %v251 = vld [vmem:[%s10 + $0xe0] sm:$0xff]
  %v252 = vld [vmem:[%s10 + $0xe8] sm:$0xff]
  %v253 = vld [vmem:[%s10 + $0xf0] sm:$0xff]
  %v254 = vld [vmem:[%s10 + $0xf8] sm:$0xff]
  %v255 = vld [vmem:[%s11] sm:$0xff]
  %v256 = vld [vmem:[%s11 + $0x8] sm:$0xff]
  %v257 = vld [vmem:[%s11 + $0x10] sm:$0xff]
  %v258 = vld [vmem:[%s11 + $0x18] sm:$0xff]
  %v259 = vld [vmem:[%s11 + $0x20] sm:$0xff]
  %v260 = vld [vmem:[%s11 + $0x28] sm:$0xff]
  %v261 = vld [vmem:[%s11 + $0x30] sm:$0xff]
  %v262 = vld [vmem:[%s11 + $0x38] sm:$0xff]
  %v263 = vld [vmem:[%s11 + $0x40] sm:$0xff]
  %v264 = vld [vmem:[%s11 + $0x48] sm:$0xff]
  %v265 = vld [vmem:[%s11 + $0x50] sm:$0xff]
  %v266 = vld [vmem:[%s11 + $0x58] sm:$0xff]
  %v267 = vld [vmem:[%s11 + $0x60] sm:$0xff]
  %v268 = vld [vmem:[%s11 + $0x68] sm:$0xff]
  %v269 = vld [vmem:[%s11 + $0x70] sm:$0xff]
  %v270 = vld [vmem:[%s11 + $0x78] sm:$0xff]
  %v271 = vld [vmem:[%s12] sm:$0xff]
  %v272 = vld [vmem:[%s12 + $0x8] sm:$0xff]
  %v273 = vld [vmem:[%s12 + $0x10] sm:$0xff]
  %v274 = vld [vmem:[%s12 + $0x18] sm:$0xff]
  %v275 = vld [vmem:[%s12 + $0x20] sm:$0xff]
  %v276 = vld [vmem:[%s12 + $0x28] sm:$0xff]
  %v277 = vld [vmem:[%s12 + $0x30] sm:$0xff]
  %v278 = vld [vmem:[%s12 + $0x38] sm:$0xff]
  %v279 = vld [vmem:[%s12 + $0x40] sm:$0xff]
  %v280 = vld [vmem:[%s12 + $0x48] sm:$0xff]
  %v281 = vld [vmem:[%s12 + $0x50] sm:$0xff]
  %v282 = vld [vmem:[%s12 + $0x58] sm:$0xff]
  %v283 = vld [vmem:[%s12 + $0x60] sm:$0xff]
  %v284 = vld [vmem:[%s12 + $0x68] sm:$0xff]
  %v285 = vld [vmem:[%s12 + $0x70] sm:$0xff]
  %v286 = vld [vmem:[%s12 + $0x78] sm:$0xff]
  %v287 = vld [vmem:[%s12 + $0x80] sm:$0xff]
  %v288 = vld [vmem:[%s12 + $0x88] sm:$0xff]
  %v289 = vld [vmem:[%s12 + $0x90] sm:$0xff]
  %v290 = vld [vmem:[%s12 + $0x98] sm:$0xff]
  %v291 = vld [vmem:[%s12 + $0xa0] sm:$0xff]
  %v292 = vld [vmem:[%s12 + $0xa8] sm:$0xff]
  %v293 = vld [vmem:[%s12 + $0xb0] sm:$0xff]
  %v294 = vld [vmem:[%s12 + $0xb8] sm:$0xff]
  %v295 = vld [vmem:[%s12 + $0xc0] sm:$0xff]
  %v296 = vld [vmem:[%s12 + $0xc8] sm:$0xff]
  %v297 = vld [vmem:[%s12 + $0xd0] sm:$0xff]
  %v298 = vld [vmem:[%s12 + $0xd8] sm:$0xff]
  %v299 = vld [vmem:[%s12 + $0xe0] sm:$0xff]
  %v300 = vld [vmem:[%s12 + $0xe8] sm:$0xff]
  %v301 = vld [vmem:[%s12 + $0xf0] sm:$0xff]
  %v302 = vld [vmem:[%s12 + $0xf8] sm:$0xff]
  %v303 = vld [vmem:[%s13] sm:$0xf]
  %v304 = vpack.c.bf16 %v56, %v55
  %v433 = vunpack.c.l.b16 %v59
  %v434 = vunpack.c.l.b16 %v60
  %v435 = vunpack.c.l.b16 %v61
  %v436 = vunpack.c.l.b16 %v62
  %v437 = vunpack.c.l.b16 %v63
  %v438 = vunpack.c.l.b16 %v64
  %v439 = vunpack.c.l.b16 %v65
  %v440 = vunpack.c.l.b16 %v66
  %v441 = vunpack.c.l.b16 %v67
  %v442 = vunpack.c.l.b16 %v68
  %v443 = vunpack.c.l.b16 %v69
  %v444 = vunpack.c.l.b16 %v70
  %v445 = vunpack.c.l.b16 %v71
  %v446 = vunpack.c.l.b16 %v72
  %v447 = vunpack.c.l.b16 %v73
  %v448 = vunpack.c.l.b16 %v74
  %v449 = vunpack.c.l.b16 %v75
  %v450 = vunpack.c.l.b16 %v76
  %v451 = vunpack.c.l.b16 %v77
  %v452 = vunpack.c.l.b16 %v78
  %v453 = vunpack.c.l.b16 %v79
  %v454 = vunpack.c.l.b16 %v80
  %v455 = vunpack.c.l.b16 %v81
  %v456 = vunpack.c.l.b16 %v82
  %v457 = vunpack.c.l.b16 %v83
  %v458 = vunpack.c.l.b16 %v84
  %v459 = vunpack.c.l.b16 %v85
  %v460 = vunpack.c.l.b16 %v86
  %v461 = vunpack.c.l.b16 %v87
  %v462 = vunpack.c.l.b16 %v88
  %v463 = vunpack.c.l.b16 %v89
  %v464 = vunpack.c.l.b16 %v90
  %v465 = vunpack.c.l.b16 %v91
  %v466 = vunpack.c.l.b16 %v92
  %v467 = vunpack.c.l.b16 %v93
  %v468 = vunpack.c.l.b16 %v94
  %v469 = vunpack.c.l.b16 %v95
  %v470 = vunpack.c.l.b16 %v96
  %v471 = vunpack.c.l.b16 %v97
  %v472 = vunpack.c.l.b16 %v98
  %v473 = vunpack.c.l.b16 %v99
  %v474 = vunpack.c.l.b16 %v100
  %v475 = vunpack.c.l.b16 %v101
  %v476 = vunpack.c.l.b16 %v102
  %v477 = vunpack.c.l.b16 %v103
  %v478 = vunpack.c.l.b16 %v104
  %v479 = vunpack.c.l.b16 %v105
  %v480 = vunpack.c.l.b16 %v106
  %v481 = vunpack.c.l.b16 %v107
  %v482 = vunpack.c.l.b16 %v108
  %v483 = vunpack.c.l.b16 %v109
  %v484 = vunpack.c.l.b16 %v110
  %v485 = vunpack.c.l.b16 %v111
  %v486 = vunpack.c.l.b16 %v112
  %v487 = vunpack.c.l.b16 %v113
  %v488 = vunpack.c.l.b16 %v114
  %v489 = vunpack.c.l.b16 %v115
  %v490 = vunpack.c.l.b16 %v116
  %v491 = vunpack.c.l.b16 %v117
  %v492 = vunpack.c.l.b16 %v118
  %v493 = vunpack.c.l.b16 %v119
  %v494 = vunpack.c.l.b16 %v120
  %v495 = vunpack.c.l.b16 %v121
  %v496 = vunpack.c.l.b16 %v122
  %v497 = vunpack.c.l.b16 %v123
  %v498 = vunpack.c.l.b16 %v124
  %v499 = vunpack.c.l.b16 %v125
  %v500 = vunpack.c.l.b16 %v126
  %v501 = vunpack.c.l.b16 %v127
  %v502 = vunpack.c.l.b16 %v128
  %v503 = vunpack.c.l.b16 %v129
  %v504 = vunpack.c.l.b16 %v130
  %v505 = vunpack.c.l.b16 %v131
  %v506 = vunpack.c.l.b16 %v132
  %v507 = vunpack.c.l.b16 %v133
  %v508 = vunpack.c.l.b16 %v134
  %v509 = vunpack.c.l.b16 %v135
  %v510 = vunpack.c.l.b16 %v136
  %v511 = vunpack.c.l.b16 %v137
  %v512 = vunpack.c.l.b16 %v138
  %v513 = vunpack.c.l.b16 %v139
  %v514 = vunpack.c.l.b16 %v140
  %v515 = vunpack.c.l.b16 %v141
  %v516 = vunpack.c.l.b16 %v142
  %v517 = vunpack.c.l.b16 %v143
  %v518 = vunpack.c.l.b16 %v144
  %v519 = vunpack.c.l.b16 %v145
  %v520 = vunpack.c.l.b16 %v146
  %v521 = vunpack.c.l.b16 %v147
  %v522 = vunpack.c.l.b16 %v148
  %v523 = vunpack.c.l.b16 %v149
  %v524 = vunpack.c.l.b16 %v150
  %v525 = vunpack.c.l.b16 %v151
  %v526 = vunpack.c.l.b16 %v152
  %v527 = vunpack.c.l.b16 %v153
  %v528 = vunpack.c.l.b16 %v154
  %v529 = vunpack.c.l.b16 %v155
  %v530 = vunpack.c.l.b16 %v156
  %v531 = vunpack.c.l.b16 %v157
  %v532 = vunpack.c.l.b16 %v158
  %v533 = vunpack.c.l.b16 %v159
  %v534 = vunpack.c.l.b16 %v160
  %v535 = vunpack.c.l.b16 %v161
  %v536 = vunpack.c.l.b16 %v162
  %v537 = vunpack.c.l.b16 %v163
  %v538 = vunpack.c.l.b16 %v164
  %v539 = vunpack.c.l.b16 %v165
  %v540 = vunpack.c.l.b16 %v166
  %v541 = vunpack.c.l.b16 %v167
  %v542 = vunpack.c.l.b16 %v168
  %v543 = vunpack.c.l.b16 %v169
  %v544 = vunpack.c.l.b16 %v170
  %v545 = vunpack.c.l.b16 %v171
  %v546 = vunpack.c.l.b16 %v172
  %v547 = vunpack.c.l.b16 %v173
  %v548 = vunpack.c.l.b16 %v174
  %v549 = vunpack.c.l.b16 %v175
  %v550 = vunpack.c.l.b16 %v176
  %v551 = vunpack.c.l.b16 %v177
  %v552 = vunpack.c.l.b16 %v178
  %v553 = vunpack.c.l.b16 %v179
  %v554 = vunpack.c.l.b16 %v180
  %v555 = vunpack.c.l.b16 %v181
  %v556 = vunpack.c.l.b16 %v182
  %v557 = vunpack.c.l.b16 %v183
  %v558 = vunpack.c.l.b16 %v184
  %v559 = vunpack.c.l.b16 %v185
  %v560 = vunpack.c.l.b16 %v186
  %v561 = vpack.c.b16 %v434, %v433
  %v562 = vpack.c.b16 %v436, %v435
  %v563 = vpack.c.b16 %v438, %v437
  %v564 = vpack.c.b16 %v440, %v439
  %v565 = vpack.c.b16 %v442, %v441
  %v566 = vpack.c.b16 %v444, %v443
  %v567 = vpack.c.b16 %v446, %v445
  %v568 = vpack.c.b16 %v448, %v447
  %v569 = vpack.c.b16 %v450, %v449
  %v570 = vpack.c.b16 %v452, %v451
  %v571 = vpack.c.b16 %v454, %v453
  %v572 = vpack.c.b16 %v456, %v455
  %v573 = vpack.c.b16 %v458, %v457
  %v574 = vpack.c.b16 %v460, %v459
  %v575 = vpack.c.b16 %v462, %v461
  %v576 = vpack.c.b16 %v464, %v463
  %v577 = vpack.c.b16 %v466, %v465
  %v578 = vpack.c.b16 %v468, %v467
  %v579 = vpack.c.b16 %v470, %v469
  %v580 = vpack.c.b16 %v472, %v471
  %v581 = vpack.c.b16 %v474, %v473
  %v582 = vpack.c.b16 %v476, %v475
  %v583 = vpack.c.b16 %v478, %v477
  %v584 = vpack.c.b16 %v480, %v479
  %v585 = vpack.c.b16 %v482, %v481
  %v586 = vpack.c.b16 %v484, %v483
  %v587 = vpack.c.b16 %v486, %v485
  %v588 = vpack.c.b16 %v488, %v487
  %v589 = vpack.c.b16 %v490, %v489
  %v590 = vpack.c.b16 %v492, %v491
  %v591 = vpack.c.b16 %v494, %v493
  %v592 = vpack.c.b16 %v496, %v495
  %v593 = vpack.c.b16 %v498, %v497
  %v594 = vpack.c.b16 %v500, %v499
  %v595 = vpack.c.b16 %v502, %v501
  %v596 = vpack.c.b16 %v504, %v503
  %v597 = vpack.c.b16 %v506, %v505
  %v598 = vpack.c.b16 %v508, %v507
  %v599 = vpack.c.b16 %v510, %v509
  %v600 = vpack.c.b16 %v512, %v511
  %v601 = vpack.c.b16 %v514, %v513
  %v602 = vpack.c.b16 %v516, %v515
  %v603 = vpack.c.b16 %v518, %v517
  %v604 = vpack.c.b16 %v520, %v519
  %v605 = vpack.c.b16 %v522, %v521
  %v606 = vpack.c.b16 %v524, %v523
  %v607 = vpack.c.b16 %v526, %v525
  %v608 = vpack.c.b16 %v528, %v527
  %v609 = vpack.c.b16 %v530, %v529
  %v610 = vpack.c.b16 %v532, %v531
  %v611 = vpack.c.b16 %v534, %v533
  %v612 = vpack.c.b16 %v536, %v535
  %v613 = vpack.c.b16 %v538, %v537
  %v614 = vpack.c.b16 %v540, %v539
  %v615 = vpack.c.b16 %v542, %v541
  %v616 = vpack.c.b16 %v544, %v543
  %v617 = vpack.c.b16 %v546, %v545
  %v618 = vpack.c.b16 %v548, %v547
  %v619 = vpack.c.b16 %v550, %v549
  %v620 = vpack.c.b16 %v552, %v551
  %v621 = vpack.c.b16 %v554, %v553
  %v622 = vpack.c.b16 %v556, %v555
  %v623 = vpack.c.b16 %v558, %v557
  %v624 = vpack.c.b16 %v560, %v559
  %v705 = vunpack.c.l.b16 %v187
  %v706 = vunpack.c.l.b16 %v188
  %v707 = vunpack.c.l.b16 %v189
  %v708 = vunpack.c.l.b16 %v190
  %v709 = vunpack.c.l.b16 %v191
  %v710 = vunpack.c.l.b16 %v192
  %v711 = vunpack.c.l.b16 %v193
  %v712 = vunpack.c.l.b16 %v194
  %v713 = vunpack.c.l.b16 %v195
  %v714 = vunpack.c.l.b16 %v196
  %v715 = vunpack.c.l.b16 %v197
  %v716 = vunpack.c.l.b16 %v198
  %v717 = vunpack.c.l.b16 %v199
  %v718 = vunpack.c.l.b16 %v200
  %v719 = vunpack.c.l.b16 %v201
  %v720 = vunpack.c.l.b16 %v202
  %v721 = vpack.c.b16 %v706, %v705
  %v722 = vpack.c.b16 %v708, %v707
  %v723 = vpack.c.b16 %v710, %v709
  %v724 = vpack.c.b16 %v712, %v711
  %v725 = vpack.c.b16 %v714, %v713
  %v726 = vpack.c.b16 %v716, %v715
  %v727 = vpack.c.b16 %v718, %v717
  %v728 = vpack.c.b16 %v720, %v719
  %737 = vmatprep.subr.bf16.mxu0 0
  %738 = vmatpush1.bf16.msra.mxu0 %v721
  %739 = vmatprep.subr.bf16.mxu0 0
  %740 = vmatpush1.bf16.msra.mxu0 %v722
  %741 = vmatprep.subr.bf16.mxu0 0
  %742 = vmatpush1.bf16.msra.mxu0 %v723
  %743 = vmatprep.subr.bf16.mxu0 0
  %744 = vmatpush1.bf16.msra.mxu0 %v724
  %745 = vmatprep.subr.bf16.mxu0 0
  %746 = vmatpush1.bf16.msra.mxu0 %v725
  %747 = vmatprep.subr.bf16.mxu0 0
  %748 = vmatpush1.bf16.msra.mxu0 %v726
  %749 = vmatprep.subr.bf16.mxu0 0
  %750 = vmatpush1.bf16.msra.mxu0 %v727
  %751 = vmatprep.subr.bf16.mxu0 0
  %752 = vmatpush1.bf16.msra.mxu0 %v728
  %753 = vmatprep.subr.bf16.mxu0 0
  %754 = vmatpush1.bf16.msra.mxu0 0
  %755 = vmatprep.subr.bf16.mxu0 0
  %756 = vmatpush1.bf16.msra.mxu0 0
  %757 = vmatprep.subr.bf16.mxu0 0
  %758 = vmatpush1.bf16.msra.mxu0 0
  %759 = vmatprep.subr.bf16.mxu0 0
  %760 = vmatpush1.bf16.msra.mxu0 0
  %761 = vmatprep.subr.bf16.mxu0 0
  %762 = vmatpush1.bf16.msra.mxu0 0
  %763 = vmatprep.subr.bf16.mxu0 0
  %764 = vmatpush1.bf16.msra.mxu0 0
  %765 = vmatprep.subr.bf16.mxu0 0
  %766 = vmatpush1.bf16.msra.mxu0 0
  %767 = vmatprep.subr.bf16.mxu0 0
  %768 = vmatpush1.bf16.msra.mxu0 0
  %769 = vmatprep.mubr.bf16.mxu0 0
  %770 = vmatmul.mubr.bf16.gmra.mrb[0].mxu0 %v561
  %v771 = vpop.f32.mrb[0].mxu0
  %v772 = vadd.f32 0.0, %v771
  %v773 = vpop.f32.mrb[0].mxu0
  %v774 = vpop.f32.mrb[0].mxu0
  %v775 = vadd.f32 0.0, %v774
  %v776 = vpop.f32.mrb[0].mxu0
  %777 = vmatprep.mubr.bf16.mxu0 0
  %778 = vmatmul.mubr.bf16.gmra.mrb[0].mxu0 %v562
  %v779 = vpop.f32.mrb[0].mxu0
  %v780 = vadd.f32 0.0, %v779
  %v781 = vpop.f32.mrb[0].mxu0
  %v782 = vpop.f32.mrb[0].mxu0
  %v783 = vadd.f32 0.0, %v782
  %v784 = vpop.f32.mrb[0].mxu0
  %785 = vmatprep.mubr.bf16.mxu0 0
  %786 = vmatmul.mubr.bf16.gmra.mrb[0].mxu0 %v563
  %v787 = vpop.f32.mrb[0].mxu0
  %v788 = vadd.f32 0.0, %v787
  %v789 = vpop.f32.mrb[0].mxu0
  %v790 = vpop.f32.mrb[0].mxu0
  %v791 = vadd.f32 0.0, %v790
  %v792 = vpop.f32.mrb[0].mxu0
  %793 = vmatprep.mubr.bf16.mxu0 0
  %794 = vmatmul.mubr.bf16.gmra.mrb[0].mxu0 %v564
  %v795 = vpop.f32.mrb[0].mxu0
  %v796 = vadd.f32 0.0, %v795
  %v797 = vpop.f32.mrb[0].mxu0
  %v798 = vpop.f32.mrb[0].mxu0
  %v799 = vadd.f32 0.0, %v798
  %v800 = vpop.f32.mrb[0].mxu0
  %801 = vmatprep.mubr.bf16.mxu0 0
  %802 = vmatmul.mubr.bf16.gmra.mrb[0].mxu0 %v565
  %v803 = vpop.f32.mrb[0].mxu0
  %v804 = vadd.f32 0.0, %v803
  %v805 = vpop.f32.mrb[0].mxu0
  %v806 = vpop.f32.mrb[0].mxu0
  %v807 = vadd.f32 0.0, %v806
  %v808 = vpop.f32.mrb[0].mxu0
  %809 = vmatprep.mubr.bf16.mxu0 0
  %810 = vmatmul.mubr.bf16.gmra.mrb[0].mxu0 %v566
  %v811 = vpop.f32.mrb[0].mxu0
  %v812 = vadd.f32 0.0, %v811
  %v813 = vpop.f32.mrb[0].mxu0
  %v814 = vpop.f32.mrb[0].mxu0
  %v815 = vadd.f32 0.0, %v814
  %v816 = vpop.f32.mrb[0].mxu0
  %817 = vmatprep.mubr.bf16.mxu0 0
  %818 = vmatmul.mubr.bf16.gmra.mrb[0].mxu0 %v567
  %v819 = vpop.f32.mrb[0].mxu0
  %v820 = vadd.f32 0.0, %v819
  %v821 = vpop.f32.mrb[0].mxu0
  %v822 = vpop.f32.mrb[0].mxu0
  %v823 = vadd.f32 0.0, %v822
  %v824 = vpop.f32.mrb[0].mxu0
  %825 = vmatprep.mubr.bf16.mxu0 0
  %826 = vmatmul.mubr.bf16.gmra.mrb[0].mxu0 %v568
  %v827 = vpop.f32.mrb[0].mxu0
  %v828 = vadd.f32 0.0, %v827
  %v829 = vpop.f32.mrb[0].mxu0
  %v830 = vpop.f32.mrb[0].mxu0
  %v831 = vadd.f32 0.0, %v830
  %v832 = vpop.f32.mrb[0].mxu0
  %833 = vmatprep.mubr.bf16.mxu0 0
  %834 = vmatmul.mubr.bf16.gmra.mrb[0].mxu0 %v569
  %v835 = vpop.f32.mrb[0].mxu0
  %v836 = vadd.f32 0.0, %v835
  %v837 = vpop.f32.mrb[0].mxu0
  %v838 = vpop.f32.mrb[0].mxu0
  %v839 = vadd.f32 0.0, %v838
  %v840 = vpop.f32.mrb[0].mxu0
  %841 = vmatprep.mubr.bf16.mxu0 0
  %842 = vmatmul.mubr.bf16.gmra.mrb[0].mxu0 %v570
  %v843 = vpop.f32.mrb[0].mxu0
  %v844 = vadd.f32 0.0, %v843
  %v845 = vpop.f32.mrb[0].mxu0
  %v846 = vpop.f32.mrb[0].mxu0
  %v847 = vadd.f32 0.0, %v846
  %v848 = vpop.f32.mrb[0].mxu0
  %849 = vmatprep.mubr.bf16.mxu0 0
  %850 = vmatmul.mubr.bf16.gmra.mrb[0].mxu0 %v571
  %v851 = vpop.f32.mrb[0].mxu0
  %v852 = vadd.f32 0.0, %v851
  %v853 = vpop.f32.mrb[0].mxu0
  %v854 = vpop.f32.mrb[0].mxu0
  %v855 = vadd.f32 0.0, %v854
  %v856 = vpop.f32.mrb[0].mxu0
  %857 = vmatprep.mubr.bf16.mxu0 0
  %858 = vmatmul.mubr.bf16.gmra.mrb[0].mxu0 %v572
  %v859 = vpop.f32.mrb[0].mxu0
  %v860 = vadd.f32 0.0, %v859
  %v861 = vpop.f32.mrb[0].mxu0
  %v862 = vpop.f32.mrb[0].mxu0
  %v863 = vadd.f32 0.0, %v862
  %v864 = vpop.f32.mrb[0].mxu0
  %865 = vmatprep.mubr.bf16.mxu0 0
  %866 = vmatmul.mubr.bf16.gmra.mrb[0].mxu0 %v573
  %v867 = vpop.f32.mrb[0].mxu0
  %v868 = vadd.f32 0.0, %v867
  %v869 = vpop.f32.mrb[0].mxu0
  %v870 = vpop.f32.mrb[0].mxu0
  %v871 = vadd.f32 0.0, %v870
  %v872 = vpop.f32.mrb[0].mxu0
  %873 = vmatprep.mubr.bf16.mxu0 0
  %874 = vmatmul.mubr.bf16.gmra.mrb[0].mxu0 %v574
  %v875 = vpop.f32.mrb[0].mxu0
  %v876 = vadd.f32 0.0, %v875
  %v877 = vpop.f32.mrb[0].mxu0
  %v878 = vpop.f32.mrb[0].mxu0
  %v879 = vadd.f32 0.0, %v878
  %v880 = vpop.f32.mrb[0].mxu0
  %881 = vmatprep.mubr.bf16.mxu0 0
  %882 = vmatmul.mubr.bf16.gmra.mrb[0].mxu0 %v575
  %v883 = vpop.f32.mrb[0].mxu0
  %v884 = vadd.f32 0.0, %v883
  %v885 = vpop.f32.mrb[0].mxu0
  %v886 = vpop.f32.mrb[0].mxu0
  %v887 = vadd.f32 0.0, %v886
  %v888 = vpop.f32.mrb[0].mxu0
  %889 = vmatprep.mubr.bf16.mxu0 0
  %890 = vmatmul.mubr.bf16.gmra.mrb[0].mxu0 %v576
  %v891 = vpop.f32.mrb[0].mxu0
  %v892 = vadd.f32 0.0, %v891
  %v893 = vpop.f32.mrb[0].mxu0
  %v894 = vpop.f32.mrb[0].mxu0
  %v895 = vadd.f32 0.0, %v894
  %v896 = vpop.f32.mrb[0].mxu0
  %897 = vmatprep.mubr.bf16.mxu0 0
  %898 = vmatmul.mubr.bf16.gmra.mrb[0].mxu0 %v577
  %v899 = vpop.f32.mrb[0].mxu0
  %v900 = vadd.f32 0.0, %v899
  %v901 = vpop.f32.mrb[0].mxu0
  %v902 = vpop.f32.mrb[0].mxu0
  %v903 = vadd.f32 0.0, %v902
  %v904 = vpop.f32.mrb[0].mxu0
  %905 = vmatprep.mubr.bf16.mxu0 0
  %906 = vmatmul.mubr.bf16.gmra.mrb[0].mxu0 %v578
  %v907 = vpop.f32.mrb[0].mxu0
  %v908 = vadd.f32 0.0, %v907
  %v909 = vpop.f32.mrb[0].mxu0
  %v910 = vpop.f32.mrb[0].mxu0
  %v911 = vadd.f32 0.0, %v910
  %v912 = vpop.f32.mrb[0].mxu0
  %913 = vmatprep.mubr.bf16.mxu0 0
  %914 = vmatmul.mubr.bf16.gmra.mrb[0].mxu0 %v579
  %v915 = vpop.f32.mrb[0].mxu0
  %v916 = vadd.f32 0.0, %v915
  %v917 = vpop.f32.mrb[0].mxu0
  %v918 = vpop.f32.mrb[0].mxu0
  %v919 = vadd.f32 0.0, %v918
  %v920 = vpop.f32.mrb[0].mxu0
  %921 = vmatprep.mubr.bf16.mxu0 0
  %922 = vmatmul.mubr.bf16.gmra.mrb[0].mxu0 %v580
  %v923 = vpop.f32.mrb[0].mxu0
  %v924 = vadd.f32 0.0, %v923
  %v925 = vpop.f32.mrb[0].mxu0
  %v926 = vpop.f32.mrb[0].mxu0
  %v927 = vadd.f32 0.0, %v926
  %v928 = vpop.f32.mrb[0].mxu0
  %929 = vmatprep.mubr.bf16.mxu0 0
  %930 = vmatmul.mubr.bf16.gmra.mrb[0].mxu0 %v581
  %v931 = vpop.f32.mrb[0].mxu0
  %v932 = vadd.f32 0.0, %v931
  %v933 = vpop.f32.mrb[0].mxu0
  %v934 = vpop.f32.mrb[0].mxu0
  %v935 = vadd.f32 0.0, %v934
  %v936 = vpop.f32.mrb[0].mxu0
  %937 = vmatprep.mubr.bf16.mxu0 0
  %938 = vmatmul.mubr.bf16.gmra.mrb[0].mxu0 %v582
  %v939 = vpop.f32.mrb[0].mxu0
  %v940 = vadd.f32 0.0, %v939
  %v941 = vpop.f32.mrb[0].mxu0
  %v942 = vpop.f32.mrb[0].mxu0
  %v943 = vadd.f32 0.0, %v942
  %v944 = vpop.f32.mrb[0].mxu0
  %945 = vmatprep.mubr.bf16.mxu0 0
  %946 = vmatmul.mubr.bf16.gmra.mrb[0].mxu0 %v583
  %v947 = vpop.f32.mrb[0].mxu0
  %v948 = vadd.f32 0.0, %v947
  %v949 = vpop.f32.mrb[0].mxu0
  %v950 = vpop.f32.mrb[0].mxu0
  %v951 = vadd.f32 0.0, %v950
  %v952 = vpop.f32.mrb[0].mxu0
  %953 = vmatprep.mubr.bf16.mxu0 0
  %954 = vmatmul.mubr.bf16.gmra.mrb[0].mxu0 %v584
  %v955 = vpop.f32.mrb[0].mxu0
  %v956 = vadd.f32 0.0, %v955
  %v957 = vpop.f32.mrb[0].mxu0
  %v958 = vpop.f32.mrb[0].mxu0
  %v959 = vadd.f32 0.0, %v958
  %v960 = vpop.f32.mrb[0].mxu0
  %961 = vmatprep.mubr.bf16.mxu0 0
  %962 = vmatmul.mubr.bf16.gmra.mrb[0].mxu0 %v585
  %v963 = vpop.f32.mrb[0].mxu0
  %v964 = vadd.f32 0.0, %v963
  %v965 = vpop.f32.mrb[0].mxu0
  %v966 = vpop.f32.mrb[0].mxu0
  %v967 = vadd.f32 0.0, %v966
  %v968 = vpop.f32.mrb[0].mxu0
  %969 = vmatprep.mubr.bf16.mxu0 0
  %970 = vmatmul.mubr.bf16.gmra.mrb[0].mxu0 %v586
  %v971 = vpop.f32.mrb[0].mxu0
  %v972 = vadd.f32 0.0, %v971
  %v973 = vpop.f32.mrb[0].mxu0
  %v974 = vpop.f32.mrb[0].mxu0
  %v975 = vadd.f32 0.0, %v974
  %v976 = vpop.f32.mrb[0].mxu0
  %977 = vmatprep.mubr.bf16.mxu0 0
  %978 = vmatmul.mubr.bf16.gmra.mrb[0].mxu0 %v587
  %v979 = vpop.f32.mrb[0].mxu0
  %v980 = vadd.f32 0.0, %v979
  %v981 = vpop.f32.mrb[0].mxu0
  %v982 = vpop.f32.mrb[0].mxu0
  %v983 = vadd.f32 0.0, %v982
  %v984 = vpop.f32.mrb[0].mxu0
  %985 = vmatprep.mubr.bf16.mxu0 0
  %986 = vmatmul.mubr.bf16.gmra.mrb[0].mxu0 %v588
  %v987 = vpop.f32.mrb[0].mxu0
  %v988 = vadd.f32 0.0, %v987
  %v989 = vpop.f32.mrb[0].mxu0
  %v990 = vpop.f32.mrb[0].mxu0
  %v991 = vadd.f32 0.0, %v990
  %v992 = vpop.f32.mrb[0].mxu0
  %993 = vmatprep.mubr.bf16.mxu0 0
  %994 = vmatmul.mubr.bf16.gmra.mrb[0].mxu0 %v589
  %v995 = vpop.f32.mrb[0].mxu0
  %v996 = vadd.f32 0.0, %v995
  %v997 = vpop.f32.mrb[0].mxu0
  %v998 = vpop.f32.mrb[0].mxu0
  %v999 = vadd.f32 0.0, %v998
  %v1000 = vpop.f32.mrb[0].mxu0
  %1001 = vmatprep.mubr.bf16.mxu0 0
  %1002 = vmatmul.mubr.bf16.gmra.mrb[0].mxu0 %v590
  %v1003 = vpop.f32.mrb[0].mxu0
  %v1004 = vadd.f32 0.0, %v1003
  %v1005 = vpop.f32.mrb[0].mxu0
  %v1006 = vpop.f32.mrb[0].mxu0
  %v1007 = vadd.f32 0.0, %v1006
  %v1008 = vpop.f32.mrb[0].mxu0
  %1009 = vmatprep.mubr.bf16.mxu0 0
  %1010 = vmatmul.mubr.bf16.gmra.mrb[0].mxu0 %v591
  %v1011 = vpop.f32.mrb[0].mxu0
  %v1012 = vadd.f32 0.0, %v1011
  %v1013 = vpop.f32.mrb[0].mxu0
  %v1014 = vpop.f32.mrb[0].mxu0
  %v1015 = vadd.f32 0.0, %v1014
  %v1016 = vpop.f32.mrb[0].mxu0
  %1017 = vmatprep.mubr.bf16.mxu0 0
  %1018 = vmatmul.mubr.bf16.gmra.mrb[0].mxu0 %v592
  %v1019 = vpop.f32.mrb[0].mxu0
  %v1020 = vadd.f32 0.0, %v1019
  %v1021 = vpop.f32.mrb[0].mxu0
  %v1022 = vpop.f32.mrb[0].mxu0
  %v1023 = vadd.f32 0.0, %v1022
  %v1024 = vpop.f32.mrb[0].mxu0
  %1025 = vmatprep.mubr.bf16.mxu0 0
  %1026 = vmatmul.mubr.bf16.gmra.mrb[0].mxu0 %v593
  %v1027 = vpop.f32.mrb[0].mxu0
  %v1028 = vadd.f32 0.0, %v1027
  %v1029 = vpop.f32.mrb[0].mxu0
  %v1030 = vpop.f32.mrb[0].mxu0
  %v1031 = vadd.f32 0.0, %v1030
  %v1032 = vpop.f32.mrb[0].mxu0
  %1033 = vmatprep.mubr.bf16.mxu0 0
  %1034 = vmatmul.mubr.bf16.gmra.mrb[0].mxu0 %v594
  %v1035 = vpop.f32.mrb[0].mxu0
  %v1036 = vadd.f32 0.0, %v1035
  %v1037 = vpop.f32.mrb[0].mxu0
  %v1038 = vpop.f32.mrb[0].mxu0
  %v1039 = vadd.f32 0.0, %v1038
  %v1040 = vpop.f32.mrb[0].mxu0
  %1041 = vmatprep.mubr.bf16.mxu0 0
  %1042 = vmatmul.mubr.bf16.gmra.mrb[0].mxu0 %v595
  %v1043 = vpop.f32.mrb[0].mxu0
  %v1044 = vadd.f32 0.0, %v1043
  %v1045 = vpop.f32.mrb[0].mxu0
  %v1046 = vpop.f32.mrb[0].mxu0
  %v1047 = vadd.f32 0.0, %v1046
  %v1048 = vpop.f32.mrb[0].mxu0
  %1049 = vmatprep.mubr.bf16.mxu0 0
  %1050 = vmatmul.mubr.bf16.gmra.mrb[0].mxu0 %v596
  %v1051 = vpop.f32.mrb[0].mxu0
  %v1052 = vadd.f32 0.0, %v1051
  %v1053 = vpop.f32.mrb[0].mxu0
  %v1054 = vpop.f32.mrb[0].mxu0
  %v1055 = vadd.f32 0.0, %v1054
  %v1056 = vpop.f32.mrb[0].mxu0
  %1057 = vmatprep.mubr.bf16.mxu0 0
  %1058 = vmatmul.mubr.bf16.gmra.mrb[0].mxu0 %v597
  %v1059 = vpop.f32.mrb[0].mxu0
  %v1060 = vadd.f32 0.0, %v1059
  %v1061 = vpop.f32.mrb[0].mxu0
  %v1062 = vpop.f32.mrb[0].mxu0
  %v1063 = vadd.f32 0.0, %v1062
  %v1064 = vpop.f32.mrb[0].mxu0
  %1065 = vmatprep.mubr.bf16.mxu0 0
  %1066 = vmatmul.mubr.bf16.gmra.mrb[0].mxu0 %v598
  %v1067 = vpop.f32.mrb[0].mxu0
  %v1068 = vadd.f32 0.0, %v1067
  %v1069 = vpop.f32.mrb[0].mxu0
  %v1070 = vpop.f32.mrb[0].mxu0
  %v1071 = vadd.f32 0.0, %v1070
  %v1072 = vpop.f32.mrb[0].mxu0
  %1073 = vmatprep.mubr.bf16.mxu0 0
  %1074 = vmatmul.mubr.bf16.gmra.mrb[0].mxu0 %v599
  %v1075 = vpop.f32.mrb[0].mxu0
  %v1076 = vadd.f32 0.0, %v1075
  %v1077 = vpop.f32.mrb[0].mxu0
  %v1078 = vpop.f32.mrb[0].mxu0
  %v1079 = vadd.f32 0.0, %v1078
  %v1080 = vpop.f32.mrb[0].mxu0
  %1081 = vmatprep.mubr.bf16.mxu0 0
  %1082 = vmatmul.mubr.bf16.gmra.mrb[0].mxu0 %v600
  %v1083 = vpop.f32.mrb[0].mxu0
  %v1084 = vadd.f32 0.0, %v1083
  %v1085 = vpop.f32.mrb[0].mxu0
  %v1086 = vpop.f32.mrb[0].mxu0
  %v1087 = vadd.f32 0.0, %v1086
  %v1088 = vpop.f32.mrb[0].mxu0
  %1089 = vmatprep.mubr.bf16.mxu0 0
  %1090 = vmatmul.mubr.bf16.gmra.mrb[0].mxu0 %v601
  %v1091 = vpop.f32.mrb[0].mxu0
  %v1092 = vadd.f32 0.0, %v1091
  %v1093 = vpop.f32.mrb[0].mxu0
  %v1094 = vpop.f32.mrb[0].mxu0
  %v1095 = vadd.f32 0.0, %v1094
  %v1096 = vpop.f32.mrb[0].mxu0
  %1097 = vmatprep.mubr.bf16.mxu0 0
  %1098 = vmatmul.mubr.bf16.gmra.mrb[0].mxu0 %v602
  %v1099 = vpop.f32.mrb[0].mxu0
  %v1100 = vadd.f32 0.0, %v1099
  %v1101 = vpop.f32.mrb[0].mxu0
  %v1102 = vpop.f32.mrb[0].mxu0
  %v1103 = vadd.f32 0.0, %v1102
  %v1104 = vpop.f32.mrb[0].mxu0
  %1105 = vmatprep.mubr.bf16.mxu0 0
  %1106 = vmatmul.mubr.bf16.gmra.mrb[0].mxu0 %v603
  %v1107 = vpop.f32.mrb[0].mxu0
  %v1108 = vadd.f32 0.0, %v1107
  %v1109 = vpop.f32.mrb[0].mxu0
  %v1110 = vpop.f32.mrb[0].mxu0
  %v1111 = vadd.f32 0.0, %v1110
  %v1112 = vpop.f32.mrb[0].mxu0
  %1113 = vmatprep.mubr.bf16.mxu0 0
  %1114 = vmatmul.mubr.bf16.gmra.mrb[0].mxu0 %v604
  %v1115 = vpop.f32.mrb[0].mxu0
  %v1116 = vadd.f32 0.0, %v1115
  %v1117 = vpop.f32.mrb[0].mxu0
  %v1118 = vpop.f32.mrb[0].mxu0
  %v1119 = vadd.f32 0.0, %v1118
  %v1120 = vpop.f32.mrb[0].mxu0
  %1121 = vmatprep.mubr.bf16.mxu0 0
  %1122 = vmatmul.mubr.bf16.gmra.mrb[0].mxu0 %v605
  %v1123 = vpop.f32.mrb[0].mxu0
  %v1124 = vadd.f32 0.0, %v1123
  %v1125 = vpop.f32.mrb[0].mxu0
  %v1126 = vpop.f32.mrb[0].mxu0
  %v1127 = vadd.f32 0.0, %v1126
  %v1128 = vpop.f32.mrb[0].mxu0
  %1129 = vmatprep.mubr.bf16.mxu0 0
  %1130 = vmatmul.mubr.bf16.gmra.mrb[0].mxu0 %v606
  %v1131 = vpop.f32.mrb[0].mxu0
  %v1132 = vadd.f32 0.0, %v1131
  %v1133 = vpop.f32.mrb[0].mxu0
  %v1134 = vpop.f32.mrb[0].mxu0
  %v1135 = vadd.f32 0.0, %v1134
  %v1136 = vpop.f32.mrb[0].mxu0
  %1137 = vmatprep.mubr.bf16.mxu0 0
  %1138 = vmatmul.mubr.bf16.gmra.mrb[0].mxu0 %v607
  %v1139 = vpop.f32.mrb[0].mxu0
  %v1140 = vadd.f32 0.0, %v1139
  %v1141 = vpop.f32.mrb[0].mxu0
  %v1142 = vpop.f32.mrb[0].mxu0
  %v1143 = vadd.f32 0.0, %v1142
  %v1144 = vpop.f32.mrb[0].mxu0
  %1145 = vmatprep.mubr.bf16.mxu0 0
  %1146 = vmatmul.mubr.bf16.gmra.mrb[0].mxu0 %v608
  %v1147 = vpop.f32.mrb[0].mxu0
  %v1148 = vadd.f32 0.0, %v1147
  %v1149 = vpop.f32.mrb[0].mxu0
  %v1150 = vpop.f32.mrb[0].mxu0
  %v1151 = vadd.f32 0.0, %v1150
  %v1152 = vpop.f32.mrb[0].mxu0
  %1153 = vmatprep.mubr.bf16.mxu0 0
  %1154 = vmatmul.mubr.bf16.gmra.mrb[0].mxu0 %v609
  %v1155 = vpop.f32.mrb[0].mxu0
  %v1156 = vadd.f32 0.0, %v1155
  %v1157 = vpop.f32.mrb[0].mxu0
  %v1158 = vpop.f32.mrb[0].mxu0
  %v1159 = vadd.f32 0.0, %v1158
  %v1160 = vpop.f32.mrb[0].mxu0
  %1161 = vmatprep.mubr.bf16.mxu0 0
  %1162 = vmatmul.mubr.bf16.gmra.mrb[0].mxu0 %v610
  %v1163 = vpop.f32.mrb[0].mxu0
  %v1164 = vadd.f32 0.0, %v1163
  %v1165 = vpop.f32.mrb[0].mxu0
  %v1166 = vpop.f32.mrb[0].mxu0
  %v1167 = vadd.f32 0.0, %v1166
  %v1168 = vpop.f32.mrb[0].mxu0
  %1169 = vmatprep.mubr.bf16.mxu0 0
  %1170 = vmatmul.mubr.bf16.gmra.mrb[0].mxu0 %v611
  %v1171 = vpop.f32.mrb[0].mxu0
  %v1172 = vadd.f32 0.0, %v1171
  %v1173 = vpop.f32.mrb[0].mxu0
  %v1174 = vpop.f32.mrb[0].mxu0
  %v1175 = vadd.f32 0.0, %v1174
  %v1176 = vpop.f32.mrb[0].mxu0
  %1177 = vmatprep.mubr.bf16.mxu0 0
  %1178 = vmatmul.mubr.bf16.gmra.mrb[0].mxu0 %v612
  %v1179 = vpop.f32.mrb[0].mxu0
  %v1180 = vadd.f32 0.0, %v1179
  %v1181 = vpop.f32.mrb[0].mxu0
  %v1182 = vpop.f32.mrb[0].mxu0
  %v1183 = vadd.f32 0.0, %v1182
  %v1184 = vpop.f32.mrb[0].mxu0
  %1185 = vmatprep.mubr.bf16.mxu0 0
  %1186 = vmatmul.mubr.bf16.gmra.mrb[0].mxu0 %v613
  %v1187 = vpop.f32.mrb[0].mxu0
  %v1188 = vadd.f32 0.0, %v1187
  %v1189 = vpop.f32.mrb[0].mxu0
  %v1190 = vpop.f32.mrb[0].mxu0
  %v1191 = vadd.f32 0.0, %v1190
  %v1192 = vpop.f32.mrb[0].mxu0
  %1193 = vmatprep.mubr.bf16.mxu0 0
  %1194 = vmatmul.mubr.bf16.gmra.mrb[0].mxu0 %v614
  %v1195 = vpop.f32.mrb[0].mxu0
  %v1196 = vadd.f32 0.0, %v1195
  %v1197 = vpop.f32.mrb[0].mxu0
  %v1198 = vpop.f32.mrb[0].mxu0
  %v1199 = vadd.f32 0.0, %v1198
  %v1200 = vpop.f32.mrb[0].mxu0
  %1201 = vmatprep.mubr.bf16.mxu0 0
  %1202 = vmatmul.mubr.bf16.gmra.mrb[0].mxu0 %v615
  %v1203 = vpop.f32.mrb[0].mxu0
  %v1204 = vadd.f32 0.0, %v1203
  %v1205 = vpop.f32.mrb[0].mxu0
  %v1206 = vpop.f32.mrb[0].mxu0
  %v1207 = vadd.f32 0.0, %v1206
  %v1208 = vpop.f32.mrb[0].mxu0
  %1209 = vmatprep.mubr.bf16.mxu0 0
  %1210 = vmatmul.mubr.bf16.gmra.mrb[0].mxu0 %v616
  %v1211 = vpop.f32.mrb[0].mxu0
  %v1212 = vadd.f32 0.0, %v1211
  %v1213 = vpop.f32.mrb[0].mxu0
  %v1214 = vpop.f32.mrb[0].mxu0
  %v1215 = vadd.f32 0.0, %v1214
  %v1216 = vpop.f32.mrb[0].mxu0
  %1217 = vmatprep.mubr.bf16.mxu0 0
  %1218 = vmatmul.mubr.bf16.gmra.mrb[0].mxu0 %v617
  %v1219 = vpop.f32.mrb[0].mxu0
  %v1220 = vadd.f32 0.0, %v1219
  %v1221 = vpop.f32.mrb[0].mxu0
  %v1222 = vpop.f32.mrb[0].mxu0
  %v1223 = vadd.f32 0.0, %v1222
  %v1224 = vpop.f32.mrb[0].mxu0
  %1225 = vmatprep.mubr.bf16.mxu0 0
  %1226 = vmatmul.mubr.bf16.gmra.mrb[0].mxu0 %v618
  %v1227 = vpop.f32.mrb[0].mxu0
  %v1228 = vadd.f32 0.0, %v1227
  %v1229 = vpop.f32.mrb[0].mxu0
  %v1230 = vpop.f32.mrb[0].mxu0
  %v1231 = vadd.f32 0.0, %v1230
  %v1232 = vpop.f32.mrb[0].mxu0
  %1233 = vmatprep.mubr.bf16.mxu0 0
  %1234 = vmatmul.mubr.bf16.gmra.mrb[0].mxu0 %v619
  %v1235 = vpop.f32.mrb[0].mxu0
  %v1236 = vadd.f32 0.0, %v1235
  %v1237 = vpop.f32.mrb[0].mxu0
  %v1238 = vpop.f32.mrb[0].mxu0
  %v1239 = vadd.f32 0.0, %v1238
  %v1240 = vpop.f32.mrb[0].mxu0
  %1241 = vmatprep.mubr.bf16.mxu0 0
  %1242 = vmatmul.mubr.bf16.gmra.mrb[0].mxu0 %v620
  %v1243 = vpop.f32.mrb[0].mxu0
  %v1244 = vadd.f32 0.0, %v1243
  %v1245 = vpop.f32.mrb[0].mxu0
  %v1246 = vpop.f32.mrb[0].mxu0
  %v1247 = vadd.f32 0.0, %v1246
  %v1248 = vpop.f32.mrb[0].mxu0
  %1249 = vmatprep.mubr.bf16.mxu0 0
  %1250 = vmatmul.mubr.bf16.gmra.mrb[0].mxu0 %v621
  %v1251 = vpop.f32.mrb[0].mxu0
  %v1252 = vadd.f32 0.0, %v1251
  %v1253 = vpop.f32.mrb[0].mxu0
  %v1254 = vpop.f32.mrb[0].mxu0
  %v1255 = vadd.f32 0.0, %v1254
  %v1256 = vpop.f32.mrb[0].mxu0
  %1257 = vmatprep.mubr.bf16.mxu0 0
  %1258 = vmatmul.mubr.bf16.gmra.mrb[0].mxu0 %v622
  %v1259 = vpop.f32.mrb[0].mxu0
  %v1260 = vadd.f32 0.0, %v1259
  %v1261 = vpop.f32.mrb[0].mxu0
  %v1262 = vpop.f32.mrb[0].mxu0
  %v1263 = vadd.f32 0.0, %v1262
  %v1264 = vpop.f32.mrb[0].mxu0
  %1265 = vmatprep.mubr.bf16.mxu0 0
  %1266 = vmatmul.mubr.bf16.gmra.mrb[0].mxu0 %v623
  %v1267 = vpop.f32.mrb[0].mxu0
  %v1268 = vadd.f32 0.0, %v1267
  %v1269 = vpop.f32.mrb[0].mxu0
  %v1270 = vpop.f32.mrb[0].mxu0
  %v1271 = vadd.f32 0.0, %v1270
  %v1272 = vpop.f32.mrb[0].mxu0
  %1273 = vmatprep.mubr.bf16.mxu0 0
  %1274 = vmatmul.mubr.bf16.gmra.mrb[0].mxu0 %v624
  %v1275 = vpop.f32.mrb[0].mxu0
  %v1276 = vadd.f32 0.0, %v1275
  %v1277 = vpop.f32.mrb[0].mxu0
  %v1278 = vpop.f32.mrb[0].mxu0
  %v1279 = vadd.f32 0.0, %v1278
  %v1280 = vpop.f32.mrb[0].mxu0
  %1281 = vdwg.mxu0
  %v1283 = vlaneseq
  %v1284 = vshrl.u32 %v1283, 7
  %v1285 = vsub.s32 0, %v1284
  %v1286 = vrot.slane %v203, %v1285
  %v1288 = vadd.f32 %v772, %v1286
  %v1289 = vadd.f32 %v775, %v1286
  %v1290 = vadd.f32 %v780, %v1286
  %v1291 = vadd.f32 %v783, %v1286
  %v1292 = vadd.f32 %v788, %v1286
  %v1293 = vadd.f32 %v791, %v1286
  %v1294 = vadd.f32 %v796, %v1286
  %v1295 = vadd.f32 %v799, %v1286
  %v1296 = vadd.f32 %v804, %v1286
  %v1297 = vadd.f32 %v807, %v1286
  %v1298 = vadd.f32 %v812, %v1286
  %v1299 = vadd.f32 %v815, %v1286
  %v1300 = vadd.f32 %v820, %v1286
  %v1301 = vadd.f32 %v823, %v1286
  %v1302 = vadd.f32 %v828, %v1286
  %v1303 = vadd.f32 %v831, %v1286
  %v1304 = vadd.f32 %v836, %v1286
  %v1305 = vadd.f32 %v839, %v1286
  %v1306 = vadd.f32 %v844, %v1286
  %v1307 = vadd.f32 %v847, %v1286
  %v1308 = vadd.f32 %v852, %v1286
  %v1309 = vadd.f32 %v855, %v1286
  %v1310 = vadd.f32 %v860, %v1286
  %v1311 = vadd.f32 %v863, %v1286
  %v1312 = vadd.f32 %v868, %v1286
  %v1313 = vadd.f32 %v871, %v1286
  %v1314 = vadd.f32 %v876, %v1286
  %v1315 = vadd.f32 %v879, %v1286
  %v1316 = vadd.f32 %v884, %v1286
  %v1317 = vadd.f32 %v887, %v1286
  %v1318 = vadd.f32 %v892, %v1286
  %v1319 = vadd.f32 %v895, %v1286
  %v1320 = vadd.f32 %v900, %v1286
  %v1321 = vadd.f32 %v903, %v1286
  %v1322 = vadd.f32 %v908, %v1286
  %v1323 = vadd.f32 %v911, %v1286
  %v1324 = vadd.f32 %v916, %v1286
  %v1325 = vadd.f32 %v919, %v1286
  %v1326 = vadd.f32 %v924, %v1286
  %v1327 = vadd.f32 %v927, %v1286
  %v1328 = vadd.f32 %v932, %v1286
  %v1329 = vadd.f32 %v935, %v1286
  %v1330 = vadd.f32 %v940, %v1286
  %v1331 = vadd.f32 %v943, %v1286
  %v1332 = vadd.f32 %v948, %v1286
  %v1333 = vadd.f32 %v951, %v1286
  %v1334 = vadd.f32 %v956, %v1286
  %v1335 = vadd.f32 %v959, %v1286
  %v1336 = vadd.f32 %v964, %v1286
  %v1337 = vadd.f32 %v967, %v1286
  %v1338 = vadd.f32 %v972, %v1286
  %v1339 = vadd.f32 %v975, %v1286
  %v1340 = vadd.f32 %v980, %v1286
  %v1341 = vadd.f32 %v983, %v1286
  %v1342 = vadd.f32 %v988, %v1286
  %v1343 = vadd.f32 %v991, %v1286
  %v1344 = vadd.f32 %v996, %v1286
  %v1345 = vadd.f32 %v999, %v1286
  %v1346 = vadd.f32 %v1004, %v1286
  %v1347 = vadd.f32 %v1007, %v1286
  %v1348 = vadd.f32 %v1012, %v1286
  %v1349 = vadd.f32 %v1015, %v1286
  %v1350 = vadd.f32 %v1020, %v1286
  %v1351 = vadd.f32 %v1023, %v1286
  %v1352 = vadd.f32 %v1028, %v1286
  %v1353 = vadd.f32 %v1031, %v1286
  %v1354 = vadd.f32 %v1036, %v1286
  %v1355 = vadd.f32 %v1039, %v1286
  %v1356 = vadd.f32 %v1044, %v1286
  %v1357 = vadd.f32 %v1047, %v1286
  %v1358 = vadd.f32 %v1052, %v1286
  %v1359 = vadd.f32 %v1055, %v1286
  %v1360 = vadd.f32 %v1060, %v1286
  %v1361 = vadd.f32 %v1063, %v1286
  %v1362 = vadd.f32 %v1068, %v1286
  %v1363 = vadd.f32 %v1071, %v1286
  %v1364 = vadd.f32 %v1076, %v1286
  %v1365 = vadd.f32 %v1079, %v1286
  %v1366 = vadd.f32 %v1084, %v1286
  %v1367 = vadd.f32 %v1087, %v1286
  %v1368 = vadd.f32 %v1092, %v1286
  %v1369 = vadd.f32 %v1095, %v1286
  %v1370 = vadd.f32 %v1100, %v1286
  %v1371 = vadd.f32 %v1103, %v1286
  %v1372 = vadd.f32 %v1108, %v1286
  %v1373 = vadd.f32 %v1111, %v1286
  %v1374 = vadd.f32 %v1116, %v1286
  %v1375 = vadd.f32 %v1119, %v1286
  %v1376 = vadd.f32 %v1124, %v1286
  %v1377 = vadd.f32 %v1127, %v1286
  %v1378 = vadd.f32 %v1132, %v1286
  %v1379 = vadd.f32 %v1135, %v1286
  %v1380 = vadd.f32 %v1140, %v1286
  %v1381 = vadd.f32 %v1143, %v1286
  %v1382 = vadd.f32 %v1148, %v1286
  %v1383 = vadd.f32 %v1151, %v1286
  %v1384 = vadd.f32 %v1156, %v1286
  %v1385 = vadd.f32 %v1159, %v1286
  %v1386 = vadd.f32 %v1164, %v1286
  %v1387 = vadd.f32 %v1167, %v1286
  %v1388 = vadd.f32 %v1172, %v1286
  %v1389 = vadd.f32 %v1175, %v1286
  %v1390 = vadd.f32 %v1180, %v1286
  %v1391 = vadd.f32 %v1183, %v1286
  %v1392 = vadd.f32 %v1188, %v1286
  %v1393 = vadd.f32 %v1191, %v1286
  %v1394 = vadd.f32 %v1196, %v1286
  %v1395 = vadd.f32 %v1199, %v1286
  %v1396 = vadd.f32 %v1204, %v1286
  %v1397 = vadd.f32 %v1207, %v1286
  %v1398 = vadd.f32 %v1212, %v1286
  %v1399 = vadd.f32 %v1215, %v1286
  %v1400 = vadd.f32 %v1220, %v1286
  %v1401 = vadd.f32 %v1223, %v1286
  %v1402 = vadd.f32 %v1228, %v1286
  %v1403 = vadd.f32 %v1231, %v1286
  %v1404 = vadd.f32 %v1236, %v1286
  %v1405 = vadd.f32 %v1239, %v1286
  %v1406 = vadd.f32 %v1244, %v1286
  %v1407 = vadd.f32 %v1247, %v1286
  %v1408 = vadd.f32 %v1252, %v1286
  %v1409 = vadd.f32 %v1255, %v1286
  %v1410 = vadd.f32 %v1260, %v1286
  %v1411 = vadd.f32 %v1263, %v1286
  %v1412 = vadd.f32 %v1268, %v1286
  %v1413 = vadd.f32 %v1271, %v1286
  %v1414 = vadd.f32 %v1276, %v1286
  %v1415 = vadd.f32 %v1279, %v1286
  %v1417 = vlaneseq
  %v1418 = vshrl.u32 %v1417, 7
  %v1419 = vsub.s32 0, %v1418
  %v1420 = vrot.slane %v220, %v1419
  %v1438 = vunpack.c.l.b16 %v204
  %v1439 = vunpack.c.l.b16 %v205
  %v1440 = vunpack.c.l.b16 %v206
  %v1441 = vunpack.c.l.b16 %v207
  %v1442 = vunpack.c.l.b16 %v208
  %v1443 = vunpack.c.l.b16 %v209
  %v1444 = vunpack.c.l.b16 %v210
  %v1445 = vunpack.c.l.b16 %v211
  %v1446 = vunpack.c.l.b16 %v212
  %v1447 = vunpack.c.l.b16 %v213
  %v1448 = vunpack.c.l.b16 %v214
  %v1449 = vunpack.c.l.b16 %v215
  %v1450 = vunpack.c.l.b16 %v216
  %v1451 = vunpack.c.l.b16 %v217
  %v1452 = vunpack.c.l.b16 %v218
  %v1453 = vunpack.c.l.b16 %v219
  %v1454 = vpack.c.b16 %v1439, %v1438
  %v1455 = vpack.c.b16 %v1441, %v1440
  %v1456 = vpack.c.b16 %v1443, %v1442
  %v1457 = vpack.c.b16 %v1445, %v1444
  %v1458 = vpack.c.b16 %v1447, %v1446
  %v1459 = vpack.c.b16 %v1449, %v1448
  %v1460 = vpack.c.b16 %v1451, %v1450
  %v1461 = vpack.c.b16 %v1453, %v1452
  %1470 = vmatprep.subr.bf16.mxu0 0
  %1471 = vmatpush1.bf16.msra.mxu0 %v1454
  %1472 = vmatprep.subr.bf16.mxu0 0
  %1473 = vmatpush1.bf16.msra.mxu0 %v1455
  %1474 = vmatprep.subr.bf16.mxu0 0
  %1475 = vmatpush1.bf16.msra.mxu0 %v1456
  %1476 = vmatprep.subr.bf16.mxu0 0
  %1477 = vmatpush1.bf16.msra.mxu0 %v1457
  %1478 = vmatprep.subr.bf16.mxu0 0
  %1479 = vmatpush1.bf16.msra.mxu0 %v1458
  %1480 = vmatprep.subr.bf16.mxu0 0
  %1481 = vmatpush1.bf16.msra.mxu0 %v1459
  %1482 = vmatprep.subr.bf16.mxu0 0
  %1483 = vmatpush1.bf16.msra.mxu0 %v1460
  %1484 = vmatprep.subr.bf16.mxu0 0
  %1485 = vmatpush1.bf16.msra.mxu0 %v1461
  %1486 = vmatprep.subr.bf16.mxu0 0
  %1487 = vmatpush1.bf16.msra.mxu0 0
  %1488 = vmatprep.subr.bf16.mxu0 0
  %1489 = vmatpush1.bf16.msra.mxu0 0
  %1490 = vmatprep.subr.bf16.mxu0 0
  %1491 = vmatpush1.bf16.msra.mxu0 0
  %1492 = vmatprep.subr.bf16.mxu0 0
  %1493 = vmatpush1.bf16.msra.mxu0 0
  %1494 = vmatprep.subr.bf16.mxu0 0
  %1495 = vmatpush1.bf16.msra.mxu0 0
  %1496 = vmatprep.subr.bf16.mxu0 0
  %1497 = vmatpush1.bf16.msra.mxu0 0
  %1498 = vmatprep.subr.bf16.mxu0 0
  %1499 = vmatpush1.bf16.msra.mxu0 0
  %1500 = vmatprep.subr.bf16.mxu0 0
  %1501 = vmatpush1.bf16.msra.mxu0 0
  %1502 = vmatprep.mubr.bf16.mxu0 0
  %1503 = vmatmul.mubr.bf16.gmra.mrb[0].mxu0 %v304
  %v1504 = vpop.f32.mrb[0].mxu0
  %v1505 = vadd.f32 %v1420, %v1504
  %v1506 = vpop.f32.mrb[0].mxu0
  %v1507 = vpop.f32.mrb[0].mxu0
  %v1508 = vadd.f32 %v1420, %v1507
  %v1509 = vpop.f32.mrb[0].mxu0
  %1510 = vdwg.mxu0
  %v1513 = vcombine.high %v1505, %v1505
  %v1515 = vunpack.c.l.s4 1966171168
  %v1516 = vunpack.c.0.s8 %v1515
  %v1517 = vlaneseq
  %v1518 = vshrl.u32 %v1517, 7
  %v1519 = vsub.s32 %v1516, %v1518
  %v1520 = vrot.slane %v1505, %v1519
  %v1522 = vunpack.c.l.s4 1966171168
  %v1523 = vunpack.c.0.s8 %v1522
  %v1524 = vlaneseq
  %v1525 = vshrl.u32 %v1524, 7
  %v1526 = vsub.s32 %v1523, %v1525
  %v1527 = vrot.slane %v1513, %v1526
  %v1528 = vcombine.high %v1520, %v1520
  %v1529 = vcombine.high %v1527, %v1527
  %v1531 = vunpack.c.l.s4 1966171168
  %v1532 = vunpack.c.0.s8 %v1531
  %v1533 = vlaneseq
  %v1534 = vshrl.u32 %v1533, 7
  %v1535 = vsub.s32 %v1532, %v1534
  %v1536 = vrot.slane %v1520, %v1535
  %v1538 = vunpack.c.l.s4 1966171168
  %v1539 = vunpack.c.0.s8 %v1538
  %v1540 = vlaneseq
  %v1541 = vshrl.u32 %v1540, 7
  %v1542 = vsub.s32 %v1539, %v1541
  %v1543 = vrot.slane %v1527, %v1542
  %v1545 = vunpack.c.l.s4 1966171168
  %v1546 = vunpack.c.0.s8 %v1545
  %v1547 = vlaneseq
  %v1548 = vshrl.u32 %v1547, 7
  %v1549 = vsub.s32 %v1546, %v1548
  %v1550 = vrot.slane %v1528, %v1549
  %v1552 = vunpack.c.l.s4 1966171168
  %v1553 = vunpack.c.0.s8 %v1552
  %v1554 = vlaneseq
  %v1555 = vshrl.u32 %v1554, 7
  %v1556 = vsub.s32 %v1553, %v1555
  %v1557 = vrot.slane %v1529, %v1556
  %v1558 = vcombine.high %v1536, %v1536
  %v1559 = vcombine.high %v1543, %v1543
  %v1560 = vcombine.high %v1550, %v1550
  %v1561 = vcombine.high %v1557, %v1557
  %v1562 = vcombine.high %v1508, %v1508
  %v1564 = vunpack.c.l.s4 1966171168
  %v1565 = vunpack.c.0.s8 %v1564
  %v1566 = vlaneseq
  %v1567 = vshrl.u32 %v1566, 7
  %v1568 = vsub.s32 %v1565, %v1567
  %v1569 = vrot.slane %v1508, %v1568
  %v1571 = vunpack.c.l.s4 1966171168
  %v1572 = vunpack.c.0.s8 %v1571
  %v1573 = vlaneseq
  %v1574 = vshrl.u32 %v1573, 7
  %v1575 = vsub.s32 %v1572, %v1574
  %v1576 = vrot.slane %v1562, %v1575
  %v1577 = vcombine.high %v1569, %v1569
  %v1578 = vcombine.high %v1576, %v1576
  %v1580 = vunpack.c.l.s4 1966171168
  %v1581 = vunpack.c.0.s8 %v1580
  %v1582 = vlaneseq
  %v1583 = vshrl.u32 %v1582, 7
  %v1584 = vsub.s32 %v1581, %v1583
  %v1585 = vrot.slane %v1569, %v1584
  %v1587 = vunpack.c.l.s4 1966171168
  %v1588 = vunpack.c.0.s8 %v1587
  %v1589 = vlaneseq
  %v1590 = vshrl.u32 %v1589, 7
  %v1591 = vsub.s32 %v1588, %v1590
  %v1592 = vrot.slane %v1576, %v1591
  %v1594 = vunpack.c.l.s4 1966171168
  %v1595 = vunpack.c.0.s8 %v1594
  %v1596 = vlaneseq
  %v1597 = vshrl.u32 %v1596, 7
  %v1598 = vsub.s32 %v1595, %v1597
  %v1599 = vrot.slane %v1577, %v1598
  %v1601 = vunpack.c.l.s4 1966171168
  %v1602 = vunpack.c.0.s8 %v1601
  %v1603 = vlaneseq
  %v1604 = vshrl.u32 %v1603, 7
  %v1605 = vsub.s32 %v1602, %v1604
  %v1606 = vrot.slane %v1578, %v1605
  %v1607 = vcombine.high %v1585, %v1585
  %v1608 = vcombine.high %v1592, %v1592
  %v1609 = vcombine.high %v1599, %v1599
  %v1610 = vcombine.high %v1606, %v1606
  %v1611 = vlaneseq
  %v1612 = vshrl.u32 %v1611, 7
  %v1613 = vsub.s32 0, %v1612
  %v1614 = vrot.slane %v1536, %v1613
  %v1615 = vlaneseq
  %v1616 = vshrl.u32 %v1615, 7
  %v1617 = vsub.s32 0, %v1616
  %v1618 = vrot.slane %v1550, %v1617
  %v1619 = vlaneseq
  %v1620 = vshrl.u32 %v1619, 7
  %v1621 = vsub.s32 0, %v1620
  %v1622 = vrot.slane %v1558, %v1621
  %v1623 = vlaneseq
  %v1624 = vshrl.u32 %v1623, 7
  %v1625 = vsub.s32 0, %v1624
  %v1626 = vrot.slane %v1560, %v1625
  %v1627 = vlaneseq
  %v1628 = vshrl.u32 %v1627, 7
  %v1629 = vsub.s32 0, %v1628
  %v1630 = vrot.slane %v1543, %v1629
  %v1631 = vlaneseq
  %v1632 = vshrl.u32 %v1631, 7
  %v1633 = vsub.s32 0, %v1632
  %v1634 = vrot.slane %v1557, %v1633
  %v1635 = vlaneseq
  %v1636 = vshrl.u32 %v1635, 7
  %v1637 = vsub.s32 0, %v1636
  %v1638 = vrot.slane %v1559, %v1637
  %v1639 = vlaneseq
  %v1640 = vshrl.u32 %v1639, 7
  %v1641 = vsub.s32 0, %v1640
  %v1642 = vrot.slane %v1561, %v1641
  %v1643 = vlaneseq
  %v1644 = vshrl.u32 %v1643, 7
  %v1645 = vsub.s32 0, %v1644
  %v1646 = vrot.slane %v1585, %v1645
  %v1647 = vlaneseq
  %v1648 = vshrl.u32 %v1647, 7
  %v1649 = vsub.s32 0, %v1648
  %v1650 = vrot.slane %v1599, %v1649
  %v1651 = vlaneseq
  %v1652 = vshrl.u32 %v1651, 7
  %v1653 = vsub.s32 0, %v1652
  %v1654 = vrot.slane %v1607, %v1653
  %v1655 = vlaneseq
  %v1656 = vshrl.u32 %v1655, 7
  %v1657 = vsub.s32 0, %v1656
  %v1658 = vrot.slane %v1609, %v1657
  %v1659 = vlaneseq
  %v1660 = vshrl.u32 %v1659, 7
  %v1661 = vsub.s32 0, %v1660
  %v1662 = vrot.slane %v1592, %v1661
  %v1663 = vlaneseq
  %v1664 = vshrl.u32 %v1663, 7
  %v1665 = vsub.s32 0, %v1664
  %v1666 = vrot.slane %v1606, %v1665
  %v1667 = vlaneseq
  %v1668 = vshrl.u32 %v1667, 7
  %v1669 = vsub.s32 0, %v1668
  %v1670 = vrot.slane %v1608, %v1669
  %v1671 = vlaneseq
  %v1672 = vshrl.u32 %v1671, 7
  %v1673 = vsub.s32 0, %v1672
  %v1674 = vrot.slane %v1610, %v1673
  %v1691 = vadd.f32 %v1288, %v1614
  %v1692 = vadd.f32 %v1289, %v1614
  %v1693 = vadd.f32 %v1290, %v1614
  %v1694 = vadd.f32 %v1291, %v1614
  %v1695 = vadd.f32 %v1292, %v1614
  %v1696 = vadd.f32 %v1293, %v1614
  %v1697 = vadd.f32 %v1294, %v1614
  %v1698 = vadd.f32 %v1295, %v1614
  %v1699 = vadd.f32 %v1296, %v1618
  %v1700 = vadd.f32 %v1297, %v1618
  %v1701 = vadd.f32 %v1298, %v1618
  %v1702 = vadd.f32 %v1299, %v1618
  %v1703 = vadd.f32 %v1300, %v1618
  %v1704 = vadd.f32 %v1301, %v1618
  %v1705 = vadd.f32 %v1302, %v1618
  %v1706 = vadd.f32 %v1303, %v1618
  %v1707 = vadd.f32 %v1304, %v1622
  %v1708 = vadd.f32 %v1305, %v1622
  %v1709 = vadd.f32 %v1306, %v1622
  %v1710 = vadd.f32 %v1307, %v1622
  %v1711 = vadd.f32 %v1308, %v1622
  %v1712 = vadd.f32 %v1309, %v1622
  %v1713 = vadd.f32 %v1310, %v1622
  %v1714 = vadd.f32 %v1311, %v1622
  %v1715 = vadd.f32 %v1312, %v1626
  %v1716 = vadd.f32 %v1313, %v1626
  %v1717 = vadd.f32 %v1314, %v1626
  %v1718 = vadd.f32 %v1315, %v1626
  %v1719 = vadd.f32 %v1316, %v1626
  %v1720 = vadd.f32 %v1317, %v1626
  %v1721 = vadd.f32 %v1318, %v1626
  %v1722 = vadd.f32 %v1319, %v1626
  %v1723 = vadd.f32 %v1320, %v1630
  %v1724 = vadd.f32 %v1321, %v1630
  %v1725 = vadd.f32 %v1322, %v1630
  %v1726 = vadd.f32 %v1323, %v1630
  %v1727 = vadd.f32 %v1324, %v1630
  %v1728 = vadd.f32 %v1325, %v1630
  %v1729 = vadd.f32 %v1326, %v1630
  %v1730 = vadd.f32 %v1327, %v1630
  %v1731 = vadd.f32 %v1328, %v1634
  %v1732 = vadd.f32 %v1329, %v1634
  %v1733 = vadd.f32 %v1330, %v1634
  %v1734 = vadd.f32 %v1331, %v1634
  %v1735 = vadd.f32 %v1332, %v1634
  %v1736 = vadd.f32 %v1333, %v1634
  %v1737 = vadd.f32 %v1334, %v1634
  %v1738 = vadd.f32 %v1335, %v1634
  %v1739 = vadd.f32 %v1336, %v1638
  %v1740 = vadd.f32 %v1337, %v1638
  %v1741 = vadd.f32 %v1338, %v1638
  %v1742 = vadd.f32 %v1339, %v1638
  %v1743 = vadd.f32 %v1340, %v1638
  %v1744 = vadd.f32 %v1341, %v1638
  %v1745 = vadd.f32 %v1342, %v1638
  %v1746 = vadd.f32 %v1343, %v1638
  %v1747 = vadd.f32 %v1344, %v1642
  %v1748 = vadd.f32 %v1345, %v1642
  %v1749 = vadd.f32 %v1346, %v1642
  %v1750 = vadd.f32 %v1347, %v1642
  %v1751 = vadd.f32 %v1348, %v1642
  %v1752 = vadd.f32 %v1349, %v1642
  %v1753 = vadd.f32 %v1350, %v1642
  %v1754 = vadd.f32 %v1351, %v1642
  %v1755 = vadd.f32 %v1352, %v1646
  %v1756 = vadd.f32 %v1353, %v1646
  %v1757 = vadd.f32 %v1354, %v1646
  %v1758 = vadd.f32 %v1355, %v1646
  %v1759 = vadd.f32 %v1356, %v1646
  %v1760 = vadd.f32 %v1357, %v1646
  %v1761 = vadd.f32 %v1358, %v1646
  %v1762 = vadd.f32 %v1359, %v1646
  %v1763 = vadd.f32 %v1360, %v1650
  %v1764 = vadd.f32 %v1361, %v1650
  %v1765 = vadd.f32 %v1362, %v1650
  %v1766 = vadd.f32 %v1363, %v1650
  %v1767 = vadd.f32 %v1364, %v1650
  %v1768 = vadd.f32 %v1365, %v1650
  %v1769 = vadd.f32 %v1366, %v1650
  %v1770 = vadd.f32 %v1367, %v1650
  %v1771 = vadd.f32 %v1368, %v1654
  %v1772 = vadd.f32 %v1369, %v1654
  %v1773 = vadd.f32 %v1370, %v1654
  %v1774 = vadd.f32 %v1371, %v1654
  %v1775 = vadd.f32 %v1372, %v1654
  %v1776 = vadd.f32 %v1373, %v1654
  %v1777 = vadd.f32 %v1374, %v1654
  %v1778 = vadd.f32 %v1375, %v1654
  %v1779 = vadd.f32 %v1376, %v1658
  %v1780 = vadd.f32 %v1377, %v1658
  %v1781 = vadd.f32 %v1378, %v1658
  %v1782 = vadd.f32 %v1379, %v1658
  %v1783 = vadd.f32 %v1380, %v1658
  %v1784 = vadd.f32 %v1381, %v1658
  %v1785 = vadd.f32 %v1382, %v1658
  %v1786 = vadd.f32 %v1383, %v1658
  %v1787 = vadd.f32 %v1384, %v1662
  %v1788 = vadd.f32 %v1385, %v1662
  %v1789 = vadd.f32 %v1386, %v1662
  %v1790 = vadd.f32 %v1387, %v1662
  %v1791 = vadd.f32 %v1388, %v1662
  %v1792 = vadd.f32 %v1389, %v1662
  %v1793 = vadd.f32 %v1390, %v1662
  %v1794 = vadd.f32 %v1391, %v1662
  %v1795 = vadd.f32 %v1392, %v1666
  %v1796 = vadd.f32 %v1393, %v1666
  %v1797 = vadd.f32 %v1394, %v1666
  %v1798 = vadd.f32 %v1395, %v1666
  %v1799 = vadd.f32 %v1396, %v1666
  %v1800 = vadd.f32 %v1397, %v1666
  %v1801 = vadd.f32 %v1398, %v1666
  %v1802 = vadd.f32 %v1399, %v1666
  %v1803 = vadd.f32 %v1400, %v1670
  %v1804 = vadd.f32 %v1401, %v1670
  %v1805 = vadd.f32 %v1402, %v1670
  %v1806 = vadd.f32 %v1403, %v1670
  %v1807 = vadd.f32 %v1404, %v1670
  %v1808 = vadd.f32 %v1405, %v1670
  %v1809 = vadd.f32 %v1406, %v1670
  %v1810 = vadd.f32 %v1407, %v1670
  %v1811 = vadd.f32 %v1408, %v1674
  %v1812 = vadd.f32 %v1409, %v1674
  %v1813 = vadd.f32 %v1410, %v1674
  %v1814 = vadd.f32 %v1411, %v1674
  %v1815 = vadd.f32 %v1412, %v1674
  %v1816 = vadd.f32 %v1413, %v1674
  %v1817 = vadd.f32 %v1414, %v1674
  %v1818 = vadd.f32 %v1415, %v1674
  %v1819 = vmax.f32 %v1691, 0.0
  %v1820 = vmax.f32 %v1692, 0.0
  %v1821 = vmax.f32 %v1693, 0.0
  %v1822 = vmax.f32 %v1694, 0.0
  %v1823 = vmax.f32 %v1695, 0.0
  %v1824 = vmax.f32 %v1696, 0.0
  %v1825 = vmax.f32 %v1697, 0.0
  %v1826 = vmax.f32 %v1698, 0.0
  %v1827 = vmax.f32 %v1699, 0.0
  %v1828 = vmax.f32 %v1700, 0.0
  %v1829 = vmax.f32 %v1701, 0.0
  %v1830 = vmax.f32 %v1702, 0.0
  %v1831 = vmax.f32 %v1703, 0.0
  %v1832 = vmax.f32 %v1704, 0.0
  %v1833 = vmax.f32 %v1705, 0.0
  %v1834 = vmax.f32 %v1706, 0.0
  %v1835 = vmax.f32 %v1707, 0.0
  %v1836 = vmax.f32 %v1708, 0.0
  %v1837 = vmax.f32 %v1709, 0.0
  %v1838 = vmax.f32 %v1710, 0.0
  %v1839 = vmax.f32 %v1711, 0.0
  %v1840 = vmax.f32 %v1712, 0.0
  %v1841 = vmax.f32 %v1713, 0.0
  %v1842 = vmax.f32 %v1714, 0.0
  %v1843 = vmax.f32 %v1715, 0.0
  %v1844 = vmax.f32 %v1716, 0.0
  %v1845 = vmax.f32 %v1717, 0.0
  %v1846 = vmax.f32 %v1718, 0.0
  %v1847 = vmax.f32 %v1719, 0.0
  %v1848 = vmax.f32 %v1720, 0.0
  %v1849 = vmax.f32 %v1721, 0.0
  %v1850 = vmax.f32 %v1722, 0.0
  %v1851 = vmax.f32 %v1723, 0.0
  %v1852 = vmax.f32 %v1724, 0.0
  %v1853 = vmax.f32 %v1725, 0.0
  %v1854 = vmax.f32 %v1726, 0.0
  %v1855 = vmax.f32 %v1727, 0.0
  %v1856 = vmax.f32 %v1728, 0.0
  %v1857 = vmax.f32 %v1729, 0.0
  %v1858 = vmax.f32 %v1730, 0.0
  %v1859 = vmax.f32 %v1731, 0.0
  %v1860 = vmax.f32 %v1732, 0.0
  %v1861 = vmax.f32 %v1733, 0.0
  %v1862 = vmax.f32 %v1734, 0.0
  %v1863 = vmax.f32 %v1735, 0.0
  %v1864 = vmax.f32 %v1736, 0.0
  %v1865 = vmax.f32 %v1737, 0.0
  %v1866 = vmax.f32 %v1738, 0.0
  %v1867 = vmax.f32 %v1739, 0.0
  %v1868 = vmax.f32 %v1740, 0.0
  %v1869 = vmax.f32 %v1741, 0.0
  %v1870 = vmax.f32 %v1742, 0.0
  %v1871 = vmax.f32 %v1743, 0.0
  %v1872 = vmax.f32 %v1744, 0.0
  %v1873 = vmax.f32 %v1745, 0.0
  %v1874 = vmax.f32 %v1746, 0.0
  %v1875 = vmax.f32 %v1747, 0.0
  %v1876 = vmax.f32 %v1748, 0.0
  %v1877 = vmax.f32 %v1749, 0.0
  %v1878 = vmax.f32 %v1750, 0.0
  %v1879 = vmax.f32 %v1751, 0.0
  %v1880 = vmax.f32 %v1752, 0.0
  %v1881 = vmax.f32 %v1753, 0.0
  %v1882 = vmax.f32 %v1754, 0.0
  %v1883 = vmax.f32 %v1755, 0.0
  %v1884 = vmax.f32 %v1756, 0.0
  %v1885 = vmax.f32 %v1757, 0.0
  %v1886 = vmax.f32 %v1758, 0.0
  %v1887 = vmax.f32 %v1759, 0.0
  %v1888 = vmax.f32 %v1760, 0.0
  %v1889 = vmax.f32 %v1761, 0.0
  %v1890 = vmax.f32 %v1762, 0.0
  %v1891 = vmax.f32 %v1763, 0.0
  %v1892 = vmax.f32 %v1764, 0.0
  %v1893 = vmax.f32 %v1765, 0.0
  %v1894 = vmax.f32 %v1766, 0.0
  %v1895 = vmax.f32 %v1767, 0.0
  %v1896 = vmax.f32 %v1768, 0.0
  %v1897 = vmax.f32 %v1769, 0.0
  %v1898 = vmax.f32 %v1770, 0.0
  %v1899 = vmax.f32 %v1771, 0.0
  %v1900 = vmax.f32 %v1772, 0.0
  %v1901 = vmax.f32 %v1773, 0.0
  %v1902 = vmax.f32 %v1774, 0.0
  %v1903 = vmax.f32 %v1775, 0.0
  %v1904 = vmax.f32 %v1776, 0.0
  %v1905 = vmax.f32 %v1777, 0.0
  %v1906 = vmax.f32 %v1778, 0.0
  %v1907 = vmax.f32 %v1779, 0.0
  %v1908 = vmax.f32 %v1780, 0.0
  %v1909 = vmax.f32 %v1781, 0.0
  %v1910 = vmax.f32 %v1782, 0.0
  %v1911 = vmax.f32 %v1783, 0.0
  %v1912 = vmax.f32 %v1784, 0.0
  %v1913 = vmax.f32 %v1785, 0.0
  %v1914 = vmax.f32 %v1786, 0.0
  %v1915 = vmax.f32 %v1787, 0.0
  %v1916 = vmax.f32 %v1788, 0.0
  %v1917 = vmax.f32 %v1789, 0.0
  %v1918 = vmax.f32 %v1790, 0.0
  %v1919 = vmax.f32 %v1791, 0.0
  %v1920 = vmax.f32 %v1792, 0.0
  %v1921 = vmax.f32 %v1793, 0.0
  %v1922 = vmax.f32 %v1794, 0.0
  %v1923 = vmax.f32 %v1795, 0.0
  %v1924 = vmax.f32 %v1796, 0.0
  %v1925 = vmax.f32 %v1797, 0.0
  %v1926 = vmax.f32 %v1798, 0.0
  %v1927 = vmax.f32 %v1799, 0.0
  %v1928 = vmax.f32 %v1800, 0.0
  %v1929 = vmax.f32 %v1801, 0.0
  %v1930 = vmax.f32 %v1802, 0.0
  %v1931 = vmax.f32 %v1803, 0.0
  %v1932 = vmax.f32 %v1804, 0.0
  %v1933 = vmax.f32 %v1805, 0.0
  %v1934 = vmax.f32 %v1806, 0.0
  %v1935 = vmax.f32 %v1807, 0.0
  %v1936 = vmax.f32 %v1808, 0.0
  %v1937 = vmax.f32 %v1809, 0.0
  %v1938 = vmax.f32 %v1810, 0.0
  %v1939 = vmax.f32 %v1811, 0.0
  %v1940 = vmax.f32 %v1812, 0.0
  %v1941 = vmax.f32 %v1813, 0.0
  %v1942 = vmax.f32 %v1814, 0.0
  %v1943 = vmax.f32 %v1815, 0.0
  %v1944 = vmax.f32 %v1816, 0.0
  %v1945 = vmax.f32 %v1817, 0.0
  %v1946 = vmax.f32 %v1818, 0.0
  %v1948 = vlaneseq
  %v1949 = vshrl.u32 %v1948, 7
  %v1950 = vsub.s32 0, %v1949
  %v1951 = vrot.slane %v221, %v1950
  %v1953 = vmul.f32 %v1819, %v1951
  %v1954 = vmul.f32 %v1820, %v1951
  %v1955 = vmul.f32 %v1821, %v1951
  %v1956 = vmul.f32 %v1822, %v1951
  %v1957 = vmul.f32 %v1823, %v1951
  %v1958 = vmul.f32 %v1824, %v1951
  %v1959 = vmul.f32 %v1825, %v1951
  %v1960 = vmul.f32 %v1826, %v1951
  %v1961 = vmul.f32 %v1827, %v1951
  %v1962 = vmul.f32 %v1828, %v1951
  %v1963 = vmul.f32 %v1829, %v1951
  %v1964 = vmul.f32 %v1830, %v1951
  %v1965 = vmul.f32 %v1831, %v1951
  %v1966 = vmul.f32 %v1832, %v1951
  %v1967 = vmul.f32 %v1833, %v1951
  %v1968 = vmul.f32 %v1834, %v1951
  %v1969 = vmul.f32 %v1835, %v1951
  %v1970 = vmul.f32 %v1836, %v1951
  %v1971 = vmul.f32 %v1837, %v1951
  %v1972 = vmul.f32 %v1838, %v1951
  %v1973 = vmul.f32 %v1839, %v1951
  %v1974 = vmul.f32 %v1840, %v1951
  %v1975 = vmul.f32 %v1841, %v1951
  %v1976 = vmul.f32 %v1842, %v1951
  %v1977 = vmul.f32 %v1843, %v1951
  %v1978 = vmul.f32 %v1844, %v1951
  %v1979 = vmul.f32 %v1845, %v1951
  %v1980 = vmul.f32 %v1846, %v1951
  %v1981 = vmul.f32 %v1847, %v1951
  %v1982 = vmul.f32 %v1848, %v1951
  %v1983 = vmul.f32 %v1849, %v1951
  %v1984 = vmul.f32 %v1850, %v1951
  %v1985 = vmul.f32 %v1851, %v1951
  %v1986 = vmul.f32 %v1852, %v1951
  %v1987 = vmul.f32 %v1853, %v1951
  %v1988 = vmul.f32 %v1854, %v1951
  %v1989 = vmul.f32 %v1855, %v1951
  %v1990 = vmul.f32 %v1856, %v1951
  %v1991 = vmul.f32 %v1857, %v1951
  %v1992 = vmul.f32 %v1858, %v1951
  %v1993 = vmul.f32 %v1859, %v1951
  %v1994 = vmul.f32 %v1860, %v1951
  %v1995 = vmul.f32 %v1861, %v1951
  %v1996 = vmul.f32 %v1862, %v1951
  %v1997 = vmul.f32 %v1863, %v1951
  %v1998 = vmul.f32 %v1864, %v1951
  %v1999 = vmul.f32 %v1865, %v1951
  %v2000 = vmul.f32 %v1866, %v1951
  %v2001 = vmul.f32 %v1867, %v1951
  %v2002 = vmul.f32 %v1868, %v1951
  %v2003 = vmul.f32 %v1869, %v1951
  %v2004 = vmul.f32 %v1870, %v1951
  %v2005 = vmul.f32 %v1871, %v1951
  %v2006 = vmul.f32 %v1872, %v1951
  %v2007 = vmul.f32 %v1873, %v1951
  %v2008 = vmul.f32 %v1874, %v1951
  %v2009 = vmul.f32 %v1875, %v1951
  %v2010 = vmul.f32 %v1876, %v1951
  %v2011 = vmul.f32 %v1877, %v1951
  %v2012 = vmul.f32 %v1878, %v1951
  %v2013 = vmul.f32 %v1879, %v1951
  %v2014 = vmul.f32 %v1880, %v1951
  %v2015 = vmul.f32 %v1881, %v1951
  %v2016 = vmul.f32 %v1882, %v1951
  %v2017 = vmul.f32 %v1883, %v1951
  %v2018 = vmul.f32 %v1884, %v1951
  %v2019 = vmul.f32 %v1885, %v1951
  %v2020 = vmul.f32 %v1886, %v1951
  %v2021 = vmul.f32 %v1887, %v1951
  %v2022 = vmul.f32 %v1888, %v1951
  %v2023 = vmul.f32 %v1889, %v1951
  %v2024 = vmul.f32 %v1890, %v1951
  %v2025 = vmul.f32 %v1891, %v1951
  %v2026 = vmul.f32 %v1892, %v1951
  %v2027 = vmul.f32 %v1893, %v1951
  %v2028 = vmul.f32 %v1894, %v1951
  %v2029 = vmul.f32 %v1895, %v1951
  %v2030 = vmul.f32 %v1896, %v1951
  %v2031 = vmul.f32 %v1897, %v1951
  %v2032 = vmul.f32 %v1898, %v1951
  %v2033 = vmul.f32 %v1899, %v1951
  %v2034 = vmul.f32 %v1900, %v1951
  %v2035 = vmul.f32 %v1901, %v1951
  %v2036 = vmul.f32 %v1902, %v1951
  %v2037 = vmul.f32 %v1903, %v1951
  %v2038 = vmul.f32 %v1904, %v1951
  %v2039 = vmul.f32 %v1905, %v1951
  %v2040 = vmul.f32 %v1906, %v1951
  %v2041 = vmul.f32 %v1907, %v1951
  %v2042 = vmul.f32 %v1908, %v1951
  %v2043 = vmul.f32 %v1909, %v1951
  %v2044 = vmul.f32 %v1910, %v1951
  %v2045 = vmul.f32 %v1911, %v1951
  %v2046 = vmul.f32 %v1912, %v1951
  %v2047 = vmul.f32 %v1913, %v1951
  %v2048 = vmul.f32 %v1914, %v1951
  %v2049 = vmul.f32 %v1915, %v1951
  %v2050 = vmul.f32 %v1916, %v1951
  %v2051 = vmul.f32 %v1917, %v1951
  %v2052 = vmul.f32 %v1918, %v1951
  %v2053 = vmul.f32 %v1919, %v1951
  %v2054 = vmul.f32 %v1920, %v1951
  %v2055 = vmul.f32 %v1921, %v1951
  %v2056 = vmul.f32 %v1922, %v1951
  %v2057 = vmul.f32 %v1923, %v1951
  %v2058 = vmul.f32 %v1924, %v1951
  %v2059 = vmul.f32 %v1925, %v1951
  %v2060 = vmul.f32 %v1926, %v1951
  %v2061 = vmul.f32 %v1927, %v1951
  %v2062 = vmul.f32 %v1928, %v1951
  %v2063 = vmul.f32 %v1929, %v1951
  %v2064 = vmul.f32 %v1930, %v1951
  %v2065 = vmul.f32 %v1931, %v1951
  %v2066 = vmul.f32 %v1932, %v1951
  %v2067 = vmul.f32 %v1933, %v1951
  %v2068 = vmul.f32 %v1934, %v1951
  %v2069 = vmul.f32 %v1935, %v1951
  %v2070 = vmul.f32 %v1936, %v1951
  %v2071 = vmul.f32 %v1937, %v1951
  %v2072 = vmul.f32 %v1938, %v1951
  %v2073 = vmul.f32 %v1939, %v1951
  %v2074 = vmul.f32 %v1940, %v1951
  %v2075 = vmul.f32 %v1941, %v1951
  %v2076 = vmul.f32 %v1942, %v1951
  %v2077 = vmul.f32 %v1943, %v1951
  %v2078 = vmul.f32 %v1944, %v1951
  %v2079 = vmul.f32 %v1945, %v1951
  %v2080 = vmul.f32 %v1946, %v1951
  %2081 = vadd.xlane.f32.xlu0 %v1953
  %v2082 = vpop.xlane.xlu0 %2081
  %2083 = vadd.xlane.f32.xlu0 %v1954
  %v2084 = vpop.xlane.xlu0 %2083
  %2085 = vadd.xlane.f32.xlu0 %v1955
  %v2086 = vpop.xlane.xlu0 %2085
  %2087 = vadd.xlane.f32.xlu0 %v1956
  %v2088 = vpop.xlane.xlu0 %2087
  %2089 = vadd.xlane.f32.xlu0 %v1957
  %v2090 = vpop.xlane.xlu0 %2089
  %2091 = vadd.xlane.f32.xlu0 %v1958
  %v2092 = vpop.xlane.xlu0 %2091
  %2093 = vadd.xlane.f32.xlu0 %v1959
  %v2094 = vpop.xlane.xlu0 %2093
  %2095 = vadd.xlane.f32.xlu0 %v1960
  %v2096 = vpop.xlane.xlu0 %2095
  %2097 = vadd.xlane.f32.xlu0 %v1961
  %v2098 = vpop.xlane.xlu0 %2097
  %2099 = vadd.xlane.f32.xlu0 %v1962
  %v2100 = vpop.xlane.xlu0 %2099
  %2101 = vadd.xlane.f32.xlu0 %v1963
  %v2102 = vpop.xlane.xlu0 %2101
  %2103 = vadd.xlane.f32.xlu0 %v1964
  %v2104 = vpop.xlane.xlu0 %2103
  %2105 = vadd.xlane.f32.xlu0 %v1965
  %v2106 = vpop.xlane.xlu0 %2105
  %2107 = vadd.xlane.f32.xlu0 %v1966
  %v2108 = vpop.xlane.xlu0 %2107
  %2109 = vadd.xlane.f32.xlu0 %v1967
  %v2110 = vpop.xlane.xlu0 %2109
  %2111 = vadd.xlane.f32.xlu0 %v1968
  %v2112 = vpop.xlane.xlu0 %2111
  %2113 = vadd.xlane.f32.xlu0 %v1969
  %v2114 = vpop.xlane.xlu0 %2113
  %2115 = vadd.xlane.f32.xlu0 %v1970
  %v2116 = vpop.xlane.xlu0 %2115
  %2117 = vadd.xlane.f32.xlu0 %v1971
  %v2118 = vpop.xlane.xlu0 %2117
  %2119 = vadd.xlane.f32.xlu0 %v1972
  %v2120 = vpop.xlane.xlu0 %2119
  %2121 = vadd.xlane.f32.xlu0 %v1973
  %v2122 = vpop.xlane.xlu0 %2121
  %2123 = vadd.xlane.f32.xlu0 %v1974
  %v2124 = vpop.xlane.xlu0 %2123
  %2125 = vadd.xlane.f32.xlu0 %v1975
  %v2126 = vpop.xlane.xlu0 %2125
  %2127 = vadd.xlane.f32.xlu0 %v1976
  %v2128 = vpop.xlane.xlu0 %2127
  %2129 = vadd.xlane.f32.xlu0 %v1977
  %v2130 = vpop.xlane.xlu0 %2129
  %2131 = vadd.xlane.f32.xlu0 %v1978
  %v2132 = vpop.xlane.xlu0 %2131
  %2133 = vadd.xlane.f32.xlu0 %v1979
  %v2134 = vpop.xlane.xlu0 %2133
  %2135 = vadd.xlane.f32.xlu0 %v1980
  %v2136 = vpop.xlane.xlu0 %2135
  %2137 = vadd.xlane.f32.xlu0 %v1981
  %v2138 = vpop.xlane.xlu0 %2137
  %2139 = vadd.xlane.f32.xlu0 %v1982
  %v2140 = vpop.xlane.xlu0 %2139
  %2141 = vadd.xlane.f32.xlu0 %v1983
  %v2142 = vpop.xlane.xlu0 %2141
  %2143 = vadd.xlane.f32.xlu0 %v1984
  %v2144 = vpop.xlane.xlu0 %2143
  %2145 = vadd.xlane.f32.xlu0 %v1985
  %v2146 = vpop.xlane.xlu0 %2145
  %2147 = vadd.xlane.f32.xlu0 %v1986
  %v2148 = vpop.xlane.xlu0 %2147
  %2149 = vadd.xlane.f32.xlu0 %v1987
  %v2150 = vpop.xlane.xlu0 %2149
  %2151 = vadd.xlane.f32.xlu0 %v1988
  %v2152 = vpop.xlane.xlu0 %2151
  %2153 = vadd.xlane.f32.xlu0 %v1989
  %v2154 = vpop.xlane.xlu0 %2153
  %2155 = vadd.xlane.f32.xlu0 %v1990
  %v2156 = vpop.xlane.xlu0 %2155
  %2157 = vadd.xlane.f32.xlu0 %v1991
  %v2158 = vpop.xlane.xlu0 %2157
  %2159 = vadd.xlane.f32.xlu0 %v1992
  %v2160 = vpop.xlane.xlu0 %2159
  %2161 = vadd.xlane.f32.xlu0 %v1993
  %v2162 = vpop.xlane.xlu0 %2161
  %2163 = vadd.xlane.f32.xlu0 %v1994
  %v2164 = vpop.xlane.xlu0 %2163
  %2165 = vadd.xlane.f32.xlu0 %v1995
  %v2166 = vpop.xlane.xlu0 %2165
  %2167 = vadd.xlane.f32.xlu0 %v1996
  %v2168 = vpop.xlane.xlu0 %2167
  %2169 = vadd.xlane.f32.xlu0 %v1997
  %v2170 = vpop.xlane.xlu0 %2169
  %2171 = vadd.xlane.f32.xlu0 %v1998
  %v2172 = vpop.xlane.xlu0 %2171
  %2173 = vadd.xlane.f32.xlu0 %v1999
  %v2174 = vpop.xlane.xlu0 %2173
  %2175 = vadd.xlane.f32.xlu0 %v2000
  %v2176 = vpop.xlane.xlu0 %2175
  %2177 = vadd.xlane.f32.xlu0 %v2001
  %v2178 = vpop.xlane.xlu0 %2177
  %2179 = vadd.xlane.f32.xlu0 %v2002
  %v2180 = vpop.xlane.xlu0 %2179
  %2181 = vadd.xlane.f32.xlu0 %v2003
  %v2182 = vpop.xlane.xlu0 %2181
  %2183 = vadd.xlane.f32.xlu0 %v2004
  %v2184 = vpop.xlane.xlu0 %2183
  %2185 = vadd.xlane.f32.xlu0 %v2005
  %v2186 = vpop.xlane.xlu0 %2185
  %2187 = vadd.xlane.f32.xlu0 %v2006
  %v2188 = vpop.xlane.xlu0 %2187
  %2189 = vadd.xlane.f32.xlu0 %v2007
  %v2190 = vpop.xlane.xlu0 %2189
  %2191 = vadd.xlane.f32.xlu0 %v2008
  %v2192 = vpop.xlane.xlu0 %2191
  %2193 = vadd.xlane.f32.xlu0 %v2009
  %v2194 = vpop.xlane.xlu0 %2193
  %2195 = vadd.xlane.f32.xlu0 %v2010
  %v2196 = vpop.xlane.xlu0 %2195
  %2197 = vadd.xlane.f32.xlu0 %v2011
  %v2198 = vpop.xlane.xlu0 %2197
  %2199 = vadd.xlane.f32.xlu0 %v2012
  %v2200 = vpop.xlane.xlu0 %2199
  %2201 = vadd.xlane.f32.xlu0 %v2013
  %v2202 = vpop.xlane.xlu0 %2201
  %2203 = vadd.xlane.f32.xlu0 %v2014
  %v2204 = vpop.xlane.xlu0 %2203
  %2205 = vadd.xlane.f32.xlu0 %v2015
  %v2206 = vpop.xlane.xlu0 %2205
  %2207 = vadd.xlane.f32.xlu0 %v2016
  %v2208 = vpop.xlane.xlu0 %2207
  %2209 = vadd.xlane.f32.xlu0 %v2017
  %v2210 = vpop.xlane.xlu0 %2209
  %2211 = vadd.xlane.f32.xlu0 %v2018
  %v2212 = vpop.xlane.xlu0 %2211
  %2213 = vadd.xlane.f32.xlu0 %v2019
  %v2214 = vpop.xlane.xlu0 %2213
  %2215 = vadd.xlane.f32.xlu0 %v2020
  %v2216 = vpop.xlane.xlu0 %2215
  %2217 = vadd.xlane.f32.xlu0 %v2021
  %v2218 = vpop.xlane.xlu0 %2217
  %2219 = vadd.xlane.f32.xlu0 %v2022
  %v2220 = vpop.xlane.xlu0 %2219
  %2221 = vadd.xlane.f32.xlu0 %v2023
  %v2222 = vpop.xlane.xlu0 %2221
  %2223 = vadd.xlane.f32.xlu0 %v2024
  %v2224 = vpop.xlane.xlu0 %2223
  %2225 = vadd.xlane.f32.xlu0 %v2025
  %v2226 = vpop.xlane.xlu0 %2225
  %2227 = vadd.xlane.f32.xlu0 %v2026
  %v2228 = vpop.xlane.xlu0 %2227
  %2229 = vadd.xlane.f32.xlu0 %v2027
  %v2230 = vpop.xlane.xlu0 %2229
  %2231 = vadd.xlane.f32.xlu0 %v2028
  %v2232 = vpop.xlane.xlu0 %2231
  %2233 = vadd.xlane.f32.xlu0 %v2029
  %v2234 = vpop.xlane.xlu0 %2233
  %2235 = vadd.xlane.f32.xlu0 %v2030
  %v2236 = vpop.xlane.xlu0 %2235
  %2237 = vadd.xlane.f32.xlu0 %v2031
  %v2238 = vpop.xlane.xlu0 %2237
  %2239 = vadd.xlane.f32.xlu0 %v2032
  %v2240 = vpop.xlane.xlu0 %2239
  %2241 = vadd.xlane.f32.xlu0 %v2033
  %v2242 = vpop.xlane.xlu0 %2241
  %2243 = vadd.xlane.f32.xlu0 %v2034
  %v2244 = vpop.xlane.xlu0 %2243
  %2245 = vadd.xlane.f32.xlu0 %v2035
  %v2246 = vpop.xlane.xlu0 %2245
  %2247 = vadd.xlane.f32.xlu0 %v2036
  %v2248 = vpop.xlane.xlu0 %2247
  %2249 = vadd.xlane.f32.xlu0 %v2037
  %v2250 = vpop.xlane.xlu0 %2249
  %2251 = vadd.xlane.f32.xlu0 %v2038
  %v2252 = vpop.xlane.xlu0 %2251
  %2253 = vadd.xlane.f32.xlu0 %v2039
  %v2254 = vpop.xlane.xlu0 %2253
  %2255 = vadd.xlane.f32.xlu0 %v2040
  %v2256 = vpop.xlane.xlu0 %2255
  %2257 = vadd.xlane.f32.xlu0 %v2041
  %v2258 = vpop.xlane.xlu0 %2257
  %2259 = vadd.xlane.f32.xlu0 %v2042
  %v2260 = vpop.xlane.xlu0 %2259
  %2261 = vadd.xlane.f32.xlu0 %v2043
  %v2262 = vpop.xlane.xlu0 %2261
  %2263 = vadd.xlane.f32.xlu0 %v2044
  %v2264 = vpop.xlane.xlu0 %2263
  %2265 = vadd.xlane.f32.xlu0 %v2045
  %v2266 = vpop.xlane.xlu0 %2265
  %2267 = vadd.xlane.f32.xlu0 %v2046
  %v2268 = vpop.xlane.xlu0 %2267
  %2269 = vadd.xlane.f32.xlu0 %v2047
  %v2270 = vpop.xlane.xlu0 %2269
  %2271 = vadd.xlane.f32.xlu0 %v2048
  %v2272 = vpop.xlane.xlu0 %2271
  %2273 = vadd.xlane.f32.xlu0 %v2049
  %v2274 = vpop.xlane.xlu0 %2273
  %2275 = vadd.xlane.f32.xlu0 %v2050
  %v2276 = vpop.xlane.xlu0 %2275
  %2277 = vadd.xlane.f32.xlu0 %v2051
  %v2278 = vpop.xlane.xlu0 %2277
  %2279 = vadd.xlane.f32.xlu0 %v2052
  %v2280 = vpop.xlane.xlu0 %2279
  %2281 = vadd.xlane.f32.xlu0 %v2053
  %v2282 = vpop.xlane.xlu0 %2281
  %2283 = vadd.xlane.f32.xlu0 %v2054
  %v2284 = vpop.xlane.xlu0 %2283
  %2285 = vadd.xlane.f32.xlu0 %v2055
  %v2286 = vpop.xlane.xlu0 %2285
  %2287 = vadd.xlane.f32.xlu0 %v2056
  %v2288 = vpop.xlane.xlu0 %2287
  %2289 = vadd.xlane.f32.xlu0 %v2057
  %v2290 = vpop.xlane.xlu0 %2289
  %2291 = vadd.xlane.f32.xlu0 %v2058
  %v2292 = vpop.xlane.xlu0 %2291
  %2293 = vadd.xlane.f32.xlu0 %v2059
  %v2294 = vpop.xlane.xlu0 %2293
  %2295 = vadd.xlane.f32.xlu0 %v2060
  %v2296 = vpop.xlane.xlu0 %2295
  %2297 = vadd.xlane.f32.xlu0 %v2061
  %v2298 = vpop.xlane.xlu0 %2297
  %2299 = vadd.xlane.f32.xlu0 %v2062
  %v2300 = vpop.xlane.xlu0 %2299
  %2301 = vadd.xlane.f32.xlu0 %v2063
  %v2302 = vpop.xlane.xlu0 %2301
  %2303 = vadd.xlane.f32.xlu0 %v2064
  %v2304 = vpop.xlane.xlu0 %2303
  %2305 = vadd.xlane.f32.xlu0 %v2065
  %v2306 = vpop.xlane.xlu0 %2305
  %2307 = vadd.xlane.f32.xlu0 %v2066
  %v2308 = vpop.xlane.xlu0 %2307
  %2309 = vadd.xlane.f32.xlu0 %v2067
  %v2310 = vpop.xlane.xlu0 %2309
  %2311 = vadd.xlane.f32.xlu0 %v2068
  %v2312 = vpop.xlane.xlu0 %2311
  %2313 = vadd.xlane.f32.xlu0 %v2069
  %v2314 = vpop.xlane.xlu0 %2313
  %2315 = vadd.xlane.f32.xlu0 %v2070
  %v2316 = vpop.xlane.xlu0 %2315
  %2317 = vadd.xlane.f32.xlu0 %v2071
  %v2318 = vpop.xlane.xlu0 %2317
  %2319 = vadd.xlane.f32.xlu0 %v2072
  %v2320 = vpop.xlane.xlu0 %2319
  %2321 = vadd.xlane.f32.xlu0 %v2073
  %v2322 = vpop.xlane.xlu0 %2321
  %2323 = vadd.xlane.f32.xlu0 %v2074
  %v2324 = vpop.xlane.xlu0 %2323
  %2325 = vadd.xlane.f32.xlu0 %v2075
  %v2326 = vpop.xlane.xlu0 %2325
  %2327 = vadd.xlane.f32.xlu0 %v2076
  %v2328 = vpop.xlane.xlu0 %2327
  %2329 = vadd.xlane.f32.xlu0 %v2077
  %v2330 = vpop.xlane.xlu0 %2329
  %2331 = vadd.xlane.f32.xlu0 %v2078
  %v2332 = vpop.xlane.xlu0 %2331
  %2333 = vadd.xlane.f32.xlu0 %v2079
  %v2334 = vpop.xlane.xlu0 %2333
  %2335 = vadd.xlane.f32.xlu0 %v2080
  %v2336 = vpop.xlane.xlu0 %2335
  %v2338 = vlaneseq
  %v2339 = vshrl.u32 %v2338, 7
  %v2340 = vsub.s32 0, %v2339
  %v2341 = vrot.slane %v222, %v2340
  %2342 = vset.pattern.permute.xlu0 0
  %2343 = vperm.xlu0 %2342, %v2341
  %v2344 = vpop.permute.xlu0 %2343
  %v2346 = vadd.f32 %v2082, %v2344
  %v2347 = vadd.f32 %v2084, %v2344
  %v2348 = vadd.f32 %v2086, %v2344
  %v2349 = vadd.f32 %v2088, %v2344
  %v2350 = vadd.f32 %v2090, %v2344
  %v2351 = vadd.f32 %v2092, %v2344
  %v2352 = vadd.f32 %v2094, %v2344
  %v2353 = vadd.f32 %v2096, %v2344
  %v2354 = vadd.f32 %v2098, %v2344
  %v2355 = vadd.f32 %v2100, %v2344
  %v2356 = vadd.f32 %v2102, %v2344
  %v2357 = vadd.f32 %v2104, %v2344
  %v2358 = vadd.f32 %v2106, %v2344
  %v2359 = vadd.f32 %v2108, %v2344
  %v2360 = vadd.f32 %v2110, %v2344
  %v2361 = vadd.f32 %v2112, %v2344
  %v2362 = vadd.f32 %v2114, %v2344
  %v2363 = vadd.f32 %v2116, %v2344
  %v2364 = vadd.f32 %v2118, %v2344
  %v2365 = vadd.f32 %v2120, %v2344
  %v2366 = vadd.f32 %v2122, %v2344
  %v2367 = vadd.f32 %v2124, %v2344
  %v2368 = vadd.f32 %v2126, %v2344
  %v2369 = vadd.f32 %v2128, %v2344
  %v2370 = vadd.f32 %v2130, %v2344
  %v2371 = vadd.f32 %v2132, %v2344
  %v2372 = vadd.f32 %v2134, %v2344
  %v2373 = vadd.f32 %v2136, %v2344
  %v2374 = vadd.f32 %v2138, %v2344
  %v2375 = vadd.f32 %v2140, %v2344
  %v2376 = vadd.f32 %v2142, %v2344
  %v2377 = vadd.f32 %v2144, %v2344
  %v2378 = vadd.f32 %v2146, %v2344
  %v2379 = vadd.f32 %v2148, %v2344
  %v2380 = vadd.f32 %v2150, %v2344
  %v2381 = vadd.f32 %v2152, %v2344
  %v2382 = vadd.f32 %v2154, %v2344
  %v2383 = vadd.f32 %v2156, %v2344
  %v2384 = vadd.f32 %v2158, %v2344
  %v2385 = vadd.f32 %v2160, %v2344
  %v2386 = vadd.f32 %v2162, %v2344
  %v2387 = vadd.f32 %v2164, %v2344
  %v2388 = vadd.f32 %v2166, %v2344
  %v2389 = vadd.f32 %v2168, %v2344
  %v2390 = vadd.f32 %v2170, %v2344
  %v2391 = vadd.f32 %v2172, %v2344
  %v2392 = vadd.f32 %v2174, %v2344
  %v2393 = vadd.f32 %v2176, %v2344
  %v2394 = vadd.f32 %v2178, %v2344
  %v2395 = vadd.f32 %v2180, %v2344
  %v2396 = vadd.f32 %v2182, %v2344
  %v2397 = vadd.f32 %v2184, %v2344
  %v2398 = vadd.f32 %v2186, %v2344
  %v2399 = vadd.f32 %v2188, %v2344
  %v2400 = vadd.f32 %v2190, %v2344
  %v2401 = vadd.f32 %v2192, %v2344
  %v2402 = vadd.f32 %v2194, %v2344
  %v2403 = vadd.f32 %v2196, %v2344
  %v2404 = vadd.f32 %v2198, %v2344
  %v2405 = vadd.f32 %v2200, %v2344
  %v2406 = vadd.f32 %v2202, %v2344
  %v2407 = vadd.f32 %v2204, %v2344
  %v2408 = vadd.f32 %v2206, %v2344
  %v2409 = vadd.f32 %v2208, %v2344
  %v2410 = vadd.f32 %v2210, %v2344
  %v2411 = vadd.f32 %v2212, %v2344
  %v2412 = vadd.f32 %v2214, %v2344
  %v2413 = vadd.f32 %v2216, %v2344
  %v2414 = vadd.f32 %v2218, %v2344
  %v2415 = vadd.f32 %v2220, %v2344
  %v2416 = vadd.f32 %v2222, %v2344
  %v2417 = vadd.f32 %v2224, %v2344
  %v2418 = vadd.f32 %v2226, %v2344
  %v2419 = vadd.f32 %v2228, %v2344
  %v2420 = vadd.f32 %v2230, %v2344
  %v2421 = vadd.f32 %v2232, %v2344
  %v2422 = vadd.f32 %v2234, %v2344
  %v2423 = vadd.f32 %v2236, %v2344
  %v2424 = vadd.f32 %v2238, %v2344
  %v2425 = vadd.f32 %v2240, %v2344
  %v2426 = vadd.f32 %v2242, %v2344
  %v2427 = vadd.f32 %v2244, %v2344
  %v2428 = vadd.f32 %v2246, %v2344
  %v2429 = vadd.f32 %v2248, %v2344
  %v2430 = vadd.f32 %v2250, %v2344
  %v2431 = vadd.f32 %v2252, %v2344
  %v2432 = vadd.f32 %v2254, %v2344
  %v2433 = vadd.f32 %v2256, %v2344
  %v2434 = vadd.f32 %v2258, %v2344
  %v2435 = vadd.f32 %v2260, %v2344
  %v2436 = vadd.f32 %v2262, %v2344
  %v2437 = vadd.f32 %v2264, %v2344
  %v2438 = vadd.f32 %v2266, %v2344
  %v2439 = vadd.f32 %v2268, %v2344
  %v2440 = vadd.f32 %v2270, %v2344
  %v2441 = vadd.f32 %v2272, %v2344
  %v2442 = vadd.f32 %v2274, %v2344
  %v2443 = vadd.f32 %v2276, %v2344
  %v2444 = vadd.f32 %v2278, %v2344
  %v2445 = vadd.f32 %v2280, %v2344
  %v2446 = vadd.f32 %v2282, %v2344
  %v2447 = vadd.f32 %v2284, %v2344
  %v2448 = vadd.f32 %v2286, %v2344
  %v2449 = vadd.f32 %v2288, %v2344
  %v2450 = vadd.f32 %v2290, %v2344
  %v2451 = vadd.f32 %v2292, %v2344
  %v2452 = vadd.f32 %v2294, %v2344
  %v2453 = vadd.f32 %v2296, %v2344
  %v2454 = vadd.f32 %v2298, %v2344
  %v2455 = vadd.f32 %v2300, %v2344
  %v2456 = vadd.f32 %v2302, %v2344
  %v2457 = vadd.f32 %v2304, %v2344
  %v2458 = vadd.f32 %v2306, %v2344
  %v2459 = vadd.f32 %v2308, %v2344
  %v2460 = vadd.f32 %v2310, %v2344
  %v2461 = vadd.f32 %v2312, %v2344
  %v2462 = vadd.f32 %v2314, %v2344
  %v2463 = vadd.f32 %v2316, %v2344
  %v2464 = vadd.f32 %v2318, %v2344
  %v2465 = vadd.f32 %v2320, %v2344
  %v2466 = vadd.f32 %v2322, %v2344
  %v2467 = vadd.f32 %v2324, %v2344
  %v2468 = vadd.f32 %v2326, %v2344
  %v2469 = vadd.f32 %v2328, %v2344
  %v2470 = vadd.f32 %v2330, %v2344
  %v2471 = vadd.f32 %v2332, %v2344
  %v2472 = vadd.f32 %v2334, %v2344
  %v2473 = vadd.f32 %v2336, %v2344
  %v2602 = vlaneseq
  %v2603 = vand.u32 %v2602, 127
  %v2604 = vlaneseq
  %v2605 = vshrl.u32 %v2604, 7
  %v2606 = vsub.s32 %v2603, %v2605
  %v2607 = vrot.slane %v2346, %v2606
  %v2608 = vadd.s32 %v2603, 4294967288
  %v2609 = vlaneseq
  %v2610 = vshrl.u32 %v2609, 7
  %v2611 = vsub.s32 %v2608, %v2610
  %v2612 = vrot.slane %v2347, %v2611
  %vm2613 = vcmask 130112
  %v2614 = vsel %vm2613, %v2612, %v2607
  %v2615 = vadd.s32 %v2603, 4294967280
  %v2616 = vlaneseq
  %v2617 = vshrl.u32 %v2616, 7
  %v2618 = vsub.s32 %v2615, %v2617
  %v2619 = vrot.slane %v2348, %v2618
  %vm2620 = vcmask 195712
  %v2621 = vsel %vm2620, %v2619, %v2614
  %v2622 = vadd.s32 %v2603, 4294967272
  %v2623 = vlaneseq
  %v2624 = vshrl.u32 %v2623, 7
  %v2625 = vsub.s32 %v2622, %v2624
  %v2626 = vrot.slane %v2349, %v2625
  %vm2627 = vcmask 261312
  %v2628 = vsel %vm2627, %v2626, %v2621
  %v2629 = vadd.s32 %v2603, 4294967264
  %v2630 = vlaneseq
  %v2631 = vshrl.u32 %v2630, 7
  %v2632 = vsub.s32 %v2629, %v2631
  %v2633 = vrot.slane %v2350, %v2632
  %vm2634 = vcmask 326912
  %v2635 = vsel %vm2634, %v2633, %v2628
  %v2636 = vadd.s32 %v2603, 4294967256
  %v2637 = vlaneseq
  %v2638 = vshrl.u32 %v2637, 7
  %v2639 = vsub.s32 %v2636, %v2638
  %v2640 = vrot.slane %v2351, %v2639
  %vm2641 = vcmask 392512
  %v2642 = vsel %vm2641, %v2640, %v2635
  %v2643 = vadd.s32 %v2603, 4294967248
  %v2644 = vlaneseq
  %v2645 = vshrl.u32 %v2644, 7
  %v2646 = vsub.s32 %v2643, %v2645
  %v2647 = vrot.slane %v2352, %v2646
  %vm2648 = vcmask 458112
  %v2649 = vsel %vm2648, %v2647, %v2642
  %v2650 = vadd.s32 %v2603, 4294967240
  %v2651 = vlaneseq
  %v2652 = vshrl.u32 %v2651, 7
  %v2653 = vsub.s32 %v2650, %v2652
  %v2654 = vrot.slane %v2353, %v2653
  %vm2655 = vcmask 523712
  %v2656 = vsel %vm2655, %v2654, %v2649
  %v2657 = vlaneseq
  %v2658 = vshrl.u32 %v2657, 7
  %v2659 = vsub.s32 %v2603, %v2658
  %v2660 = vrot.slane %v2354, %v2659
  %v2661 = vlaneseq
  %v2662 = vshrl.u32 %v2661, 7
  %v2663 = vsub.s32 %v2608, %v2662
  %v2664 = vrot.slane %v2355, %v2663
  %v2665 = vsel %vm2613, %v2664, %v2660
  %v2666 = vlaneseq
  %v2667 = vshrl.u32 %v2666, 7
  %v2668 = vsub.s32 %v2615, %v2667
  %v2669 = vrot.slane %v2356, %v2668
  %v2670 = vsel %vm2620, %v2669, %v2665
  %v2671 = vlaneseq
  %v2672 = vshrl.u32 %v2671, 7
  %v2673 = vsub.s32 %v2622, %v2672
  %v2674 = vrot.slane %v2357, %v2673
  %v2675 = vsel %vm2627, %v2674, %v2670
  %v2676 = vlaneseq
  %v2677 = vshrl.u32 %v2676, 7
  %v2678 = vsub.s32 %v2629, %v2677
  %v2679 = vrot.slane %v2358, %v2678
  %v2680 = vsel %vm2634, %v2679, %v2675
  %v2681 = vlaneseq
  %v2682 = vshrl.u32 %v2681, 7
  %v2683 = vsub.s32 %v2636, %v2682
  %v2684 = vrot.slane %v2359, %v2683
  %v2685 = vsel %vm2641, %v2684, %v2680
  %v2686 = vlaneseq
  %v2687 = vshrl.u32 %v2686, 7
  %v2688 = vsub.s32 %v2643, %v2687
  %v2689 = vrot.slane %v2360, %v2688
  %v2690 = vsel %vm2648, %v2689, %v2685
  %v2691 = vlaneseq
  %v2692 = vshrl.u32 %v2691, 7
  %v2693 = vsub.s32 %v2650, %v2692
  %v2694 = vrot.slane %v2361, %v2693
  %v2695 = vsel %vm2655, %v2694, %v2690
  %v2696 = vlaneseq
  %v2697 = vshrl.u32 %v2696, 7
  %v2698 = vsub.s32 %v2603, %v2697
  %v2699 = vrot.slane %v2362, %v2698
  %v2700 = vlaneseq
  %v2701 = vshrl.u32 %v2700, 7
  %v2702 = vsub.s32 %v2608, %v2701
  %v2703 = vrot.slane %v2363, %v2702
  %v2704 = vsel %vm2613, %v2703, %v2699
  %v2705 = vlaneseq
  %v2706 = vshrl.u32 %v2705, 7
  %v2707 = vsub.s32 %v2615, %v2706
  %v2708 = vrot.slane %v2364, %v2707
  %v2709 = vsel %vm2620, %v2708, %v2704
  %v2710 = vlaneseq
  %v2711 = vshrl.u32 %v2710, 7
  %v2712 = vsub.s32 %v2622, %v2711
  %v2713 = vrot.slane %v2365, %v2712
  %v2714 = vsel %vm2627, %v2713, %v2709
  %v2715 = vlaneseq
  %v2716 = vshrl.u32 %v2715, 7
  %v2717 = vsub.s32 %v2629, %v2716
  %v2718 = vrot.slane %v2366, %v2717
  %v2719 = vsel %vm2634, %v2718, %v2714
  %v2720 = vlaneseq
  %v2721 = vshrl.u32 %v2720, 7
  %v2722 = vsub.s32 %v2636, %v2721
  %v2723 = vrot.slane %v2367, %v2722
  %v2724 = vsel %vm2641, %v2723, %v2719
  %v2725 = vlaneseq
  %v2726 = vshrl.u32 %v2725, 7
  %v2727 = vsub.s32 %v2643, %v2726
  %v2728 = vrot.slane %v2368, %v2727
  %v2729 = vsel %vm2648, %v2728, %v2724
  %v2730 = vlaneseq
  %v2731 = vshrl.u32 %v2730, 7
  %v2732 = vsub.s32 %v2650, %v2731
  %v2733 = vrot.slane %v2369, %v2732
  %v2734 = vsel %vm2655, %v2733, %v2729
  %v2735 = vlaneseq
  %v2736 = vshrl.u32 %v2735, 7
  %v2737 = vsub.s32 %v2603, %v2736
  %v2738 = vrot.slane %v2370, %v2737
  %v2739 = vlaneseq
  %v2740 = vshrl.u32 %v2739, 7
  %v2741 = vsub.s32 %v2608, %v2740
  %v2742 = vrot.slane %v2371, %v2741
  %v2743 = vsel %vm2613, %v2742, %v2738
  %v2744 = vlaneseq
  %v2745 = vshrl.u32 %v2744, 7
  %v2746 = vsub.s32 %v2615, %v2745
  %v2747 = vrot.slane %v2372, %v2746
  %v2748 = vsel %vm2620, %v2747, %v2743
  %v2749 = vlaneseq
  %v2750 = vshrl.u32 %v2749, 7
  %v2751 = vsub.s32 %v2622, %v2750
  %v2752 = vrot.slane %v2373, %v2751
  %v2753 = vsel %vm2627, %v2752, %v2748
  %v2754 = vlaneseq
  %v2755 = vshrl.u32 %v2754, 7
  %v2756 = vsub.s32 %v2629, %v2755
  %v2757 = vrot.slane %v2374, %v2756
  %v2758 = vsel %vm2634, %v2757, %v2753
  %v2759 = vlaneseq
  %v2760 = vshrl.u32 %v2759, 7
  %v2761 = vsub.s32 %v2636, %v2760
  %v2762 = vrot.slane %v2375, %v2761
  %v2763 = vsel %vm2641, %v2762, %v2758
  %v2764 = vlaneseq
  %v2765 = vshrl.u32 %v2764, 7
  %v2766 = vsub.s32 %v2643, %v2765
  %v2767 = vrot.slane %v2376, %v2766
  %v2768 = vsel %vm2648, %v2767, %v2763
  %v2769 = vlaneseq
  %v2770 = vshrl.u32 %v2769, 7
  %v2771 = vsub.s32 %v2650, %v2770
  %v2772 = vrot.slane %v2377, %v2771
  %v2773 = vsel %vm2655, %v2772, %v2768
  %v2774 = vlaneseq
  %v2775 = vshrl.u32 %v2774, 7
  %v2776 = vsub.s32 %v2603, %v2775
  %v2777 = vrot.slane %v2378, %v2776
  %v2778 = vlaneseq
  %v2779 = vshrl.u32 %v2778, 7
  %v2780 = vsub.s32 %v2608, %v2779
  %v2781 = vrot.slane %v2379, %v2780
  %v2782 = vsel %vm2613, %v2781, %v2777
  %v2783 = vlaneseq
  %v2784 = vshrl.u32 %v2783, 7
  %v2785 = vsub.s32 %v2615, %v2784
  %v2786 = vrot.slane %v2380, %v2785
  %v2787 = vsel %vm2620, %v2786, %v2782
  %v2788 = vlaneseq
  %v2789 = vshrl.u32 %v2788, 7
  %v2790 = vsub.s32 %v2622, %v2789
  %v2791 = vrot.slane %v2381, %v2790
  %v2792 = vsel %vm2627, %v2791, %v2787
  %v2793 = vlaneseq
  %v2794 = vshrl.u32 %v2793, 7
  %v2795 = vsub.s32 %v2629, %v2794
  %v2796 = vrot.slane %v2382, %v2795
  %v2797 = vsel %vm2634, %v2796, %v2792
  %v2798 = vlaneseq
  %v2799 = vshrl.u32 %v2798, 7
  %v2800 = vsub.s32 %v2636, %v2799
  %v2801 = vrot.slane %v2383, %v2800
  %v2802 = vsel %vm2641, %v2801, %v2797
  %v2803 = vlaneseq
  %v2804 = vshrl.u32 %v2803, 7
  %v2805 = vsub.s32 %v2643, %v2804
  %v2806 = vrot.slane %v2384, %v2805
  %v2807 = vsel %vm2648, %v2806, %v2802
  %v2808 = vlaneseq
  %v2809 = vshrl.u32 %v2808, 7
  %v2810 = vsub.s32 %v2650, %v2809
  %v2811 = vrot.slane %v2385, %v2810
  %v2812 = vsel %vm2655, %v2811, %v2807
  %v2813 = vlaneseq
  %v2814 = vshrl.u32 %v2813, 7
  %v2815 = vsub.s32 %v2603, %v2814
  %v2816 = vrot.slane %v2386, %v2815
  %v2817 = vlaneseq
  %v2818 = vshrl.u32 %v2817, 7
  %v2819 = vsub.s32 %v2608, %v2818
  %v2820 = vrot.slane %v2387, %v2819
  %v2821 = vsel %vm2613, %v2820, %v2816
  %v2822 = vlaneseq
  %v2823 = vshrl.u32 %v2822, 7
  %v2824 = vsub.s32 %v2615, %v2823
  %v2825 = vrot.slane %v2388, %v2824
  %v2826 = vsel %vm2620, %v2825, %v2821
  %v2827 = vlaneseq
  %v2828 = vshrl.u32 %v2827, 7
  %v2829 = vsub.s32 %v2622, %v2828
  %v2830 = vrot.slane %v2389, %v2829
  %v2831 = vsel %vm2627, %v2830, %v2826
  %v2832 = vlaneseq
  %v2833 = vshrl.u32 %v2832, 7
  %v2834 = vsub.s32 %v2629, %v2833
  %v2835 = vrot.slane %v2390, %v2834
  %v2836 = vsel %vm2634, %v2835, %v2831
  %v2837 = vlaneseq
  %v2838 = vshrl.u32 %v2837, 7
  %v2839 = vsub.s32 %v2636, %v2838
  %v2840 = vrot.slane %v2391, %v2839
  %v2841 = vsel %vm2641, %v2840, %v2836
  %v2842 = vlaneseq
  %v2843 = vshrl.u32 %v2842, 7
  %v2844 = vsub.s32 %v2643, %v2843
  %v2845 = vrot.slane %v2392, %v2844
  %v2846 = vsel %vm2648, %v2845, %v2841
  %v2847 = vlaneseq
  %v2848 = vshrl.u32 %v2847, 7
  %v2849 = vsub.s32 %v2650, %v2848
  %v2850 = vrot.slane %v2393, %v2849
  %v2851 = vsel %vm2655, %v2850, %v2846
  %v2852 = vlaneseq
  %v2853 = vshrl.u32 %v2852, 7
  %v2854 = vsub.s32 %v2603, %v2853
  %v2855 = vrot.slane %v2394, %v2854
  %v2856 = vlaneseq
  %v2857 = vshrl.u32 %v2856, 7
  %v2858 = vsub.s32 %v2608, %v2857
  %v2859 = vrot.slane %v2395, %v2858
  %v2860 = vsel %vm2613, %v2859, %v2855
  %v2861 = vlaneseq
  %v2862 = vshrl.u32 %v2861, 7
  %v2863 = vsub.s32 %v2615, %v2862
  %v2864 = vrot.slane %v2396, %v2863
  %v2865 = vsel %vm2620, %v2864, %v2860
  %v2866 = vlaneseq
  %v2867 = vshrl.u32 %v2866, 7
  %v2868 = vsub.s32 %v2622, %v2867
  %v2869 = vrot.slane %v2397, %v2868
  %v2870 = vsel %vm2627, %v2869, %v2865
  %v2871 = vlaneseq
  %v2872 = vshrl.u32 %v2871, 7
  %v2873 = vsub.s32 %v2629, %v2872
  %v2874 = vrot.slane %v2398, %v2873
  %v2875 = vsel %vm2634, %v2874, %v2870
  %v2876 = vlaneseq
  %v2877 = vshrl.u32 %v2876, 7
  %v2878 = vsub.s32 %v2636, %v2877
  %v2879 = vrot.slane %v2399, %v2878
  %v2880 = vsel %vm2641, %v2879, %v2875
  %v2881 = vlaneseq
  %v2882 = vshrl.u32 %v2881, 7
  %v2883 = vsub.s32 %v2643, %v2882
  %v2884 = vrot.slane %v2400, %v2883
  %v2885 = vsel %vm2648, %v2884, %v2880
  %v2886 = vlaneseq
  %v2887 = vshrl.u32 %v2886, 7
  %v2888 = vsub.s32 %v2650, %v2887
  %v2889 = vrot.slane %v2401, %v2888
  %v2890 = vsel %vm2655, %v2889, %v2885
  %v2891 = vlaneseq
  %v2892 = vshrl.u32 %v2891, 7
  %v2893 = vsub.s32 %v2603, %v2892
  %v2894 = vrot.slane %v2402, %v2893
  %v2895 = vlaneseq
  %v2896 = vshrl.u32 %v2895, 7
  %v2897 = vsub.s32 %v2608, %v2896
  %v2898 = vrot.slane %v2403, %v2897
  %v2899 = vsel %vm2613, %v2898, %v2894
  %v2900 = vlaneseq
  %v2901 = vshrl.u32 %v2900, 7
  %v2902 = vsub.s32 %v2615, %v2901
  %v2903 = vrot.slane %v2404, %v2902
  %v2904 = vsel %vm2620, %v2903, %v2899
  %v2905 = vlaneseq
  %v2906 = vshrl.u32 %v2905, 7
  %v2907 = vsub.s32 %v2622, %v2906
  %v2908 = vrot.slane %v2405, %v2907
  %v2909 = vsel %vm2627, %v2908, %v2904
  %v2910 = vlaneseq
  %v2911 = vshrl.u32 %v2910, 7
  %v2912 = vsub.s32 %v2629, %v2911
  %v2913 = vrot.slane %v2406, %v2912
  %v2914 = vsel %vm2634, %v2913, %v2909
  %v2915 = vlaneseq
  %v2916 = vshrl.u32 %v2915, 7
  %v2917 = vsub.s32 %v2636, %v2916
  %v2918 = vrot.slane %v2407, %v2917
  %v2919 = vsel %vm2641, %v2918, %v2914
  %v2920 = vlaneseq
  %v2921 = vshrl.u32 %v2920, 7
  %v2922 = vsub.s32 %v2643, %v2921
  %v2923 = vrot.slane %v2408, %v2922
  %v2924 = vsel %vm2648, %v2923, %v2919
  %v2925 = vlaneseq
  %v2926 = vshrl.u32 %v2925, 7
  %v2927 = vsub.s32 %v2650, %v2926
  %v2928 = vrot.slane %v2409, %v2927
  %v2929 = vsel %vm2655, %v2928, %v2924
  %v2930 = vlaneseq
  %v2931 = vshrl.u32 %v2930, 7
  %v2932 = vsub.s32 %v2603, %v2931
  %v2933 = vrot.slane %v2410, %v2932
  %v2934 = vlaneseq
  %v2935 = vshrl.u32 %v2934, 7
  %v2936 = vsub.s32 %v2608, %v2935
  %v2937 = vrot.slane %v2411, %v2936
  %v2938 = vsel %vm2613, %v2937, %v2933
  %v2939 = vlaneseq
  %v2940 = vshrl.u32 %v2939, 7
  %v2941 = vsub.s32 %v2615, %v2940
  %v2942 = vrot.slane %v2412, %v2941
  %v2943 = vsel %vm2620, %v2942, %v2938
  %v2944 = vlaneseq
  %v2945 = vshrl.u32 %v2944, 7
  %v2946 = vsub.s32 %v2622, %v2945
  %v2947 = vrot.slane %v2413, %v2946
  %v2948 = vsel %vm2627, %v2947, %v2943
  %v2949 = vlaneseq
  %v2950 = vshrl.u32 %v2949, 7
  %v2951 = vsub.s32 %v2629, %v2950
  %v2952 = vrot.slane %v2414, %v2951
  %v2953 = vsel %vm2634, %v2952, %v2948
  %v2954 = vlaneseq
  %v2955 = vshrl.u32 %v2954, 7
  %v2956 = vsub.s32 %v2636, %v2955
  %v2957 = vrot.slane %v2415, %v2956
  %v2958 = vsel %vm2641, %v2957, %v2953
  %v2959 = vlaneseq
  %v2960 = vshrl.u32 %v2959, 7
  %v2961 = vsub.s32 %v2643, %v2960
  %v2962 = vrot.slane %v2416, %v2961
  %v2963 = vsel %vm2648, %v2962, %v2958
  %v2964 = vlaneseq
  %v2965 = vshrl.u32 %v2964, 7
  %v2966 = vsub.s32 %v2650, %v2965
  %v2967 = vrot.slane %v2417, %v2966
  %v2968 = vsel %vm2655, %v2967, %v2963
  %v2969 = vlaneseq
  %v2970 = vshrl.u32 %v2969, 7
  %v2971 = vsub.s32 %v2603, %v2970
  %v2972 = vrot.slane %v2418, %v2971
  %v2973 = vlaneseq
  %v2974 = vshrl.u32 %v2973, 7
  %v2975 = vsub.s32 %v2608, %v2974
  %v2976 = vrot.slane %v2419, %v2975
  %v2977 = vsel %vm2613, %v2976, %v2972
  %v2978 = vlaneseq
  %v2979 = vshrl.u32 %v2978, 7
  %v2980 = vsub.s32 %v2615, %v2979
  %v2981 = vrot.slane %v2420, %v2980
  %v2982 = vsel %vm2620, %v2981, %v2977
  %v2983 = vlaneseq
  %v2984 = vshrl.u32 %v2983, 7
  %v2985 = vsub.s32 %v2622, %v2984
  %v2986 = vrot.slane %v2421, %v2985
  %v2987 = vsel %vm2627, %v2986, %v2982
  %v2988 = vlaneseq
  %v2989 = vshrl.u32 %v2988, 7
  %v2990 = vsub.s32 %v2629, %v2989
  %v2991 = vrot.slane %v2422, %v2990
  %v2992 = vsel %vm2634, %v2991, %v2987
  %v2993 = vlaneseq
  %v2994 = vshrl.u32 %v2993, 7
  %v2995 = vsub.s32 %v2636, %v2994
  %v2996 = vrot.slane %v2423, %v2995
  %v2997 = vsel %vm2641, %v2996, %v2992
  %v2998 = vlaneseq
  %v2999 = vshrl.u32 %v2998, 7
  %v3000 = vsub.s32 %v2643, %v2999
  %v3001 = vrot.slane %v2424, %v3000
  %v3002 = vsel %vm2648, %v3001, %v2997
  %v3003 = vlaneseq
  %v3004 = vshrl.u32 %v3003, 7
  %v3005 = vsub.s32 %v2650, %v3004
  %v3006 = vrot.slane %v2425, %v3005
  %v3007 = vsel %vm2655, %v3006, %v3002
  %v3008 = vlaneseq
  %v3009 = vshrl.u32 %v3008, 7
  %v3010 = vsub.s32 %v2603, %v3009
  %v3011 = vrot.slane %v2426, %v3010
  %v3012 = vlaneseq
  %v3013 = vshrl.u32 %v3012, 7
  %v3014 = vsub.s32 %v2608, %v3013
  %v3015 = vrot.slane %v2427, %v3014
  %v3016 = vsel %vm2613, %v3015, %v3011
  %v3017 = vlaneseq
  %v3018 = vshrl.u32 %v3017, 7
  %v3019 = vsub.s32 %v2615, %v3018
  %v3020 = vrot.slane %v2428, %v3019
  %v3021 = vsel %vm2620, %v3020, %v3016
  %v3022 = vlaneseq
  %v3023 = vshrl.u32 %v3022, 7
  %v3024 = vsub.s32 %v2622, %v3023
  %v3025 = vrot.slane %v2429, %v3024
  %v3026 = vsel %vm2627, %v3025, %v3021
  %v3027 = vlaneseq
  %v3028 = vshrl.u32 %v3027, 7
  %v3029 = vsub.s32 %v2629, %v3028
  %v3030 = vrot.slane %v2430, %v3029
  %v3031 = vsel %vm2634, %v3030, %v3026
  %v3032 = vlaneseq
  %v3033 = vshrl.u32 %v3032, 7
  %v3034 = vsub.s32 %v2636, %v3033
  %v3035 = vrot.slane %v2431, %v3034
  %v3036 = vsel %vm2641, %v3035, %v3031
  %v3037 = vlaneseq
  %v3038 = vshrl.u32 %v3037, 7
  %v3039 = vsub.s32 %v2643, %v3038
  %v3040 = vrot.slane %v2432, %v3039
  %v3041 = vsel %vm2648, %v3040, %v3036
  %v3042 = vlaneseq
  %v3043 = vshrl.u32 %v3042, 7
  %v3044 = vsub.s32 %v2650, %v3043
  %v3045 = vrot.slane %v2433, %v3044
  %v3046 = vsel %vm2655, %v3045, %v3041
  %v3047 = vlaneseq
  %v3048 = vshrl.u32 %v3047, 7
  %v3049 = vsub.s32 %v2603, %v3048
  %v3050 = vrot.slane %v2434, %v3049
  %v3051 = vlaneseq
  %v3052 = vshrl.u32 %v3051, 7
  %v3053 = vsub.s32 %v2608, %v3052
  %v3054 = vrot.slane %v2435, %v3053
  %v3055 = vsel %vm2613, %v3054, %v3050
  %v3056 = vlaneseq
  %v3057 = vshrl.u32 %v3056, 7
  %v3058 = vsub.s32 %v2615, %v3057
  %v3059 = vrot.slane %v2436, %v3058
  %v3060 = vsel %vm2620, %v3059, %v3055
  %v3061 = vlaneseq
  %v3062 = vshrl.u32 %v3061, 7
  %v3063 = vsub.s32 %v2622, %v3062
  %v3064 = vrot.slane %v2437, %v3063
  %v3065 = vsel %vm2627, %v3064, %v3060
  %v3066 = vlaneseq
  %v3067 = vshrl.u32 %v3066, 7
  %v3068 = vsub.s32 %v2629, %v3067
  %v3069 = vrot.slane %v2438, %v3068
  %v3070 = vsel %vm2634, %v3069, %v3065
  %v3071 = vlaneseq
  %v3072 = vshrl.u32 %v3071, 7
  %v3073 = vsub.s32 %v2636, %v3072
  %v3074 = vrot.slane %v2439, %v3073
  %v3075 = vsel %vm2641, %v3074, %v3070
  %v3076 = vlaneseq
  %v3077 = vshrl.u32 %v3076, 7
  %v3078 = vsub.s32 %v2643, %v3077
  %v3079 = vrot.slane %v2440, %v3078
  %v3080 = vsel %vm2648, %v3079, %v3075
  %v3081 = vlaneseq
  %v3082 = vshrl.u32 %v3081, 7
  %v3083 = vsub.s32 %v2650, %v3082
  %v3084 = vrot.slane %v2441, %v3083
  %v3085 = vsel %vm2655, %v3084, %v3080
  %v3086 = vlaneseq
  %v3087 = vshrl.u32 %v3086, 7
  %v3088 = vsub.s32 %v2603, %v3087
  %v3089 = vrot.slane %v2442, %v3088
  %v3090 = vlaneseq
  %v3091 = vshrl.u32 %v3090, 7
  %v3092 = vsub.s32 %v2608, %v3091
  %v3093 = vrot.slane %v2443, %v3092
  %v3094 = vsel %vm2613, %v3093, %v3089
  %v3095 = vlaneseq
  %v3096 = vshrl.u32 %v3095, 7
  %v3097 = vsub.s32 %v2615, %v3096
  %v3098 = vrot.slane %v2444, %v3097
  %v3099 = vsel %vm2620, %v3098, %v3094
  %v3100 = vlaneseq
  %v3101 = vshrl.u32 %v3100, 7
  %v3102 = vsub.s32 %v2622, %v3101
  %v3103 = vrot.slane %v2445, %v3102
  %v3104 = vsel %vm2627, %v3103, %v3099
  %v3105 = vlaneseq
  %v3106 = vshrl.u32 %v3105, 7
  %v3107 = vsub.s32 %v2629, %v3106
  %v3108 = vrot.slane %v2446, %v3107
  %v3109 = vsel %vm2634, %v3108, %v3104
  %v3110 = vlaneseq
  %v3111 = vshrl.u32 %v3110, 7
  %v3112 = vsub.s32 %v2636, %v3111
  %v3113 = vrot.slane %v2447, %v3112
  %v3114 = vsel %vm2641, %v3113, %v3109
  %v3115 = vlaneseq
  %v3116 = vshrl.u32 %v3115, 7
  %v3117 = vsub.s32 %v2643, %v3116
  %v3118 = vrot.slane %v2448, %v3117
  %v3119 = vsel %vm2648, %v3118, %v3114
  %v3120 = vlaneseq
  %v3121 = vshrl.u32 %v3120, 7
  %v3122 = vsub.s32 %v2650, %v3121
  %v3123 = vrot.slane %v2449, %v3122
  %v3124 = vsel %vm2655, %v3123, %v3119
  %v3125 = vlaneseq
  %v3126 = vshrl.u32 %v3125, 7
  %v3127 = vsub.s32 %v2603, %v3126
  %v3128 = vrot.slane %v2450, %v3127
  %v3129 = vlaneseq
  %v3130 = vshrl.u32 %v3129, 7
  %v3131 = vsub.s32 %v2608, %v3130
  %v3132 = vrot.slane %v2451, %v3131
  %v3133 = vsel %vm2613, %v3132, %v3128
  %v3134 = vlaneseq
  %v3135 = vshrl.u32 %v3134, 7
  %v3136 = vsub.s32 %v2615, %v3135
  %v3137 = vrot.slane %v2452, %v3136
  %v3138 = vsel %vm2620, %v3137, %v3133
  %v3139 = vlaneseq
  %v3140 = vshrl.u32 %v3139, 7
  %v3141 = vsub.s32 %v2622, %v3140
  %v3142 = vrot.slane %v2453, %v3141
  %v3143 = vsel %vm2627, %v3142, %v3138
  %v3144 = vlaneseq
  %v3145 = vshrl.u32 %v3144, 7
  %v3146 = vsub.s32 %v2629, %v3145
  %v3147 = vrot.slane %v2454, %v3146
  %v3148 = vsel %vm2634, %v3147, %v3143
  %v3149 = vlaneseq
  %v3150 = vshrl.u32 %v3149, 7
  %v3151 = vsub.s32 %v2636, %v3150
  %v3152 = vrot.slane %v2455, %v3151
  %v3153 = vsel %vm2641, %v3152, %v3148
  %v3154 = vlaneseq
  %v3155 = vshrl.u32 %v3154, 7
  %v3156 = vsub.s32 %v2643, %v3155
  %v3157 = vrot.slane %v2456, %v3156
  %v3158 = vsel %vm2648, %v3157, %v3153
  %v3159 = vlaneseq
  %v3160 = vshrl.u32 %v3159, 7
  %v3161 = vsub.s32 %v2650, %v3160
  %v3162 = vrot.slane %v2457, %v3161
  %v3163 = vsel %vm2655, %v3162, %v3158
  %v3164 = vlaneseq
  %v3165 = vshrl.u32 %v3164, 7
  %v3166 = vsub.s32 %v2603, %v3165
  %v3167 = vrot.slane %v2458, %v3166
  %v3168 = vlaneseq
  %v3169 = vshrl.u32 %v3168, 7
  %v3170 = vsub.s32 %v2608, %v3169
  %v3171 = vrot.slane %v2459, %v3170
  %v3172 = vsel %vm2613, %v3171, %v3167
  %v3173 = vlaneseq
  %v3174 = vshrl.u32 %v3173, 7
  %v3175 = vsub.s32 %v2615, %v3174
  %v3176 = vrot.slane %v2460, %v3175
  %v3177 = vsel %vm2620, %v3176, %v3172
  %v3178 = vlaneseq
  %v3179 = vshrl.u32 %v3178, 7
  %v3180 = vsub.s32 %v2622, %v3179
  %v3181 = vrot.slane %v2461, %v3180
  %v3182 = vsel %vm2627, %v3181, %v3177
  %v3183 = vlaneseq
  %v3184 = vshrl.u32 %v3183, 7
  %v3185 = vsub.s32 %v2629, %v3184
  %v3186 = vrot.slane %v2462, %v3185
  %v3187 = vsel %vm2634, %v3186, %v3182
  %v3188 = vlaneseq
  %v3189 = vshrl.u32 %v3188, 7
  %v3190 = vsub.s32 %v2636, %v3189
  %v3191 = vrot.slane %v2463, %v3190
  %v3192 = vsel %vm2641, %v3191, %v3187
  %v3193 = vlaneseq
  %v3194 = vshrl.u32 %v3193, 7
  %v3195 = vsub.s32 %v2643, %v3194
  %v3196 = vrot.slane %v2464, %v3195
  %v3197 = vsel %vm2648, %v3196, %v3192
  %v3198 = vlaneseq
  %v3199 = vshrl.u32 %v3198, 7
  %v3200 = vsub.s32 %v2650, %v3199
  %v3201 = vrot.slane %v2465, %v3200
  %v3202 = vsel %vm2655, %v3201, %v3197
  %v3203 = vlaneseq
  %v3204 = vshrl.u32 %v3203, 7
  %v3205 = vsub.s32 %v2603, %v3204
  %v3206 = vrot.slane %v2466, %v3205
  %v3207 = vlaneseq
  %v3208 = vshrl.u32 %v3207, 7
  %v3209 = vsub.s32 %v2608, %v3208
  %v3210 = vrot.slane %v2467, %v3209
  %v3211 = vsel %vm2613, %v3210, %v3206
  %v3212 = vlaneseq
  %v3213 = vshrl.u32 %v3212, 7
  %v3214 = vsub.s32 %v2615, %v3213
  %v3215 = vrot.slane %v2468, %v3214
  %v3216 = vsel %vm2620, %v3215, %v3211
  %v3217 = vlaneseq
  %v3218 = vshrl.u32 %v3217, 7
  %v3219 = vsub.s32 %v2622, %v3218
  %v3220 = vrot.slane %v2469, %v3219
  %v3221 = vsel %vm2627, %v3220, %v3216
  %v3222 = vlaneseq
  %v3223 = vshrl.u32 %v3222, 7
  %v3224 = vsub.s32 %v2629, %v3223
  %v3225 = vrot.slane %v2470, %v3224
  %v3226 = vsel %vm2634, %v3225, %v3221
  %v3227 = vlaneseq
  %v3228 = vshrl.u32 %v3227, 7
  %v3229 = vsub.s32 %v2636, %v3228
  %v3230 = vrot.slane %v2471, %v3229
  %v3231 = vsel %vm2641, %v3230, %v3226
  %v3232 = vlaneseq
  %v3233 = vshrl.u32 %v3232, 7
  %v3234 = vsub.s32 %v2643, %v3233
  %v3235 = vrot.slane %v2472, %v3234
  %v3236 = vsel %vm2648, %v3235, %v3231
  %v3237 = vlaneseq
  %v3238 = vshrl.u32 %v3237, 7
  %v3239 = vsub.s32 %v2650, %v3238
  %v3240 = vrot.slane %v2473, %v3239
  %v3241 = vsel %vm2655, %v3240, %v3236
  %vm3242 = vcmask 1041409
  %v3243 = vsel %vm3242, %v2695, %v2656
  %vm3244 = vcmask 1042434
  %v3245 = vsel %vm3244, %v2734, %v3243
  %vm3246 = vcmask 1043459
  %v3247 = vsel %vm3246, %v2773, %v3245
  %vm3248 = vcmask 1044484
  %v3249 = vsel %vm3248, %v2812, %v3247
  %vm3250 = vcmask 1045509
  %v3251 = vsel %vm3250, %v2851, %v3249
  %vm3252 = vcmask 1046534
  %v3253 = vsel %vm3252, %v2890, %v3251
  %vm3254 = vcmask 1047559
  %v3255 = vsel %vm3254, %v2929, %v3253
  %v3256 = vsel %vm3242, %v3007, %v2968
  %v3257 = vsel %vm3244, %v3046, %v3256
  %v3258 = vsel %vm3246, %v3085, %v3257
  %v3259 = vsel %vm3248, %v3124, %v3258
  %v3260 = vsel %vm3250, %v3163, %v3259
  %v3261 = vsel %vm3252, %v3202, %v3260
  %v3262 = vsel %vm3254, %v3241, %v3261
  %vm3265 = vcmask 523264
  %v3266 = vsel %vm3265, %v3255, -inf
  %3267 = vmax.xlane.f32.xlu0 %v3266
  %v3268 = vpop.xlane.xlu0 %3267
  %v3269 = vsel %vm3265, %v3262, -inf
  %3270 = vmax.xlane.f32.xlu0 %v3269
  %v3271 = vpop.xlane.xlu0 %3270
  %v3274 = vlaneseq
  %v3275 = vshrl.u32 %v3274, 7
  %v3276 = vsub.s32 0, %v3275
  %v3277 = vrot.slane %v3268, %v3276
  %v3278 = vlaneseq
  %v3279 = vshrl.u32 %v3278, 7
  %v3280 = vsub.s32 1, %v3279
  %v3281 = vrot.slane %v3268, %v3280
  %v3282 = vlaneseq
  %v3283 = vshrl.u32 %v3282, 7
  %v3284 = vsub.s32 2, %v3283
  %v3285 = vrot.slane %v3268, %v3284
  %v3286 = vlaneseq
  %v3287 = vshrl.u32 %v3286, 7
  %v3288 = vsub.s32 3, %v3287
  %v3289 = vrot.slane %v3268, %v3288
  %v3290 = vlaneseq
  %v3291 = vshrl.u32 %v3290, 7
  %v3292 = vsub.s32 4, %v3291
  %v3293 = vrot.slane %v3268, %v3292
  %v3294 = vlaneseq
  %v3295 = vshrl.u32 %v3294, 7
  %v3296 = vsub.s32 5, %v3295
  %v3297 = vrot.slane %v3268, %v3296
  %v3298 = vlaneseq
  %v3299 = vshrl.u32 %v3298, 7
  %v3300 = vsub.s32 6, %v3299
  %v3301 = vrot.slane %v3268, %v3300
  %v3302 = vlaneseq
  %v3303 = vshrl.u32 %v3302, 7
  %v3304 = vsub.s32 7, %v3303
  %v3305 = vrot.slane %v3268, %v3304
  %v3306 = vlaneseq
  %v3307 = vshrl.u32 %v3306, 7
  %v3308 = vsub.s32 0, %v3307
  %v3309 = vrot.slane %v3271, %v3308
  %v3310 = vlaneseq
  %v3311 = vshrl.u32 %v3310, 7
  %v3312 = vsub.s32 1, %v3311
  %v3313 = vrot.slane %v3271, %v3312
  %v3314 = vlaneseq
  %v3315 = vshrl.u32 %v3314, 7
  %v3316 = vsub.s32 2, %v3315
  %v3317 = vrot.slane %v3271, %v3316
  %v3318 = vlaneseq
  %v3319 = vshrl.u32 %v3318, 7
  %v3320 = vsub.s32 3, %v3319
  %v3321 = vrot.slane %v3271, %v3320
  %v3322 = vlaneseq
  %v3323 = vshrl.u32 %v3322, 7
  %v3324 = vsub.s32 4, %v3323
  %v3325 = vrot.slane %v3271, %v3324
  %v3326 = vlaneseq
  %v3327 = vshrl.u32 %v3326, 7
  %v3328 = vsub.s32 5, %v3327
  %v3329 = vrot.slane %v3271, %v3328
  %v3330 = vlaneseq
  %v3331 = vshrl.u32 %v3330, 7
  %v3332 = vsub.s32 6, %v3331
  %v3333 = vrot.slane %v3271, %v3332
  %v3334 = vlaneseq
  %v3335 = vshrl.u32 %v3334, 7
  %v3336 = vsub.s32 7, %v3335
  %v3337 = vrot.slane %v3271, %v3336
  %v3354 = vsub.f32 %v2346, %v3277
  %v3355 = vsub.f32 %v2347, %v3277
  %v3356 = vsub.f32 %v2348, %v3277
  %v3357 = vsub.f32 %v2349, %v3277
  %v3358 = vsub.f32 %v2350, %v3277
  %v3359 = vsub.f32 %v2351, %v3277
  %v3360 = vsub.f32 %v2352, %v3277
  %v3361 = vsub.f32 %v2353, %v3277
  %v3362 = vsub.f32 %v2354, %v3281
  %v3363 = vsub.f32 %v2355, %v3281
  %v3364 = vsub.f32 %v2356, %v3281
  %v3365 = vsub.f32 %v2357, %v3281
  %v3366 = vsub.f32 %v2358, %v3281
  %v3367 = vsub.f32 %v2359, %v3281
  %v3368 = vsub.f32 %v2360, %v3281
  %v3369 = vsub.f32 %v2361, %v3281
  %v3370 = vsub.f32 %v2362, %v3285
  %v3371 = vsub.f32 %v2363, %v3285
  %v3372 = vsub.f32 %v2364, %v3285
  %v3373 = vsub.f32 %v2365, %v3285
  %v3374 = vsub.f32 %v2366, %v3285
  %v3375 = vsub.f32 %v2367, %v3285
  %v3376 = vsub.f32 %v2368, %v3285
  %v3377 = vsub.f32 %v2369, %v3285
  %v3378 = vsub.f32 %v2370, %v3289
  %v3379 = vsub.f32 %v2371, %v3289
  %v3380 = vsub.f32 %v2372, %v3289
  %v3381 = vsub.f32 %v2373, %v3289
  %v3382 = vsub.f32 %v2374, %v3289
  %v3383 = vsub.f32 %v2375, %v3289
  %v3384 = vsub.f32 %v2376, %v3289
  %v3385 = vsub.f32 %v2377, %v3289
  %v3386 = vsub.f32 %v2378, %v3293
  %v3387 = vsub.f32 %v2379, %v3293
  %v3388 = vsub.f32 %v2380, %v3293
  %v3389 = vsub.f32 %v2381, %v3293
  %v3390 = vsub.f32 %v2382, %v3293
  %v3391 = vsub.f32 %v2383, %v3293
  %v3392 = vsub.f32 %v2384, %v3293
  %v3393 = vsub.f32 %v2385, %v3293
  %v3394 = vsub.f32 %v2386, %v3297
  %v3395 = vsub.f32 %v2387, %v3297
  %v3396 = vsub.f32 %v2388, %v3297
  %v3397 = vsub.f32 %v2389, %v3297
  %v3398 = vsub.f32 %v2390, %v3297
  %v3399 = vsub.f32 %v2391, %v3297
  %v3400 = vsub.f32 %v2392, %v3297
  %v3401 = vsub.f32 %v2393, %v3297
  %v3402 = vsub.f32 %v2394, %v3301
  %v3403 = vsub.f32 %v2395, %v3301
  %v3404 = vsub.f32 %v2396, %v3301
  %v3405 = vsub.f32 %v2397, %v3301
  %v3406 = vsub.f32 %v2398, %v3301
  %v3407 = vsub.f32 %v2399, %v3301
  %v3408 = vsub.f32 %v2400, %v3301
  %v3409 = vsub.f32 %v2401, %v3301
  %v3410 = vsub.f32 %v2402, %v3305
  %v3411 = vsub.f32 %v2403, %v3305
  %v3412 = vsub.f32 %v2404, %v3305
  %v3413 = vsub.f32 %v2405, %v3305
  %v3414 = vsub.f32 %v2406, %v3305
  %v3415 = vsub.f32 %v2407, %v3305
  %v3416 = vsub.f32 %v2408, %v3305
  %v3417 = vsub.f32 %v2409, %v3305
  %v3418 = vsub.f32 %v2410, %v3309
  %v3419 = vsub.f32 %v2411, %v3309
  %v3420 = vsub.f32 %v2412, %v3309
  %v3421 = vsub.f32 %v2413, %v3309
  %v3422 = vsub.f32 %v2414, %v3309
  %v3423 = vsub.f32 %v2415, %v3309
  %v3424 = vsub.f32 %v2416, %v3309
  %v3425 = vsub.f32 %v2417, %v3309
  %v3426 = vsub.f32 %v2418, %v3313
  %v3427 = vsub.f32 %v2419, %v3313
  %v3428 = vsub.f32 %v2420, %v3313
  %v3429 = vsub.f32 %v2421, %v3313
  %v3430 = vsub.f32 %v2422, %v3313
  %v3431 = vsub.f32 %v2423, %v3313
  %v3432 = vsub.f32 %v2424, %v3313
  %v3433 = vsub.f32 %v2425, %v3313
  %v3434 = vsub.f32 %v2426, %v3317
  %v3435 = vsub.f32 %v2427, %v3317
  %v3436 = vsub.f32 %v2428, %v3317
  %v3437 = vsub.f32 %v2429, %v3317
  %v3438 = vsub.f32 %v2430, %v3317
  %v3439 = vsub.f32 %v2431, %v3317
  %v3440 = vsub.f32 %v2432, %v3317
  %v3441 = vsub.f32 %v2433, %v3317
  %v3442 = vsub.f32 %v2434, %v3321
  %v3443 = vsub.f32 %v2435, %v3321
  %v3444 = vsub.f32 %v2436, %v3321
  %v3445 = vsub.f32 %v2437, %v3321
  %v3446 = vsub.f32 %v2438, %v3321
  %v3447 = vsub.f32 %v2439, %v3321
  %v3448 = vsub.f32 %v2440, %v3321
  %v3449 = vsub.f32 %v2441, %v3321
  %v3450 = vsub.f32 %v2442, %v3325
  %v3451 = vsub.f32 %v2443, %v3325
  %v3452 = vsub.f32 %v2444, %v3325
  %v3453 = vsub.f32 %v2445, %v3325
  %v3454 = vsub.f32 %v2446, %v3325
  %v3455 = vsub.f32 %v2447, %v3325
  %v3456 = vsub.f32 %v2448, %v3325
  %v3457 = vsub.f32 %v2449, %v3325
  %v3458 = vsub.f32 %v2450, %v3329
  %v3459 = vsub.f32 %v2451, %v3329
  %v3460 = vsub.f32 %v2452, %v3329
  %v3461 = vsub.f32 %v2453, %v3329
  %v3462 = vsub.f32 %v2454, %v3329
  %v3463 = vsub.f32 %v2455, %v3329
  %v3464 = vsub.f32 %v2456, %v3329
  %v3465 = vsub.f32 %v2457, %v3329
  %v3466 = vsub.f32 %v2458, %v3333
  %v3467 = vsub.f32 %v2459, %v3333
  %v3468 = vsub.f32 %v2460, %v3333
  %v3469 = vsub.f32 %v2461, %v3333
  %v3470 = vsub.f32 %v2462, %v3333
  %v3471 = vsub.f32 %v2463, %v3333
  %v3472 = vsub.f32 %v2464, %v3333
  %v3473 = vsub.f32 %v2465, %v3333
  %v3474 = vsub.f32 %v2466, %v3337
  %v3475 = vsub.f32 %v2467, %v3337
  %v3476 = vsub.f32 %v2468, %v3337
  %v3477 = vsub.f32 %v2469, %v3337
  %v3478 = vsub.f32 %v2470, %v3337
  %v3479 = vsub.f32 %v2471, %v3337
  %v3480 = vsub.f32 %v2472, %v3337
  %v3481 = vsub.f32 %v2473, %v3337
  %v3482 = vmul.f32 %v3354, 1.442695
  %v3483 = vpow.pop %v3482
  %v3484 = vmul.f32 %v3355, 1.442695
  %v3485 = vpow.pop %v3484
  %v3486 = vmul.f32 %v3356, 1.442695
  %v3487 = vpow.pop %v3486
  %v3488 = vmul.f32 %v3357, 1.442695
  %v3489 = vpow.pop %v3488
  %v3490 = vmul.f32 %v3358, 1.442695
  %v3491 = vpow.pop %v3490
  %v3492 = vmul.f32 %v3359, 1.442695
  %v3493 = vpow.pop %v3492
  %v3494 = vmul.f32 %v3360, 1.442695
  %v3495 = vpow.pop %v3494
  %v3496 = vmul.f32 %v3361, 1.442695
  %v3497 = vpow.pop %v3496
  %v3498 = vmul.f32 %v3362, 1.442695
  %v3499 = vpow.pop %v3498
  %v3500 = vmul.f32 %v3363, 1.442695
  %v3501 = vpow.pop %v3500
  %v3502 = vmul.f32 %v3364, 1.442695
  %v3503 = vpow.pop %v3502
  %v3504 = vmul.f32 %v3365, 1.442695
  %v3505 = vpow.pop %v3504
  %v3506 = vmul.f32 %v3366, 1.442695
  %v3507 = vpow.pop %v3506
  %v3508 = vmul.f32 %v3367, 1.442695
  %v3509 = vpow.pop %v3508
  %v3510 = vmul.f32 %v3368, 1.442695
  %v3511 = vpow.pop %v3510
  %v3512 = vmul.f32 %v3369, 1.442695
  %v3513 = vpow.pop %v3512
  %v3514 = vmul.f32 %v3370, 1.442695
  %v3515 = vpow.pop %v3514
  %v3516 = vmul.f32 %v3371, 1.442695
  %v3517 = vpow.pop %v3516
  %v3518 = vmul.f32 %v3372, 1.442695
  %v3519 = vpow.pop %v3518
  %v3520 = vmul.f32 %v3373, 1.442695
  %v3521 = vpow.pop %v3520
  %v3522 = vmul.f32 %v3374, 1.442695
  %v3523 = vpow.pop %v3522
  %v3524 = vmul.f32 %v3375, 1.442695
  %v3525 = vpow.pop %v3524
  %v3526 = vmul.f32 %v3376, 1.442695
  %v3527 = vpow.pop %v3526
  %v3528 = vmul.f32 %v3377, 1.442695
  %v3529 = vpow.pop %v3528
  %v3530 = vmul.f32 %v3378, 1.442695
  %v3531 = vpow.pop %v3530
  %v3532 = vmul.f32 %v3379, 1.442695
  %v3533 = vpow.pop %v3532
  %v3534 = vmul.f32 %v3380, 1.442695
  %v3535 = vpow.pop %v3534
  %v3536 = vmul.f32 %v3381, 1.442695
  %v3537 = vpow.pop %v3536
  %v3538 = vmul.f32 %v3382, 1.442695
  %v3539 = vpow.pop %v3538
  %v3540 = vmul.f32 %v3383, 1.442695
  %v3541 = vpow.pop %v3540
  %v3542 = vmul.f32 %v3384, 1.442695
  %v3543 = vpow.pop %v3542
  %v3544 = vmul.f32 %v3385, 1.442695
  %v3545 = vpow.pop %v3544
  %v3546 = vmul.f32 %v3386, 1.442695
  %v3547 = vpow.pop %v3546
  %v3548 = vmul.f32 %v3387, 1.442695
  %v3549 = vpow.pop %v3548
  %v3550 = vmul.f32 %v3388, 1.442695
  %v3551 = vpow.pop %v3550
  %v3552 = vmul.f32 %v3389, 1.442695
  %v3553 = vpow.pop %v3552
  %v3554 = vmul.f32 %v3390, 1.442695
  %v3555 = vpow.pop %v3554
  %v3556 = vmul.f32 %v3391, 1.442695
  %v3557 = vpow.pop %v3556
  %v3558 = vmul.f32 %v3392, 1.442695
  %v3559 = vpow.pop %v3558
  %v3560 = vmul.f32 %v3393, 1.442695
  %v3561 = vpow.pop %v3560
  %v3562 = vmul.f32 %v3394, 1.442695
  %v3563 = vpow.pop %v3562
  %v3564 = vmul.f32 %v3395, 1.442695
  %v3565 = vpow.pop %v3564
  %v3566 = vmul.f32 %v3396, 1.442695
  %v3567 = vpow.pop %v3566
  %v3568 = vmul.f32 %v3397, 1.442695
  %v3569 = vpow.pop %v3568
  %v3570 = vmul.f32 %v3398, 1.442695
  %v3571 = vpow.pop %v3570
  %v3572 = vmul.f32 %v3399, 1.442695
  %v3573 = vpow.pop %v3572
  %v3574 = vmul.f32 %v3400, 1.442695
  %v3575 = vpow.pop %v3574
  %v3576 = vmul.f32 %v3401, 1.442695
  %v3577 = vpow.pop %v3576
  %v3578 = vmul.f32 %v3402, 1.442695
  %v3579 = vpow.pop %v3578
  %v3580 = vmul.f32 %v3403, 1.442695
  %v3581 = vpow.pop %v3580
  %v3582 = vmul.f32 %v3404, 1.442695
  %v3583 = vpow.pop %v3582
  %v3584 = vmul.f32 %v3405, 1.442695
  %v3585 = vpow.pop %v3584
  %v3586 = vmul.f32 %v3406, 1.442695
  %v3587 = vpow.pop %v3586
  %v3588 = vmul.f32 %v3407, 1.442695
  %v3589 = vpow.pop %v3588
  %v3590 = vmul.f32 %v3408, 1.442695
  %v3591 = vpow.pop %v3590
  %v3592 = vmul.f32 %v3409, 1.442695
  %v3593 = vpow.pop %v3592
  %v3594 = vmul.f32 %v3410, 1.442695
  %v3595 = vpow.pop %v3594
  %v3596 = vmul.f32 %v3411, 1.442695
  %v3597 = vpow.pop %v3596
  %v3598 = vmul.f32 %v3412, 1.442695
  %v3599 = vpow.pop %v3598
  %v3600 = vmul.f32 %v3413, 1.442695
  %v3601 = vpow.pop %v3600
  %v3602 = vmul.f32 %v3414, 1.442695
  %v3603 = vpow.pop %v3602
  %v3604 = vmul.f32 %v3415, 1.442695
  %v3605 = vpow.pop %v3604
  %v3606 = vmul.f32 %v3416, 1.442695
  %v3607 = vpow.pop %v3606
  %v3608 = vmul.f32 %v3417, 1.442695
  %v3609 = vpow.pop %v3608
  %v3610 = vmul.f32 %v3418, 1.442695
  %v3611 = vpow.pop %v3610
  %v3612 = vmul.f32 %v3419, 1.442695
  %v3613 = vpow.pop %v3612
  %v3614 = vmul.f32 %v3420, 1.442695
  %v3615 = vpow.pop %v3614
  %v3616 = vmul.f32 %v3421, 1.442695
  %v3617 = vpow.pop %v3616
  %v3618 = vmul.f32 %v3422, 1.442695
  %v3619 = vpow.pop %v3618
  %v3620 = vmul.f32 %v3423, 1.442695
  %v3621 = vpow.pop %v3620
  %v3622 = vmul.f32 %v3424, 1.442695
  %v3623 = vpow.pop %v3622
  %v3624 = vmul.f32 %v3425, 1.442695
  %v3625 = vpow.pop %v3624
  %v3626 = vmul.f32 %v3426, 1.442695
  %v3627 = vpow.pop %v3626
  %v3628 = vmul.f32 %v3427, 1.442695
  %v3629 = vpow.pop %v3628
  %v3630 = vmul.f32 %v3428, 1.442695
  %v3631 = vpow.pop %v3630
  %v3632 = vmul.f32 %v3429, 1.442695
  %v3633 = vpow.pop %v3632
  %v3634 = vmul.f32 %v3430, 1.442695
  %v3635 = vpow.pop %v3634
  %v3636 = vmul.f32 %v3431, 1.442695
  %v3637 = vpow.pop %v3636
  %v3638 = vmul.f32 %v3432, 1.442695
  %v3639 = vpow.pop %v3638
  %v3640 = vmul.f32 %v3433, 1.442695
  %v3641 = vpow.pop %v3640
  %v3642 = vmul.f32 %v3434, 1.442695
  %v3643 = vpow.pop %v3642
  %v3644 = vmul.f32 %v3435, 1.442695
  %v3645 = vpow.pop %v3644
  %v3646 = vmul.f32 %v3436, 1.442695
  %v3647 = vpow.pop %v3646
  %v3648 = vmul.f32 %v3437, 1.442695
  %v3649 = vpow.pop %v3648
  %v3650 = vmul.f32 %v3438, 1.442695
  %v3651 = vpow.pop %v3650
  %v3652 = vmul.f32 %v3439, 1.442695
  %v3653 = vpow.pop %v3652
  %v3654 = vmul.f32 %v3440, 1.442695
  %v3655 = vpow.pop %v3654
  %v3656 = vmul.f32 %v3441, 1.442695
  %v3657 = vpow.pop %v3656
  %v3658 = vmul.f32 %v3442, 1.442695
  %v3659 = vpow.pop %v3658
  %v3660 = vmul.f32 %v3443, 1.442695
  %v3661 = vpow.pop %v3660
  %v3662 = vmul.f32 %v3444, 1.442695
  %v3663 = vpow.pop %v3662
  %v3664 = vmul.f32 %v3445, 1.442695
  %v3665 = vpow.pop %v3664
  %v3666 = vmul.f32 %v3446, 1.442695
  %v3667 = vpow.pop %v3666
  %v3668 = vmul.f32 %v3447, 1.442695
  %v3669 = vpow.pop %v3668
  %v3670 = vmul.f32 %v3448, 1.442695
  %v3671 = vpow.pop %v3670
  %v3672 = vmul.f32 %v3449, 1.442695
  %v3673 = vpow.pop %v3672
  %v3674 = vmul.f32 %v3450, 1.442695
  %v3675 = vpow.pop %v3674
  %v3676 = vmul.f32 %v3451, 1.442695
  %v3677 = vpow.pop %v3676
  %v3678 = vmul.f32 %v3452, 1.442695
  %v3679 = vpow.pop %v3678
  %v3680 = vmul.f32 %v3453, 1.442695
  %v3681 = vpow.pop %v3680
  %v3682 = vmul.f32 %v3454, 1.442695
  %v3683 = vpow.pop %v3682
  %v3684 = vmul.f32 %v3455, 1.442695
  %v3685 = vpow.pop %v3684
  %v3686 = vmul.f32 %v3456, 1.442695
  %v3687 = vpow.pop %v3686
  %v3688 = vmul.f32 %v3457, 1.442695
  %v3689 = vpow.pop %v3688
  %v3690 = vmul.f32 %v3458, 1.442695
  %v3691 = vpow.pop %v3690
  %v3692 = vmul.f32 %v3459, 1.442695
  %v3693 = vpow.pop %v3692
  %v3694 = vmul.f32 %v3460, 1.442695
  %v3695 = vpow.pop %v3694
  %v3696 = vmul.f32 %v3461, 1.442695
  %v3697 = vpow.pop %v3696
  %v3698 = vmul.f32 %v3462, 1.442695
  %v3699 = vpow.pop %v3698
  %v3700 = vmul.f32 %v3463, 1.442695
  %v3701 = vpow.pop %v3700
  %v3702 = vmul.f32 %v3464, 1.442695
  %v3703 = vpow.pop %v3702
  %v3704 = vmul.f32 %v3465, 1.442695
  %v3705 = vpow.pop %v3704
  %v3706 = vmul.f32 %v3466, 1.442695
  %v3707 = vpow.pop %v3706
  %v3708 = vmul.f32 %v3467, 1.442695
  %v3709 = vpow.pop %v3708
  %v3710 = vmul.f32 %v3468, 1.442695
  %v3711 = vpow.pop %v3710
  %v3712 = vmul.f32 %v3469, 1.442695
  %v3713 = vpow.pop %v3712
  %v3714 = vmul.f32 %v3470, 1.442695
  %v3715 = vpow.pop %v3714
  %v3716 = vmul.f32 %v3471, 1.442695
  %v3717 = vpow.pop %v3716
  %v3718 = vmul.f32 %v3472, 1.442695
  %v3719 = vpow.pop %v3718
  %v3720 = vmul.f32 %v3473, 1.442695
  %v3721 = vpow.pop %v3720
  %v3722 = vmul.f32 %v3474, 1.442695
  %v3723 = vpow.pop %v3722
  %v3724 = vmul.f32 %v3475, 1.442695
  %v3725 = vpow.pop %v3724
  %v3726 = vmul.f32 %v3476, 1.442695
  %v3727 = vpow.pop %v3726
  %v3728 = vmul.f32 %v3477, 1.442695
  %v3729 = vpow.pop %v3728
  %v3730 = vmul.f32 %v3478, 1.442695
  %v3731 = vpow.pop %v3730
  %v3732 = vmul.f32 %v3479, 1.442695
  %v3733 = vpow.pop %v3732
  %v3734 = vmul.f32 %v3480, 1.442695
  %v3735 = vpow.pop %v3734
  %v3736 = vmul.f32 %v3481, 1.442695
  %v3737 = vpow.pop %v3736
  %3866 = vset.pattern.permute.xlu0 0
  %3867 = vperm.xlu0 %3866, %v3483
  %v3868 = vpop.permute.xlu0 %3867
  %3869 = vset.pattern.permute.xlu0 0
  %3870 = vperm.xlu0 %3869, %v3485
  %v3871 = vpop.permute.xlu0 %3870
  %3872 = vset.pattern.permute.xlu0 0
  %3873 = vperm.xlu0 %3872, %v3487
  %v3874 = vpop.permute.xlu0 %3873
  %3875 = vset.pattern.permute.xlu0 0
  %3876 = vperm.xlu0 %3875, %v3489
  %v3877 = vpop.permute.xlu0 %3876
  %3878 = vset.pattern.permute.xlu0 0
  %3879 = vperm.xlu0 %3878, %v3491
  %v3880 = vpop.permute.xlu0 %3879
  %3881 = vset.pattern.permute.xlu0 0
  %3882 = vperm.xlu0 %3881, %v3493
  %v3883 = vpop.permute.xlu0 %3882
  %3884 = vset.pattern.permute.xlu0 0
  %3885 = vperm.xlu0 %3884, %v3495
  %v3886 = vpop.permute.xlu0 %3885
  %3887 = vset.pattern.permute.xlu0 0
  %3888 = vperm.xlu0 %3887, %v3497
  %v3889 = vpop.permute.xlu0 %3888
  %3890 = vset.pattern.permute.xlu0 0
  %3891 = vperm.xlu0 %3890, %v3499
  %v3892 = vpop.permute.xlu0 %3891
  %3893 = vset.pattern.permute.xlu0 0
  %3894 = vperm.xlu0 %3893, %v3501
  %v3895 = vpop.permute.xlu0 %3894
  %3896 = vset.pattern.permute.xlu0 0
  %3897 = vperm.xlu0 %3896, %v3503
  %v3898 = vpop.permute.xlu0 %3897
  %3899 = vset.pattern.permute.xlu0 0
  %3900 = vperm.xlu0 %3899, %v3505
  %v3901 = vpop.permute.xlu0 %3900
  %3902 = vset.pattern.permute.xlu0 0
  %3903 = vperm.xlu0 %3902, %v3507
  %v3904 = vpop.permute.xlu0 %3903
  %3905 = vset.pattern.permute.xlu0 0
  %3906 = vperm.xlu0 %3905, %v3509
  %v3907 = vpop.permute.xlu0 %3906
  %3908 = vset.pattern.permute.xlu0 0
  %3909 = vperm.xlu0 %3908, %v3511
  %v3910 = vpop.permute.xlu0 %3909
  %3911 = vset.pattern.permute.xlu0 0
  %3912 = vperm.xlu0 %3911, %v3513
  %v3913 = vpop.permute.xlu0 %3912
  %3914 = vset.pattern.permute.xlu0 0
  %3915 = vperm.xlu0 %3914, %v3515
  %v3916 = vpop.permute.xlu0 %3915
  %3917 = vset.pattern.permute.xlu0 0
  %3918 = vperm.xlu0 %3917, %v3517
  %v3919 = vpop.permute.xlu0 %3918
  %3920 = vset.pattern.permute.xlu0 0
  %3921 = vperm.xlu0 %3920, %v3519
  %v3922 = vpop.permute.xlu0 %3921
  %3923 = vset.pattern.permute.xlu0 0
  %3924 = vperm.xlu0 %3923, %v3521
  %v3925 = vpop.permute.xlu0 %3924
  %3926 = vset.pattern.permute.xlu0 0
  %3927 = vperm.xlu0 %3926, %v3523
  %v3928 = vpop.permute.xlu0 %3927
  %3929 = vset.pattern.permute.xlu0 0
  %3930 = vperm.xlu0 %3929, %v3525
  %v3931 = vpop.permute.xlu0 %3930
  %3932 = vset.pattern.permute.xlu0 0
  %3933 = vperm.xlu0 %3932, %v3527
  %v3934 = vpop.permute.xlu0 %3933
  %3935 = vset.pattern.permute.xlu0 0
  %3936 = vperm.xlu0 %3935, %v3529
  %v3937 = vpop.permute.xlu0 %3936
  %3938 = vset.pattern.permute.xlu0 0
  %3939 = vperm.xlu0 %3938, %v3531
  %v3940 = vpop.permute.xlu0 %3939
  %3941 = vset.pattern.permute.xlu0 0
  %3942 = vperm.xlu0 %3941, %v3533
  %v3943 = vpop.permute.xlu0 %3942
  %3944 = vset.pattern.permute.xlu0 0
  %3945 = vperm.xlu0 %3944, %v3535
  %v3946 = vpop.permute.xlu0 %3945
  %3947 = vset.pattern.permute.xlu0 0
  %3948 = vperm.xlu0 %3947, %v3537
  %v3949 = vpop.permute.xlu0 %3948
  %3950 = vset.pattern.permute.xlu0 0
  %3951 = vperm.xlu0 %3950, %v3539
  %v3952 = vpop.permute.xlu0 %3951
  %3953 = vset.pattern.permute.xlu0 0
  %3954 = vperm.xlu0 %3953, %v3541
  %v3955 = vpop.permute.xlu0 %3954
  %3956 = vset.pattern.permute.xlu0 0
  %3957 = vperm.xlu0 %3956, %v3543
  %v3958 = vpop.permute.xlu0 %3957
  %3959 = vset.pattern.permute.xlu0 0
  %3960 = vperm.xlu0 %3959, %v3545
  %v3961 = vpop.permute.xlu0 %3960
  %3962 = vset.pattern.permute.xlu0 0
  %3963 = vperm.xlu0 %3962, %v3547
  %v3964 = vpop.permute.xlu0 %3963
  %3965 = vset.pattern.permute.xlu0 0
  %3966 = vperm.xlu0 %3965, %v3549
  %v3967 = vpop.permute.xlu0 %3966
  %3968 = vset.pattern.permute.xlu0 0
  %3969 = vperm.xlu0 %3968, %v3551
  %v3970 = vpop.permute.xlu0 %3969
  %3971 = vset.pattern.permute.xlu0 0
  %3972 = vperm.xlu0 %3971, %v3553
  %v3973 = vpop.permute.xlu0 %3972
  %3974 = vset.pattern.permute.xlu0 0
  %3975 = vperm.xlu0 %3974, %v3555
  %v3976 = vpop.permute.xlu0 %3975
  %3977 = vset.pattern.permute.xlu0 0
  %3978 = vperm.xlu0 %3977, %v3557
  %v3979 = vpop.permute.xlu0 %3978
  %3980 = vset.pattern.permute.xlu0 0
  %3981 = vperm.xlu0 %3980, %v3559
  %v3982 = vpop.permute.xlu0 %3981
  %3983 = vset.pattern.permute.xlu0 0
  %3984 = vperm.xlu0 %3983, %v3561
  %v3985 = vpop.permute.xlu0 %3984
  %3986 = vset.pattern.permute.xlu0 0
  %3987 = vperm.xlu0 %3986, %v3563
  %v3988 = vpop.permute.xlu0 %3987
  %3989 = vset.pattern.permute.xlu0 0
  %3990 = vperm.xlu0 %3989, %v3565
  %v3991 = vpop.permute.xlu0 %3990
  %3992 = vset.pattern.permute.xlu0 0
  %3993 = vperm.xlu0 %3992, %v3567
  %v3994 = vpop.permute.xlu0 %3993
  %3995 = vset.pattern.permute.xlu0 0
  %3996 = vperm.xlu0 %3995, %v3569
  %v3997 = vpop.permute.xlu0 %3996
  %3998 = vset.pattern.permute.xlu0 0
  %3999 = vperm.xlu0 %3998, %v3571
  %v4000 = vpop.permute.xlu0 %3999
  %4001 = vset.pattern.permute.xlu0 0
  %4002 = vperm.xlu0 %4001, %v3573
  %v4003 = vpop.permute.xlu0 %4002
  %4004 = vset.pattern.permute.xlu0 0
  %4005 = vperm.xlu0 %4004, %v3575
  %v4006 = vpop.permute.xlu0 %4005
  %4007 = vset.pattern.permute.xlu0 0
  %4008 = vperm.xlu0 %4007, %v3577
  %v4009 = vpop.permute.xlu0 %4008
  %4010 = vset.pattern.permute.xlu0 0
  %4011 = vperm.xlu0 %4010, %v3579
  %v4012 = vpop.permute.xlu0 %4011
  %4013 = vset.pattern.permute.xlu0 0
  %4014 = vperm.xlu0 %4013, %v3581
  %v4015 = vpop.permute.xlu0 %4014
  %4016 = vset.pattern.permute.xlu0 0
  %4017 = vperm.xlu0 %4016, %v3583
  %v4018 = vpop.permute.xlu0 %4017
  %4019 = vset.pattern.permute.xlu0 0
  %4020 = vperm.xlu0 %4019, %v3585
  %v4021 = vpop.permute.xlu0 %4020
  %4022 = vset.pattern.permute.xlu0 0
  %4023 = vperm.xlu0 %4022, %v3587
  %v4024 = vpop.permute.xlu0 %4023
  %4025 = vset.pattern.permute.xlu0 0
  %4026 = vperm.xlu0 %4025, %v3589
  %v4027 = vpop.permute.xlu0 %4026
  %4028 = vset.pattern.permute.xlu0 0
  %4029 = vperm.xlu0 %4028, %v3591
  %v4030 = vpop.permute.xlu0 %4029
  %4031 = vset.pattern.permute.xlu0 0
  %4032 = vperm.xlu0 %4031, %v3593
  %v4033 = vpop.permute.xlu0 %4032
  %4034 = vset.pattern.permute.xlu0 0
  %4035 = vperm.xlu0 %4034, %v3595
  %v4036 = vpop.permute.xlu0 %4035
  %4037 = vset.pattern.permute.xlu0 0
  %4038 = vperm.xlu0 %4037, %v3597
  %v4039 = vpop.permute.xlu0 %4038
  %4040 = vset.pattern.permute.xlu0 0
  %4041 = vperm.xlu0 %4040, %v3599
  %v4042 = vpop.permute.xlu0 %4041
  %4043 = vset.pattern.permute.xlu0 0
  %4044 = vperm.xlu0 %4043, %v3601
  %v4045 = vpop.permute.xlu0 %4044
  %4046 = vset.pattern.permute.xlu0 0
  %4047 = vperm.xlu0 %4046, %v3603
  %v4048 = vpop.permute.xlu0 %4047
  %4049 = vset.pattern.permute.xlu0 0
  %4050 = vperm.xlu0 %4049, %v3605
  %v4051 = vpop.permute.xlu0 %4050
  %4052 = vset.pattern.permute.xlu0 0
  %4053 = vperm.xlu0 %4052, %v3607
  %v4054 = vpop.permute.xlu0 %4053
  %4055 = vset.pattern.permute.xlu0 0
  %4056 = vperm.xlu0 %4055, %v3609
  %v4057 = vpop.permute.xlu0 %4056
  %4058 = vset.pattern.permute.xlu0 0
  %4059 = vperm.xlu0 %4058, %v3611
  %v4060 = vpop.permute.xlu0 %4059
  %4061 = vset.pattern.permute.xlu0 0
  %4062 = vperm.xlu0 %4061, %v3613
  %v4063 = vpop.permute.xlu0 %4062
  %4064 = vset.pattern.permute.xlu0 0
  %4065 = vperm.xlu0 %4064, %v3615
  %v4066 = vpop.permute.xlu0 %4065
  %4067 = vset.pattern.permute.xlu0 0
  %4068 = vperm.xlu0 %4067, %v3617
  %v4069 = vpop.permute.xlu0 %4068
  %4070 = vset.pattern.permute.xlu0 0
  %4071 = vperm.xlu0 %4070, %v3619
  %v4072 = vpop.permute.xlu0 %4071
  %4073 = vset.pattern.permute.xlu0 0
  %4074 = vperm.xlu0 %4073, %v3621
  %v4075 = vpop.permute.xlu0 %4074
  %4076 = vset.pattern.permute.xlu0 0
  %4077 = vperm.xlu0 %4076, %v3623
  %v4078 = vpop.permute.xlu0 %4077
  %4079 = vset.pattern.permute.xlu0 0
  %4080 = vperm.xlu0 %4079, %v3625
  %v4081 = vpop.permute.xlu0 %4080
  %4082 = vset.pattern.permute.xlu0 0
  %4083 = vperm.xlu0 %4082, %v3627
  %v4084 = vpop.permute.xlu0 %4083
  %4085 = vset.pattern.permute.xlu0 0
  %4086 = vperm.xlu0 %4085, %v3629
  %v4087 = vpop.permute.xlu0 %4086
  %4088 = vset.pattern.permute.xlu0 0
  %4089 = vperm.xlu0 %4088, %v3631
  %v4090 = vpop.permute.xlu0 %4089
  %4091 = vset.pattern.permute.xlu0 0
  %4092 = vperm.xlu0 %4091, %v3633
  %v4093 = vpop.permute.xlu0 %4092
  %4094 = vset.pattern.permute.xlu0 0
  %4095 = vperm.xlu0 %4094, %v3635
  %v4096 = vpop.permute.xlu0 %4095
  %4097 = vset.pattern.permute.xlu0 0
  %4098 = vperm.xlu0 %4097, %v3637
  %v4099 = vpop.permute.xlu0 %4098
  %4100 = vset.pattern.permute.xlu0 0
  %4101 = vperm.xlu0 %4100, %v3639
  %v4102 = vpop.permute.xlu0 %4101
  %4103 = vset.pattern.permute.xlu0 0
  %4104 = vperm.xlu0 %4103, %v3641
  %v4105 = vpop.permute.xlu0 %4104
  %4106 = vset.pattern.permute.xlu0 0
  %4107 = vperm.xlu0 %4106, %v3643
  %v4108 = vpop.permute.xlu0 %4107
  %4109 = vset.pattern.permute.xlu0 0
  %4110 = vperm.xlu0 %4109, %v3645
  %v4111 = vpop.permute.xlu0 %4110
  %4112 = vset.pattern.permute.xlu0 0
  %4113 = vperm.xlu0 %4112, %v3647
  %v4114 = vpop.permute.xlu0 %4113
  %4115 = vset.pattern.permute.xlu0 0
  %4116 = vperm.xlu0 %4115, %v3649
  %v4117 = vpop.permute.xlu0 %4116
  %4118 = vset.pattern.permute.xlu0 0
  %4119 = vperm.xlu0 %4118, %v3651
  %v4120 = vpop.permute.xlu0 %4119
  %4121 = vset.pattern.permute.xlu0 0
  %4122 = vperm.xlu0 %4121, %v3653
  %v4123 = vpop.permute.xlu0 %4122
  %4124 = vset.pattern.permute.xlu0 0
  %4125 = vperm.xlu0 %4124, %v3655
  %v4126 = vpop.permute.xlu0 %4125
  %4127 = vset.pattern.permute.xlu0 0
  %4128 = vperm.xlu0 %4127, %v3657
  %v4129 = vpop.permute.xlu0 %4128
  %4130 = vset.pattern.permute.xlu0 0
  %4131 = vperm.xlu0 %4130, %v3659
  %v4132 = vpop.permute.xlu0 %4131
  %4133 = vset.pattern.permute.xlu0 0
  %4134 = vperm.xlu0 %4133, %v3661
  %v4135 = vpop.permute.xlu0 %4134
  %4136 = vset.pattern.permute.xlu0 0
  %4137 = vperm.xlu0 %4136, %v3663
  %v4138 = vpop.permute.xlu0 %4137
  %4139 = vset.pattern.permute.xlu0 0
  %4140 = vperm.xlu0 %4139, %v3665
  %v4141 = vpop.permute.xlu0 %4140
  %4142 = vset.pattern.permute.xlu0 0
  %4143 = vperm.xlu0 %4142, %v3667
  %v4144 = vpop.permute.xlu0 %4143
  %4145 = vset.pattern.permute.xlu0 0
  %4146 = vperm.xlu0 %4145, %v3669
  %v4147 = vpop.permute.xlu0 %4146
  %4148 = vset.pattern.permute.xlu0 0
  %4149 = vperm.xlu0 %4148, %v3671
  %v4150 = vpop.permute.xlu0 %4149
  %4151 = vset.pattern.permute.xlu0 0
  %4152 = vperm.xlu0 %4151, %v3673
  %v4153 = vpop.permute.xlu0 %4152
  %4154 = vset.pattern.permute.xlu0 0
  %4155 = vperm.xlu0 %4154, %v3675
  %v4156 = vpop.permute.xlu0 %4155
  %4157 = vset.pattern.permute.xlu0 0
  %4158 = vperm.xlu0 %4157, %v3677
  %v4159 = vpop.permute.xlu0 %4158
  %4160 = vset.pattern.permute.xlu0 0
  %4161 = vperm.xlu0 %4160, %v3679
  %v4162 = vpop.permute.xlu0 %4161
  %4163 = vset.pattern.permute.xlu0 0
  %4164 = vperm.xlu0 %4163, %v3681
  %v4165 = vpop.permute.xlu0 %4164
  %4166 = vset.pattern.permute.xlu0 0
  %4167 = vperm.xlu0 %4166, %v3683
  %v4168 = vpop.permute.xlu0 %4167
  %4169 = vset.pattern.permute.xlu0 0
  %4170 = vperm.xlu0 %4169, %v3685
  %v4171 = vpop.permute.xlu0 %4170
  %4172 = vset.pattern.permute.xlu0 0
  %4173 = vperm.xlu0 %4172, %v3687
  %v4174 = vpop.permute.xlu0 %4173
  %4175 = vset.pattern.permute.xlu0 0
  %4176 = vperm.xlu0 %4175, %v3689
  %v4177 = vpop.permute.xlu0 %4176
  %4178 = vset.pattern.permute.xlu0 0
  %4179 = vperm.xlu0 %4178, %v3691
  %v4180 = vpop.permute.xlu0 %4179
  %4181 = vset.pattern.permute.xlu0 0
  %4182 = vperm.xlu0 %4181, %v3693
  %v4183 = vpop.permute.xlu0 %4182
  %4184 = vset.pattern.permute.xlu0 0
  %4185 = vperm.xlu0 %4184, %v3695
  %v4186 = vpop.permute.xlu0 %4185
  %4187 = vset.pattern.permute.xlu0 0
  %4188 = vperm.xlu0 %4187, %v3697
  %v4189 = vpop.permute.xlu0 %4188
  %4190 = vset.pattern.permute.xlu0 0
  %4191 = vperm.xlu0 %4190, %v3699
  %v4192 = vpop.permute.xlu0 %4191
  %4193 = vset.pattern.permute.xlu0 0
  %4194 = vperm.xlu0 %4193, %v3701
  %v4195 = vpop.permute.xlu0 %4194
  %4196 = vset.pattern.permute.xlu0 0
  %4197 = vperm.xlu0 %4196, %v3703
  %v4198 = vpop.permute.xlu0 %4197
  %4199 = vset.pattern.permute.xlu0 0
  %4200 = vperm.xlu0 %4199, %v3705
  %v4201 = vpop.permute.xlu0 %4200
  %4202 = vset.pattern.permute.xlu0 0
  %4203 = vperm.xlu0 %4202, %v3707
  %v4204 = vpop.permute.xlu0 %4203
  %4205 = vset.pattern.permute.xlu0 0
  %4206 = vperm.xlu0 %4205, %v3709
  %v4207 = vpop.permute.xlu0 %4206
  %4208 = vset.pattern.permute.xlu0 0
  %4209 = vperm.xlu0 %4208, %v3711
  %v4210 = vpop.permute.xlu0 %4209
  %4211 = vset.pattern.permute.xlu0 0
  %4212 = vperm.xlu0 %4211, %v3713
  %v4213 = vpop.permute.xlu0 %4212
  %4214 = vset.pattern.permute.xlu0 0
  %4215 = vperm.xlu0 %4214, %v3715
  %v4216 = vpop.permute.xlu0 %4215
  %4217 = vset.pattern.permute.xlu0 0
  %4218 = vperm.xlu0 %4217, %v3717
  %v4219 = vpop.permute.xlu0 %4218
  %4220 = vset.pattern.permute.xlu0 0
  %4221 = vperm.xlu0 %4220, %v3719
  %v4222 = vpop.permute.xlu0 %4221
  %4223 = vset.pattern.permute.xlu0 0
  %4224 = vperm.xlu0 %4223, %v3721
  %v4225 = vpop.permute.xlu0 %4224
  %4226 = vset.pattern.permute.xlu0 0
  %4227 = vperm.xlu0 %4226, %v3723
  %v4228 = vpop.permute.xlu0 %4227
  %4229 = vset.pattern.permute.xlu0 0
  %4230 = vperm.xlu0 %4229, %v3725
  %v4231 = vpop.permute.xlu0 %4230
  %4232 = vset.pattern.permute.xlu0 0
  %4233 = vperm.xlu0 %4232, %v3727
  %v4234 = vpop.permute.xlu0 %4233
  %4235 = vset.pattern.permute.xlu0 0
  %4236 = vperm.xlu0 %4235, %v3729
  %v4237 = vpop.permute.xlu0 %4236
  %4238 = vset.pattern.permute.xlu0 0
  %4239 = vperm.xlu0 %4238, %v3731
  %v4240 = vpop.permute.xlu0 %4239
  %4241 = vset.pattern.permute.xlu0 0
  %4242 = vperm.xlu0 %4241, %v3733
  %v4243 = vpop.permute.xlu0 %4242
  %4244 = vset.pattern.permute.xlu0 0
  %4245 = vperm.xlu0 %4244, %v3735
  %v4246 = vpop.permute.xlu0 %4245
  %4247 = vset.pattern.permute.xlu0 0
  %4248 = vperm.xlu0 %4247, %v3737
  %v4249 = vpop.permute.xlu0 %4248
  %v4250 = vlaneseq
  %v4251 = vshrl.u32 %v4250, 7
  %v4252 = vsub.s32 %v2603, %v4251
  %v4253 = vrot.slane %v3868, %v4252
  %v4254 = vlaneseq
  %v4255 = vshrl.u32 %v4254, 7
  %v4256 = vsub.s32 %v2608, %v4255
  %v4257 = vrot.slane %v3871, %v4256
  %v4258 = vsel %vm2613, %v4257, %v4253
  %v4259 = vlaneseq
  %v4260 = vshrl.u32 %v4259, 7
  %v4261 = vsub.s32 %v2615, %v4260
  %v4262 = vrot.slane %v3874, %v4261
  %v4263 = vsel %vm2620, %v4262, %v4258
  %v4264 = vlaneseq
  %v4265 = vshrl.u32 %v4264, 7
  %v4266 = vsub.s32 %v2622, %v4265
  %v4267 = vrot.slane %v3877, %v4266
  %v4268 = vsel %vm2627, %v4267, %v4263
  %v4269 = vlaneseq
  %v4270 = vshrl.u32 %v4269, 7
  %v4271 = vsub.s32 %v2629, %v4270
  %v4272 = vrot.slane %v3880, %v4271
  %v4273 = vsel %vm2634, %v4272, %v4268
  %v4274 = vlaneseq
  %v4275 = vshrl.u32 %v4274, 7
  %v4276 = vsub.s32 %v2636, %v4275
  %v4277 = vrot.slane %v3883, %v4276
  %v4278 = vsel %vm2641, %v4277, %v4273
  %v4279 = vlaneseq
  %v4280 = vshrl.u32 %v4279, 7
  %v4281 = vsub.s32 %v2643, %v4280
  %v4282 = vrot.slane %v3886, %v4281
  %v4283 = vsel %vm2648, %v4282, %v4278
  %v4284 = vlaneseq
  %v4285 = vshrl.u32 %v4284, 7
  %v4286 = vsub.s32 %v2650, %v4285
  %v4287 = vrot.slane %v3889, %v4286
  %v4288 = vsel %vm2655, %v4287, %v4283
  %v4289 = vlaneseq
  %v4290 = vshrl.u32 %v4289, 7
  %v4291 = vsub.s32 %v2603, %v4290
  %v4292 = vrot.slane %v3892, %v4291
  %v4293 = vlaneseq
  %v4294 = vshrl.u32 %v4293, 7
  %v4295 = vsub.s32 %v2608, %v4294
  %v4296 = vrot.slane %v3895, %v4295
  %v4297 = vsel %vm2613, %v4296, %v4292
  %v4298 = vlaneseq
  %v4299 = vshrl.u32 %v4298, 7
  %v4300 = vsub.s32 %v2615, %v4299
  %v4301 = vrot.slane %v3898, %v4300
  %v4302 = vsel %vm2620, %v4301, %v4297
  %v4303 = vlaneseq
  %v4304 = vshrl.u32 %v4303, 7
  %v4305 = vsub.s32 %v2622, %v4304
  %v4306 = vrot.slane %v3901, %v4305
  %v4307 = vsel %vm2627, %v4306, %v4302
  %v4308 = vlaneseq
  %v4309 = vshrl.u32 %v4308, 7
  %v4310 = vsub.s32 %v2629, %v4309
  %v4311 = vrot.slane %v3904, %v4310
  %v4312 = vsel %vm2634, %v4311, %v4307
  %v4313 = vlaneseq
  %v4314 = vshrl.u32 %v4313, 7
  %v4315 = vsub.s32 %v2636, %v4314
  %v4316 = vrot.slane %v3907, %v4315
  %v4317 = vsel %vm2641, %v4316, %v4312
  %v4318 = vlaneseq
  %v4319 = vshrl.u32 %v4318, 7
  %v4320 = vsub.s32 %v2643, %v4319
  %v4321 = vrot.slane %v3910, %v4320
  %v4322 = vsel %vm2648, %v4321, %v4317
  %v4323 = vlaneseq
  %v4324 = vshrl.u32 %v4323, 7
  %v4325 = vsub.s32 %v2650, %v4324
  %v4326 = vrot.slane %v3913, %v4325
  %v4327 = vsel %vm2655, %v4326, %v4322
  %v4328 = vlaneseq
  %v4329 = vshrl.u32 %v4328, 7
  %v4330 = vsub.s32 %v2603, %v4329
  %v4331 = vrot.slane %v3916, %v4330
  %v4332 = vlaneseq
  %v4333 = vshrl.u32 %v4332, 7
  %v4334 = vsub.s32 %v2608, %v4333
  %v4335 = vrot.slane %v3919, %v4334
  %v4336 = vsel %vm2613, %v4335, %v4331
  %v4337 = vlaneseq
  %v4338 = vshrl.u32 %v4337, 7
  %v4339 = vsub.s32 %v2615, %v4338
  %v4340 = vrot.slane %v3922, %v4339
  %v4341 = vsel %vm2620, %v4340, %v4336
  %v4342 = vlaneseq
  %v4343 = vshrl.u32 %v4342, 7
  %v4344 = vsub.s32 %v2622, %v4343
  %v4345 = vrot.slane %v3925, %v4344
  %v4346 = vsel %vm2627, %v4345, %v4341
  %v4347 = vlaneseq
  %v4348 = vshrl.u32 %v4347, 7
  %v4349 = vsub.s32 %v2629, %v4348
  %v4350 = vrot.slane %v3928, %v4349
  %v4351 = vsel %vm2634, %v4350, %v4346
  %v4352 = vlaneseq
  %v4353 = vshrl.u32 %v4352, 7
  %v4354 = vsub.s32 %v2636, %v4353
  %v4355 = vrot.slane %v3931, %v4354
  %v4356 = vsel %vm2641, %v4355, %v4351
  %v4357 = vlaneseq
  %v4358 = vshrl.u32 %v4357, 7
  %v4359 = vsub.s32 %v2643, %v4358
  %v4360 = vrot.slane %v3934, %v4359
  %v4361 = vsel %vm2648, %v4360, %v4356
  %v4362 = vlaneseq
  %v4363 = vshrl.u32 %v4362, 7
  %v4364 = vsub.s32 %v2650, %v4363
  %v4365 = vrot.slane %v3937, %v4364
  %v4366 = vsel %vm2655, %v4365, %v4361
  %v4367 = vlaneseq
  %v4368 = vshrl.u32 %v4367, 7
  %v4369 = vsub.s32 %v2603, %v4368
  %v4370 = vrot.slane %v3940, %v4369
  %v4371 = vlaneseq
  %v4372 = vshrl.u32 %v4371, 7
  %v4373 = vsub.s32 %v2608, %v4372
  %v4374 = vrot.slane %v3943, %v4373
  %v4375 = vsel %vm2613, %v4374, %v4370
  %v4376 = vlaneseq
  %v4377 = vshrl.u32 %v4376, 7
  %v4378 = vsub.s32 %v2615, %v4377
  %v4379 = vrot.slane %v3946, %v4378
  %v4380 = vsel %vm2620, %v4379, %v4375
  %v4381 = vlaneseq
  %v4382 = vshrl.u32 %v4381, 7
  %v4383 = vsub.s32 %v2622, %v4382
  %v4384 = vrot.slane %v3949, %v4383
  %v4385 = vsel %vm2627, %v4384, %v4380
  %v4386 = vlaneseq
  %v4387 = vshrl.u32 %v4386, 7
  %v4388 = vsub.s32 %v2629, %v4387
  %v4389 = vrot.slane %v3952, %v4388
  %v4390 = vsel %vm2634, %v4389, %v4385
  %v4391 = vlaneseq
  %v4392 = vshrl.u32 %v4391, 7
  %v4393 = vsub.s32 %v2636, %v4392
  %v4394 = vrot.slane %v3955, %v4393
  %v4395 = vsel %vm2641, %v4394, %v4390
  %v4396 = vlaneseq
  %v4397 = vshrl.u32 %v4396, 7
  %v4398 = vsub.s32 %v2643, %v4397
  %v4399 = vrot.slane %v3958, %v4398
  %v4400 = vsel %vm2648, %v4399, %v4395
  %v4401 = vlaneseq
  %v4402 = vshrl.u32 %v4401, 7
  %v4403 = vsub.s32 %v2650, %v4402
  %v4404 = vrot.slane %v3961, %v4403
  %v4405 = vsel %vm2655, %v4404, %v4400
  %v4406 = vlaneseq
  %v4407 = vshrl.u32 %v4406, 7
  %v4408 = vsub.s32 %v2603, %v4407
  %v4409 = vrot.slane %v3964, %v4408
  %v4410 = vlaneseq
  %v4411 = vshrl.u32 %v4410, 7
  %v4412 = vsub.s32 %v2608, %v4411
  %v4413 = vrot.slane %v3967, %v4412
  %v4414 = vsel %vm2613, %v4413, %v4409
  %v4415 = vlaneseq
  %v4416 = vshrl.u32 %v4415, 7
  %v4417 = vsub.s32 %v2615, %v4416
  %v4418 = vrot.slane %v3970, %v4417
  %v4419 = vsel %vm2620, %v4418, %v4414
  %v4420 = vlaneseq
  %v4421 = vshrl.u32 %v4420, 7
  %v4422 = vsub.s32 %v2622, %v4421
  %v4423 = vrot.slane %v3973, %v4422
  %v4424 = vsel %vm2627, %v4423, %v4419
  %v4425 = vlaneseq
  %v4426 = vshrl.u32 %v4425, 7
  %v4427 = vsub.s32 %v2629, %v4426
  %v4428 = vrot.slane %v3976, %v4427
  %v4429 = vsel %vm2634, %v4428, %v4424
  %v4430 = vlaneseq
  %v4431 = vshrl.u32 %v4430, 7
  %v4432 = vsub.s32 %v2636, %v4431
  %v4433 = vrot.slane %v3979, %v4432
  %v4434 = vsel %vm2641, %v4433, %v4429
  %v4435 = vlaneseq
  %v4436 = vshrl.u32 %v4435, 7
  %v4437 = vsub.s32 %v2643, %v4436
  %v4438 = vrot.slane %v3982, %v4437
  %v4439 = vsel %vm2648, %v4438, %v4434
  %v4440 = vlaneseq
  %v4441 = vshrl.u32 %v4440, 7
  %v4442 = vsub.s32 %v2650, %v4441
  %v4443 = vrot.slane %v3985, %v4442
  %v4444 = vsel %vm2655, %v4443, %v4439
  %v4445 = vlaneseq
  %v4446 = vshrl.u32 %v4445, 7
  %v4447 = vsub.s32 %v2603, %v4446
  %v4448 = vrot.slane %v3988, %v4447
  %v4449 = vlaneseq
  %v4450 = vshrl.u32 %v4449, 7
  %v4451 = vsub.s32 %v2608, %v4450
  %v4452 = vrot.slane %v3991, %v4451
  %v4453 = vsel %vm2613, %v4452, %v4448
  %v4454 = vlaneseq
  %v4455 = vshrl.u32 %v4454, 7
  %v4456 = vsub.s32 %v2615, %v4455
  %v4457 = vrot.slane %v3994, %v4456
  %v4458 = vsel %vm2620, %v4457, %v4453
  %v4459 = vlaneseq
  %v4460 = vshrl.u32 %v4459, 7
  %v4461 = vsub.s32 %v2622, %v4460
  %v4462 = vrot.slane %v3997, %v4461
  %v4463 = vsel %vm2627, %v4462, %v4458
  %v4464 = vlaneseq
  %v4465 = vshrl.u32 %v4464, 7
  %v4466 = vsub.s32 %v2629, %v4465
  %v4467 = vrot.slane %v4000, %v4466
  %v4468 = vsel %vm2634, %v4467, %v4463
  %v4469 = vlaneseq
  %v4470 = vshrl.u32 %v4469, 7
  %v4471 = vsub.s32 %v2636, %v4470
  %v4472 = vrot.slane %v4003, %v4471
  %v4473 = vsel %vm2641, %v4472, %v4468
  %v4474 = vlaneseq
  %v4475 = vshrl.u32 %v4474, 7
  %v4476 = vsub.s32 %v2643, %v4475
  %v4477 = vrot.slane %v4006, %v4476
  %v4478 = vsel %vm2648, %v4477, %v4473
  %v4479 = vlaneseq
  %v4480 = vshrl.u32 %v4479, 7
  %v4481 = vsub.s32 %v2650, %v4480
  %v4482 = vrot.slane %v4009, %v4481
  %v4483 = vsel %vm2655, %v4482, %v4478
  %v4484 = vlaneseq
  %v4485 = vshrl.u32 %v4484, 7
  %v4486 = vsub.s32 %v2603, %v4485
  %v4487 = vrot.slane %v4012, %v4486
  %v4488 = vlaneseq
  %v4489 = vshrl.u32 %v4488, 7
  %v4490 = vsub.s32 %v2608, %v4489
  %v4491 = vrot.slane %v4015, %v4490
  %v4492 = vsel %vm2613, %v4491, %v4487
  %v4493 = vlaneseq
  %v4494 = vshrl.u32 %v4493, 7
  %v4495 = vsub.s32 %v2615, %v4494
  %v4496 = vrot.slane %v4018, %v4495
  %v4497 = vsel %vm2620, %v4496, %v4492
  %v4498 = vlaneseq
  %v4499 = vshrl.u32 %v4498, 7
  %v4500 = vsub.s32 %v2622, %v4499
  %v4501 = vrot.slane %v4021, %v4500
  %v4502 = vsel %vm2627, %v4501, %v4497
  %v4503 = vlaneseq
  %v4504 = vshrl.u32 %v4503, 7
  %v4505 = vsub.s32 %v2629, %v4504
  %v4506 = vrot.slane %v4024, %v4505
  %v4507 = vsel %vm2634, %v4506, %v4502
  %v4508 = vlaneseq
  %v4509 = vshrl.u32 %v4508, 7
  %v4510 = vsub.s32 %v2636, %v4509
  %v4511 = vrot.slane %v4027, %v4510
  %v4512 = vsel %vm2641, %v4511, %v4507
  %v4513 = vlaneseq
  %v4514 = vshrl.u32 %v4513, 7
  %v4515 = vsub.s32 %v2643, %v4514
  %v4516 = vrot.slane %v4030, %v4515
  %v4517 = vsel %vm2648, %v4516, %v4512
  %v4518 = vlaneseq
  %v4519 = vshrl.u32 %v4518, 7
  %v4520 = vsub.s32 %v2650, %v4519
  %v4521 = vrot.slane %v4033, %v4520
  %v4522 = vsel %vm2655, %v4521, %v4517
  %v4523 = vlaneseq
  %v4524 = vshrl.u32 %v4523, 7
  %v4525 = vsub.s32 %v2603, %v4524
  %v4526 = vrot.slane %v4036, %v4525
  %v4527 = vlaneseq
  %v4528 = vshrl.u32 %v4527, 7
  %v4529 = vsub.s32 %v2608, %v4528
  %v4530 = vrot.slane %v4039, %v4529
  %v4531 = vsel %vm2613, %v4530, %v4526
  %v4532 = vlaneseq
  %v4533 = vshrl.u32 %v4532, 7
  %v4534 = vsub.s32 %v2615, %v4533
  %v4535 = vrot.slane %v4042, %v4534
  %v4536 = vsel %vm2620, %v4535, %v4531
  %v4537 = vlaneseq
  %v4538 = vshrl.u32 %v4537, 7
  %v4539 = vsub.s32 %v2622, %v4538
  %v4540 = vrot.slane %v4045, %v4539
  %v4541 = vsel %vm2627, %v4540, %v4536
  %v4542 = vlaneseq
  %v4543 = vshrl.u32 %v4542, 7
  %v4544 = vsub.s32 %v2629, %v4543
  %v4545 = vrot.slane %v4048, %v4544
  %v4546 = vsel %vm2634, %v4545, %v4541
  %v4547 = vlaneseq
  %v4548 = vshrl.u32 %v4547, 7
  %v4549 = vsub.s32 %v2636, %v4548
  %v4550 = vrot.slane %v4051, %v4549
  %v4551 = vsel %vm2641, %v4550, %v4546
  %v4552 = vlaneseq
  %v4553 = vshrl.u32 %v4552, 7
  %v4554 = vsub.s32 %v2643, %v4553
  %v4555 = vrot.slane %v4054, %v4554
  %v4556 = vsel %vm2648, %v4555, %v4551
  %v4557 = vlaneseq
  %v4558 = vshrl.u32 %v4557, 7
  %v4559 = vsub.s32 %v2650, %v4558
  %v4560 = vrot.slane %v4057, %v4559
  %v4561 = vsel %vm2655, %v4560, %v4556
  %v4562 = vlaneseq
  %v4563 = vshrl.u32 %v4562, 7
  %v4564 = vsub.s32 %v2603, %v4563
  %v4565 = vrot.slane %v4060, %v4564
  %v4566 = vlaneseq
  %v4567 = vshrl.u32 %v4566, 7
  %v4568 = vsub.s32 %v2608, %v4567
  %v4569 = vrot.slane %v4063, %v4568
  %v4570 = vsel %vm2613, %v4569, %v4565
  %v4571 = vlaneseq
  %v4572 = vshrl.u32 %v4571, 7
  %v4573 = vsub.s32 %v2615, %v4572
  %v4574 = vrot.slane %v4066, %v4573
  %v4575 = vsel %vm2620, %v4574, %v4570
  %v4576 = vlaneseq
  %v4577 = vshrl.u32 %v4576, 7
  %v4578 = vsub.s32 %v2622, %v4577
  %v4579 = vrot.slane %v4069, %v4578
  %v4580 = vsel %vm2627, %v4579, %v4575
  %v4581 = vlaneseq
  %v4582 = vshrl.u32 %v4581, 7
  %v4583 = vsub.s32 %v2629, %v4582
  %v4584 = vrot.slane %v4072, %v4583
  %v4585 = vsel %vm2634, %v4584, %v4580
  %v4586 = vlaneseq
  %v4587 = vshrl.u32 %v4586, 7
  %v4588 = vsub.s32 %v2636, %v4587
  %v4589 = vrot.slane %v4075, %v4588
  %v4590 = vsel %vm2641, %v4589, %v4585
  %v4591 = vlaneseq
  %v4592 = vshrl.u32 %v4591, 7
  %v4593 = vsub.s32 %v2643, %v4592
  %v4594 = vrot.slane %v4078, %v4593
  %v4595 = vsel %vm2648, %v4594, %v4590
  %v4596 = vlaneseq
  %v4597 = vshrl.u32 %v4596, 7
  %v4598 = vsub.s32 %v2650, %v4597
  %v4599 = vrot.slane %v4081, %v4598
  %v4600 = vsel %vm2655, %v4599, %v4595
  %v4601 = vlaneseq
  %v4602 = vshrl.u32 %v4601, 7
  %v4603 = vsub.s32 %v2603, %v4602
  %v4604 = vrot.slane %v4084, %v4603
  %v4605 = vlaneseq
  %v4606 = vshrl.u32 %v4605, 7
  %v4607 = vsub.s32 %v2608, %v4606
  %v4608 = vrot.slane %v4087, %v4607
  %v4609 = vsel %vm2613, %v4608, %v4604
  %v4610 = vlaneseq
  %v4611 = vshrl.u32 %v4610, 7
  %v4612 = vsub.s32 %v2615, %v4611
  %v4613 = vrot.slane %v4090, %v4612
  %v4614 = vsel %vm2620, %v4613, %v4609
  %v4615 = vlaneseq
  %v4616 = vshrl.u32 %v4615, 7
  %v4617 = vsub.s32 %v2622, %v4616
  %v4618 = vrot.slane %v4093, %v4617
  %v4619 = vsel %vm2627, %v4618, %v4614
  %v4620 = vlaneseq
  %v4621 = vshrl.u32 %v4620, 7
  %v4622 = vsub.s32 %v2629, %v4621
  %v4623 = vrot.slane %v4096, %v4622
  %v4624 = vsel %vm2634, %v4623, %v4619
  %v4625 = vlaneseq
  %v4626 = vshrl.u32 %v4625, 7
  %v4627 = vsub.s32 %v2636, %v4626
  %v4628 = vrot.slane %v4099, %v4627
  %v4629 = vsel %vm2641, %v4628, %v4624
  %v4630 = vlaneseq
  %v4631 = vshrl.u32 %v4630, 7
  %v4632 = vsub.s32 %v2643, %v4631
  %v4633 = vrot.slane %v4102, %v4632
  %v4634 = vsel %vm2648, %v4633, %v4629
  %v4635 = vlaneseq
  %v4636 = vshrl.u32 %v4635, 7
  %v4637 = vsub.s32 %v2650, %v4636
  %v4638 = vrot.slane %v4105, %v4637
  %v4639 = vsel %vm2655, %v4638, %v4634
  %v4640 = vlaneseq
  %v4641 = vshrl.u32 %v4640, 7
  %v4642 = vsub.s32 %v2603, %v4641
  %v4643 = vrot.slane %v4108, %v4642
  %v4644 = vlaneseq
  %v4645 = vshrl.u32 %v4644, 7
  %v4646 = vsub.s32 %v2608, %v4645
  %v4647 = vrot.slane %v4111, %v4646
  %v4648 = vsel %vm2613, %v4647, %v4643
  %v4649 = vlaneseq
  %v4650 = vshrl.u32 %v4649, 7
  %v4651 = vsub.s32 %v2615, %v4650
  %v4652 = vrot.slane %v4114, %v4651
  %v4653 = vsel %vm2620, %v4652, %v4648
  %v4654 = vlaneseq
  %v4655 = vshrl.u32 %v4654, 7
  %v4656 = vsub.s32 %v2622, %v4655
  %v4657 = vrot.slane %v4117, %v4656
  %v4658 = vsel %vm2627, %v4657, %v4653
  %v4659 = vlaneseq
  %v4660 = vshrl.u32 %v4659, 7
  %v4661 = vsub.s32 %v2629, %v4660
  %v4662 = vrot.slane %v4120, %v4661
  %v4663 = vsel %vm2634, %v4662, %v4658
  %v4664 = vlaneseq
  %v4665 = vshrl.u32 %v4664, 7
  %v4666 = vsub.s32 %v2636, %v4665
  %v4667 = vrot.slane %v4123, %v4666
  %v4668 = vsel %vm2641, %v4667, %v4663
  %v4669 = vlaneseq
  %v4670 = vshrl.u32 %v4669, 7
  %v4671 = vsub.s32 %v2643, %v4670
  %v4672 = vrot.slane %v4126, %v4671
  %v4673 = vsel %vm2648, %v4672, %v4668
  %v4674 = vlaneseq
  %v4675 = vshrl.u32 %v4674, 7
  %v4676 = vsub.s32 %v2650, %v4675
  %v4677 = vrot.slane %v4129, %v4676
  %v4678 = vsel %vm2655, %v4677, %v4673
  %v4679 = vlaneseq
  %v4680 = vshrl.u32 %v4679, 7
  %v4681 = vsub.s32 %v2603, %v4680
  %v4682 = vrot.slane %v4132, %v4681
  %v4683 = vlaneseq
  %v4684 = vshrl.u32 %v4683, 7
  %v4685 = vsub.s32 %v2608, %v4684
  %v4686 = vrot.slane %v4135, %v4685
  %v4687 = vsel %vm2613, %v4686, %v4682
  %v4688 = vlaneseq
  %v4689 = vshrl.u32 %v4688, 7
  %v4690 = vsub.s32 %v2615, %v4689
  %v4691 = vrot.slane %v4138, %v4690
  %v4692 = vsel %vm2620, %v4691, %v4687
  %v4693 = vlaneseq
  %v4694 = vshrl.u32 %v4693, 7
  %v4695 = vsub.s32 %v2622, %v4694
  %v4696 = vrot.slane %v4141, %v4695
  %v4697 = vsel %vm2627, %v4696, %v4692
  %v4698 = vlaneseq
  %v4699 = vshrl.u32 %v4698, 7
  %v4700 = vsub.s32 %v2629, %v4699
  %v4701 = vrot.slane %v4144, %v4700
  %v4702 = vsel %vm2634, %v4701, %v4697
  %v4703 = vlaneseq
  %v4704 = vshrl.u32 %v4703, 7
  %v4705 = vsub.s32 %v2636, %v4704
  %v4706 = vrot.slane %v4147, %v4705
  %v4707 = vsel %vm2641, %v4706, %v4702
  %v4708 = vlaneseq
  %v4709 = vshrl.u32 %v4708, 7
  %v4710 = vsub.s32 %v2643, %v4709
  %v4711 = vrot.slane %v4150, %v4710
  %v4712 = vsel %vm2648, %v4711, %v4707
  %v4713 = vlaneseq
  %v4714 = vshrl.u32 %v4713, 7
  %v4715 = vsub.s32 %v2650, %v4714
  %v4716 = vrot.slane %v4153, %v4715
  %v4717 = vsel %vm2655, %v4716, %v4712
  %v4718 = vlaneseq
  %v4719 = vshrl.u32 %v4718, 7
  %v4720 = vsub.s32 %v2603, %v4719
  %v4721 = vrot.slane %v4156, %v4720
  %v4722 = vlaneseq
  %v4723 = vshrl.u32 %v4722, 7
  %v4724 = vsub.s32 %v2608, %v4723
  %v4725 = vrot.slane %v4159, %v4724
  %v4726 = vsel %vm2613, %v4725, %v4721
  %v4727 = vlaneseq
  %v4728 = vshrl.u32 %v4727, 7
  %v4729 = vsub.s32 %v2615, %v4728
  %v4730 = vrot.slane %v4162, %v4729
  %v4731 = vsel %vm2620, %v4730, %v4726
  %v4732 = vlaneseq
  %v4733 = vshrl.u32 %v4732, 7
  %v4734 = vsub.s32 %v2622, %v4733
  %v4735 = vrot.slane %v4165, %v4734
  %v4736 = vsel %vm2627, %v4735, %v4731
  %v4737 = vlaneseq
  %v4738 = vshrl.u32 %v4737, 7
  %v4739 = vsub.s32 %v2629, %v4738
  %v4740 = vrot.slane %v4168, %v4739
  %v4741 = vsel %vm2634, %v4740, %v4736
  %v4742 = vlaneseq
  %v4743 = vshrl.u32 %v4742, 7
  %v4744 = vsub.s32 %v2636, %v4743
  %v4745 = vrot.slane %v4171, %v4744
  %v4746 = vsel %vm2641, %v4745, %v4741
  %v4747 = vlaneseq
  %v4748 = vshrl.u32 %v4747, 7
  %v4749 = vsub.s32 %v2643, %v4748
  %v4750 = vrot.slane %v4174, %v4749
  %v4751 = vsel %vm2648, %v4750, %v4746
  %v4752 = vlaneseq
  %v4753 = vshrl.u32 %v4752, 7
  %v4754 = vsub.s32 %v2650, %v4753
  %v4755 = vrot.slane %v4177, %v4754
  %v4756 = vsel %vm2655, %v4755, %v4751
  %v4757 = vlaneseq
  %v4758 = vshrl.u32 %v4757, 7
  %v4759 = vsub.s32 %v2603, %v4758
  %v4760 = vrot.slane %v4180, %v4759
  %v4761 = vlaneseq
  %v4762 = vshrl.u32 %v4761, 7
  %v4763 = vsub.s32 %v2608, %v4762
  %v4764 = vrot.slane %v4183, %v4763
  %v4765 = vsel %vm2613, %v4764, %v4760
  %v4766 = vlaneseq
  %v4767 = vshrl.u32 %v4766, 7
  %v4768 = vsub.s32 %v2615, %v4767
  %v4769 = vrot.slane %v4186, %v4768
  %v4770 = vsel %vm2620, %v4769, %v4765
  %v4771 = vlaneseq
  %v4772 = vshrl.u32 %v4771, 7
  %v4773 = vsub.s32 %v2622, %v4772
  %v4774 = vrot.slane %v4189, %v4773
  %v4775 = vsel %vm2627, %v4774, %v4770
  %v4776 = vlaneseq
  %v4777 = vshrl.u32 %v4776, 7
  %v4778 = vsub.s32 %v2629, %v4777
  %v4779 = vrot.slane %v4192, %v4778
  %v4780 = vsel %vm2634, %v4779, %v4775
  %v4781 = vlaneseq
  %v4782 = vshrl.u32 %v4781, 7
  %v4783 = vsub.s32 %v2636, %v4782
  %v4784 = vrot.slane %v4195, %v4783
  %v4785 = vsel %vm2641, %v4784, %v4780
  %v4786 = vlaneseq
  %v4787 = vshrl.u32 %v4786, 7
  %v4788 = vsub.s32 %v2643, %v4787
  %v4789 = vrot.slane %v4198, %v4788
  %v4790 = vsel %vm2648, %v4789, %v4785
  %v4791 = vlaneseq
  %v4792 = vshrl.u32 %v4791, 7
  %v4793 = vsub.s32 %v2650, %v4792
  %v4794 = vrot.slane %v4201, %v4793
  %v4795 = vsel %vm2655, %v4794, %v4790
  %v4796 = vlaneseq
  %v4797 = vshrl.u32 %v4796, 7
  %v4798 = vsub.s32 %v2603, %v4797
  %v4799 = vrot.slane %v4204, %v4798
  %v4800 = vlaneseq
  %v4801 = vshrl.u32 %v4800, 7
  %v4802 = vsub.s32 %v2608, %v4801
  %v4803 = vrot.slane %v4207, %v4802
  %v4804 = vsel %vm2613, %v4803, %v4799
  %v4805 = vlaneseq
  %v4806 = vshrl.u32 %v4805, 7
  %v4807 = vsub.s32 %v2615, %v4806
  %v4808 = vrot.slane %v4210, %v4807
  %v4809 = vsel %vm2620, %v4808, %v4804
  %v4810 = vlaneseq
  %v4811 = vshrl.u32 %v4810, 7
  %v4812 = vsub.s32 %v2622, %v4811
  %v4813 = vrot.slane %v4213, %v4812
  %v4814 = vsel %vm2627, %v4813, %v4809
  %v4815 = vlaneseq
  %v4816 = vshrl.u32 %v4815, 7
  %v4817 = vsub.s32 %v2629, %v4816
  %v4818 = vrot.slane %v4216, %v4817
  %v4819 = vsel %vm2634, %v4818, %v4814
  %v4820 = vlaneseq
  %v4821 = vshrl.u32 %v4820, 7
  %v4822 = vsub.s32 %v2636, %v4821
  %v4823 = vrot.slane %v4219, %v4822
  %v4824 = vsel %vm2641, %v4823, %v4819
  %v4825 = vlaneseq
  %v4826 = vshrl.u32 %v4825, 7
  %v4827 = vsub.s32 %v2643, %v4826
  %v4828 = vrot.slane %v4222, %v4827
  %v4829 = vsel %vm2648, %v4828, %v4824
  %v4830 = vlaneseq
  %v4831 = vshrl.u32 %v4830, 7
  %v4832 = vsub.s32 %v2650, %v4831
  %v4833 = vrot.slane %v4225, %v4832
  %v4834 = vsel %vm2655, %v4833, %v4829
  %v4835 = vlaneseq
  %v4836 = vshrl.u32 %v4835, 7
  %v4837 = vsub.s32 %v2603, %v4836
  %v4838 = vrot.slane %v4228, %v4837
  %v4839 = vlaneseq
  %v4840 = vshrl.u32 %v4839, 7
  %v4841 = vsub.s32 %v2608, %v4840
  %v4842 = vrot.slane %v4231, %v4841
  %v4843 = vsel %vm2613, %v4842, %v4838
  %v4844 = vlaneseq
  %v4845 = vshrl.u32 %v4844, 7
  %v4846 = vsub.s32 %v2615, %v4845
  %v4847 = vrot.slane %v4234, %v4846
  %v4848 = vsel %vm2620, %v4847, %v4843
  %v4849 = vlaneseq
  %v4850 = vshrl.u32 %v4849, 7
  %v4851 = vsub.s32 %v2622, %v4850
  %v4852 = vrot.slane %v4237, %v4851
  %v4853 = vsel %vm2627, %v4852, %v4848
  %v4854 = vlaneseq
  %v4855 = vshrl.u32 %v4854, 7
  %v4856 = vsub.s32 %v2629, %v4855
  %v4857 = vrot.slane %v4240, %v4856
  %v4858 = vsel %vm2634, %v4857, %v4853
  %v4859 = vlaneseq
  %v4860 = vshrl.u32 %v4859, 7
  %v4861 = vsub.s32 %v2636, %v4860
  %v4862 = vrot.slane %v4243, %v4861
  %v4863 = vsel %vm2641, %v4862, %v4858
  %v4864 = vlaneseq
  %v4865 = vshrl.u32 %v4864, 7
  %v4866 = vsub.s32 %v2643, %v4865
  %v4867 = vrot.slane %v4246, %v4866
  %v4868 = vsel %vm2648, %v4867, %v4863
  %v4869 = vlaneseq
  %v4870 = vshrl.u32 %v4869, 7
  %v4871 = vsub.s32 %v2650, %v4870
  %v4872 = vrot.slane %v4249, %v4871
  %v4873 = vsel %vm2655, %v4872, %v4868
  %v4874 = vsel %vm3242, %v4327, %v4288
  %v4875 = vsel %vm3244, %v4366, %v4874
  %v4876 = vsel %vm3246, %v4405, %v4875
  %v4877 = vsel %vm3248, %v4444, %v4876
  %v4878 = vsel %vm3250, %v4483, %v4877
  %v4879 = vsel %vm3252, %v4522, %v4878
  %v4880 = vsel %vm3254, %v4561, %v4879
  %v4881 = vsel %vm3242, %v4639, %v4600
  %v4882 = vsel %vm3244, %v4678, %v4881
  %v4883 = vsel %vm3246, %v4717, %v4882
  %v4884 = vsel %vm3248, %v4756, %v4883
  %v4885 = vsel %vm3250, %v4795, %v4884
  %v4886 = vsel %vm3252, %v4834, %v4885
  %v4887 = vsel %vm3254, %v4873, %v4886
  %v4890 = vsel %vm3265, %v4880, 0.0
  %4891 = vadd.xlane.f32.xlu0 %v4890
  %v4892 = vpop.xlane.xlu0 %4891
  %v4893 = vsel %vm3265, %v4887, 0.0
  %4894 = vadd.xlane.f32.xlu0 %v4893
  %v4895 = vpop.xlane.xlu0 %4894
  %v4896 = vrcp.pop %v4892
  %v4897 = vrcp.pop %v4895
  %v4900 = vlaneseq
  %v4901 = vshrl.u32 %v4900, 7
  %v4902 = vsub.s32 0, %v4901
  %v4903 = vrot.slane %v4896, %v4902
  %v4904 = vlaneseq
  %v4905 = vshrl.u32 %v4904, 7
  %v4906 = vsub.s32 1, %v4905
  %v4907 = vrot.slane %v4896, %v4906
  %v4908 = vlaneseq
  %v4909 = vshrl.u32 %v4908, 7
  %v4910 = vsub.s32 2, %v4909
  %v4911 = vrot.slane %v4896, %v4910
  %v4912 = vlaneseq
  %v4913 = vshrl.u32 %v4912, 7
  %v4914 = vsub.s32 3, %v4913
  %v4915 = vrot.slane %v4896, %v4914
  %v4916 = vlaneseq
  %v4917 = vshrl.u32 %v4916, 7
  %v4918 = vsub.s32 4, %v4917
  %v4919 = vrot.slane %v4896, %v4918
  %v4920 = vlaneseq
  %v4921 = vshrl.u32 %v4920, 7
  %v4922 = vsub.s32 5, %v4921
  %v4923 = vrot.slane %v4896, %v4922
  %v4924 = vlaneseq
  %v4925 = vshrl.u32 %v4924, 7
  %v4926 = vsub.s32 6, %v4925
  %v4927 = vrot.slane %v4896, %v4926
  %v4928 = vlaneseq
  %v4929 = vshrl.u32 %v4928, 7
  %v4930 = vsub.s32 7, %v4929
  %v4931 = vrot.slane %v4896, %v4930
  %v4932 = vlaneseq
  %v4933 = vshrl.u32 %v4932, 7
  %v4934 = vsub.s32 0, %v4933
  %v4935 = vrot.slane %v4897, %v4934
  %v4936 = vlaneseq
  %v4937 = vshrl.u32 %v4936, 7
  %v4938 = vsub.s32 1, %v4937
  %v4939 = vrot.slane %v4897, %v4938
  %v4940 = vlaneseq
  %v4941 = vshrl.u32 %v4940, 7
  %v4942 = vsub.s32 2, %v4941
  %v4943 = vrot.slane %v4897, %v4942
  %v4944 = vlaneseq
  %v4945 = vshrl.u32 %v4944, 7
  %v4946 = vsub.s32 3, %v4945
  %v4947 = vrot.slane %v4897, %v4946
  %v4948 = vlaneseq
  %v4949 = vshrl.u32 %v4948, 7
  %v4950 = vsub.s32 4, %v4949
  %v4951 = vrot.slane %v4897, %v4950
  %v4952 = vlaneseq
  %v4953 = vshrl.u32 %v4952, 7
  %v4954 = vsub.s32 5, %v4953
  %v4955 = vrot.slane %v4897, %v4954
  %v4956 = vlaneseq
  %v4957 = vshrl.u32 %v4956, 7
  %v4958 = vsub.s32 6, %v4957
  %v4959 = vrot.slane %v4897, %v4958
  %v4960 = vlaneseq
  %v4961 = vshrl.u32 %v4960, 7
  %v4962 = vsub.s32 7, %v4961
  %v4963 = vrot.slane %v4897, %v4962
  %v4980 = vmul.f32 %v3483, %v4903
  %v4981 = vmul.f32 %v3485, %v4903
  %v4982 = vmul.f32 %v3487, %v4903
  %v4983 = vmul.f32 %v3489, %v4903
  %v4984 = vmul.f32 %v3491, %v4903
  %v4985 = vmul.f32 %v3493, %v4903
  %v4986 = vmul.f32 %v3495, %v4903
  %v4987 = vmul.f32 %v3497, %v4903
  %v4988 = vmul.f32 %v3499, %v4907
  %v4989 = vmul.f32 %v3501, %v4907
  %v4990 = vmul.f32 %v3503, %v4907
  %v4991 = vmul.f32 %v3505, %v4907
  %v4992 = vmul.f32 %v3507, %v4907
  %v4993 = vmul.f32 %v3509, %v4907
  %v4994 = vmul.f32 %v3511, %v4907
  %v4995 = vmul.f32 %v3513, %v4907
  %v4996 = vmul.f32 %v3515, %v4911
  %v4997 = vmul.f32 %v3517, %v4911
  %v4998 = vmul.f32 %v3519, %v4911
  %v4999 = vmul.f32 %v3521, %v4911
  %v5000 = vmul.f32 %v3523, %v4911
  %v5001 = vmul.f32 %v3525, %v4911
  %v5002 = vmul.f32 %v3527, %v4911
  %v5003 = vmul.f32 %v3529, %v4911
  %v5004 = vmul.f32 %v3531, %v4915
  %v5005 = vmul.f32 %v3533, %v4915
  %v5006 = vmul.f32 %v3535, %v4915
  %v5007 = vmul.f32 %v3537, %v4915
  %v5008 = vmul.f32 %v3539, %v4915
  %v5009 = vmul.f32 %v3541, %v4915
  %v5010 = vmul.f32 %v3543, %v4915
  %v5011 = vmul.f32 %v3545, %v4915
  %v5012 = vmul.f32 %v3547, %v4919
  %v5013 = vmul.f32 %v3549, %v4919
  %v5014 = vmul.f32 %v3551, %v4919
  %v5015 = vmul.f32 %v3553, %v4919
  %v5016 = vmul.f32 %v3555, %v4919
  %v5017 = vmul.f32 %v3557, %v4919
  %v5018 = vmul.f32 %v3559, %v4919
  %v5019 = vmul.f32 %v3561, %v4919
  %v5020 = vmul.f32 %v3563, %v4923
  %v5021 = vmul.f32 %v3565, %v4923
  %v5022 = vmul.f32 %v3567, %v4923
  %v5023 = vmul.f32 %v3569, %v4923
  %v5024 = vmul.f32 %v3571, %v4923
  %v5025 = vmul.f32 %v3573, %v4923
  %v5026 = vmul.f32 %v3575, %v4923
  %v5027 = vmul.f32 %v3577, %v4923
  %v5028 = vmul.f32 %v3579, %v4927
  %v5029 = vmul.f32 %v3581, %v4927
  %v5030 = vmul.f32 %v3583, %v4927
  %v5031 = vmul.f32 %v3585, %v4927
  %v5032 = vmul.f32 %v3587, %v4927
  %v5033 = vmul.f32 %v3589, %v4927
  %v5034 = vmul.f32 %v3591, %v4927
  %v5035 = vmul.f32 %v3593, %v4927
  %v5036 = vmul.f32 %v3595, %v4931
  %v5037 = vmul.f32 %v3597, %v4931
  %v5038 = vmul.f32 %v3599, %v4931
  %v5039 = vmul.f32 %v3601, %v4931
  %v5040 = vmul.f32 %v3603, %v4931
  %v5041 = vmul.f32 %v3605, %v4931
  %v5042 = vmul.f32 %v3607, %v4931
  %v5043 = vmul.f32 %v3609, %v4931
  %v5044 = vmul.f32 %v3611, %v4935
  %v5045 = vmul.f32 %v3613, %v4935
  %v5046 = vmul.f32 %v3615, %v4935
  %v5047 = vmul.f32 %v3617, %v4935
  %v5048 = vmul.f32 %v3619, %v4935
  %v5049 = vmul.f32 %v3621, %v4935
  %v5050 = vmul.f32 %v3623, %v4935
  %v5051 = vmul.f32 %v3625, %v4935
  %v5052 = vmul.f32 %v3627, %v4939
  %v5053 = vmul.f32 %v3629, %v4939
  %v5054 = vmul.f32 %v3631, %v4939
  %v5055 = vmul.f32 %v3633, %v4939
  %v5056 = vmul.f32 %v3635, %v4939
  %v5057 = vmul.f32 %v3637, %v4939
  %v5058 = vmul.f32 %v3639, %v4939
  %v5059 = vmul.f32 %v3641, %v4939
  %v5060 = vmul.f32 %v3643, %v4943
  %v5061 = vmul.f32 %v3645, %v4943
  %v5062 = vmul.f32 %v3647, %v4943
  %v5063 = vmul.f32 %v3649, %v4943
  %v5064 = vmul.f32 %v3651, %v4943
  %v5065 = vmul.f32 %v3653, %v4943
  %v5066 = vmul.f32 %v3655, %v4943
  %v5067 = vmul.f32 %v3657, %v4943
  %v5068 = vmul.f32 %v3659, %v4947
  %v5069 = vmul.f32 %v3661, %v4947
  %v5070 = vmul.f32 %v3663, %v4947
  %v5071 = vmul.f32 %v3665, %v4947
  %v5072 = vmul.f32 %v3667, %v4947
  %v5073 = vmul.f32 %v3669, %v4947
  %v5074 = vmul.f32 %v3671, %v4947
  %v5075 = vmul.f32 %v3673, %v4947
  %v5076 = vmul.f32 %v3675, %v4951
  %v5077 = vmul.f32 %v3677, %v4951
  %v5078 = vmul.f32 %v3679, %v4951
  %v5079 = vmul.f32 %v3681, %v4951
  %v5080 = vmul.f32 %v3683, %v4951
  %v5081 = vmul.f32 %v3685, %v4951
  %v5082 = vmul.f32 %v3687, %v4951
  %v5083 = vmul.f32 %v3689, %v4951
  %v5084 = vmul.f32 %v3691, %v4955
  %v5085 = vmul.f32 %v3693, %v4955
  %v5086 = vmul.f32 %v3695, %v4955
  %v5087 = vmul.f32 %v3697, %v4955
  %v5088 = vmul.f32 %v3699, %v4955
  %v5089 = vmul.f32 %v3701, %v4955
  %v5090 = vmul.f32 %v3703, %v4955
  %v5091 = vmul.f32 %v3705, %v4955
  %v5092 = vmul.f32 %v3707, %v4959
  %v5093 = vmul.f32 %v3709, %v4959
  %v5094 = vmul.f32 %v3711, %v4959
  %v5095 = vmul.f32 %v3713, %v4959
  %v5096 = vmul.f32 %v3715, %v4959
  %v5097 = vmul.f32 %v3717, %v4959
  %v5098 = vmul.f32 %v3719, %v4959
  %v5099 = vmul.f32 %v3721, %v4959
  %v5100 = vmul.f32 %v3723, %v4963
  %v5101 = vmul.f32 %v3725, %v4963
  %v5102 = vmul.f32 %v3727, %v4963
  %v5103 = vmul.f32 %v3729, %v4963
  %v5104 = vmul.f32 %v3731, %v4963
  %v5105 = vmul.f32 %v3733, %v4963
  %v5106 = vmul.f32 %v3735, %v4963
  %v5107 = vmul.f32 %v3737, %v4963
  %v5108 = vmul.f32 %v4980, 0.5
  %v5109 = vmul.f32 %v4981, 0.5
  %v5110 = vmul.f32 %v4982, 0.5
  %v5111 = vmul.f32 %v4983, 0.5
  %v5112 = vmul.f32 %v4984, 0.5
  %v5113 = vmul.f32 %v4985, 0.5
  %v5114 = vmul.f32 %v4986, 0.5
  %v5115 = vmul.f32 %v4987, 0.5
  %v5116 = vmul.f32 %v4988, 0.5
  %v5117 = vmul.f32 %v4989, 0.5
  %v5118 = vmul.f32 %v4990, 0.5
  %v5119 = vmul.f32 %v4991, 0.5
  %v5120 = vmul.f32 %v4992, 0.5
  %v5121 = vmul.f32 %v4993, 0.5
  %v5122 = vmul.f32 %v4994, 0.5
  %v5123 = vmul.f32 %v4995, 0.5
  %v5124 = vmul.f32 %v4996, 0.5
  %v5125 = vmul.f32 %v4997, 0.5
  %v5126 = vmul.f32 %v4998, 0.5
  %v5127 = vmul.f32 %v4999, 0.5
  %v5128 = vmul.f32 %v5000, 0.5
  %v5129 = vmul.f32 %v5001, 0.5
  %v5130 = vmul.f32 %v5002, 0.5
  %v5131 = vmul.f32 %v5003, 0.5
  %v5132 = vmul.f32 %v5004, 0.5
  %v5133 = vmul.f32 %v5005, 0.5
  %v5134 = vmul.f32 %v5006, 0.5
  %v5135 = vmul.f32 %v5007, 0.5
  %v5136 = vmul.f32 %v5008, 0.5
  %v5137 = vmul.f32 %v5009, 0.5
  %v5138 = vmul.f32 %v5010, 0.5
  %v5139 = vmul.f32 %v5011, 0.5
  %v5140 = vmul.f32 %v5012, 0.5
  %v5141 = vmul.f32 %v5013, 0.5
  %v5142 = vmul.f32 %v5014, 0.5
  %v5143 = vmul.f32 %v5015, 0.5
  %v5144 = vmul.f32 %v5016, 0.5
  %v5145 = vmul.f32 %v5017, 0.5
  %v5146 = vmul.f32 %v5018, 0.5
  %v5147 = vmul.f32 %v5019, 0.5
  %v5148 = vmul.f32 %v5020, 0.5
  %v5149 = vmul.f32 %v5021, 0.5
  %v5150 = vmul.f32 %v5022, 0.5
  %v5151 = vmul.f32 %v5023, 0.5
  %v5152 = vmul.f32 %v5024, 0.5
  %v5153 = vmul.f32 %v5025, 0.5
  %v5154 = vmul.f32 %v5026, 0.5
  %v5155 = vmul.f32 %v5027, 0.5
  %v5156 = vmul.f32 %v5028, 0.5
  %v5157 = vmul.f32 %v5029, 0.5
  %v5158 = vmul.f32 %v5030, 0.5
  %v5159 = vmul.f32 %v5031, 0.5
  %v5160 = vmul.f32 %v5032, 0.5
  %v5161 = vmul.f32 %v5033, 0.5
  %v5162 = vmul.f32 %v5034, 0.5
  %v5163 = vmul.f32 %v5035, 0.5
  %v5164 = vmul.f32 %v5036, 0.5
  %v5165 = vmul.f32 %v5037, 0.5
  %v5166 = vmul.f32 %v5038, 0.5
  %v5167 = vmul.f32 %v5039, 0.5
  %v5168 = vmul.f32 %v5040, 0.5
  %v5169 = vmul.f32 %v5041, 0.5
  %v5170 = vmul.f32 %v5042, 0.5
  %v5171 = vmul.f32 %v5043, 0.5
  %v5172 = vmul.f32 %v5044, 0.5
  %v5173 = vmul.f32 %v5045, 0.5
  %v5174 = vmul.f32 %v5046, 0.5
  %v5175 = vmul.f32 %v5047, 0.5
  %v5176 = vmul.f32 %v5048, 0.5
  %v5177 = vmul.f32 %v5049, 0.5
  %v5178 = vmul.f32 %v5050, 0.5
  %v5179 = vmul.f32 %v5051, 0.5
  %v5180 = vmul.f32 %v5052, 0.5
  %v5181 = vmul.f32 %v5053, 0.5
  %v5182 = vmul.f32 %v5054, 0.5
  %v5183 = vmul.f32 %v5055, 0.5
  %v5184 = vmul.f32 %v5056, 0.5
  %v5185 = vmul.f32 %v5057, 0.5
  %v5186 = vmul.f32 %v5058, 0.5
  %v5187 = vmul.f32 %v5059, 0.5
  %v5188 = vmul.f32 %v5060, 0.5
  %v5189 = vmul.f32 %v5061, 0.5
  %v5190 = vmul.f32 %v5062, 0.5
  %v5191 = vmul.f32 %v5063, 0.5
  %v5192 = vmul.f32 %v5064, 0.5
  %v5193 = vmul.f32 %v5065, 0.5
  %v5194 = vmul.f32 %v5066, 0.5
  %v5195 = vmul.f32 %v5067, 0.5
  %v5196 = vmul.f32 %v5068, 0.5
  %v5197 = vmul.f32 %v5069, 0.5
  %v5198 = vmul.f32 %v5070, 0.5
  %v5199 = vmul.f32 %v5071, 0.5
  %v5200 = vmul.f32 %v5072, 0.5
  %v5201 = vmul.f32 %v5073, 0.5
  %v5202 = vmul.f32 %v5074, 0.5
  %v5203 = vmul.f32 %v5075, 0.5
  %v5204 = vmul.f32 %v5076, 0.5
  %v5205 = vmul.f32 %v5077, 0.5
  %v5206 = vmul.f32 %v5078, 0.5
  %v5207 = vmul.f32 %v5079, 0.5
  %v5208 = vmul.f32 %v5080, 0.5
  %v5209 = vmul.f32 %v5081, 0.5
  %v5210 = vmul.f32 %v5082, 0.5
  %v5211 = vmul.f32 %v5083, 0.5
  %v5212 = vmul.f32 %v5084, 0.5
  %v5213 = vmul.f32 %v5085, 0.5
  %v5214 = vmul.f32 %v5086, 0.5
  %v5215 = vmul.f32 %v5087, 0.5
  %v5216 = vmul.f32 %v5088, 0.5
  %v5217 = vmul.f32 %v5089, 0.5
  %v5218 = vmul.f32 %v5090, 0.5
  %v5219 = vmul.f32 %v5091, 0.5
  %v5220 = vmul.f32 %v5092, 0.5
  %v5221 = vmul.f32 %v5093, 0.5
  %v5222 = vmul.f32 %v5094, 0.5
  %v5223 = vmul.f32 %v5095, 0.5
  %v5224 = vmul.f32 %v5096, 0.5
  %v5225 = vmul.f32 %v5097, 0.5
  %v5226 = vmul.f32 %v5098, 0.5
  %v5227 = vmul.f32 %v5099, 0.5
  %v5228 = vmul.f32 %v5100, 0.5
  %v5229 = vmul.f32 %v5101, 0.5
  %v5230 = vmul.f32 %v5102, 0.5
  %v5231 = vmul.f32 %v5103, 0.5
  %v5232 = vmul.f32 %v5104, 0.5
  %v5233 = vmul.f32 %v5105, 0.5
  %v5234 = vmul.f32 %v5106, 0.5
  %v5235 = vmul.f32 %v5107, 0.5
  %v5236 = vpack.c.bf16 %v5109, %v5108
  %v5237 = vpack.c.bf16 %v5111, %v5110
  %v5238 = vpack.c.bf16 %v5113, %v5112
  %v5239 = vpack.c.bf16 %v5115, %v5114
  %v5240 = vpack.c.bf16 %v5117, %v5116
  %v5241 = vpack.c.bf16 %v5119, %v5118
  %v5242 = vpack.c.bf16 %v5121, %v5120
  %v5243 = vpack.c.bf16 %v5123, %v5122
  %v5244 = vpack.c.bf16 %v5125, %v5124
  %v5245 = vpack.c.bf16 %v5127, %v5126
  %v5246 = vpack.c.bf16 %v5129, %v5128
  %v5247 = vpack.c.bf16 %v5131, %v5130
  %v5248 = vpack.c.bf16 %v5133, %v5132
  %v5249 = vpack.c.bf16 %v5135, %v5134
  %v5250 = vpack.c.bf16 %v5137, %v5136
  %v5251 = vpack.c.bf16 %v5139, %v5138
  %v5252 = vpack.c.bf16 %v5141, %v5140
  %v5253 = vpack.c.bf16 %v5143, %v5142
  %v5254 = vpack.c.bf16 %v5145, %v5144
  %v5255 = vpack.c.bf16 %v5147, %v5146
  %v5256 = vpack.c.bf16 %v5149, %v5148
  %v5257 = vpack.c.bf16 %v5151, %v5150
  %v5258 = vpack.c.bf16 %v5153, %v5152
  %v5259 = vpack.c.bf16 %v5155, %v5154
  %v5260 = vpack.c.bf16 %v5157, %v5156
  %v5261 = vpack.c.bf16 %v5159, %v5158
  %v5262 = vpack.c.bf16 %v5161, %v5160
  %v5263 = vpack.c.bf16 %v5163, %v5162
  %v5264 = vpack.c.bf16 %v5165, %v5164
  %v5265 = vpack.c.bf16 %v5167, %v5166
  %v5266 = vpack.c.bf16 %v5169, %v5168
  %v5267 = vpack.c.bf16 %v5171, %v5170
  %v5268 = vpack.c.bf16 %v5173, %v5172
  %v5269 = vpack.c.bf16 %v5175, %v5174
  %v5270 = vpack.c.bf16 %v5177, %v5176
  %v5271 = vpack.c.bf16 %v5179, %v5178
  %v5272 = vpack.c.bf16 %v5181, %v5180
  %v5273 = vpack.c.bf16 %v5183, %v5182
  %v5274 = vpack.c.bf16 %v5185, %v5184
  %v5275 = vpack.c.bf16 %v5187, %v5186
  %v5276 = vpack.c.bf16 %v5189, %v5188
  %v5277 = vpack.c.bf16 %v5191, %v5190
  %v5278 = vpack.c.bf16 %v5193, %v5192
  %v5279 = vpack.c.bf16 %v5195, %v5194
  %v5280 = vpack.c.bf16 %v5197, %v5196
  %v5281 = vpack.c.bf16 %v5199, %v5198
  %v5282 = vpack.c.bf16 %v5201, %v5200
  %v5283 = vpack.c.bf16 %v5203, %v5202
  %v5284 = vpack.c.bf16 %v5205, %v5204
  %v5285 = vpack.c.bf16 %v5207, %v5206
  %v5286 = vpack.c.bf16 %v5209, %v5208
  %v5287 = vpack.c.bf16 %v5211, %v5210
  %v5288 = vpack.c.bf16 %v5213, %v5212
  %v5289 = vpack.c.bf16 %v5215, %v5214
  %v5290 = vpack.c.bf16 %v5217, %v5216
  %v5291 = vpack.c.bf16 %v5219, %v5218
  %v5292 = vpack.c.bf16 %v5221, %v5220
  %v5293 = vpack.c.bf16 %v5223, %v5222
  %v5294 = vpack.c.bf16 %v5225, %v5224
  %v5295 = vpack.c.bf16 %v5227, %v5226
  %v5296 = vpack.c.bf16 %v5229, %v5228
  %v5297 = vpack.c.bf16 %v5231, %v5230
  %v5298 = vpack.c.bf16 %v5233, %v5232
  %v5299 = vpack.c.bf16 %v5235, %v5234
  %v5364 = vunpack.c.l.b16 %v5236
  %v5365 = vunpack.c.h.b16 %v5236
  %v5366 = vunpack.c.l.b16 %v5237
  %v5367 = vunpack.c.h.b16 %v5237
  %v5368 = vunpack.c.l.b16 %v5238
  %v5369 = vunpack.c.h.b16 %v5238
  %v5370 = vunpack.c.l.b16 %v5239
  %v5371 = vunpack.c.h.b16 %v5239
  %v5372 = vunpack.c.l.b16 %v5240
  %v5373 = vunpack.c.h.b16 %v5240
  %v5374 = vunpack.c.l.b16 %v5241
  %v5375 = vunpack.c.h.b16 %v5241
  %v5376 = vunpack.c.l.b16 %v5242
  %v5377 = vunpack.c.h.b16 %v5242
  %v5378 = vunpack.c.l.b16 %v5243
  %v5379 = vunpack.c.h.b16 %v5243
  %v5380 = vunpack.c.l.b16 %v5244
  %v5381 = vunpack.c.h.b16 %v5244
  %v5382 = vunpack.c.l.b16 %v5245
  %v5383 = vunpack.c.h.b16 %v5245
  %v5384 = vunpack.c.l.b16 %v5246
  %v5385 = vunpack.c.h.b16 %v5246
  %v5386 = vunpack.c.l.b16 %v5247
  %v5387 = vunpack.c.h.b16 %v5247
  %v5388 = vunpack.c.l.b16 %v5248
  %v5389 = vunpack.c.h.b16 %v5248
  %v5390 = vunpack.c.l.b16 %v5249
  %v5391 = vunpack.c.h.b16 %v5249
  %v5392 = vunpack.c.l.b16 %v5250
  %v5393 = vunpack.c.h.b16 %v5250
  %v5394 = vunpack.c.l.b16 %v5251
  %v5395 = vunpack.c.h.b16 %v5251
  %v5396 = vunpack.c.l.b16 %v5252
  %v5397 = vunpack.c.h.b16 %v5252
  %v5398 = vunpack.c.l.b16 %v5253
  %v5399 = vunpack.c.h.b16 %v5253
  %v5400 = vunpack.c.l.b16 %v5254
  %v5401 = vunpack.c.h.b16 %v5254
  %v5402 = vunpack.c.l.b16 %v5255
  %v5403 = vunpack.c.h.b16 %v5255
  %v5404 = vunpack.c.l.b16 %v5256
  %v5405 = vunpack.c.h.b16 %v5256
  %v5406 = vunpack.c.l.b16 %v5257
  %v5407 = vunpack.c.h.b16 %v5257
  %v5408 = vunpack.c.l.b16 %v5258
  %v5409 = vunpack.c.h.b16 %v5258
  %v5410 = vunpack.c.l.b16 %v5259
  %v5411 = vunpack.c.h.b16 %v5259
  %v5412 = vunpack.c.l.b16 %v5260
  %v5413 = vunpack.c.h.b16 %v5260
  %v5414 = vunpack.c.l.b16 %v5261
  %v5415 = vunpack.c.h.b16 %v5261
  %v5416 = vunpack.c.l.b16 %v5262
  %v5417 = vunpack.c.h.b16 %v5262
  %v5418 = vunpack.c.l.b16 %v5263
  %v5419 = vunpack.c.h.b16 %v5263
  %v5420 = vunpack.c.l.b16 %v5264
  %v5421 = vunpack.c.h.b16 %v5264
  %v5422 = vunpack.c.l.b16 %v5265
  %v5423 = vunpack.c.h.b16 %v5265
  %v5424 = vunpack.c.l.b16 %v5266
  %v5425 = vunpack.c.h.b16 %v5266
  %v5426 = vunpack.c.l.b16 %v5267
  %v5427 = vunpack.c.h.b16 %v5267
  %v5428 = vunpack.c.l.b16 %v5268
  %v5429 = vunpack.c.h.b16 %v5268
  %v5430 = vunpack.c.l.b16 %v5269
  %v5431 = vunpack.c.h.b16 %v5269
  %v5432 = vunpack.c.l.b16 %v5270
  %v5433 = vunpack.c.h.b16 %v5270
  %v5434 = vunpack.c.l.b16 %v5271
  %v5435 = vunpack.c.h.b16 %v5271
  %v5436 = vunpack.c.l.b16 %v5272
  %v5437 = vunpack.c.h.b16 %v5272
  %v5438 = vunpack.c.l.b16 %v5273
  %v5439 = vunpack.c.h.b16 %v5273
  %v5440 = vunpack.c.l.b16 %v5274
  %v5441 = vunpack.c.h.b16 %v5274
  %v5442 = vunpack.c.l.b16 %v5275
  %v5443 = vunpack.c.h.b16 %v5275
  %v5444 = vunpack.c.l.b16 %v5276
  %v5445 = vunpack.c.h.b16 %v5276
  %v5446 = vunpack.c.l.b16 %v5277
  %v5447 = vunpack.c.h.b16 %v5277
  %v5448 = vunpack.c.l.b16 %v5278
  %v5449 = vunpack.c.h.b16 %v5278
  %v5450 = vunpack.c.l.b16 %v5279
  %v5451 = vunpack.c.h.b16 %v5279
  %v5452 = vunpack.c.l.b16 %v5280
  %v5453 = vunpack.c.h.b16 %v5280
  %v5454 = vunpack.c.l.b16 %v5281
  %v5455 = vunpack.c.h.b16 %v5281
  %v5456 = vunpack.c.l.b16 %v5282
  %v5457 = vunpack.c.h.b16 %v5282
  %v5458 = vunpack.c.l.b16 %v5283
  %v5459 = vunpack.c.h.b16 %v5283
  %v5460 = vunpack.c.l.b16 %v5284
  %v5461 = vunpack.c.h.b16 %v5284
  %v5462 = vunpack.c.l.b16 %v5285
  %v5463 = vunpack.c.h.b16 %v5285
  %v5464 = vunpack.c.l.b16 %v5286
  %v5465 = vunpack.c.h.b16 %v5286
  %v5466 = vunpack.c.l.b16 %v5287
  %v5467 = vunpack.c.h.b16 %v5287
  %v5468 = vunpack.c.l.b16 %v5288
  %v5469 = vunpack.c.h.b16 %v5288
  %v5470 = vunpack.c.l.b16 %v5289
  %v5471 = vunpack.c.h.b16 %v5289
  %v5472 = vunpack.c.l.b16 %v5290
  %v5473 = vunpack.c.h.b16 %v5290
  %v5474 = vunpack.c.l.b16 %v5291
  %v5475 = vunpack.c.h.b16 %v5291
  %v5476 = vunpack.c.l.b16 %v5292
  %v5477 = vunpack.c.h.b16 %v5292
  %v5478 = vunpack.c.l.b16 %v5293
  %v5479 = vunpack.c.h.b16 %v5293
  %v5480 = vunpack.c.l.b16 %v5294
  %v5481 = vunpack.c.h.b16 %v5294
  %v5482 = vunpack.c.l.b16 %v5295
  %v5483 = vunpack.c.h.b16 %v5295
  %v5484 = vunpack.c.l.b16 %v5296
  %v5485 = vunpack.c.h.b16 %v5296
  %v5486 = vunpack.c.l.b16 %v5297
  %v5487 = vunpack.c.h.b16 %v5297
  %v5488 = vunpack.c.l.b16 %v5298
  %v5489 = vunpack.c.h.b16 %v5298
  %v5490 = vunpack.c.l.b16 %v5299
  %v5491 = vunpack.c.h.b16 %v5299
  %5492 = vset.pattern.permute.xlu0 0
  %5493 = vperm.xlu0 %5492, %v5364
  %v5494 = vpop.permute.xlu0 %5493
  %5495 = vset.pattern.permute.xlu0 0
  %5496 = vperm.xlu0 %5495, %v5365
  %v5497 = vpop.permute.xlu0 %5496
  %5498 = vset.pattern.permute.xlu0 0
  %5499 = vperm.xlu0 %5498, %v5366
  %v5500 = vpop.permute.xlu0 %5499
  %5501 = vset.pattern.permute.xlu0 0
  %5502 = vperm.xlu0 %5501, %v5367
  %v5503 = vpop.permute.xlu0 %5502
  %5504 = vset.pattern.permute.xlu0 0
  %5505 = vperm.xlu0 %5504, %v5368
  %v5506 = vpop.permute.xlu0 %5505
  %5507 = vset.pattern.permute.xlu0 0
  %5508 = vperm.xlu0 %5507, %v5369
  %v5509 = vpop.permute.xlu0 %5508
  %5510 = vset.pattern.permute.xlu0 0
  %5511 = vperm.xlu0 %5510, %v5370
  %v5512 = vpop.permute.xlu0 %5511
  %5513 = vset.pattern.permute.xlu0 0
  %5514 = vperm.xlu0 %5513, %v5371
  %v5515 = vpop.permute.xlu0 %5514
  %5516 = vset.pattern.permute.xlu0 0
  %5517 = vperm.xlu0 %5516, %v5372
  %v5518 = vpop.permute.xlu0 %5517
  %5519 = vset.pattern.permute.xlu0 0
  %5520 = vperm.xlu0 %5519, %v5373
  %v5521 = vpop.permute.xlu0 %5520
  %5522 = vset.pattern.permute.xlu0 0
  %5523 = vperm.xlu0 %5522, %v5374
  %v5524 = vpop.permute.xlu0 %5523
  %5525 = vset.pattern.permute.xlu0 0
  %5526 = vperm.xlu0 %5525, %v5375
  %v5527 = vpop.permute.xlu0 %5526
  %5528 = vset.pattern.permute.xlu0 0
  %5529 = vperm.xlu0 %5528, %v5376
  %v5530 = vpop.permute.xlu0 %5529
  %5531 = vset.pattern.permute.xlu0 0
  %5532 = vperm.xlu0 %5531, %v5377
  %v5533 = vpop.permute.xlu0 %5532
  %5534 = vset.pattern.permute.xlu0 0
  %5535 = vperm.xlu0 %5534, %v5378
  %v5536 = vpop.permute.xlu0 %5535
  %5537 = vset.pattern.permute.xlu0 0
  %5538 = vperm.xlu0 %5537, %v5379
  %v5539 = vpop.permute.xlu0 %5538
  %5540 = vset.pattern.permute.xlu0 0
  %5541 = vperm.xlu0 %5540, %v5380
  %v5542 = vpop.permute.xlu0 %5541
  %5543 = vset.pattern.permute.xlu0 0
  %5544 = vperm.xlu0 %5543, %v5381
  %v5545 = vpop.permute.xlu0 %5544
  %5546 = vset.pattern.permute.xlu0 0
  %5547 = vperm.xlu0 %5546, %v5382
  %v5548 = vpop.permute.xlu0 %5547
  %5549 = vset.pattern.permute.xlu0 0
  %5550 = vperm.xlu0 %5549, %v5383
  %v5551 = vpop.permute.xlu0 %5550
  %5552 = vset.pattern.permute.xlu0 0
  %5553 = vperm.xlu0 %5552, %v5384
  %v5554 = vpop.permute.xlu0 %5553
  %5555 = vset.pattern.permute.xlu0 0
  %5556 = vperm.xlu0 %5555, %v5385
  %v5557 = vpop.permute.xlu0 %5556
  %5558 = vset.pattern.permute.xlu0 0
  %5559 = vperm.xlu0 %5558, %v5386
  %v5560 = vpop.permute.xlu0 %5559
  %5561 = vset.pattern.permute.xlu0 0
  %5562 = vperm.xlu0 %5561, %v5387
  %v5563 = vpop.permute.xlu0 %5562
  %5564 = vset.pattern.permute.xlu0 0
  %5565 = vperm.xlu0 %5564, %v5388
  %v5566 = vpop.permute.xlu0 %5565
  %5567 = vset.pattern.permute.xlu0 0
  %5568 = vperm.xlu0 %5567, %v5389
  %v5569 = vpop.permute.xlu0 %5568
  %5570 = vset.pattern.permute.xlu0 0
  %5571 = vperm.xlu0 %5570, %v5390
  %v5572 = vpop.permute.xlu0 %5571
  %5573 = vset.pattern.permute.xlu0 0
  %5574 = vperm.xlu0 %5573, %v5391
  %v5575 = vpop.permute.xlu0 %5574
  %5576 = vset.pattern.permute.xlu0 0
  %5577 = vperm.xlu0 %5576, %v5392
  %v5578 = vpop.permute.xlu0 %5577
  %5579 = vset.pattern.permute.xlu0 0
  %5580 = vperm.xlu0 %5579, %v5393
  %v5581 = vpop.permute.xlu0 %5580
  %5582 = vset.pattern.permute.xlu0 0
  %5583 = vperm.xlu0 %5582, %v5394
  %v5584 = vpop.permute.xlu0 %5583
  %5585 = vset.pattern.permute.xlu0 0
  %5586 = vperm.xlu0 %5585, %v5395
  %v5587 = vpop.permute.xlu0 %5586
  %5588 = vset.pattern.permute.xlu0 0
  %5589 = vperm.xlu0 %5588, %v5396
  %v5590 = vpop.permute.xlu0 %5589
  %5591 = vset.pattern.permute.xlu0 0
  %5592 = vperm.xlu0 %5591, %v5397
  %v5593 = vpop.permute.xlu0 %5592
  %5594 = vset.pattern.permute.xlu0 0
  %5595 = vperm.xlu0 %5594, %v5398
  %v5596 = vpop.permute.xlu0 %5595
  %5597 = vset.pattern.permute.xlu0 0
  %5598 = vperm.xlu0 %5597, %v5399
  %v5599 = vpop.permute.xlu0 %5598
  %5600 = vset.pattern.permute.xlu0 0
  %5601 = vperm.xlu0 %5600, %v5400
  %v5602 = vpop.permute.xlu0 %5601
  %5603 = vset.pattern.permute.xlu0 0
  %5604 = vperm.xlu0 %5603, %v5401
  %v5605 = vpop.permute.xlu0 %5604
  %5606 = vset.pattern.permute.xlu0 0
  %5607 = vperm.xlu0 %5606, %v5402
  %v5608 = vpop.permute.xlu0 %5607
  %5609 = vset.pattern.permute.xlu0 0
  %5610 = vperm.xlu0 %5609, %v5403
  %v5611 = vpop.permute.xlu0 %5610
  %5612 = vset.pattern.permute.xlu0 0
  %5613 = vperm.xlu0 %5612, %v5404
  %v5614 = vpop.permute.xlu0 %5613
  %5615 = vset.pattern.permute.xlu0 0
  %5616 = vperm.xlu0 %5615, %v5405
  %v5617 = vpop.permute.xlu0 %5616
  %5618 = vset.pattern.permute.xlu0 0
  %5619 = vperm.xlu0 %5618, %v5406
  %v5620 = vpop.permute.xlu0 %5619
  %5621 = vset.pattern.permute.xlu0 0
  %5622 = vperm.xlu0 %5621, %v5407
  %v5623 = vpop.permute.xlu0 %5622
  %5624 = vset.pattern.permute.xlu0 0
  %5625 = vperm.xlu0 %5624, %v5408
  %v5626 = vpop.permute.xlu0 %5625
  %5627 = vset.pattern.permute.xlu0 0
  %5628 = vperm.xlu0 %5627, %v5409
  %v5629 = vpop.permute.xlu0 %5628
  %5630 = vset.pattern.permute.xlu0 0
  %5631 = vperm.xlu0 %5630, %v5410
  %v5632 = vpop.permute.xlu0 %5631
  %5633 = vset.pattern.permute.xlu0 0
  %5634 = vperm.xlu0 %5633, %v5411
  %v5635 = vpop.permute.xlu0 %5634
  %5636 = vset.pattern.permute.xlu0 0
  %5637 = vperm.xlu0 %5636, %v5412
  %v5638 = vpop.permute.xlu0 %5637
  %5639 = vset.pattern.permute.xlu0 0
  %5640 = vperm.xlu0 %5639, %v5413
  %v5641 = vpop.permute.xlu0 %5640
  %5642 = vset.pattern.permute.xlu0 0
  %5643 = vperm.xlu0 %5642, %v5414
  %v5644 = vpop.permute.xlu0 %5643
  %5645 = vset.pattern.permute.xlu0 0
  %5646 = vperm.xlu0 %5645, %v5415
  %v5647 = vpop.permute.xlu0 %5646
  %5648 = vset.pattern.permute.xlu0 0
  %5649 = vperm.xlu0 %5648, %v5416
  %v5650 = vpop.permute.xlu0 %5649
  %5651 = vset.pattern.permute.xlu0 0
  %5652 = vperm.xlu0 %5651, %v5417
  %v5653 = vpop.permute.xlu0 %5652
  %5654 = vset.pattern.permute.xlu0 0
  %5655 = vperm.xlu0 %5654, %v5418
  %v5656 = vpop.permute.xlu0 %5655
  %5657 = vset.pattern.permute.xlu0 0
  %5658 = vperm.xlu0 %5657, %v5419
  %v5659 = vpop.permute.xlu0 %5658
  %5660 = vset.pattern.permute.xlu0 0
  %5661 = vperm.xlu0 %5660, %v5420
  %v5662 = vpop.permute.xlu0 %5661
  %5663 = vset.pattern.permute.xlu0 0
  %5664 = vperm.xlu0 %5663, %v5421
  %v5665 = vpop.permute.xlu0 %5664
  %5666 = vset.pattern.permute.xlu0 0
  %5667 = vperm.xlu0 %5666, %v5422
  %v5668 = vpop.permute.xlu0 %5667
  %5669 = vset.pattern.permute.xlu0 0
  %5670 = vperm.xlu0 %5669, %v5423
  %v5671 = vpop.permute.xlu0 %5670
  %5672 = vset.pattern.permute.xlu0 0
  %5673 = vperm.xlu0 %5672, %v5424
  %v5674 = vpop.permute.xlu0 %5673
  %5675 = vset.pattern.permute.xlu0 0
  %5676 = vperm.xlu0 %5675, %v5425
  %v5677 = vpop.permute.xlu0 %5676
  %5678 = vset.pattern.permute.xlu0 0
  %5679 = vperm.xlu0 %5678, %v5426
  %v5680 = vpop.permute.xlu0 %5679
  %5681 = vset.pattern.permute.xlu0 0
  %5682 = vperm.xlu0 %5681, %v5427
  %v5683 = vpop.permute.xlu0 %5682
  %5684 = vset.pattern.permute.xlu0 0
  %5685 = vperm.xlu0 %5684, %v5428
  %v5686 = vpop.permute.xlu0 %5685
  %5687 = vset.pattern.permute.xlu0 0
  %5688 = vperm.xlu0 %5687, %v5429
  %v5689 = vpop.permute.xlu0 %5688
  %5690 = vset.pattern.permute.xlu0 0
  %5691 = vperm.xlu0 %5690, %v5430
  %v5692 = vpop.permute.xlu0 %5691
  %5693 = vset.pattern.permute.xlu0 0
  %5694 = vperm.xlu0 %5693, %v5431
  %v5695 = vpop.permute.xlu0 %5694
  %5696 = vset.pattern.permute.xlu0 0
  %5697 = vperm.xlu0 %5696, %v5432
  %v5698 = vpop.permute.xlu0 %5697
  %5699 = vset.pattern.permute.xlu0 0
  %5700 = vperm.xlu0 %5699, %v5433
  %v5701 = vpop.permute.xlu0 %5700
  %5702 = vset.pattern.permute.xlu0 0
  %5703 = vperm.xlu0 %5702, %v5434
  %v5704 = vpop.permute.xlu0 %5703
  %5705 = vset.pattern.permute.xlu0 0
  %5706 = vperm.xlu0 %5705, %v5435
  %v5707 = vpop.permute.xlu0 %5706
  %5708 = vset.pattern.permute.xlu0 0
  %5709 = vperm.xlu0 %5708, %v5436
  %v5710 = vpop.permute.xlu0 %5709
  %5711 = vset.pattern.permute.xlu0 0
  %5712 = vperm.xlu0 %5711, %v5437
  %v5713 = vpop.permute.xlu0 %5712
  %5714 = vset.pattern.permute.xlu0 0
  %5715 = vperm.xlu0 %5714, %v5438
  %v5716 = vpop.permute.xlu0 %5715
  %5717 = vset.pattern.permute.xlu0 0
  %5718 = vperm.xlu0 %5717, %v5439
  %v5719 = vpop.permute.xlu0 %5718
  %5720 = vset.pattern.permute.xlu0 0
  %5721 = vperm.xlu0 %5720, %v5440
  %v5722 = vpop.permute.xlu0 %5721
  %5723 = vset.pattern.permute.xlu0 0
  %5724 = vperm.xlu0 %5723, %v5441
  %v5725 = vpop.permute.xlu0 %5724
  %5726 = vset.pattern.permute.xlu0 0
  %5727 = vperm.xlu0 %5726, %v5442
  %v5728 = vpop.permute.xlu0 %5727
  %5729 = vset.pattern.permute.xlu0 0
  %5730 = vperm.xlu0 %5729, %v5443
  %v5731 = vpop.permute.xlu0 %5730
  %5732 = vset.pattern.permute.xlu0 0
  %5733 = vperm.xlu0 %5732, %v5444
  %v5734 = vpop.permute.xlu0 %5733
  %5735 = vset.pattern.permute.xlu0 0
  %5736 = vperm.xlu0 %5735, %v5445
  %v5737 = vpop.permute.xlu0 %5736
  %5738 = vset.pattern.permute.xlu0 0
  %5739 = vperm.xlu0 %5738, %v5446
  %v5740 = vpop.permute.xlu0 %5739
  %5741 = vset.pattern.permute.xlu0 0
  %5742 = vperm.xlu0 %5741, %v5447
  %v5743 = vpop.permute.xlu0 %5742
  %5744 = vset.pattern.permute.xlu0 0
  %5745 = vperm.xlu0 %5744, %v5448
  %v5746 = vpop.permute.xlu0 %5745
  %5747 = vset.pattern.permute.xlu0 0
  %5748 = vperm.xlu0 %5747, %v5449
  %v5749 = vpop.permute.xlu0 %5748
  %5750 = vset.pattern.permute.xlu0 0
  %5751 = vperm.xlu0 %5750, %v5450
  %v5752 = vpop.permute.xlu0 %5751
  %5753 = vset.pattern.permute.xlu0 0
  %5754 = vperm.xlu0 %5753, %v5451
  %v5755 = vpop.permute.xlu0 %5754
  %5756 = vset.pattern.permute.xlu0 0
  %5757 = vperm.xlu0 %5756, %v5452
  %v5758 = vpop.permute.xlu0 %5757
  %5759 = vset.pattern.permute.xlu0 0
  %5760 = vperm.xlu0 %5759, %v5453
  %v5761 = vpop.permute.xlu0 %5760
  %5762 = vset.pattern.permute.xlu0 0
  %5763 = vperm.xlu0 %5762, %v5454
  %v5764 = vpop.permute.xlu0 %5763
  %5765 = vset.pattern.permute.xlu0 0
  %5766 = vperm.xlu0 %5765, %v5455
  %v5767 = vpop.permute.xlu0 %5766
  %5768 = vset.pattern.permute.xlu0 0
  %5769 = vperm.xlu0 %5768, %v5456
  %v5770 = vpop.permute.xlu0 %5769
  %5771 = vset.pattern.permute.xlu0 0
  %5772 = vperm.xlu0 %5771, %v5457
  %v5773 = vpop.permute.xlu0 %5772
  %5774 = vset.pattern.permute.xlu0 0
  %5775 = vperm.xlu0 %5774, %v5458
  %v5776 = vpop.permute.xlu0 %5775
  %5777 = vset.pattern.permute.xlu0 0
  %5778 = vperm.xlu0 %5777, %v5459
  %v5779 = vpop.permute.xlu0 %5778
  %5780 = vset.pattern.permute.xlu0 0
  %5781 = vperm.xlu0 %5780, %v5460
  %v5782 = vpop.permute.xlu0 %5781
  %5783 = vset.pattern.permute.xlu0 0
  %5784 = vperm.xlu0 %5783, %v5461
  %v5785 = vpop.permute.xlu0 %5784
  %5786 = vset.pattern.permute.xlu0 0
  %5787 = vperm.xlu0 %5786, %v5462
  %v5788 = vpop.permute.xlu0 %5787
  %5789 = vset.pattern.permute.xlu0 0
  %5790 = vperm.xlu0 %5789, %v5463
  %v5791 = vpop.permute.xlu0 %5790
  %5792 = vset.pattern.permute.xlu0 0
  %5793 = vperm.xlu0 %5792, %v5464
  %v5794 = vpop.permute.xlu0 %5793
  %5795 = vset.pattern.permute.xlu0 0
  %5796 = vperm.xlu0 %5795, %v5465
  %v5797 = vpop.permute.xlu0 %5796
  %5798 = vset.pattern.permute.xlu0 0
  %5799 = vperm.xlu0 %5798, %v5466
  %v5800 = vpop.permute.xlu0 %5799
  %5801 = vset.pattern.permute.xlu0 0
  %5802 = vperm.xlu0 %5801, %v5467
  %v5803 = vpop.permute.xlu0 %5802
  %5804 = vset.pattern.permute.xlu0 0
  %5805 = vperm.xlu0 %5804, %v5468
  %v5806 = vpop.permute.xlu0 %5805
  %5807 = vset.pattern.permute.xlu0 0
  %5808 = vperm.xlu0 %5807, %v5469
  %v5809 = vpop.permute.xlu0 %5808
  %5810 = vset.pattern.permute.xlu0 0
  %5811 = vperm.xlu0 %5810, %v5470
  %v5812 = vpop.permute.xlu0 %5811
  %5813 = vset.pattern.permute.xlu0 0
  %5814 = vperm.xlu0 %5813, %v5471
  %v5815 = vpop.permute.xlu0 %5814
  %5816 = vset.pattern.permute.xlu0 0
  %5817 = vperm.xlu0 %5816, %v5472
  %v5818 = vpop.permute.xlu0 %5817
  %5819 = vset.pattern.permute.xlu0 0
  %5820 = vperm.xlu0 %5819, %v5473
  %v5821 = vpop.permute.xlu0 %5820
  %5822 = vset.pattern.permute.xlu0 0
  %5823 = vperm.xlu0 %5822, %v5474
  %v5824 = vpop.permute.xlu0 %5823
  %5825 = vset.pattern.permute.xlu0 0
  %5826 = vperm.xlu0 %5825, %v5475
  %v5827 = vpop.permute.xlu0 %5826
  %5828 = vset.pattern.permute.xlu0 0
  %5829 = vperm.xlu0 %5828, %v5476
  %v5830 = vpop.permute.xlu0 %5829
  %5831 = vset.pattern.permute.xlu0 0
  %5832 = vperm.xlu0 %5831, %v5477
  %v5833 = vpop.permute.xlu0 %5832
  %5834 = vset.pattern.permute.xlu0 0
  %5835 = vperm.xlu0 %5834, %v5478
  %v5836 = vpop.permute.xlu0 %5835
  %5837 = vset.pattern.permute.xlu0 0
  %5838 = vperm.xlu0 %5837, %v5479
  %v5839 = vpop.permute.xlu0 %5838
  %5840 = vset.pattern.permute.xlu0 0
  %5841 = vperm.xlu0 %5840, %v5480
  %v5842 = vpop.permute.xlu0 %5841
  %5843 = vset.pattern.permute.xlu0 0
  %5844 = vperm.xlu0 %5843, %v5481
  %v5845 = vpop.permute.xlu0 %5844
  %5846 = vset.pattern.permute.xlu0 0
  %5847 = vperm.xlu0 %5846, %v5482
  %v5848 = vpop.permute.xlu0 %5847
  %5849 = vset.pattern.permute.xlu0 0
  %5850 = vperm.xlu0 %5849, %v5483
  %v5851 = vpop.permute.xlu0 %5850
  %5852 = vset.pattern.permute.xlu0 0
  %5853 = vperm.xlu0 %5852, %v5484
  %v5854 = vpop.permute.xlu0 %5853
  %5855 = vset.pattern.permute.xlu0 0
  %5856 = vperm.xlu0 %5855, %v5485
  %v5857 = vpop.permute.xlu0 %5856
  %5858 = vset.pattern.permute.xlu0 0
  %5859 = vperm.xlu0 %5858, %v5486
  %v5860 = vpop.permute.xlu0 %5859
  %5861 = vset.pattern.permute.xlu0 0
  %5862 = vperm.xlu0 %5861, %v5487
  %v5863 = vpop.permute.xlu0 %5862
  %5864 = vset.pattern.permute.xlu0 0
  %5865 = vperm.xlu0 %5864, %v5488
  %v5866 = vpop.permute.xlu0 %5865
  %5867 = vset.pattern.permute.xlu0 0
  %5868 = vperm.xlu0 %5867, %v5489
  %v5869 = vpop.permute.xlu0 %5868
  %5870 = vset.pattern.permute.xlu0 0
  %5871 = vperm.xlu0 %5870, %v5490
  %v5872 = vpop.permute.xlu0 %5871
  %5873 = vset.pattern.permute.xlu0 0
  %5874 = vperm.xlu0 %5873, %v5491
  %v5875 = vpop.permute.xlu0 %5874
  %v5876 = vlaneseq
  %v5877 = vshrl.u32 %v5876, 7
  %v5878 = vsub.s32 %v2603, %v5877
  %v5879 = vrot.slane %v5494, %v5878
  %v5880 = vlaneseq
  %v5881 = vshrl.u32 %v5880, 7
  %v5882 = vsub.s32 %v2608, %v5881
  %v5883 = vrot.slane %v5497, %v5882
  %v5884 = vsel %vm2613, %v5883, %v5879
  %v5885 = vlaneseq
  %v5886 = vshrl.u32 %v5885, 7
  %v5887 = vsub.s32 %v2615, %v5886
  %v5888 = vrot.slane %v5500, %v5887
  %v5889 = vsel %vm2620, %v5888, %v5884
  %v5890 = vlaneseq
  %v5891 = vshrl.u32 %v5890, 7
  %v5892 = vsub.s32 %v2622, %v5891
  %v5893 = vrot.slane %v5503, %v5892
  %v5894 = vsel %vm2627, %v5893, %v5889
  %v5895 = vlaneseq
  %v5896 = vshrl.u32 %v5895, 7
  %v5897 = vsub.s32 %v2629, %v5896
  %v5898 = vrot.slane %v5506, %v5897
  %v5899 = vsel %vm2634, %v5898, %v5894
  %v5900 = vlaneseq
  %v5901 = vshrl.u32 %v5900, 7
  %v5902 = vsub.s32 %v2636, %v5901
  %v5903 = vrot.slane %v5509, %v5902
  %v5904 = vsel %vm2641, %v5903, %v5899
  %v5905 = vlaneseq
  %v5906 = vshrl.u32 %v5905, 7
  %v5907 = vsub.s32 %v2643, %v5906
  %v5908 = vrot.slane %v5512, %v5907
  %v5909 = vsel %vm2648, %v5908, %v5904
  %v5910 = vlaneseq
  %v5911 = vshrl.u32 %v5910, 7
  %v5912 = vsub.s32 %v2650, %v5911
  %v5913 = vrot.slane %v5515, %v5912
  %v5914 = vsel %vm2655, %v5913, %v5909
  %v5915 = vlaneseq
  %v5916 = vshrl.u32 %v5915, 7
  %v5917 = vsub.s32 %v2603, %v5916
  %v5918 = vrot.slane %v5518, %v5917
  %v5919 = vlaneseq
  %v5920 = vshrl.u32 %v5919, 7
  %v5921 = vsub.s32 %v2608, %v5920
  %v5922 = vrot.slane %v5521, %v5921
  %v5923 = vsel %vm2613, %v5922, %v5918
  %v5924 = vlaneseq
  %v5925 = vshrl.u32 %v5924, 7
  %v5926 = vsub.s32 %v2615, %v5925
  %v5927 = vrot.slane %v5524, %v5926
  %v5928 = vsel %vm2620, %v5927, %v5923
  %v5929 = vlaneseq
  %v5930 = vshrl.u32 %v5929, 7
  %v5931 = vsub.s32 %v2622, %v5930
  %v5932 = vrot.slane %v5527, %v5931
  %v5933 = vsel %vm2627, %v5932, %v5928
  %v5934 = vlaneseq
  %v5935 = vshrl.u32 %v5934, 7
  %v5936 = vsub.s32 %v2629, %v5935
  %v5937 = vrot.slane %v5530, %v5936
  %v5938 = vsel %vm2634, %v5937, %v5933
  %v5939 = vlaneseq
  %v5940 = vshrl.u32 %v5939, 7
  %v5941 = vsub.s32 %v2636, %v5940
  %v5942 = vrot.slane %v5533, %v5941
  %v5943 = vsel %vm2641, %v5942, %v5938
  %v5944 = vlaneseq
  %v5945 = vshrl.u32 %v5944, 7
  %v5946 = vsub.s32 %v2643, %v5945
  %v5947 = vrot.slane %v5536, %v5946
  %v5948 = vsel %vm2648, %v5947, %v5943
  %v5949 = vlaneseq
  %v5950 = vshrl.u32 %v5949, 7
  %v5951 = vsub.s32 %v2650, %v5950
  %v5952 = vrot.slane %v5539, %v5951
  %v5953 = vsel %vm2655, %v5952, %v5948
  %v5954 = vlaneseq
  %v5955 = vshrl.u32 %v5954, 7
  %v5956 = vsub.s32 %v2603, %v5955
  %v5957 = vrot.slane %v5542, %v5956
  %v5958 = vlaneseq
  %v5959 = vshrl.u32 %v5958, 7
  %v5960 = vsub.s32 %v2608, %v5959
  %v5961 = vrot.slane %v5545, %v5960
  %v5962 = vsel %vm2613, %v5961, %v5957
  %v5963 = vlaneseq
  %v5964 = vshrl.u32 %v5963, 7
  %v5965 = vsub.s32 %v2615, %v5964
  %v5966 = vrot.slane %v5548, %v5965
  %v5967 = vsel %vm2620, %v5966, %v5962
  %v5968 = vlaneseq
  %v5969 = vshrl.u32 %v5968, 7
  %v5970 = vsub.s32 %v2622, %v5969
  %v5971 = vrot.slane %v5551, %v5970
  %v5972 = vsel %vm2627, %v5971, %v5967
  %v5973 = vlaneseq
  %v5974 = vshrl.u32 %v5973, 7
  %v5975 = vsub.s32 %v2629, %v5974
  %v5976 = vrot.slane %v5554, %v5975
  %v5977 = vsel %vm2634, %v5976, %v5972
  %v5978 = vlaneseq
  %v5979 = vshrl.u32 %v5978, 7
  %v5980 = vsub.s32 %v2636, %v5979
  %v5981 = vrot.slane %v5557, %v5980
  %v5982 = vsel %vm2641, %v5981, %v5977
  %v5983 = vlaneseq
  %v5984 = vshrl.u32 %v5983, 7
  %v5985 = vsub.s32 %v2643, %v5984
  %v5986 = vrot.slane %v5560, %v5985
  %v5987 = vsel %vm2648, %v5986, %v5982
  %v5988 = vlaneseq
  %v5989 = vshrl.u32 %v5988, 7
  %v5990 = vsub.s32 %v2650, %v5989
  %v5991 = vrot.slane %v5563, %v5990
  %v5992 = vsel %vm2655, %v5991, %v5987
  %v5993 = vlaneseq
  %v5994 = vshrl.u32 %v5993, 7
  %v5995 = vsub.s32 %v2603, %v5994
  %v5996 = vrot.slane %v5566, %v5995
  %v5997 = vlaneseq
  %v5998 = vshrl.u32 %v5997, 7
  %v5999 = vsub.s32 %v2608, %v5998
  %v6000 = vrot.slane %v5569, %v5999
  %v6001 = vsel %vm2613, %v6000, %v5996
  %v6002 = vlaneseq
  %v6003 = vshrl.u32 %v6002, 7
  %v6004 = vsub.s32 %v2615, %v6003
  %v6005 = vrot.slane %v5572, %v6004
  %v6006 = vsel %vm2620, %v6005, %v6001
  %v6007 = vlaneseq
  %v6008 = vshrl.u32 %v6007, 7
  %v6009 = vsub.s32 %v2622, %v6008
  %v6010 = vrot.slane %v5575, %v6009
  %v6011 = vsel %vm2627, %v6010, %v6006
  %v6012 = vlaneseq
  %v6013 = vshrl.u32 %v6012, 7
  %v6014 = vsub.s32 %v2629, %v6013
  %v6015 = vrot.slane %v5578, %v6014
  %v6016 = vsel %vm2634, %v6015, %v6011
  %v6017 = vlaneseq
  %v6018 = vshrl.u32 %v6017, 7
  %v6019 = vsub.s32 %v2636, %v6018
  %v6020 = vrot.slane %v5581, %v6019
  %v6021 = vsel %vm2641, %v6020, %v6016
  %v6022 = vlaneseq
  %v6023 = vshrl.u32 %v6022, 7
  %v6024 = vsub.s32 %v2643, %v6023
  %v6025 = vrot.slane %v5584, %v6024
  %v6026 = vsel %vm2648, %v6025, %v6021
  %v6027 = vlaneseq
  %v6028 = vshrl.u32 %v6027, 7
  %v6029 = vsub.s32 %v2650, %v6028
  %v6030 = vrot.slane %v5587, %v6029
  %v6031 = vsel %vm2655, %v6030, %v6026
  %v6032 = vlaneseq
  %v6033 = vshrl.u32 %v6032, 7
  %v6034 = vsub.s32 %v2603, %v6033
  %v6035 = vrot.slane %v5590, %v6034
  %v6036 = vlaneseq
  %v6037 = vshrl.u32 %v6036, 7
  %v6038 = vsub.s32 %v2608, %v6037
  %v6039 = vrot.slane %v5593, %v6038
  %v6040 = vsel %vm2613, %v6039, %v6035
  %v6041 = vlaneseq
  %v6042 = vshrl.u32 %v6041, 7
  %v6043 = vsub.s32 %v2615, %v6042
  %v6044 = vrot.slane %v5596, %v6043
  %v6045 = vsel %vm2620, %v6044, %v6040
  %v6046 = vlaneseq
  %v6047 = vshrl.u32 %v6046, 7
  %v6048 = vsub.s32 %v2622, %v6047
  %v6049 = vrot.slane %v5599, %v6048
  %v6050 = vsel %vm2627, %v6049, %v6045
  %v6051 = vlaneseq
  %v6052 = vshrl.u32 %v6051, 7
  %v6053 = vsub.s32 %v2629, %v6052
  %v6054 = vrot.slane %v5602, %v6053
  %v6055 = vsel %vm2634, %v6054, %v6050
  %v6056 = vlaneseq
  %v6057 = vshrl.u32 %v6056, 7
  %v6058 = vsub.s32 %v2636, %v6057
  %v6059 = vrot.slane %v5605, %v6058
  %v6060 = vsel %vm2641, %v6059, %v6055
  %v6061 = vlaneseq
  %v6062 = vshrl.u32 %v6061, 7
  %v6063 = vsub.s32 %v2643, %v6062
  %v6064 = vrot.slane %v5608, %v6063
  %v6065 = vsel %vm2648, %v6064, %v6060
  %v6066 = vlaneseq
  %v6067 = vshrl.u32 %v6066, 7
  %v6068 = vsub.s32 %v2650, %v6067
  %v6069 = vrot.slane %v5611, %v6068
  %v6070 = vsel %vm2655, %v6069, %v6065
  %v6071 = vlaneseq
  %v6072 = vshrl.u32 %v6071, 7
  %v6073 = vsub.s32 %v2603, %v6072
  %v6074 = vrot.slane %v5614, %v6073
  %v6075 = vlaneseq
  %v6076 = vshrl.u32 %v6075, 7
  %v6077 = vsub.s32 %v2608, %v6076
  %v6078 = vrot.slane %v5617, %v6077
  %v6079 = vsel %vm2613, %v6078, %v6074
  %v6080 = vlaneseq
  %v6081 = vshrl.u32 %v6080, 7
  %v6082 = vsub.s32 %v2615, %v6081
  %v6083 = vrot.slane %v5620, %v6082
  %v6084 = vsel %vm2620, %v6083, %v6079
  %v6085 = vlaneseq
  %v6086 = vshrl.u32 %v6085, 7
  %v6087 = vsub.s32 %v2622, %v6086
  %v6088 = vrot.slane %v5623, %v6087
  %v6089 = vsel %vm2627, %v6088, %v6084
  %v6090 = vlaneseq
  %v6091 = vshrl.u32 %v6090, 7
  %v6092 = vsub.s32 %v2629, %v6091
  %v6093 = vrot.slane %v5626, %v6092
  %v6094 = vsel %vm2634, %v6093, %v6089
  %v6095 = vlaneseq
  %v6096 = vshrl.u32 %v6095, 7
  %v6097 = vsub.s32 %v2636, %v6096
  %v6098 = vrot.slane %v5629, %v6097
  %v6099 = vsel %vm2641, %v6098, %v6094
  %v6100 = vlaneseq
  %v6101 = vshrl.u32 %v6100, 7
  %v6102 = vsub.s32 %v2643, %v6101
  %v6103 = vrot.slane %v5632, %v6102
  %v6104 = vsel %vm2648, %v6103, %v6099
  %v6105 = vlaneseq
  %v6106 = vshrl.u32 %v6105, 7
  %v6107 = vsub.s32 %v2650, %v6106
  %v6108 = vrot.slane %v5635, %v6107
  %v6109 = vsel %vm2655, %v6108, %v6104
  %v6110 = vlaneseq
  %v6111 = vshrl.u32 %v6110, 7
  %v6112 = vsub.s32 %v2603, %v6111
  %v6113 = vrot.slane %v5638, %v6112
  %v6114 = vlaneseq
  %v6115 = vshrl.u32 %v6114, 7
  %v6116 = vsub.s32 %v2608, %v6115
  %v6117 = vrot.slane %v5641, %v6116
  %v6118 = vsel %vm2613, %v6117, %v6113
  %v6119 = vlaneseq
  %v6120 = vshrl.u32 %v6119, 7
  %v6121 = vsub.s32 %v2615, %v6120
  %v6122 = vrot.slane %v5644, %v6121
  %v6123 = vsel %vm2620, %v6122, %v6118
  %v6124 = vlaneseq
  %v6125 = vshrl.u32 %v6124, 7
  %v6126 = vsub.s32 %v2622, %v6125
  %v6127 = vrot.slane %v5647, %v6126
  %v6128 = vsel %vm2627, %v6127, %v6123
  %v6129 = vlaneseq
  %v6130 = vshrl.u32 %v6129, 7
  %v6131 = vsub.s32 %v2629, %v6130
  %v6132 = vrot.slane %v5650, %v6131
  %v6133 = vsel %vm2634, %v6132, %v6128
  %v6134 = vlaneseq
  %v6135 = vshrl.u32 %v6134, 7
  %v6136 = vsub.s32 %v2636, %v6135
  %v6137 = vrot.slane %v5653, %v6136
  %v6138 = vsel %vm2641, %v6137, %v6133
  %v6139 = vlaneseq
  %v6140 = vshrl.u32 %v6139, 7
  %v6141 = vsub.s32 %v2643, %v6140
  %v6142 = vrot.slane %v5656, %v6141
  %v6143 = vsel %vm2648, %v6142, %v6138
  %v6144 = vlaneseq
  %v6145 = vshrl.u32 %v6144, 7
  %v6146 = vsub.s32 %v2650, %v6145
  %v6147 = vrot.slane %v5659, %v6146
  %v6148 = vsel %vm2655, %v6147, %v6143
  %v6149 = vlaneseq
  %v6150 = vshrl.u32 %v6149, 7
  %v6151 = vsub.s32 %v2603, %v6150
  %v6152 = vrot.slane %v5662, %v6151
  %v6153 = vlaneseq
  %v6154 = vshrl.u32 %v6153, 7
  %v6155 = vsub.s32 %v2608, %v6154
  %v6156 = vrot.slane %v5665, %v6155
  %v6157 = vsel %vm2613, %v6156, %v6152
  %v6158 = vlaneseq
  %v6159 = vshrl.u32 %v6158, 7
  %v6160 = vsub.s32 %v2615, %v6159
  %v6161 = vrot.slane %v5668, %v6160
  %v6162 = vsel %vm2620, %v6161, %v6157
  %v6163 = vlaneseq
  %v6164 = vshrl.u32 %v6163, 7
  %v6165 = vsub.s32 %v2622, %v6164
  %v6166 = vrot.slane %v5671, %v6165
  %v6167 = vsel %vm2627, %v6166, %v6162
  %v6168 = vlaneseq
  %v6169 = vshrl.u32 %v6168, 7
  %v6170 = vsub.s32 %v2629, %v6169
  %v6171 = vrot.slane %v5674, %v6170
  %v6172 = vsel %vm2634, %v6171, %v6167
  %v6173 = vlaneseq
  %v6174 = vshrl.u32 %v6173, 7
  %v6175 = vsub.s32 %v2636, %v6174
  %v6176 = vrot.slane %v5677, %v6175
  %v6177 = vsel %vm2641, %v6176, %v6172
  %v6178 = vlaneseq
  %v6179 = vshrl.u32 %v6178, 7
  %v6180 = vsub.s32 %v2643, %v6179
  %v6181 = vrot.slane %v5680, %v6180
  %v6182 = vsel %vm2648, %v6181, %v6177
  %v6183 = vlaneseq
  %v6184 = vshrl.u32 %v6183, 7
  %v6185 = vsub.s32 %v2650, %v6184
  %v6186 = vrot.slane %v5683, %v6185
  %v6187 = vsel %vm2655, %v6186, %v6182
  %v6188 = vlaneseq
  %v6189 = vshrl.u32 %v6188, 7
  %v6190 = vsub.s32 %v2603, %v6189
  %v6191 = vrot.slane %v5686, %v6190
  %v6192 = vlaneseq
  %v6193 = vshrl.u32 %v6192, 7
  %v6194 = vsub.s32 %v2608, %v6193
  %v6195 = vrot.slane %v5689, %v6194
  %v6196 = vsel %vm2613, %v6195, %v6191
  %v6197 = vlaneseq
  %v6198 = vshrl.u32 %v6197, 7
  %v6199 = vsub.s32 %v2615, %v6198
  %v6200 = vrot.slane %v5692, %v6199
  %v6201 = vsel %vm2620, %v6200, %v6196
  %v6202 = vlaneseq
  %v6203 = vshrl.u32 %v6202, 7
  %v6204 = vsub.s32 %v2622, %v6203
  %v6205 = vrot.slane %v5695, %v6204
  %v6206 = vsel %vm2627, %v6205, %v6201
  %v6207 = vlaneseq
  %v6208 = vshrl.u32 %v6207, 7
  %v6209 = vsub.s32 %v2629, %v6208
  %v6210 = vrot.slane %v5698, %v6209
  %v6211 = vsel %vm2634, %v6210, %v6206
  %v6212 = vlaneseq
  %v6213 = vshrl.u32 %v6212, 7
  %v6214 = vsub.s32 %v2636, %v6213
  %v6215 = vrot.slane %v5701, %v6214
  %v6216 = vsel %vm2641, %v6215, %v6211
  %v6217 = vlaneseq
  %v6218 = vshrl.u32 %v6217, 7
  %v6219 = vsub.s32 %v2643, %v6218
  %v6220 = vrot.slane %v5704, %v6219
  %v6221 = vsel %vm2648, %v6220, %v6216
  %v6222 = vlaneseq
  %v6223 = vshrl.u32 %v6222, 7
  %v6224 = vsub.s32 %v2650, %v6223
  %v6225 = vrot.slane %v5707, %v6224
  %v6226 = vsel %vm2655, %v6225, %v6221
  %v6227 = vlaneseq
  %v6228 = vshrl.u32 %v6227, 7
  %v6229 = vsub.s32 %v2603, %v6228
  %v6230 = vrot.slane %v5710, %v6229
  %v6231 = vlaneseq
  %v6232 = vshrl.u32 %v6231, 7
  %v6233 = vsub.s32 %v2608, %v6232
  %v6234 = vrot.slane %v5713, %v6233
  %v6235 = vsel %vm2613, %v6234, %v6230
  %v6236 = vlaneseq
  %v6237 = vshrl.u32 %v6236, 7
  %v6238 = vsub.s32 %v2615, %v6237
  %v6239 = vrot.slane %v5716, %v6238
  %v6240 = vsel %vm2620, %v6239, %v6235
  %v6241 = vlaneseq
  %v6242 = vshrl.u32 %v6241, 7
  %v6243 = vsub.s32 %v2622, %v6242
  %v6244 = vrot.slane %v5719, %v6243
  %v6245 = vsel %vm2627, %v6244, %v6240
  %v6246 = vlaneseq
  %v6247 = vshrl.u32 %v6246, 7
  %v6248 = vsub.s32 %v2629, %v6247
  %v6249 = vrot.slane %v5722, %v6248
  %v6250 = vsel %vm2634, %v6249, %v6245
  %v6251 = vlaneseq
  %v6252 = vshrl.u32 %v6251, 7
  %v6253 = vsub.s32 %v2636, %v6252
  %v6254 = vrot.slane %v5725, %v6253
  %v6255 = vsel %vm2641, %v6254, %v6250
  %v6256 = vlaneseq
  %v6257 = vshrl.u32 %v6256, 7
  %v6258 = vsub.s32 %v2643, %v6257
  %v6259 = vrot.slane %v5728, %v6258
  %v6260 = vsel %vm2648, %v6259, %v6255
  %v6261 = vlaneseq
  %v6262 = vshrl.u32 %v6261, 7
  %v6263 = vsub.s32 %v2650, %v6262
  %v6264 = vrot.slane %v5731, %v6263
  %v6265 = vsel %vm2655, %v6264, %v6260
  %v6266 = vlaneseq
  %v6267 = vshrl.u32 %v6266, 7
  %v6268 = vsub.s32 %v2603, %v6267
  %v6269 = vrot.slane %v5734, %v6268
  %v6270 = vlaneseq
  %v6271 = vshrl.u32 %v6270, 7
  %v6272 = vsub.s32 %v2608, %v6271
  %v6273 = vrot.slane %v5737, %v6272
  %v6274 = vsel %vm2613, %v6273, %v6269
  %v6275 = vlaneseq
  %v6276 = vshrl.u32 %v6275, 7
  %v6277 = vsub.s32 %v2615, %v6276
  %v6278 = vrot.slane %v5740, %v6277
  %v6279 = vsel %vm2620, %v6278, %v6274
  %v6280 = vlaneseq
  %v6281 = vshrl.u32 %v6280, 7
  %v6282 = vsub.s32 %v2622, %v6281
  %v6283 = vrot.slane %v5743, %v6282
  %v6284 = vsel %vm2627, %v6283, %v6279
  %v6285 = vlaneseq
  %v6286 = vshrl.u32 %v6285, 7
  %v6287 = vsub.s32 %v2629, %v6286
  %v6288 = vrot.slane %v5746, %v6287
  %v6289 = vsel %vm2634, %v6288, %v6284
  %v6290 = vlaneseq
  %v6291 = vshrl.u32 %v6290, 7
  %v6292 = vsub.s32 %v2636, %v6291
  %v6293 = vrot.slane %v5749, %v6292
  %v6294 = vsel %vm2641, %v6293, %v6289
  %v6295 = vlaneseq
  %v6296 = vshrl.u32 %v6295, 7
  %v6297 = vsub.s32 %v2643, %v6296
  %v6298 = vrot.slane %v5752, %v6297
  %v6299 = vsel %vm2648, %v6298, %v6294
  %v6300 = vlaneseq
  %v6301 = vshrl.u32 %v6300, 7
  %v6302 = vsub.s32 %v2650, %v6301
  %v6303 = vrot.slane %v5755, %v6302
  %v6304 = vsel %vm2655, %v6303, %v6299
  %v6305 = vlaneseq
  %v6306 = vshrl.u32 %v6305, 7
  %v6307 = vsub.s32 %v2603, %v6306
  %v6308 = vrot.slane %v5758, %v6307
  %v6309 = vlaneseq
  %v6310 = vshrl.u32 %v6309, 7
  %v6311 = vsub.s32 %v2608, %v6310
  %v6312 = vrot.slane %v5761, %v6311
  %v6313 = vsel %vm2613, %v6312, %v6308
  %v6314 = vlaneseq
  %v6315 = vshrl.u32 %v6314, 7
  %v6316 = vsub.s32 %v2615, %v6315
  %v6317 = vrot.slane %v5764, %v6316
  %v6318 = vsel %vm2620, %v6317, %v6313
  %v6319 = vlaneseq
  %v6320 = vshrl.u32 %v6319, 7
  %v6321 = vsub.s32 %v2622, %v6320
  %v6322 = vrot.slane %v5767, %v6321
  %v6323 = vsel %vm2627, %v6322, %v6318
  %v6324 = vlaneseq
  %v6325 = vshrl.u32 %v6324, 7
  %v6326 = vsub.s32 %v2629, %v6325
  %v6327 = vrot.slane %v5770, %v6326
  %v6328 = vsel %vm2634, %v6327, %v6323
  %v6329 = vlaneseq
  %v6330 = vshrl.u32 %v6329, 7
  %v6331 = vsub.s32 %v2636, %v6330
  %v6332 = vrot.slane %v5773, %v6331
  %v6333 = vsel %vm2641, %v6332, %v6328
  %v6334 = vlaneseq
  %v6335 = vshrl.u32 %v6334, 7
  %v6336 = vsub.s32 %v2643, %v6335
  %v6337 = vrot.slane %v5776, %v6336
  %v6338 = vsel %vm2648, %v6337, %v6333
  %v6339 = vlaneseq
  %v6340 = vshrl.u32 %v6339, 7
  %v6341 = vsub.s32 %v2650, %v6340
  %v6342 = vrot.slane %v5779, %v6341
  %v6343 = vsel %vm2655, %v6342, %v6338
  %v6344 = vlaneseq
  %v6345 = vshrl.u32 %v6344, 7
  %v6346 = vsub.s32 %v2603, %v6345
  %v6347 = vrot.slane %v5782, %v6346
  %v6348 = vlaneseq
  %v6349 = vshrl.u32 %v6348, 7
  %v6350 = vsub.s32 %v2608, %v6349
  %v6351 = vrot.slane %v5785, %v6350
  %v6352 = vsel %vm2613, %v6351, %v6347
  %v6353 = vlaneseq
  %v6354 = vshrl.u32 %v6353, 7
  %v6355 = vsub.s32 %v2615, %v6354
  %v6356 = vrot.slane %v5788, %v6355
  %v6357 = vsel %vm2620, %v6356, %v6352
  %v6358 = vlaneseq
  %v6359 = vshrl.u32 %v6358, 7
  %v6360 = vsub.s32 %v2622, %v6359
  %v6361 = vrot.slane %v5791, %v6360
  %v6362 = vsel %vm2627, %v6361, %v6357
  %v6363 = vlaneseq
  %v6364 = vshrl.u32 %v6363, 7
  %v6365 = vsub.s32 %v2629, %v6364
  %v6366 = vrot.slane %v5794, %v6365
  %v6367 = vsel %vm2634, %v6366, %v6362
  %v6368 = vlaneseq
  %v6369 = vshrl.u32 %v6368, 7
  %v6370 = vsub.s32 %v2636, %v6369
  %v6371 = vrot.slane %v5797, %v6370
  %v6372 = vsel %vm2641, %v6371, %v6367
  %v6373 = vlaneseq
  %v6374 = vshrl.u32 %v6373, 7
  %v6375 = vsub.s32 %v2643, %v6374
  %v6376 = vrot.slane %v5800, %v6375
  %v6377 = vsel %vm2648, %v6376, %v6372
  %v6378 = vlaneseq
  %v6379 = vshrl.u32 %v6378, 7
  %v6380 = vsub.s32 %v2650, %v6379
  %v6381 = vrot.slane %v5803, %v6380
  %v6382 = vsel %vm2655, %v6381, %v6377
  %v6383 = vlaneseq
  %v6384 = vshrl.u32 %v6383, 7
  %v6385 = vsub.s32 %v2603, %v6384
  %v6386 = vrot.slane %v5806, %v6385
  %v6387 = vlaneseq
  %v6388 = vshrl.u32 %v6387, 7
  %v6389 = vsub.s32 %v2608, %v6388
  %v6390 = vrot.slane %v5809, %v6389
  %v6391 = vsel %vm2613, %v6390, %v6386
  %v6392 = vlaneseq
  %v6393 = vshrl.u32 %v6392, 7
  %v6394 = vsub.s32 %v2615, %v6393
  %v6395 = vrot.slane %v5812, %v6394
  %v6396 = vsel %vm2620, %v6395, %v6391
  %v6397 = vlaneseq
  %v6398 = vshrl.u32 %v6397, 7
  %v6399 = vsub.s32 %v2622, %v6398
  %v6400 = vrot.slane %v5815, %v6399
  %v6401 = vsel %vm2627, %v6400, %v6396
  %v6402 = vlaneseq
  %v6403 = vshrl.u32 %v6402, 7
  %v6404 = vsub.s32 %v2629, %v6403
  %v6405 = vrot.slane %v5818, %v6404
  %v6406 = vsel %vm2634, %v6405, %v6401
  %v6407 = vlaneseq
  %v6408 = vshrl.u32 %v6407, 7
  %v6409 = vsub.s32 %v2636, %v6408
  %v6410 = vrot.slane %v5821, %v6409
  %v6411 = vsel %vm2641, %v6410, %v6406
  %v6412 = vlaneseq
  %v6413 = vshrl.u32 %v6412, 7
  %v6414 = vsub.s32 %v2643, %v6413
  %v6415 = vrot.slane %v5824, %v6414
  %v6416 = vsel %vm2648, %v6415, %v6411
  %v6417 = vlaneseq
  %v6418 = vshrl.u32 %v6417, 7
  %v6419 = vsub.s32 %v2650, %v6418
  %v6420 = vrot.slane %v5827, %v6419
  %v6421 = vsel %vm2655, %v6420, %v6416
  %v6422 = vlaneseq
  %v6423 = vshrl.u32 %v6422, 7
  %v6424 = vsub.s32 %v2603, %v6423
  %v6425 = vrot.slane %v5830, %v6424
  %v6426 = vlaneseq
  %v6427 = vshrl.u32 %v6426, 7
  %v6428 = vsub.s32 %v2608, %v6427
  %v6429 = vrot.slane %v5833, %v6428
  %v6430 = vsel %vm2613, %v6429, %v6425
  %v6431 = vlaneseq
  %v6432 = vshrl.u32 %v6431, 7
  %v6433 = vsub.s32 %v2615, %v6432
  %v6434 = vrot.slane %v5836, %v6433
  %v6435 = vsel %vm2620, %v6434, %v6430
  %v6436 = vlaneseq
  %v6437 = vshrl.u32 %v6436, 7
  %v6438 = vsub.s32 %v2622, %v6437
  %v6439 = vrot.slane %v5839, %v6438
  %v6440 = vsel %vm2627, %v6439, %v6435
  %v6441 = vlaneseq
  %v6442 = vshrl.u32 %v6441, 7
  %v6443 = vsub.s32 %v2629, %v6442
  %v6444 = vrot.slane %v5842, %v6443
  %v6445 = vsel %vm2634, %v6444, %v6440
  %v6446 = vlaneseq
  %v6447 = vshrl.u32 %v6446, 7
  %v6448 = vsub.s32 %v2636, %v6447
  %v6449 = vrot.slane %v5845, %v6448
  %v6450 = vsel %vm2641, %v6449, %v6445
  %v6451 = vlaneseq
  %v6452 = vshrl.u32 %v6451, 7
  %v6453 = vsub.s32 %v2643, %v6452
  %v6454 = vrot.slane %v5848, %v6453
  %v6455 = vsel %vm2648, %v6454, %v6450
  %v6456 = vlaneseq
  %v6457 = vshrl.u32 %v6456, 7
  %v6458 = vsub.s32 %v2650, %v6457
  %v6459 = vrot.slane %v5851, %v6458
  %v6460 = vsel %vm2655, %v6459, %v6455
  %v6461 = vlaneseq
  %v6462 = vshrl.u32 %v6461, 7
  %v6463 = vsub.s32 %v2603, %v6462
  %v6464 = vrot.slane %v5854, %v6463
  %v6465 = vlaneseq
  %v6466 = vshrl.u32 %v6465, 7
  %v6467 = vsub.s32 %v2608, %v6466
  %v6468 = vrot.slane %v5857, %v6467
  %v6469 = vsel %vm2613, %v6468, %v6464
  %v6470 = vlaneseq
  %v6471 = vshrl.u32 %v6470, 7
  %v6472 = vsub.s32 %v2615, %v6471
  %v6473 = vrot.slane %v5860, %v6472
  %v6474 = vsel %vm2620, %v6473, %v6469
  %v6475 = vlaneseq
  %v6476 = vshrl.u32 %v6475, 7
  %v6477 = vsub.s32 %v2622, %v6476
  %v6478 = vrot.slane %v5863, %v6477
  %v6479 = vsel %vm2627, %v6478, %v6474
  %v6480 = vlaneseq
  %v6481 = vshrl.u32 %v6480, 7
  %v6482 = vsub.s32 %v2629, %v6481
  %v6483 = vrot.slane %v5866, %v6482
  %v6484 = vsel %vm2634, %v6483, %v6479
  %v6485 = vlaneseq
  %v6486 = vshrl.u32 %v6485, 7
  %v6487 = vsub.s32 %v2636, %v6486
  %v6488 = vrot.slane %v5869, %v6487
  %v6489 = vsel %vm2641, %v6488, %v6484
  %v6490 = vlaneseq
  %v6491 = vshrl.u32 %v6490, 7
  %v6492 = vsub.s32 %v2643, %v6491
  %v6493 = vrot.slane %v5872, %v6492
  %v6494 = vsel %vm2648, %v6493, %v6489
  %v6495 = vlaneseq
  %v6496 = vshrl.u32 %v6495, 7
  %v6497 = vsub.s32 %v2650, %v6496
  %v6498 = vrot.slane %v5875, %v6497
  %v6499 = vsel %vm2655, %v6498, %v6494
  %v6500 = vsel %vm3242, %v5953, %v5914
  %v6501 = vsel %vm3244, %v5992, %v6500
  %v6502 = vsel %vm3246, %v6031, %v6501
  %v6503 = vsel %vm3248, %v6070, %v6502
  %v6504 = vsel %vm3250, %v6109, %v6503
  %v6505 = vsel %vm3252, %v6148, %v6504
  %v6506 = vsel %vm3254, %v6187, %v6505
  %v6507 = vsel %vm3242, %v6265, %v6226
  %v6508 = vsel %vm3244, %v6304, %v6507
  %v6509 = vsel %vm3246, %v6343, %v6508
  %v6510 = vsel %vm3248, %v6382, %v6509
  %v6511 = vsel %vm3250, %v6421, %v6510
  %v6512 = vsel %vm3252, %v6460, %v6511
  %v6513 = vsel %vm3254, %v6499, %v6512
  %v6514 = vpack.c.b16 %v6513, %v6506
  %v6531 = vunpack.c.l.b16 %v255
  %v6532 = vunpack.c.h.b16 %v255
  %v6533 = vunpack.c.l.b16 %v256
  %v6534 = vunpack.c.h.b16 %v256
  %v6535 = vunpack.c.l.b16 %v257
  %v6536 = vunpack.c.h.b16 %v257
  %v6537 = vunpack.c.l.b16 %v258
  %v6538 = vunpack.c.h.b16 %v258
  %v6539 = vunpack.c.l.b16 %v259
  %v6540 = vunpack.c.h.b16 %v259
  %v6541 = vunpack.c.l.b16 %v260
  %v6542 = vunpack.c.h.b16 %v260
  %v6543 = vunpack.c.l.b16 %v261
  %v6544 = vunpack.c.h.b16 %v261
  %v6545 = vunpack.c.l.b16 %v262
  %v6546 = vunpack.c.h.b16 %v262
  %v6547 = vunpack.c.l.b16 %v263
  %v6548 = vunpack.c.h.b16 %v263
  %v6549 = vunpack.c.l.b16 %v264
  %v6550 = vunpack.c.h.b16 %v264
  %v6551 = vunpack.c.l.b16 %v265
  %v6552 = vunpack.c.h.b16 %v265
  %v6553 = vunpack.c.l.b16 %v266
  %v6554 = vunpack.c.h.b16 %v266
  %v6555 = vunpack.c.l.b16 %v267
  %v6556 = vunpack.c.h.b16 %v267
  %v6557 = vunpack.c.l.b16 %v268
  %v6558 = vunpack.c.h.b16 %v268
  %v6559 = vunpack.c.l.b16 %v269
  %v6560 = vunpack.c.h.b16 %v269
  %v6561 = vunpack.c.l.b16 %v270
  %v6562 = vunpack.c.h.b16 %v270
  %v6563 = vpack.c.b16 %v6535, %v6531
  %v6564 = vpack.c.b16 %v6536, %v6532
  %v6565 = vpack.c.b16 %v6537, %v6533
  %v6566 = vpack.c.b16 %v6538, %v6534
  %v6567 = vpack.c.b16 %v6543, %v6539
  %v6568 = vpack.c.b16 %v6544, %v6540
  %v6569 = vpack.c.b16 %v6545, %v6541
  %v6570 = vpack.c.b16 %v6546, %v6542
  %v6571 = vpack.c.b16 %v6551, %v6547
  %v6572 = vpack.c.b16 %v6552, %v6548
  %v6573 = vpack.c.b16 %v6553, %v6549
  %v6574 = vpack.c.b16 %v6554, %v6550
  %v6575 = vpack.c.b16 %v6559, %v6555
  %v6576 = vpack.c.b16 %v6560, %v6556
  %v6577 = vpack.c.b16 %v6561, %v6557
  %v6578 = vpack.c.b16 %v6562, %v6558
  %v6596 = vsel %vm3265, %v6514, 0
  %6598 = vmatprep.subr.bf16.mxu0 %v6564
  %6599 = vmatpush1.bf16.msra.mxu0 %v6563
  %6600 = vmatprep.subr.bf16.mxu0 %v6568
  %6601 = vmatpush1.bf16.msra.mxu0 %v6567
  %6602 = vmatprep.subr.bf16.mxu0 %v6572
  %6603 = vmatpush1.bf16.msra.mxu0 %v6571
  %6604 = vmatprep.subr.bf16.mxu0 %v6576
  %6605 = vmatpush1.bf16.msra.mxu0 %v6575
  %6606 = vmatprep.subr.bf16.mxu0 0
  %6607 = vmatpush1.bf16.msra.mxu0 0
  %6608 = vmatprep.subr.bf16.mxu0 0
  %6609 = vmatpush1.bf16.msra.mxu0 0
  %6610 = vmatprep.subr.bf16.mxu0 0
  %6611 = vmatpush1.bf16.msra.mxu0 0
  %6612 = vmatprep.subr.bf16.mxu0 0
  %6613 = vmatpush1.bf16.msra.mxu0 0
  %6614 = vmatprep.subr.bf16.mxu0 0
  %6615 = vmatpush1.bf16.msra.mxu0 0
  %6616 = vmatprep.subr.bf16.mxu0 0
  %6617 = vmatpush1.bf16.msra.mxu0 0
  %6618 = vmatprep.subr.bf16.mxu0 0
  %6619 = vmatpush1.bf16.msra.mxu0 0
  %6620 = vmatprep.subr.bf16.mxu0 0
  %6621 = vmatpush1.bf16.msra.mxu0 0
  %6622 = vmatprep.subr.bf16.mxu0 0
  %6623 = vmatpush1.bf16.msra.mxu0 0
  %6624 = vmatprep.subr.bf16.mxu0 0
  %6625 = vmatpush1.bf16.msra.mxu0 0
  %6626 = vmatprep.subr.bf16.mxu0 0
  %6627 = vmatpush1.bf16.msra.mxu0 0
  %6628 = vmatprep.subr.bf16.mxu0 0
  %6629 = vmatpush1.bf16.msra.mxu0 0
  %6630 = vmatprep.mubr.bf16.mxu0 0
  %6631 = vmatmul.mubr.bf16.gmra.mrb[0].mxu0 %v6596
  %v6632 = vpop.f32.mrb[0].mxu0
  %v6633 = vadd.f32 0.0, %v6632
  %v6634 = vpop.f32.mrb[0].mxu0
  %v6635 = vadd.f32 0.0, %v6634
  %v6636 = vpop.f32.mrb[0].mxu0
  %v6637 = vadd.f32 0.0, %v6636
  %v6638 = vpop.f32.mrb[0].mxu0
  %v6639 = vadd.f32 0.0, %v6638
  %6640 = vdwg.mxu0
  %6641 = vmatprep.subr.bf16.mxu0 %v6566
  %6642 = vmatpush1.bf16.msra.mxu0 %v6565
  %6643 = vmatprep.subr.bf16.mxu0 %v6570
  %6644 = vmatpush1.bf16.msra.mxu0 %v6569
  %6645 = vmatprep.subr.bf16.mxu0 %v6574
  %6646 = vmatpush1.bf16.msra.mxu0 %v6573
  %6647 = vmatprep.subr.bf16.mxu0 %v6578
  %6648 = vmatpush1.bf16.msra.mxu0 %v6577
  %6649 = vmatprep.subr.bf16.mxu0 0
  %6650 = vmatpush1.bf16.msra.mxu0 0
  %6651 = vmatprep.subr.bf16.mxu0 0
  %6652 = vmatpush1.bf16.msra.mxu0 0
  %6653 = vmatprep.subr.bf16.mxu0 0
  %6654 = vmatpush1.bf16.msra.mxu0 0
  %6655 = vmatprep.subr.bf16.mxu0 0
  %6656 = vmatpush1.bf16.msra.mxu0 0
  %6657 = vmatprep.subr.bf16.mxu0 0
  %6658 = vmatpush1.bf16.msra.mxu0 0
  %6659 = vmatprep.subr.bf16.mxu0 0
  %6660 = vmatpush1.bf16.msra.mxu0 0
  %6661 = vmatprep.subr.bf16.mxu0 0
  %6662 = vmatpush1.bf16.msra.mxu0 0
  %6663 = vmatprep.subr.bf16.mxu0 0
  %6664 = vmatpush1.bf16.msra.mxu0 0
  %6665 = vmatprep.subr.bf16.mxu0 0
  %6666 = vmatpush1.bf16.msra.mxu0 0
  %6667 = vmatprep.subr.bf16.mxu0 0
  %6668 = vmatpush1.bf16.msra.mxu0 0
  %6669 = vmatprep.subr.bf16.mxu0 0
  %6670 = vmatpush1.bf16.msra.mxu0 0
  %6671 = vmatprep.subr.bf16.mxu0 0
  %6672 = vmatpush1.bf16.msra.mxu0 0
  %6673 = vmatprep.mubr.bf16.mxu0 0
  %6674 = vmatmul.mubr.bf16.gmra.mrb[0].mxu0 %v6596
  %v6675 = vpop.f32.mrb[0].mxu0
  %v6676 = vadd.f32 0.0, %v6675
  %v6677 = vpop.f32.mrb[0].mxu0
  %v6678 = vadd.f32 0.0, %v6677
  %v6679 = vpop.f32.mrb[0].mxu0
  %v6680 = vadd.f32 0.0, %v6679
  %v6681 = vpop.f32.mrb[0].mxu0
  %v6682 = vadd.f32 0.0, %v6681
  %6683 = vdwg.mxu0
  %v6686 = vunpack.c.l.b16 %v53
  %v6687 = vunpack.c.l.b16 %v54
  %v6688 = vpack.c.b16 %v6687, %v6686
  %v6722 = vunpack.c.l.b16 %v223
  %v6723 = vunpack.c.h.b16 %v223
  %v6724 = vunpack.c.l.b16 %v224
  %v6725 = vunpack.c.h.b16 %v224
  %v6726 = vunpack.c.l.b16 %v225
  %v6727 = vunpack.c.h.b16 %v225
  %v6728 = vunpack.c.l.b16 %v226
  %v6729 = vunpack.c.h.b16 %v226
  %v6730 = vunpack.c.l.b16 %v227
  %v6731 = vunpack.c.h.b16 %v227
  %v6732 = vunpack.c.l.b16 %v228
  %v6733 = vunpack.c.h.b16 %v228
  %v6734 = vunpack.c.l.b16 %v229
  %v6735 = vunpack.c.h.b16 %v229
  %v6736 = vunpack.c.l.b16 %v230
  %v6737 = vunpack.c.h.b16 %v230
  %v6738 = vunpack.c.l.b16 %v231
  %v6739 = vunpack.c.h.b16 %v231
  %v6740 = vunpack.c.l.b16 %v232
  %v6741 = vunpack.c.h.b16 %v232
  %v6742 = vunpack.c.l.b16 %v233
  %v6743 = vunpack.c.h.b16 %v233
  %v6744 = vunpack.c.l.b16 %v234
  %v6745 = vunpack.c.h.b16 %v234
  %v6746 = vunpack.c.l.b16 %v235
  %v6747 = vunpack.c.h.b16 %v235
  %v6748 = vunpack.c.l.b16 %v236
  %v6749 = vunpack.c.h.b16 %v236
  %v6750 = vunpack.c.l.b16 %v237
  %v6751 = vunpack.c.h.b16 %v237
  %v6752 = vunpack.c.l.b16 %v238
  %v6753 = vunpack.c.h.b16 %v238
  %v6754 = vunpack.c.l.b16 %v239
  %v6755 = vunpack.c.h.b16 %v239
  %v6756 = vunpack.c.l.b16 %v240
  %v6757 = vunpack.c.h.b16 %v240
  %v6758 = vunpack.c.l.b16 %v241
  %v6759 = vunpack.c.h.b16 %v241
  %v6760 = vunpack.c.l.b16 %v242
  %v6761 = vunpack.c.h.b16 %v242
  %v6762 = vunpack.c.l.b16 %v243
  %v6763 = vunpack.c.h.b16 %v243
  %v6764 = vunpack.c.l.b16 %v244
  %v6765 = vunpack.c.h.b16 %v244
  %v6766 = vunpack.c.l.b16 %v245
  %v6767 = vunpack.c.h.b16 %v245
  %v6768 = vunpack.c.l.b16 %v246
  %v6769 = vunpack.c.h.b16 %v246
  %v6770 = vunpack.c.l.b16 %v247
  %v6771 = vunpack.c.h.b16 %v247
  %v6772 = vunpack.c.l.b16 %v248
  %v6773 = vunpack.c.h.b16 %v248
  %v6774 = vunpack.c.l.b16 %v249
  %v6775 = vunpack.c.h.b16 %v249
  %v6776 = vunpack.c.l.b16 %v250
  %v6777 = vunpack.c.h.b16 %v250
  %v6778 = vunpack.c.l.b16 %v251
  %v6779 = vunpack.c.h.b16 %v251
  %v6780 = vunpack.c.l.b16 %v252
  %v6781 = vunpack.c.h.b16 %v252
  %v6782 = vunpack.c.l.b16 %v253
  %v6783 = vunpack.c.h.b16 %v253
  %v6784 = vunpack.c.l.b16 %v254
  %v6785 = vunpack.c.h.b16 %v254
  %v6786 = vpack.c.b16 %v6726, %v6722
  %v6787 = vpack.c.b16 %v6727, %v6723
  %v6788 = vpack.c.b16 %v6728, %v6724
  %v6789 = vpack.c.b16 %v6729, %v6725
  %v6790 = vpack.c.b16 %v6734, %v6730
  %v6791 = vpack.c.b16 %v6735, %v6731
  %v6792 = vpack.c.b16 %v6736, %v6732
  %v6793 = vpack.c.b16 %v6737, %v6733
  %v6794 = vpack.c.b16 %v6742, %v6738
  %v6795 = vpack.c.b16 %v6743, %v6739
  %v6796 = vpack.c.b16 %v6744, %v6740
  %v6797 = vpack.c.b16 %v6745, %v6741
  %v6798 = vpack.c.b16 %v6750, %v6746
  %v6799 = vpack.c.b16 %v6751, %v6747
  %v6800 = vpack.c.b16 %v6752, %v6748
  %v6801 = vpack.c.b16 %v6753, %v6749
  %v6802 = vpack.c.b16 %v6758, %v6754
  %v6803 = vpack.c.b16 %v6759, %v6755
  %v6804 = vpack.c.b16 %v6760, %v6756
  %v6805 = vpack.c.b16 %v6761, %v6757
  %v6806 = vpack.c.b16 %v6766, %v6762
  %v6807 = vpack.c.b16 %v6767, %v6763
  %v6808 = vpack.c.b16 %v6768, %v6764
  %v6809 = vpack.c.b16 %v6769, %v6765
  %v6810 = vpack.c.b16 %v6774, %v6770
  %v6811 = vpack.c.b16 %v6775, %v6771
  %v6812 = vpack.c.b16 %v6776, %v6772
  %v6813 = vpack.c.b16 %v6777, %v6773
  %v6814 = vpack.c.b16 %v6782, %v6778
  %v6815 = vpack.c.b16 %v6783, %v6779
  %v6816 = vpack.c.b16 %v6784, %v6780
  %v6817 = vpack.c.b16 %v6785, %v6781
  %6850 = vmatprep.subr.bf16.mxu0 %v6787
  %6851 = vmatpush1.bf16.msra.mxu0 %v6786
  %6852 = vmatprep.subr.bf16.mxu0 %v6791
  %6853 = vmatpush1.bf16.msra.mxu0 %v6790
  %6854 = vmatprep.subr.bf16.mxu0 %v6795
  %6855 = vmatpush1.bf16.msra.mxu0 %v6794
  %6856 = vmatprep.subr.bf16.mxu0 %v6799
  %6857 = vmatpush1.bf16.msra.mxu0 %v6798
  %6858 = vmatprep.subr.bf16.mxu0 %v6803
  %6859 = vmatpush1.bf16.msra.mxu0 %v6802
  %6860 = vmatprep.subr.bf16.mxu0 %v6807
  %6861 = vmatpush1.bf16.msra.mxu0 %v6806
  %6862 = vmatprep.subr.bf16.mxu0 %v6811
  %6863 = vmatpush1.bf16.msra.mxu0 %v6810
  %6864 = vmatprep.subr.bf16.mxu0 %v6815
  %6865 = vmatpush1.bf16.msra.mxu0 %v6814
  %6866 = vmatprep.subr.bf16.mxu0 0
  %6867 = vmatpush1.bf16.msra.mxu0 0
  %6868 = vmatprep.subr.bf16.mxu0 0
  %6869 = vmatpush1.bf16.msra.mxu0 0
  %6870 = vmatprep.subr.bf16.mxu0 0
  %6871 = vmatpush1.bf16.msra.mxu0 0
  %6872 = vmatprep.subr.bf16.mxu0 0
  %6873 = vmatpush1.bf16.msra.mxu0 0
  %6874 = vmatprep.subr.bf16.mxu0 0
  %6875 = vmatpush1.bf16.msra.mxu0 0
  %6876 = vmatprep.subr.bf16.mxu0 0
  %6877 = vmatpush1.bf16.msra.mxu0 0
  %6878 = vmatprep.subr.bf16.mxu0 0
  %6879 = vmatpush1.bf16.msra.mxu0 0
  %6880 = vmatprep.subr.bf16.mxu0 0
  %6881 = vmatpush1.bf16.msra.mxu0 0
  %6882 = vmatprep.mubr.bf16.mxu0 0
  %6883 = vmatmul.mubr.bf16.gmra.mrb[0].mxu0 %v6688
  %v6884 = vpop.f32.mrb[0].mxu0
  %v6885 = vadd.f32 %v6633, %v6884
  %v6886 = vpop.f32.mrb[0].mxu0
  %v6887 = vadd.f32 %v6635, %v6886
  %v6888 = vpop.f32.mrb[0].mxu0
  %v6889 = vadd.f32 %v6637, %v6888
  %v6890 = vpop.f32.mrb[0].mxu0
  %v6891 = vadd.f32 %v6639, %v6890
  %6892 = vdwg.mxu0
  %6893 = vmatprep.subr.bf16.mxu0 %v6789
  %6894 = vmatpush1.bf16.msra.mxu0 %v6788
  %6895 = vmatprep.subr.bf16.mxu0 %v6793
  %6896 = vmatpush1.bf16.msra.mxu0 %v6792
  %6897 = vmatprep.subr.bf16.mxu0 %v6797
  %6898 = vmatpush1.bf16.msra.mxu0 %v6796
  %6899 = vmatprep.subr.bf16.mxu0 %v6801
  %6900 = vmatpush1.bf16.msra.mxu0 %v6800
  %6901 = vmatprep.subr.bf16.mxu0 %v6805
  %6902 = vmatpush1.bf16.msra.mxu0 %v6804
  %6903 = vmatprep.subr.bf16.mxu0 %v6809
  %6904 = vmatpush1.bf16.msra.mxu0 %v6808
  %6905 = vmatprep.subr.bf16.mxu0 %v6813
  %6906 = vmatpush1.bf16.msra.mxu0 %v6812
  %6907 = vmatprep.subr.bf16.mxu0 %v6817
  %6908 = vmatpush1.bf16.msra.mxu0 %v6816
  %6909 = vmatprep.subr.bf16.mxu0 0
  %6910 = vmatpush1.bf16.msra.mxu0 0
  %6911 = vmatprep.subr.bf16.mxu0 0
  %6912 = vmatpush1.bf16.msra.mxu0 0
  %6913 = vmatprep.subr.bf16.mxu0 0
  %6914 = vmatpush1.bf16.msra.mxu0 0
  %6915 = vmatprep.subr.bf16.mxu0 0
  %6916 = vmatpush1.bf16.msra.mxu0 0
  %6917 = vmatprep.subr.bf16.mxu0 0
  %6918 = vmatpush1.bf16.msra.mxu0 0
  %6919 = vmatprep.subr.bf16.mxu0 0
  %6920 = vmatpush1.bf16.msra.mxu0 0
  %6921 = vmatprep.subr.bf16.mxu0 0
  %6922 = vmatpush1.bf16.msra.mxu0 0
  %6923 = vmatprep.subr.bf16.mxu0 0
  %6924 = vmatpush1.bf16.msra.mxu0 0
  %6925 = vmatprep.mubr.bf16.mxu0 0
  %6926 = vmatmul.mubr.bf16.gmra.mrb[0].mxu0 %v6688
  %v6927 = vpop.f32.mrb[0].mxu0
  %v6928 = vadd.f32 %v6676, %v6927
  %v6929 = vpop.f32.mrb[0].mxu0
  %v6930 = vadd.f32 %v6678, %v6929
  %v6931 = vpop.f32.mrb[0].mxu0
  %v6932 = vadd.f32 %v6680, %v6931
  %v6933 = vpop.f32.mrb[0].mxu0
  %v6934 = vadd.f32 %v6682, %v6933
  %6935 = vdwg.mxu0
  %v6968 = vunpack.c.l.b16 %v271
  %v6969 = vunpack.c.h.b16 %v271
  %v6970 = vunpack.c.l.b16 %v272
  %v6971 = vunpack.c.h.b16 %v272
  %v6972 = vunpack.c.l.b16 %v273
  %v6973 = vunpack.c.h.b16 %v273
  %v6974 = vunpack.c.l.b16 %v274
  %v6975 = vunpack.c.h.b16 %v274
  %v6976 = vunpack.c.l.b16 %v275
  %v6977 = vunpack.c.h.b16 %v275
  %v6978 = vunpack.c.l.b16 %v276
  %v6979 = vunpack.c.h.b16 %v276
  %v6980 = vunpack.c.l.b16 %v277
  %v6981 = vunpack.c.h.b16 %v277
  %v6982 = vunpack.c.l.b16 %v278
  %v6983 = vunpack.c.h.b16 %v278
  %v6984 = vunpack.c.l.b16 %v279
  %v6985 = vunpack.c.h.b16 %v279
  %v6986 = vunpack.c.l.b16 %v280
  %v6987 = vunpack.c.h.b16 %v280
  %v6988 = vunpack.c.l.b16 %v281
  %v6989 = vunpack.c.h.b16 %v281
  %v6990 = vunpack.c.l.b16 %v282
  %v6991 = vunpack.c.h.b16 %v282
  %v6992 = vunpack.c.l.b16 %v283
  %v6993 = vunpack.c.h.b16 %v283
  %v6994 = vunpack.c.l.b16 %v284
  %v6995 = vunpack.c.h.b16 %v284
  %v6996 = vunpack.c.l.b16 %v285
  %v6997 = vunpack.c.h.b16 %v285
  %v6998 = vunpack.c.l.b16 %v286
  %v6999 = vunpack.c.h.b16 %v286
  %v7000 = vunpack.c.l.b16 %v287
  %v7001 = vunpack.c.h.b16 %v287
  %v7002 = vunpack.c.l.b16 %v288
  %v7003 = vunpack.c.h.b16 %v288
  %v7004 = vunpack.c.l.b16 %v289
  %v7005 = vunpack.c.h.b16 %v289
  %v7006 = vunpack.c.l.b16 %v290
  %v7007 = vunpack.c.h.b16 %v290
  %v7008 = vunpack.c.l.b16 %v291
  %v7009 = vunpack.c.h.b16 %v291
  %v7010 = vunpack.c.l.b16 %v292
  %v7011 = vunpack.c.h.b16 %v292
  %v7012 = vunpack.c.l.b16 %v293
  %v7013 = vunpack.c.h.b16 %v293
  %v7014 = vunpack.c.l.b16 %v294
  %v7015 = vunpack.c.h.b16 %v294
  %v7016 = vunpack.c.l.b16 %v295
  %v7017 = vunpack.c.h.b16 %v295
  %v7018 = vunpack.c.l.b16 %v296
  %v7019 = vunpack.c.h.b16 %v296
  %v7020 = vunpack.c.l.b16 %v297
  %v7021 = vunpack.c.h.b16 %v297
  %v7022 = vunpack.c.l.b16 %v298
  %v7023 = vunpack.c.h.b16 %v298
  %v7024 = vunpack.c.l.b16 %v299
  %v7025 = vunpack.c.h.b16 %v299
  %v7026 = vunpack.c.l.b16 %v300
  %v7027 = vunpack.c.h.b16 %v300
  %v7028 = vunpack.c.l.b16 %v301
  %v7029 = vunpack.c.h.b16 %v301
  %v7030 = vunpack.c.l.b16 %v302
  %v7031 = vunpack.c.h.b16 %v302
  %v7032 = vpack.c.b16 %v6972, %v6968
  %v7033 = vpack.c.b16 %v6973, %v6969
  %v7034 = vpack.c.b16 %v6974, %v6970
  %v7035 = vpack.c.b16 %v6975, %v6971
  %v7036 = vpack.c.b16 %v6980, %v6976
  %v7037 = vpack.c.b16 %v6981, %v6977
  %v7038 = vpack.c.b16 %v6982, %v6978
  %v7039 = vpack.c.b16 %v6983, %v6979
  %v7040 = vpack.c.b16 %v6988, %v6984
  %v7041 = vpack.c.b16 %v6989, %v6985
  %v7042 = vpack.c.b16 %v6990, %v6986
  %v7043 = vpack.c.b16 %v6991, %v6987
  %v7044 = vpack.c.b16 %v6996, %v6992
  %v7045 = vpack.c.b16 %v6997, %v6993
  %v7046 = vpack.c.b16 %v6998, %v6994
  %v7047 = vpack.c.b16 %v6999, %v6995
  %v7048 = vpack.c.b16 %v7004, %v7000
  %v7049 = vpack.c.b16 %v7005, %v7001
  %v7050 = vpack.c.b16 %v7006, %v7002
  %v7051 = vpack.c.b16 %v7007, %v7003
  %v7052 = vpack.c.b16 %v7012, %v7008
  %v7053 = vpack.c.b16 %v7013, %v7009
  %v7054 = vpack.c.b16 %v7014, %v7010
  %v7055 = vpack.c.b16 %v7015, %v7011
  %v7056 = vpack.c.b16 %v7020, %v7016
  %v7057 = vpack.c.b16 %v7021, %v7017
  %v7058 = vpack.c.b16 %v7022, %v7018
  %v7059 = vpack.c.b16 %v7023, %v7019
  %v7060 = vpack.c.b16 %v7028, %v7024
  %v7061 = vpack.c.b16 %v7029, %v7025
  %v7062 = vpack.c.b16 %v7030, %v7026
  %v7063 = vpack.c.b16 %v7031, %v7027
  %7096 = vmatprep.subr.bf16.mxu0 %v7033
  %7097 = vmatpush1.bf16.msra.mxu0 %v7032
  %7098 = vmatprep.subr.bf16.mxu0 %v7037
  %7099 = vmatpush1.bf16.msra.mxu0 %v7036
  %7100 = vmatprep.subr.bf16.mxu0 %v7041
  %7101 = vmatpush1.bf16.msra.mxu0 %v7040
  %7102 = vmatprep.subr.bf16.mxu0 %v7045
  %7103 = vmatpush1.bf16.msra.mxu0 %v7044
  %7104 = vmatprep.subr.bf16.mxu0 %v7049
  %7105 = vmatpush1.bf16.msra.mxu0 %v7048
  %7106 = vmatprep.subr.bf16.mxu0 %v7053
  %7107 = vmatpush1.bf16.msra.mxu0 %v7052
  %7108 = vmatprep.subr.bf16.mxu0 %v7057
  %7109 = vmatpush1.bf16.msra.mxu0 %v7056
  %7110 = vmatprep.subr.bf16.mxu0 %v7061
  %7111 = vmatpush1.bf16.msra.mxu0 %v7060
  %7112 = vmatprep.subr.bf16.mxu0 0
  %7113 = vmatpush1.bf16.msra.mxu0 0
  %7114 = vmatprep.subr.bf16.mxu0 0
  %7115 = vmatpush1.bf16.msra.mxu0 0
  %7116 = vmatprep.subr.bf16.mxu0 0
  %7117 = vmatpush1.bf16.msra.mxu0 0
  %7118 = vmatprep.subr.bf16.mxu0 0
  %7119 = vmatpush1.bf16.msra.mxu0 0
  %7120 = vmatprep.subr.bf16.mxu0 0
  %7121 = vmatpush1.bf16.msra.mxu0 0
  %7122 = vmatprep.subr.bf16.mxu0 0
  %7123 = vmatpush1.bf16.msra.mxu0 0
  %7124 = vmatprep.subr.bf16.mxu0 0
  %7125 = vmatpush1.bf16.msra.mxu0 0
  %7126 = vmatprep.subr.bf16.mxu0 0
  %7127 = vmatpush1.bf16.msra.mxu0 0
  %7128 = vmatprep.mubr.bf16.mxu0 0
  %7129 = vmatmul.mubr.bf16.gmra.mrb[0].mxu0 %v304
  %v7130 = vpop.f32.mrb[0].mxu0
  %v7131 = vadd.f32 0.0, %v7130
  %v7132 = vpop.f32.mrb[0].mxu0
  %v7133 = vadd.f32 0.0, %v7132
  %v7134 = vpop.f32.mrb[0].mxu0
  %v7135 = vadd.f32 0.0, %v7134
  %v7136 = vpop.f32.mrb[0].mxu0
  %v7137 = vadd.f32 0.0, %v7136
  %7138 = vdwg.mxu0
  %7139 = vmatprep.subr.bf16.mxu0 %v7035
  %7140 = vmatpush1.bf16.msra.mxu0 %v7034
  %7141 = vmatprep.subr.bf16.mxu0 %v7039
  %7142 = vmatpush1.bf16.msra.mxu0 %v7038
  %7143 = vmatprep.subr.bf16.mxu0 %v7043
  %7144 = vmatpush1.bf16.msra.mxu0 %v7042
  %7145 = vmatprep.subr.bf16.mxu0 %v7047
  %7146 = vmatpush1.bf16.msra.mxu0 %v7046
  %7147 = vmatprep.subr.bf16.mxu0 %v7051
  %7148 = vmatpush1.bf16.msra.mxu0 %v7050
  %7149 = vmatprep.subr.bf16.mxu0 %v7055
  %7150 = vmatpush1.bf16.msra.mxu0 %v7054
  %7151 = vmatprep.subr.bf16.mxu0 %v7059
  %7152 = vmatpush1.bf16.msra.mxu0 %v7058
  %7153 = vmatprep.subr.bf16.mxu0 %v7063
  %7154 = vmatpush1.bf16.msra.mxu0 %v7062
  %7155 = vmatprep.subr.bf16.mxu0 0
  %7156 = vmatpush1.bf16.msra.mxu0 0
  %7157 = vmatprep.subr.bf16.mxu0 0
  %7158 = vmatpush1.bf16.msra.mxu0 0
  %7159 = vmatprep.subr.bf16.mxu0 0
  %7160 = vmatpush1.bf16.msra.mxu0 0
  %7161 = vmatprep.subr.bf16.mxu0 0
  %7162 = vmatpush1.bf16.msra.mxu0 0
  %7163 = vmatprep.subr.bf16.mxu0 0
  %7164 = vmatpush1.bf16.msra.mxu0 0
  %7165 = vmatprep.subr.bf16.mxu0 0
  %7166 = vmatpush1.bf16.msra.mxu0 0
  %7167 = vmatprep.subr.bf16.mxu0 0
  %7168 = vmatpush1.bf16.msra.mxu0 0
  %7169 = vmatprep.subr.bf16.mxu0 0
  %7170 = vmatpush1.bf16.msra.mxu0 0
  %7171 = vmatprep.mubr.bf16.mxu0 0
  %7172 = vmatmul.mubr.bf16.gmra.mrb[0].mxu0 %v304
  %v7173 = vpop.f32.mrb[0].mxu0
  %v7174 = vadd.f32 0.0, %v7173
  %v7175 = vpop.f32.mrb[0].mxu0
  %v7176 = vadd.f32 0.0, %v7175
  %v7177 = vpop.f32.mrb[0].mxu0
  %v7178 = vadd.f32 0.0, %v7177
  %v7179 = vpop.f32.mrb[0].mxu0
  %v7180 = vadd.f32 0.0, %v7179
  %7181 = vdwg.mxu0
  %v7182 = vadd.f32 %v6885, %v7131
  %v7183 = vadd.f32 %v6887, %v7133
  %v7184 = vadd.f32 %v6928, %v7174
  %v7185 = vadd.f32 %v6930, %v7176
  %v7186 = vadd.f32 %v6889, %v7135
  %v7187 = vadd.f32 %v6891, %v7137
  %v7188 = vadd.f32 %v6932, %v7178
  %v7189 = vadd.f32 %v6934, %v7180
  %v7191 = vlaneseq
  %v7192 = vshrl.u32 %v7191, 7
  %v7193 = vsub.s32 0, %v7192
  %v7194 = vrot.slane %v303, %v7193
  %v7195 = vlaneseq
  %v7196 = vshrl.u32 %v7195, 7
  %v7197 = vsub.s32 1, %v7196
  %v7198 = vrot.slane %v303, %v7197
  %v7199 = vlaneseq
  %v7200 = vshrl.u32 %v7199, 7
  %v7201 = vsub.s32 2, %v7200
  %v7202 = vrot.slane %v303, %v7201
  %v7203 = vlaneseq
  %v7204 = vshrl.u32 %v7203, 7
  %v7205 = vsub.s32 3, %v7204
  %v7206 = vrot.slane %v303, %v7205
  %v7211 = vadd.f32 %v7182, %v7194
  %v7212 = vadd.f32 %v7183, %v7198
  %v7213 = vadd.f32 %v7184, %v7202
  %v7214 = vadd.f32 %v7185, %v7206
  %v7215 = vadd.f32 %v7186, %v7194
  %v7216 = vadd.f32 %v7187, %v7198
  %v7217 = vadd.f32 %v7188, %v7202
  %v7218 = vadd.f32 %v7189, %v7206
  %v7219 = vxor.u32 %v7211, 2147483648
  %v7220 = vxor.u32 %v7215, 2147483648
  %v7221 = vmul.f32 %v7219, 1.442695
  %v7222 = vpow.pop %v7221
  %v7223 = vmul.f32 %v7220, 1.442695
  %v7224 = vpow.pop %v7223
  %v7225 = vadd.f32 %v7222, 1.0
  %v7226 = vadd.f32 %v7224, 1.0
  %v7227 = vrcp.pop %v7225
  %v7228 = vmul.f32 1.0, %v7227
  %v7229 = vrcp.pop %v7226
  %v7230 = vmul.f32 1.0, %v7229
  %v7231 = vxor.u32 %v7212, 2147483648
  %v7232 = vxor.u32 %v7216, 2147483648
  %v7233 = vmul.f32 %v7231, 1.442695
  %v7234 = vpow.pop %v7233
  %v7235 = vmul.f32 %v7232, 1.442695
  %v7236 = vpow.pop %v7235
  %v7237 = vadd.f32 %v7234, 1.0
  %v7238 = vadd.f32 %v7236, 1.0
  %v7239 = vrcp.pop %v7237
  %v7240 = vmul.f32 1.0, %v7239
  %v7241 = vrcp.pop %v7238
  %v7242 = vmul.f32 1.0, %v7241
  %v7243 = vtanh.pop %v7213
  %v7244 = vtanh.pop %v7217
  %v7245 = vxor.u32 %v7214, 2147483648
  %v7246 = vxor.u32 %v7218, 2147483648
  %v7247 = vmul.f32 %v7245, 1.442695
  %v7248 = vpow.pop %v7247
  %v7249 = vmul.f32 %v7246, 1.442695
  %v7250 = vpow.pop %v7249
  %v7251 = vadd.f32 %v7248, 1.0
  %v7252 = vadd.f32 %v7250, 1.0
  %v7253 = vrcp.pop %v7251
  %v7254 = vmul.f32 1.0, %v7253
  %v7255 = vrcp.pop %v7252
  %v7256 = vmul.f32 1.0, %v7255
  %v7257 = vmul.f32 %v7240, %v57
  %v7258 = vmul.f32 %v7242, %v58
  %v7259 = vmul.f32 %v7228, %v7243
  %v7260 = vmul.f32 %v7230, %v7244
  %v7261 = vadd.f32 %v7257, %v7259
  %v7262 = vadd.f32 %v7258, %v7260
  %v7263 = vtanh.pop %v7261
  %v7264 = vtanh.pop %v7262
  %v7265 = vmul.f32 %v7254, %v7263
  %v7266 = vmul.f32 %v7256, %v7264
  %7267 = vst [vmem:[%s14] sm:$0xff] %v7265
  %7268 = vst [vmem:[%s14 + $0x8] sm:$0xff] %v7266
  %7269 = vst [vmem:[%s15] sm:$0xff] %v7261
  %7270 = vst [vmem:[%s15 + $0x8] sm:$0xff] %v7262
  %v7271 = vpack.c.bf16 %v7266, %v7265
  %v7273 = vunpack.c.l.b16 %v7271
  %v7274 = vunpack.c.h.b16 %v7271
  %v7275 = vpack.c.b16 %v7273, %v7273
  %v7276 = vpack.c.b16 %v7274, %v7274
  %7279 = vst [vmem:[%s16] sm:$0xf] %v7275
  %7280 = vst [vmem:[%s16 + $0x4] sm:$0xf] %v7276
  // Predicated region
  $region58: #{decoder_with_attention_step.2} parent=0 // pred_check
    _
  $region59: #{decoder_with_attention_step.2} parent=0 // pred_check_branch
    %7282 = sbr.rel (0) target = $region61
  $region60: #{decoder_with_attention_step.2} parent=0 // pred_region
    _
  $region61: #{decoder_with_attention_step.2} parent=0 // pred_fallthru
    _
  // Predicated region
  $region62: #{decoder_with_attention_step.2} parent=0 // pred_check
    _
  $region63: #{decoder_with_attention_step.2} parent=0 // pred_check_branch
    %7284 = sbr.rel (0) target = $region65
  $region64: #{decoder_with_attention_step.2} parent=0 // pred_region
    _
  $region65: #{decoder_with_attention_step.2} parent=0 // pred_fallthru
    _
  // Predicated region
  $region66: #{decoder_with_attention_step.2} parent=0 // pred_check
    _
  $region67: #{decoder_with_attention_step.2} parent=0 // pred_check_branch
    %7286 = sbr.rel (0) target = $region69
  $region68: #{decoder_with_attention_step.2} parent=0 // pred_region
    _
  $region69: #{decoder_with_attention_step.2} parent=0 // pred_fallthru
    _
  // Predicated region
  $region70: #{decoder_with_attention_step.2} parent=0 // pred_check
    _
  $region71: #{decoder_with_attention_step.2} parent=0 // pred_check_branch
    %7288 = sbr.rel (0) target = $region73
  $region72: #{decoder_with_attention_step.2} parent=0 // pred_region
    _
  $region73: #{decoder_with_attention_step.2} parent=0 // pred_fallthru
    _
  // Predicated region
  $region74: #{decoder_with_attention_step.2} parent=0 // pred_check
    _
  $region75: #{decoder_with_attention_step.2} parent=0 // pred_check_branch
    %7290 = sbr.rel (0) target = $region77
  $region76: #{decoder_with_attention_step.2} parent=0 // pred_region
    _
  $region77: #{decoder_with_attention_step.2} parent=0 // pred_fallthru
    _
  // Predicated region
  $region78: #{decoder_with_attention_step.2} parent=0 // pred_check
    _
  $region79: #{decoder_with_attention_step.2} parent=0 // pred_check_branch
    %7292 = sbr.rel (0) target = $region81
  $region80: #{decoder_with_attention_step.2} parent=0 // pred_region
    _
  $region81: #{decoder_with_attention_step.2} parent=0 // pred_fallthru
    _

</llo_original>
